<compile_context>
chip_gen: v7x
topology: tpu7x:2x2x1
jax: 0.10.0
libtpu: 0.0.40
codegen_flags: <defaults>
</compile_context>

<pallas_src>
import functools

import jax
import jax.numpy as jnp
from jax import lax
from jax.experimental import pallas as pl
from jax.experimental.pallas import tpu as pltpu

EPS = 1e-5


def _rows(ref, kw, start, count, stride):
    """(count, Wo, C) leading-axis slice of staging plane `kw`."""
    if stride == 1:
        return ref[kw, pl.ds(start, count), :, :]
    # TODO(synk): strided leading-axis slice -- stride>1 path is untested.
    return ref[kw, pl.ds(start, count, stride=stride), :, :]


def _basic_block_kernel(*refs, stride, proj, row_chunk, compute_dtype):
    """Fused BasicBlock for one image (one grid step)."""
    if proj:
        (x_ref, w1_ref, b1_ref, w2_ref, b2_ref, ws_ref, bs_ref,
         o_ref, xs_ref, hs_ref) = refs
    else:
        (x_ref, w1_ref, b1_ref, w2_ref, b2_ref,
         o_ref, xs_ref, hs_ref) = refs
        ws_ref = bs_ref = None

    _, H, W, Cin = x_ref.shape
    _, Ho, Wo, Cout = o_ref.shape
    s = stride
    cdt = compute_dtype

    # ------------------------------------------------------------------
    # Stage the three kw-shifted views of the zero-padded input once:
    #   xs_ref[kw, r, wo, :] == xpad[r, kw + s*wo, :]   (xpad = 1-px pad)
    # Only the halo rows / invalid columns are zeroed (halo-only zeroing),
    # redone every grid step so each program is megacore-safe.
    # ------------------------------------------------------------------
    for kw in range(3):
        xs_ref[kw, pl.ds(0, 1), :, :] = jnp.zeros((1, Wo, Cin), cdt)
        xs_ref[kw, pl.ds(H + 1, 1), :, :] = jnp.zeros((1, Wo, Cin), cdt)
        wo_lo = 1 if kw == 0 else 0               # left pad column(s)
        wo_hi = min(Wo - 1, (W - kw) // s)        # last wo with a valid col
        nv = wo_hi - wo_lo + 1
        if wo_lo > 0:
            xs_ref[kw, pl.ds(1, H), pl.ds(0, wo_lo), :] = (
                jnp.zeros((H, wo_lo, Cin), cdt))
        if wo_hi < Wo - 1:
            nz = Wo - 1 - wo_hi
            xs_ref[kw, pl.ds(1, H), pl.ds(wo_hi + 1, nz), :] = (
                jnp.zeros((H, nz, Cin), cdt))
        if nv > 0:
            c0 = kw - 1 + s * wo_lo
            if s == 1:
                src = x_ref[0, :, pl.ds(c0, nv), :]
            else:
                # TODO(synk): strided sublane slice; stride>1 path untested.
                src = x_ref[0, :, pl.ds(c0, nv, stride=s), :]
            xs_ref[kw, pl.ds(1, H), pl.ds(wo_lo, nv), :] = src.astype(cdt)

    # Halo rows of the h staging planes (interior is written per chunk).
    for kw in range(3):
        hs_ref[kw, pl.ds(0, 1), :, :] = jnp.zeros((1, Wo, Cout), cdt)
        hs_ref[kw, pl.ds(Ho + 1, 1), :, :] = jnp.zeros((1, Wo, Cout), cdt)

    # Static row-chunk schedule (keeps f32 accumulators in vregs).
    chunks = []
    r0 = 0
    while r0 < Ho:
        chunks.append((r0, min(row_chunk, Ho - r0)))
        r0 += row_chunk

    # ---- pass 1: conv1 (3x3 / stride s) + folded-BN bias + ReLU ----------
    for r0, R in chunks:
        Mc = R * Wo
        acc = jnp.zeros((Mc, Cout), jnp.float32)
        for kh in range(3):
            for kw in range(3):
                t = _rows(xs_ref, kw, kh + s * r0, R, s).reshape(Mc, Cin)
                acc = acc + jnp.dot(t, w1_ref[kh, kw],
                                    preferred_element_type=jnp.float32)
        hc = jnp.maximum(acc + b1_ref[...], 0.0).astype(cdt).reshape(R, Wo, Cout)

        # Scatter h into its three kw-shifted staging planes (conv2, stride 1):
        #   hs_ref[kw, 1+ho, wo, :] == hpad[1+ho, kw+wo, :]
        rows = pl.ds(1 + r0, R)
        hs_ref[1, rows, :, :] = hc
        if Wo > 1:
            hs_ref[0, rows, pl.ds(1, Wo - 1), :] = hc[:, :Wo - 1, :]
            hs_ref[2, rows, pl.ds(0, Wo - 1), :] = hc[:, 1:, :]
        hs_ref[0, rows, pl.ds(0, 1), :] = jnp.zeros((R, 1, Cout), cdt)
        hs_ref[2, rows, pl.ds(Wo - 1, 1), :] = jnp.zeros((R, 1, Cout), cdt)

    # ---- pass 2: conv2 (3x3 / 1) + BN bias, shortcut, residual, ReLU -----
    for r0, R in chunks:
        Mc = R * Wo
        acc = jnp.zeros((Mc, Cout), jnp.float32)
        for kh in range(3):
            for kw in range(3):
                t = _rows(hs_ref, kw, kh + r0, R, 1).reshape(Mc, Cout)
                acc = acc + jnp.dot(t, w2_ref[kh, kw],
                                    preferred_element_type=jnp.float32)
        y = acc + b2_ref[...]

        if proj:
            if s == 1:
                sc_in = x_ref[0, pl.ds(r0, R), :, :].reshape(Mc, Cin)
            else:
                # Center staged tap == x[s*ho, s*wo, :] (1x1-conv shortcut).
                sc_in = _rows(xs_ref, 1, 1 + s * r0, R, s).reshape(Mc, Cin)
            y = y + jnp.dot(sc_in, ws_ref[...],
                            preferred_element_type=jnp.float32) + bs_ref[...]
        else:
            y = y + x_ref[0, pl.ds(r0, R), :, :].reshape(Mc, Cout).astype(jnp.float32)

        o_ref[0, pl.ds(r0, R), :, :] = (
            jnp.maximum(y, 0.0).reshape(R, Wo, Cout).astype(o_ref.dtype))


# ---------------------------------------------------------------------------
# Wrapper: BN folding, bf16 cast, BlockSpecs / grid, VMEM budget.
# ---------------------------------------------------------------------------
def fold_bn(gamma, beta, mean, var, eps=EPS):
    scale = gamma / jnp.sqrt(var + eps)
    bias = beta - mean * scale
    return scale, bias


def basic_block(x, p, *, stride=1, compute_dtype=jnp.bfloat16, row_chunk=None):
    """Pallas implementation of BasicBlock.forward (NHWC activations)."""
    N, H, W, Cin = x.shape
    Cout = p["w1"].shape[-1]
    Ho = (H - 1) // stride + 1
    Wo = (W - 1) // stride + 1
    proj = (stride != 1) or (Cin != Cout)
    if row_chunk is None:
        # ~16K f32 accumulator elements per chunk -> fits in vregs.
        row_chunk = max(1, min(Ho, 16384 // max(Wo * Cout, 1)))

    # Fold BN scale into the conv weights; in-kernel epilogue is add-bias only.
    s1, b1 = fold_bn(*p["bn1"])
    s2, b2 = fold_bn(*p["bn2"])
    w1f = (p["w1"] * s1).astype(compute_dtype)
    w2f = (p["w2"] * s2).astype(compute_dtype)
    b1 = b1.reshape(1, Cout).astype(jnp.float32)
    b2 = b2.reshape(1, Cout).astype(jnp.float32)

    # bf16 MXU operands by default (f32 accumulation in-kernel): halves the
    # HBM read of x and the VMEM activation blocks.
    x_in = x.astype(compute_dtype)

    inputs = [x_in, w1f, b1, w2f, b2]
    in_specs = [
        pl.BlockSpec((1, H, W, Cin), lambda n: (n, 0, 0, 0)),
        pl.BlockSpec((3, 3, Cin, Cout), lambda n: (0, 0, 0, 0)),
        pl.BlockSpec((1, Cout), lambda n: (0, 0)),
        pl.BlockSpec((3, 3, Cout, Cout), lambda n: (0, 0, 0, 0)),
        pl.BlockSpec((1, Cout), lambda n: (0, 0)),
    ]
    if proj:
        ss, bs = fold_bn(*p["bns"])
        wsf = (p["ws"] * ss).astype(compute_dtype)
        bs = bs.reshape(1, Cout).astype(jnp.float32)
        inputs += [wsf, bs]
        in_specs += [pl.BlockSpec((Cin, Cout), lambda n: (0, 0)),
                     pl.BlockSpec((1, Cout), lambda n: (0, 0))]

    # Explicit scoped-VMEM budget sized from the real footprint, with
    # headroom, capped below v7x's 64 MiB physical VMEM.
    isz = jnp.dtype(compute_dtype).itemsize
    osz = jnp.dtype(x.dtype).itemsize
    scratch_bytes = (3 * (H + 2) * Wo * Cin + 3 * (Ho + 2) * Wo * Cout) * isz
    block_bytes = 2 * (H * W * Cin * isz + Ho * Wo * Cout * osz
                       + (9 * Cin * Cout + 9 * Cout * Cout + Cin * Cout) * isz)
    vmem_limit = int(min(56 * 2 ** 20,
                         max(32 * 2 ** 20, 2 * (scratch_bytes + block_bytes))))

    kernel = functools.partial(_basic_block_kernel, stride=stride, proj=proj,
                               row_chunk=row_chunk, compute_dtype=compute_dtype)
    return pl.pallas_call(
        kernel,
        out_shape=jax.ShapeDtypeStruct((N, Ho, Wo, Cout), x.dtype),
        grid=(N,),
        in_specs=in_specs,
        out_specs=pl.BlockSpec((1, Ho, Wo, Cout), lambda n: (n, 0, 0, 0)),
        scratch_shapes=[
            pltpu.VMEM((3, H + 2, Wo, Cin), compute_dtype),     # kw-shifted x
            pltpu.VMEM((3, Ho + 2, Wo, Cout), compute_dtype),   # kw-shifted h
        ],
        compiler_params=pltpu.CompilerParams(
            dimension_semantics=("parallel",),
            vmem_limit_bytes=vmem_limit),
    )(*inputs)


# ---------------------------------------------------------------------------
# Pure-JAX reference (correctness check) and deterministic parameter init.
# ---------------------------------------------------------------------------
def _ref_bn(x, bn):
    g, b, m, v = bn
    return (x - m) / jnp.sqrt(v + EPS) * g + b


def ref_basic_block(x, p, *, stride=1):
    def conv(x, w, s, pad):
        return lax.conv_general_dilated(
            x, w, (s, s), pad, dimension_numbers=("NHWC", "HWIO", "NHWC"),
            precision=lax.Precision.HIGHEST)
    h = jax.nn.relu(_ref_bn(conv(x, p["w1"], stride, ((1, 1), (1, 1))), p["bn1"]))
    h = _ref_bn(conv(h, p["w2"], 1, ((1, 1), (1, 1))), p["bn2"])
    Cin, Cout = x.shape[-1], p["w1"].shape[-1]
    if stride != 1 or Cin != Cout:
        ws = p["ws"].reshape(1, 1, Cin, Cout)
        sc = _ref_bn(conv(x, ws, stride, ((0, 0), (0, 0))), p["bns"])
    else:
        sc = x
    return jax.nn.relu(h + sc)


def init_params(key, cin, cout):
    ks = jax.random.split(key, 8)

    def bn_params(k):
        k0, k1, k2, k3 = jax.random.split(k, 4)
        gamma = jax.random.uniform(k0, (cout,), jnp.float32, 0.5, 1.5)
        beta = jax.random.normal(k1, (cout,), jnp.float32) * 0.1
        mean = jax.random.normal(k2, (cout,), jnp.float32) * 0.1
        var = jax.random.uniform(k3, (cout,), jnp.float32, 0.5, 1.5)
        return (gamma, beta, mean, var)

    return {
        "w1": jax.random.normal(ks[0], (3, 3, cin, cout), jnp.float32) * 0.1,
        "bn1": bn_params(ks[1]),
        "w2": jax.random.normal(ks[2], (3, 3, cout, cout), jnp.float32) * 0.1,
        "bn2": bn_params(ks[3]),
        "ws": jax.random.normal(ks[4], (cin, cout), jnp.float32) * 0.1,
        "bns": bn_params(ks[5]),
    }


if __name__ == "__main__":
    key = jax.random.PRNGKey(0)
    N, H, W, Cin, Cout = 2, 16, 16, 4, 8

    kx, kp, kx2, kp2 = jax.random.split(key, 4)
    x = jax.random.normal(kx, (N, H, W, Cin), jnp.float32)      # NHWC
    params = init_params(kp, Cin, Cout)
    ref = ref_basic_block(x, params, stride=1)

    # 1) projection shortcut, default bf16 MXU operands + f32 accumulation.
    out = jax.block_until_ready(basic_block(x, params, stride=1))
    assert out.shape == (N, H, W, Cout), out.shape
    err = float(jnp.max(jnp.abs(out - ref)))
    assert err < 2e-1, f"proj/bf16 max abs err {err}"

    # 2) projection shortcut, f32 operands, even multi-chunk accumulation.
    outf = jax.block_until_ready(
        basic_block(x, params, stride=1, compute_dtype=jnp.float32,
                    row_chunk=8))
    errf = float(jnp.max(jnp.abs(outf - ref)))
    assert errf < 1e-3, f"proj/f32 max abs err {errf}"

    # 3) identity shortcut (Cin == Cout), f32, uneven row chunks (7, 7, 2).
    xi = jax.random.normal(kx2, (N, H, W, Cout), jnp.float32)
    pi = init_params(kp2, Cout, Cout)
    outi = jax.block_until_ready(
        basic_block(xi, pi, stride=1, compute_dtype=jnp.float32, row_chunk=7))
    refi = ref_basic_block(xi, pi, stride=1)
    erri = float(jnp.max(jnp.abs(outi - refi)))
    assert outi.shape == (N, H, W, Cout), outi.shape
    assert erri < 1e-3, f"identity/f32 max abs err {erri}"

    print("KERNEL_OK")
</pallas_src>

<mosaic_0001>
module attributes {stable_mosaic.version = 11 : i64} {
  func.func @_basic_block_kernel(%arg0: i32, %arg1: memref<1x16x16x4xbf16, #tpu.memory_space<vmem>>, %arg2: memref<3x3x4x8xbf16, #tpu.memory_space<vmem>>, %arg3: memref<1x8xf32, #tpu.memory_space<vmem>>, %arg4: memref<3x3x8x8xbf16, #tpu.memory_space<vmem>>, %arg5: memref<1x8xf32, #tpu.memory_space<vmem>>, %arg6: memref<4x8xbf16, #tpu.memory_space<vmem>>, %arg7: memref<1x8xf32, #tpu.memory_space<vmem>>, %arg8: memref<1x16x16x8xf32, #tpu.memory_space<vmem>>, %arg9: memref<3x18x16x4xbf16, #tpu.memory_space<vmem>>, %arg10: memref<3x18x16x8xbf16, #tpu.memory_space<vmem>>) attributes {dimension_semantics = [#tpu.dimension_semantics<parallel>], iteration_bounds = array<i64: 2>, scalar_prefetch = 0 : i64, scratch_operands = 2 : i64, tpu.core_type = #tpu.core_type<tc>, window_params = [{transform_indices = @transform_0, window_bounds = array<i64: 1, 16, 16, 4>}, {pipeline_mode = #tpu.pipeline_mode<synchronous>, transform_indices = @transform_1, window_bounds = array<i64: 3, 3, 4, 8>}, {pipeline_mode = #tpu.pipeline_mode<synchronous>, transform_indices = @transform_2, window_bounds = array<i64: 1, 8>}, {pipeline_mode = #tpu.pipeline_mode<synchronous>, transform_indices = @transform_3, window_bounds = array<i64: 3, 3, 8, 8>}, {pipeline_mode = #tpu.pipeline_mode<synchronous>, transform_indices = @transform_4, window_bounds = array<i64: 1, 8>}, {pipeline_mode = #tpu.pipeline_mode<synchronous>, transform_indices = @transform_5, window_bounds = array<i64: 4, 8>}, {pipeline_mode = #tpu.pipeline_mode<synchronous>, transform_indices = @transform_6, window_bounds = array<i64: 1, 8>}, {transform_indices = @transform_7, window_bounds = array<i64: 1, 16, 16, 8>}]} {
    %cst = arith.constant 0.000000e+00 : bf16
    %0 = vector.broadcast %cst : bf16 to vector<1x16x4xbf16>
    %c0 = arith.constant 0 : index
    %c0_0 = arith.constant 0 : index
    %c0_1 = arith.constant 0 : index
    %c0_2 = arith.constant 0 : index
    %1 = vector.load %arg9[%c0, %c0_0, %c0_1, %c0_2] : memref<3x18x16x4xbf16, #tpu.memory_space<vmem>>, vector<1x1x16x4xbf16>
    %2 = vector.shape_cast %1 : vector<1x1x16x4xbf16> to vector<1x16x4xbf16>
    %3 = vector.shape_cast %0 : vector<1x16x4xbf16> to vector<1x1x16x4xbf16>
    tpu.vector_store %arg9[%c0, %c0_0, %c0_1, %c0_2], %3 {strides = array<i32>} : memref<3x18x16x4xbf16, #tpu.memory_space<vmem>>, vector<1x1x16x4xbf16>,
    %cst_3 = arith.constant 0.000000e+00 : bf16
    %4 = vector.broadcast %cst_3 : bf16 to vector<1x16x4xbf16>
    %c0_4 = arith.constant 0 : index
    %c17 = arith.constant 17 : index
    %c0_5 = arith.constant 0 : index
    %c0_6 = arith.constant 0 : index
    %5 = vector.load %arg9[%c0_4, %c17, %c0_5, %c0_6] : memref<3x18x16x4xbf16, #tpu.memory_space<vmem>>, vector<1x1x16x4xbf16>
    %6 = vector.shape_cast %5 : vector<1x1x16x4xbf16> to vector<1x16x4xbf16>
    %7 = vector.shape_cast %4 : vector<1x16x4xbf16> to vector<1x1x16x4xbf16>
    tpu.vector_store %arg9[%c0_4, %c17, %c0_5, %c0_6], %7 {strides = array<i32>} : memref<3x18x16x4xbf16, #tpu.memory_space<vmem>>, vector<1x1x16x4xbf16>,
    %cst_7 = arith.constant 0.000000e+00 : bf16
    %8 = vector.broadcast %cst_7 : bf16 to vector<16x1x4xbf16>
    %c0_8 = arith.constant 0 : index
    %c1 = arith.constant 1 : index
    %c0_9 = arith.constant 0 : index
    %c0_10 = arith.constant 0 : index
    %9 = vector.load %arg9[%c0_8, %c1, %c0_9, %c0_10] : memref<3x18x16x4xbf16, #tpu.memory_space<vmem>>, vector<1x16x1x4xbf16>
    %10 = vector.shape_cast %9 : vector<1x16x1x4xbf16> to vector<16x1x4xbf16>
    %11 = vector.shape_cast %8 : vector<16x1x4xbf16> to vector<1x16x1x4xbf16>
    tpu.vector_store %arg9[%c0_8, %c1, %c0_9, %c0_10], %11 {strides = array<i32>} : memref<3x18x16x4xbf16, #tpu.memory_space<vmem>>, vector<1x16x1x4xbf16>,
    %c0_11 = arith.constant 0 : index
    %c0_12 = arith.constant 0 : index
    %c0_13 = arith.constant 0 : index
    %c0_14 = arith.constant 0 : index
    %12 = vector.load %arg1[%c0_11, %c0_12, %c0_13, %c0_14] : memref<1x16x16x4xbf16, #tpu.memory_space<vmem>>, vector<1x16x15x4xbf16>
    %13 = vector.shape_cast %12 : vector<1x16x15x4xbf16> to vector<16x15x4xbf16>
    %c0_15 = arith.constant 0 : index
    %c1_16 = arith.constant 1 : index
    %c1_17 = arith.constant 1 : index
    %c0_18 = arith.constant 0 : index
    %14 = vector.load %arg9[%c0_15, %c1_16, %c1_17, %c0_18] : memref<3x18x16x4xbf16, #tpu.memory_space<vmem>>, vector<1x16x15x4xbf16>
    %15 = vector.shape_cast %14 : vector<1x16x15x4xbf16> to vector<16x15x4xbf16>
    %16 = vector.shape_cast %13 : vector<16x15x4xbf16> to vector<1x16x15x4xbf16>
    tpu.vector_store %arg9[%c0_15, %c1_16, %c1_17, %c0_18], %16 {strides = array<i32>} : memref<3x18x16x4xbf16, #tpu.memory_space<vmem>>, vector<1x16x15x4xbf16>,
    %cst_19 = arith.constant 0.000000e+00 : bf16
    %17 = vector.broadcast %cst_19 : bf16 to vector<1x16x4xbf16>
    %c1_20 = arith.constant 1 : index
    %c0_21 = arith.constant 0 : index
    %c0_22 = arith.constant 0 : index
    %c0_23 = arith.constant 0 : index
    %18 = vector.load %arg9[%c1_20, %c0_21, %c0_22, %c0_23] : memref<3x18x16x4xbf16, #tpu.memory_space<vmem>>, vector<1x1x16x4xbf16>
    %19 = vector.shape_cast %18 : vector<1x1x16x4xbf16> to vector<1x16x4xbf16>
    %20 = vector.shape_cast %17 : vector<1x16x4xbf16> to vector<1x1x16x4xbf16>
    tpu.vector_store %arg9[%c1_20, %c0_21, %c0_22, %c0_23], %20 {strides = array<i32>} : memref<3x18x16x4xbf16, #tpu.memory_space<vmem>>, vector<1x1x16x4xbf16>,
    %cst_24 = arith.constant 0.000000e+00 : bf16
    %21 = vector.broadcast %cst_24 : bf16 to vector<1x16x4xbf16>
    %c1_25 = arith.constant 1 : index
    %c17_26 = arith.constant 17 : index
    %c0_27 = arith.constant 0 : index
    %c0_28 = arith.constant 0 : index
    %22 = vector.load %arg9[%c1_25, %c17_26, %c0_27, %c0_28] : memref<3x18x16x4xbf16, #tpu.memory_space<vmem>>, vector<1x1x16x4xbf16>
    %23 = vector.shape_cast %22 : vector<1x1x16x4xbf16> to vector<1x16x4xbf16>
    %24 = vector.shape_cast %21 : vector<1x16x4xbf16> to vector<1x1x16x4xbf16>
    tpu.vector_store %arg9[%c1_25, %c17_26, %c0_27, %c0_28], %24 {strides = array<i32>} : memref<3x18x16x4xbf16, #tpu.memory_space<vmem>>, vector<1x1x16x4xbf16>,
    %c0_29 = arith.constant 0 : index
    %c0_30 = arith.constant 0 : index
    %c0_31 = arith.constant 0 : index
    %c0_32 = arith.constant 0 : index
    %25 = vector.load %arg1[%c0_29, %c0_30, %c0_31, %c0_32] : memref<1x16x16x4xbf16, #tpu.memory_space<vmem>>, vector<1x16x16x4xbf16>
    %26 = vector.shape_cast %25 : vector<1x16x16x4xbf16> to vector<16x16x4xbf16>
    %c1_33 = arith.constant 1 : index
    %c1_34 = arith.constant 1 : index
    %c0_35 = arith.constant 0 : index
    %c0_36 = arith.constant 0 : index
    %27 = vector.load %arg9[%c1_33, %c1_34, %c0_35, %c0_36] : memref<3x18x16x4xbf16, #tpu.memory_space<vmem>>, vector<1x16x16x4xbf16>
    %28 = vector.shape_cast %27 : vector<1x16x16x4xbf16> to vector<16x16x4xbf16>
    %29 = vector.shape_cast %26 : vector<16x16x4xbf16> to vector<1x16x16x4xbf16>
    tpu.vector_store %arg9[%c1_33, %c1_34, %c0_35, %c0_36], %29 {strides = array<i32>} : memref<3x18x16x4xbf16, #tpu.memory_space<vmem>>, vector<1x16x16x4xbf16>,
    %cst_37 = arith.constant 0.000000e+00 : bf16
    %30 = vector.broadcast %cst_37 : bf16 to vector<1x16x4xbf16>
    %c2 = arith.constant 2 : index
    %c0_38 = arith.constant 0 : index
    %c0_39 = arith.constant 0 : index
    %c0_40 = arith.constant 0 : index
    %31 = vector.load %arg9[%c2, %c0_38, %c0_39, %c0_40] : memref<3x18x16x4xbf16, #tpu.memory_space<vmem>>, vector<1x1x16x4xbf16>
    %32 = vector.shape_cast %31 : vector<1x1x16x4xbf16> to vector<1x16x4xbf16>
    %33 = vector.shape_cast %30 : vector<1x16x4xbf16> to vector<1x1x16x4xbf16>
    tpu.vector_store %arg9[%c2, %c0_38, %c0_39, %c0_40], %33 {strides = array<i32>} : memref<3x18x16x4xbf16, #tpu.memory_space<vmem>>, vector<1x1x16x4xbf16>,
    %cst_41 = arith.constant 0.000000e+00 : bf16
    %34 = vector.broadcast %cst_41 : bf16 to vector<1x16x4xbf16>
    %c2_42 = arith.constant 2 : index
    %c17_43 = arith.constant 17 : index
    %c0_44 = arith.constant 0 : index
    %c0_45 = arith.constant 0 : index
    %35 = vector.load %arg9[%c2_42, %c17_43, %c0_44, %c0_45] : memref<3x18x16x4xbf16, #tpu.memory_space<vmem>>, vector<1x1x16x4xbf16>
    %36 = vector.shape_cast %35 : vector<1x1x16x4xbf16> to vector<1x16x4xbf16>
    %37 = vector.shape_cast %34 : vector<1x16x4xbf16> to vector<1x1x16x4xbf16>
    tpu.vector_store %arg9[%c2_42, %c17_43, %c0_44, %c0_45], %37 {strides = array<i32>} : memref<3x18x16x4xbf16, #tpu.memory_space<vmem>>, vector<1x1x16x4xbf16>,
    %cst_46 = arith.constant 0.000000e+00 : bf16
    %38 = vector.broadcast %cst_46 : bf16 to vector<16x1x4xbf16>
    %c2_47 = arith.constant 2 : index
    %c1_48 = arith.constant 1 : index
    %c15 = arith.constant 15 : index
    %c0_49 = arith.constant 0 : index
    %39 = vector.load %arg9[%c2_47, %c1_48, %c15, %c0_49] : memref<3x18x16x4xbf16, #tpu.memory_space<vmem>>, vector<1x16x1x4xbf16>
    %40 = vector.shape_cast %39 : vector<1x16x1x4xbf16> to vector<16x1x4xbf16>
    %41 = vector.shape_cast %38 : vector<16x1x4xbf16> to vector<1x16x1x4xbf16>
    tpu.vector_store %arg9[%c2_47, %c1_48, %c15, %c0_49], %41 {strides = array<i32>} : memref<3x18x16x4xbf16, #tpu.memory_space<vmem>>, vector<1x16x1x4xbf16>,
    %c0_50 = arith.constant 0 : index
    %c0_51 = arith.constant 0 : index
    %c1_52 = arith.constant 1 : index
    %c0_53 = arith.constant 0 : index
    %42 = vector.load %arg1[%c0_50, %c0_51, %c1_52, %c0_53] : memref<1x16x16x4xbf16, #tpu.memory_space<vmem>>, vector<1x16x15x4xbf16>
    %43 = vector.shape_cast %42 : vector<1x16x15x4xbf16> to vector<16x15x4xbf16>
    %c2_54 = arith.constant 2 : index
    %c1_55 = arith.constant 1 : index
    %c0_56 = arith.constant 0 : index
    %c0_57 = arith.constant 0 : index
    %44 = vector.load %arg9[%c2_54, %c1_55, %c0_56, %c0_57] : memref<3x18x16x4xbf16, #tpu.memory_space<vmem>>, vector<1x16x15x4xbf16>
    %45 = vector.shape_cast %44 : vector<1x16x15x4xbf16> to vector<16x15x4xbf16>
    %46 = vector.shape_cast %43 : vector<16x15x4xbf16> to vector<1x16x15x4xbf16>
    tpu.vector_store %arg9[%c2_54, %c1_55, %c0_56, %c0_57], %46 {strides = array<i32>} : memref<3x18x16x4xbf16, #tpu.memory_space<vmem>>, vector<1x16x15x4xbf16>,
    %cst_58 = arith.constant 0.000000e+00 : bf16
    %47 = vector.broadcast %cst_58 : bf16 to vector<1x16x8xbf16>
    %c0_59 = arith.constant 0 : index
    %c0_60 = arith.constant 0 : index
    %c0_61 = arith.constant 0 : index
    %c0_62 = arith.constant 0 : index
    %48 = vector.load %arg10[%c0_59, %c0_60, %c0_61, %c0_62] : memref<3x18x16x8xbf16, #tpu.memory_space<vmem>>, vector<1x1x16x8xbf16>
    %49 = vector.shape_cast %48 : vector<1x1x16x8xbf16> to vector<1x16x8xbf16>
    %50 = vector.shape_cast %47 : vector<1x16x8xbf16> to vector<1x1x16x8xbf16>
    tpu.vector_store %arg10[%c0_59, %c0_60, %c0_61, %c0_62], %50 {strides = array<i32>} : memref<3x18x16x8xbf16, #tpu.memory_space<vmem>>, vector<1x1x16x8xbf16>,
    %cst_63 = arith.constant 0.000000e+00 : bf16
    %51 = vector.broadcast %cst_63 : bf16 to vector<1x16x8xbf16>
    %c0_64 = arith.constant 0 : index
    %c17_65 = arith.constant 17 : index
    %c0_66 = arith.constant 0 : index
    %c0_67 = arith.constant 0 : index
    %52 = vector.load %arg10[%c0_64, %c17_65, %c0_66, %c0_67] : memref<3x18x16x8xbf16, #tpu.memory_space<vmem>>, vector<1x1x16x8xbf16>
    %53 = vector.shape_cast %52 : vector<1x1x16x8xbf16> to vector<1x16x8xbf16>
    %54 = vector.shape_cast %51 : vector<1x16x8xbf16> to vector<1x1x16x8xbf16>
    tpu.vector_store %arg10[%c0_64, %c17_65, %c0_66, %c0_67], %54 {strides = array<i32>} : memref<3x18x16x8xbf16, #tpu.memory_space<vmem>>, vector<1x1x16x8xbf16>,
    %cst_68 = arith.constant 0.000000e+00 : bf16
    %55 = vector.broadcast %cst_68 : bf16 to vector<1x16x8xbf16>
    %c1_69 = arith.constant 1 : index
    %c0_70 = arith.constant 0 : index
    %c0_71 = arith.constant 0 : index
    %c0_72 = arith.constant 0 : index
    %56 = vector.load %arg10[%c1_69, %c0_70, %c0_71, %c0_72] : memref<3x18x16x8xbf16, #tpu.memory_space<vmem>>, vector<1x1x16x8xbf16>
    %57 = vector.shape_cast %56 : vector<1x1x16x8xbf16> to vector<1x16x8xbf16>
    %58 = vector.shape_cast %55 : vector<1x16x8xbf16> to vector<1x1x16x8xbf16>
    tpu.vector_store %arg10[%c1_69, %c0_70, %c0_71, %c0_72], %58 {strides = array<i32>} : memref<3x18x16x8xbf16, #tpu.memory_space<vmem>>, vector<1x1x16x8xbf16>,
    %cst_73 = arith.constant 0.000000e+00 : bf16
    %59 = vector.broadcast %cst_73 : bf16 to vector<1x16x8xbf16>
    %c1_74 = arith.constant 1 : index
    %c17_75 = arith.constant 17 : index
    %c0_76 = arith.constant 0 : index
    %c0_77 = arith.constant 0 : index
    %60 = vector.load %arg10[%c1_74, %c17_75, %c0_76, %c0_77] : memref<3x18x16x8xbf16, #tpu.memory_space<vmem>>, vector<1x1x16x8xbf16>
    %61 = vector.shape_cast %60 : vector<1x1x16x8xbf16> to vector<1x16x8xbf16>
    %62 = vector.shape_cast %59 : vector<1x16x8xbf16> to vector<1x1x16x8xbf16>
    tpu.vector_store %arg10[%c1_74, %c17_75, %c0_76, %c0_77], %62 {strides = array<i32>} : memref<3x18x16x8xbf16, #tpu.memory_space<vmem>>, vector<1x1x16x8xbf16>,
    %cst_78 = arith.constant 0.000000e+00 : bf16
    %63 = vector.broadcast %cst_78 : bf16 to vector<1x16x8xbf16>
    %c2_79 = arith.constant 2 : index
    %c0_80 = arith.constant 0 : index
    %c0_81 = arith.constant 0 : index
    %c0_82 = arith.constant 0 : index
    %64 = vector.load %arg10[%c2_79, %c0_80, %c0_81, %c0_82] : memref<3x18x16x8xbf16, #tpu.memory_space<vmem>>, vector<1x1x16x8xbf16>
    %65 = vector.shape_cast %64 : vector<1x1x16x8xbf16> to vector<1x16x8xbf16>
    %66 = vector.shape_cast %63 : vector<1x16x8xbf16> to vector<1x1x16x8xbf16>
    tpu.vector_store %arg10[%c2_79, %c0_80, %c0_81, %c0_82], %66 {strides = array<i32>} : memref<3x18x16x8xbf16, #tpu.memory_space<vmem>>, vector<1x1x16x8xbf16>,
    %cst_83 = arith.constant 0.000000e+00 : bf16
    %67 = vector.broadcast %cst_83 : bf16 to vector<1x16x8xbf16>
    %c2_84 = arith.constant 2 : index
    %c17_85 = arith.constant 17 : index
    %c0_86 = arith.constant 0 : index
    %c0_87 = arith.constant 0 : index
    %68 = vector.load %arg10[%c2_84, %c17_85, %c0_86, %c0_87] : memref<3x18x16x8xbf16, #tpu.memory_space<vmem>>, vector<1x1x16x8xbf16>
    %69 = vector.shape_cast %68 : vector<1x1x16x8xbf16> to vector<1x16x8xbf16>
    %70 = vector.shape_cast %67 : vector<1x16x8xbf16> to vector<1x1x16x8xbf16>
    tpu.vector_store %arg10[%c2_84, %c17_85, %c0_86, %c0_87], %70 {strides = array<i32>} : memref<3x18x16x8xbf16, #tpu.memory_space<vmem>>, vector<1x1x16x8xbf16>,
    %cst_88 = arith.constant 0.000000e+00 : f32
    %71 = vector.broadcast %cst_88 : f32 to vector<256x8xf32>
    %c0_89 = arith.constant 0 : index
    %c0_90 = arith.constant 0 : index
    %c0_91 = arith.constant 0 : index
    %c0_92 = arith.constant 0 : index
    %72 = vector.load %arg9[%c0_89, %c0_90, %c0_91, %c0_92] : memref<3x18x16x4xbf16, #tpu.memory_space<vmem>>, vector<1x16x16x4xbf16>
    %73 = vector.shape_cast %72 : vector<1x16x16x4xbf16> to vector<16x16x4xbf16>
    %74 = vector.shape_cast %73 : vector<16x16x4xbf16> to vector<256x4xbf16>
    %c0_93 = arith.constant 0 : index
    %c0_94 = arith.constant 0 : index
    %c0_95 = arith.constant 0 : index
    %c0_96 = arith.constant 0 : index
    %75 = vector.load %arg2[%c0_93, %c0_94, %c0_95, %c0_96] : memref<3x3x4x8xbf16, #tpu.memory_space<vmem>>, vector<1x1x4x8xbf16>
    %76 = vector.shape_cast %75 : vector<1x1x4x8xbf16> to vector<4x8xbf16>
    %cst_97 = arith.constant dense<0.000000e+00> : vector<256x8xf32>
    %77 = tpu.matmul %74, %76, %cst_97 {dimension_numbers = #tpu.dot_dimension_numbers<[1], [0], [0], [1], [0, 0, 1, 1], [], []>} : vector<256x4xbf16>, vector<4x8xbf16>, vector<256x8xf32> -> vector<256x8xf32>
    %78 = arith.addf %71, %77 : vector<256x8xf32>
    %c1_98 = arith.constant 1 : index
    %c0_99 = arith.constant 0 : index
    %c0_100 = arith.constant 0 : index
    %c0_101 = arith.constant 0 : index
    %79 = vector.load %arg9[%c1_98, %c0_99, %c0_100, %c0_101] : memref<3x18x16x4xbf16, #tpu.memory_space<vmem>>, vector<1x16x16x4xbf16>
    %80 = vector.shape_cast %79 : vector<1x16x16x4xbf16> to vector<16x16x4xbf16>
    %81 = vector.shape_cast %80 : vector<16x16x4xbf16> to vector<256x4xbf16>
    %c0_102 = arith.constant 0 : index
    %c1_103 = arith.constant 1 : index
    %c0_104 = arith.constant 0 : index
    %c0_105 = arith.constant 0 : index
    %82 = vector.load %arg2[%c0_102, %c1_103, %c0_104, %c0_105] : memref<3x3x4x8xbf16, #tpu.memory_space<vmem>>, vector<1x1x4x8xbf16>
    %83 = vector.shape_cast %82 : vector<1x1x4x8xbf16> to vector<4x8xbf16>
    %cst_106 = arith.constant dense<0.000000e+00> : vector<256x8xf32>
    %84 = tpu.matmul %81, %83, %cst_106 {dimension_numbers = #tpu.dot_dimension_numbers<[1], [0], [0], [1], [0, 0, 1, 1], [], []>} : vector<256x4xbf16>, vector<4x8xbf16>, vector<256x8xf32> -> vector<256x8xf32>
    %85 = arith.addf %78, %84 : vector<256x8xf32>
    %c2_107 = arith.constant 2 : index
    %c0_108 = arith.constant 0 : index
    %c0_109 = arith.constant 0 : index
    %c0_110 = arith.constant 0 : index
    %86 = vector.load %arg9[%c2_107, %c0_108, %c0_109, %c0_110] : memref<3x18x16x4xbf16, #tpu.memory_space<vmem>>, vector<1x16x16x4xbf16>
    %87 = vector.shape_cast %86 : vector<1x16x16x4xbf16> to vector<16x16x4xbf16>
    %88 = vector.shape_cast %87 : vector<16x16x4xbf16> to vector<256x4xbf16>
    %c0_111 = arith.constant 0 : index
    %c2_112 = arith.constant 2 : index
    %c0_113 = arith.constant 0 : index
    %c0_114 = arith.constant 0 : index
    %89 = vector.load %arg2[%c0_111, %c2_112, %c0_113, %c0_114] : memref<3x3x4x8xbf16, #tpu.memory_space<vmem>>, vector<1x1x4x8xbf16>
    %90 = vector.shape_cast %89 : vector<1x1x4x8xbf16> to vector<4x8xbf16>
    %cst_115 = arith.constant dense<0.000000e+00> : vector<256x8xf32>
    %91 = tpu.matmul %88, %90, %cst_115 {dimension_numbers = #tpu.dot_dimension_numbers<[1], [0], [0], [1], [0, 0, 1, 1], [], []>} : vector<256x4xbf16>, vector<4x8xbf16>, vector<256x8xf32> -> vector<256x8xf32>
    %92 = arith.addf %85, %91 : vector<256x8xf32>
    %c0_116 = arith.constant 0 : index
    %c1_117 = arith.constant 1 : index
    %c0_118 = arith.constant 0 : index
    %c0_119 = arith.constant 0 : index
    %93 = vector.load %arg9[%c0_116, %c1_117, %c0_118, %c0_119] : memref<3x18x16x4xbf16, #tpu.memory_space<vmem>>, vector<1x16x16x4xbf16>
    %94 = vector.shape_cast %93 : vector<1x16x16x4xbf16> to vector<16x16x4xbf16>
    %95 = vector.shape_cast %94 : vector<16x16x4xbf16> to vector<256x4xbf16>
    %c1_120 = arith.constant 1 : index
    %c0_121 = arith.constant 0 : index
    %c0_122 = arith.constant 0 : index
    %c0_123 = arith.constant 0 : index
    %96 = vector.load %arg2[%c1_120, %c0_121, %c0_122, %c0_123] : memref<3x3x4x8xbf16, #tpu.memory_space<vmem>>, vector<1x1x4x8xbf16>
    %97 = vector.shape_cast %96 : vector<1x1x4x8xbf16> to vector<4x8xbf16>
    %cst_124 = arith.constant dense<0.000000e+00> : vector<256x8xf32>
    %98 = tpu.matmul %95, %97, %cst_124 {dimension_numbers = #tpu.dot_dimension_numbers<[1], [0], [0], [1], [0, 0, 1, 1], [], []>} : vector<256x4xbf16>, vector<4x8xbf16>, vector<256x8xf32> -> vector<256x8xf32>
    %99 = arith.addf %92, %98 : vector<256x8xf32>
    %c1_125 = arith.constant 1 : index
    %c1_126 = arith.constant 1 : index
    %c0_127 = arith.constant 0 : index
    %c0_128 = arith.constant 0 : index
    %100 = vector.load %arg9[%c1_125, %c1_126, %c0_127, %c0_128] : memref<3x18x16x4xbf16, #tpu.memory_space<vmem>>, vector<1x16x16x4xbf16>
    %101 = vector.shape_cast %100 : vector<1x16x16x4xbf16> to vector<16x16x4xbf16>
    %102 = vector.shape_cast %101 : vector<16x16x4xbf16> to vector<256x4xbf16>
    %c1_129 = arith.constant 1 : index
    %c1_130 = arith.constant 1 : index
    %c0_131 = arith.constant 0 : index
    %c0_132 = arith.constant 0 : index
    %103 = vector.load %arg2[%c1_129, %c1_130, %c0_131, %c0_132] : memref<3x3x4x8xbf16, #tpu.memory_space<vmem>>, vector<1x1x4x8xbf16>
    %104 = vector.shape_cast %103 : vector<1x1x4x8xbf16> to vector<4x8xbf16>
    %cst_133 = arith.constant dense<0.000000e+00> : vector<256x8xf32>
    %105 = tpu.matmul %102, %104, %cst_133 {dimension_numbers = #tpu.dot_dimension_numbers<[1], [0], [0], [1], [0, 0, 1, 1], [], []>} : vector<256x4xbf16>, vector<4x8xbf16>, vector<256x8xf32> -> vector<256x8xf32>
    %106 = arith.addf %99, %105 : vector<256x8xf32>
    %c2_134 = arith.constant 2 : index
    %c1_135 = arith.constant 1 : index
    %c0_136 = arith.constant 0 : index
    %c0_137 = arith.constant 0 : index
    %107 = vector.load %arg9[%c2_134, %c1_135, %c0_136, %c0_137] : memref<3x18x16x4xbf16, #tpu.memory_space<vmem>>, vector<1x16x16x4xbf16>
    %108 = vector.shape_cast %107 : vector<1x16x16x4xbf16> to vector<16x16x4xbf16>
    %109 = vector.shape_cast %108 : vector<16x16x4xbf16> to vector<256x4xbf16>
    %c1_138 = arith.constant 1 : index
    %c2_139 = arith.constant 2 : index
    %c0_140 = arith.constant 0 : index
    %c0_141 = arith.constant 0 : index
    %110 = vector.load %arg2[%c1_138, %c2_139, %c0_140, %c0_141] : memref<3x3x4x8xbf16, #tpu.memory_space<vmem>>, vector<1x1x4x8xbf16>
    %111 = vector.shape_cast %110 : vector<1x1x4x8xbf16> to vector<4x8xbf16>
    %cst_142 = arith.constant dense<0.000000e+00> : vector<256x8xf32>
    %112 = tpu.matmul %109, %111, %cst_142 {dimension_numbers = #tpu.dot_dimension_numbers<[1], [0], [0], [1], [0, 0, 1, 1], [], []>} : vector<256x4xbf16>, vector<4x8xbf16>, vector<256x8xf32> -> vector<256x8xf32>
    %113 = arith.addf %106, %112 : vector<256x8xf32>
    %c0_143 = arith.constant 0 : index
    %c2_144 = arith.constant 2 : index
    %c0_145 = arith.constant 0 : index
    %c0_146 = arith.constant 0 : index
    %114 = vector.load %arg9[%c0_143, %c2_144, %c0_145, %c0_146] : memref<3x18x16x4xbf16, #tpu.memory_space<vmem>>, vector<1x16x16x4xbf16>
    %115 = vector.shape_cast %114 : vector<1x16x16x4xbf16> to vector<16x16x4xbf16>
    %116 = vector.shape_cast %115 : vector<16x16x4xbf16> to vector<256x4xbf16>
    %c2_147 = arith.constant 2 : index
    %c0_148 = arith.constant 0 : index
    %c0_149 = arith.constant 0 : index
    %c0_150 = arith.constant 0 : index
    %117 = vector.load %arg2[%c2_147, %c0_148, %c0_149, %c0_150] : memref<3x3x4x8xbf16, #tpu.memory_space<vmem>>, vector<1x1x4x8xbf16>
    %118 = vector.shape_cast %117 : vector<1x1x4x8xbf16> to vector<4x8xbf16>
    %cst_151 = arith.constant dense<0.000000e+00> : vector<256x8xf32>
    %119 = tpu.matmul %116, %118, %cst_151 {dimension_numbers = #tpu.dot_dimension_numbers<[1], [0], [0], [1], [0, 0, 1, 1], [], []>} : vector<256x4xbf16>, vector<4x8xbf16>, vector<256x8xf32> -> vector<256x8xf32>
    %120 = arith.addf %113, %119 : vector<256x8xf32>
    %c1_152 = arith.constant 1 : index
    %c2_153 = arith.constant 2 : index
    %c0_154 = arith.constant 0 : index
    %c0_155 = arith.constant 0 : index
    %121 = vector.load %arg9[%c1_152, %c2_153, %c0_154, %c0_155] : memref<3x18x16x4xbf16, #tpu.memory_space<vmem>>, vector<1x16x16x4xbf16>
    %122 = vector.shape_cast %121 : vector<1x16x16x4xbf16> to vector<16x16x4xbf16>
    %123 = vector.shape_cast %122 : vector<16x16x4xbf16> to vector<256x4xbf16>
    %c2_156 = arith.constant 2 : index
    %c1_157 = arith.constant 1 : index
    %c0_158 = arith.constant 0 : index
    %c0_159 = arith.constant 0 : index
    %124 = vector.load %arg2[%c2_156, %c1_157, %c0_158, %c0_159] : memref<3x3x4x8xbf16, #tpu.memory_space<vmem>>, vector<1x1x4x8xbf16>
    %125 = vector.shape_cast %124 : vector<1x1x4x8xbf16> to vector<4x8xbf16>
    %cst_160 = arith.constant dense<0.000000e+00> : vector<256x8xf32>
    %126 = tpu.matmul %123, %125, %cst_160 {dimension_numbers = #tpu.dot_dimension_numbers<[1], [0], [0], [1], [0, 0, 1, 1], [], []>} : vector<256x4xbf16>, vector<4x8xbf16>, vector<256x8xf32> -> vector<256x8xf32>
    %127 = arith.addf %120, %126 : vector<256x8xf32>
    %c2_161 = arith.constant 2 : index
    %c2_162 = arith.constant 2 : index
    %c0_163 = arith.constant 0 : index
    %c0_164 = arith.constant 0 : index
    %128 = vector.load %arg9[%c2_161, %c2_162, %c0_163, %c0_164] : memref<3x18x16x4xbf16, #tpu.memory_space<vmem>>, vector<1x16x16x4xbf16>
    %129 = vector.shape_cast %128 : vector<1x16x16x4xbf16> to vector<16x16x4xbf16>
    %130 = vector.shape_cast %129 : vector<16x16x4xbf16> to vector<256x4xbf16>
    %c2_165 = arith.constant 2 : index
    %c2_166 = arith.constant 2 : index
    %c0_167 = arith.constant 0 : index
    %c0_168 = arith.constant 0 : index
    %131 = vector.load %arg2[%c2_165, %c2_166, %c0_167, %c0_168] : memref<3x3x4x8xbf16, #tpu.memory_space<vmem>>, vector<1x1x4x8xbf16>
    %132 = vector.shape_cast %131 : vector<1x1x4x8xbf16> to vector<4x8xbf16>
    %cst_169 = arith.constant dense<0.000000e+00> : vector<256x8xf32>
    %133 = tpu.matmul %130, %132, %cst_169 {dimension_numbers = #tpu.dot_dimension_numbers<[1], [0], [0], [1], [0, 0, 1, 1], [], []>} : vector<256x4xbf16>, vector<4x8xbf16>, vector<256x8xf32> -> vector<256x8xf32>
    %134 = arith.addf %127, %133 : vector<256x8xf32>
    %c0_170 = arith.constant 0 : index
    %c0_171 = arith.constant 0 : index
    %135 = vector.load %arg3[%c0_170, %c0_171] : memref<1x8xf32, #tpu.memory_space<vmem>>, vector<1x8xf32>
    %136 = vector.broadcast %135 : vector<1x8xf32> to vector<256x8xf32>
    %137 = arith.addf %134, %136 : vector<256x8xf32>
    %cst_172 = arith.constant 0.000000e+00 : f32
    %138 = vector.broadcast %cst_172 : f32 to vector<256x8xf32>
    %139 = arith.maximumf %137, %138 : vector<256x8xf32>
    %140 = arith.truncf %139 : vector<256x8xf32> to vector<256x8xbf16>
    %141 = vector.shape_cast %140 : vector<256x8xbf16> to vector<16x16x8xbf16>
    %c1_173 = arith.constant 1 : index
    %c1_174 = arith.constant 1 : index
    %c0_175 = arith.constant 0 : index
    %c0_176 = arith.constant 0 : index
    %142 = vector.load %arg10[%c1_173, %c1_174, %c0_175, %c0_176] : memref<3x18x16x8xbf16, #tpu.memory_space<vmem>>, vector<1x16x16x8xbf16>
    %143 = vector.shape_cast %142 : vector<1x16x16x8xbf16> to vector<16x16x8xbf16>
    %144 = vector.shape_cast %141 : vector<16x16x8xbf16> to vector<1x16x16x8xbf16>
    tpu.vector_store %arg10[%c1_173, %c1_174, %c0_175, %c0_176], %144 {strides = array<i32>} : memref<3x18x16x8xbf16, #tpu.memory_space<vmem>>, vector<1x16x16x8xbf16>,
    %145 = vector.extract_strided_slice %141 {offsets = [0, 0, 0], sizes = [16, 15, 8], strides = [1, 1, 1]} : vector<16x16x8xbf16> to vector<16x15x8xbf16>
    %c0_177 = arith.constant 0 : index
    %c1_178 = arith.constant 1 : index
    %c1_179 = arith.constant 1 : index
    %c0_180 = arith.constant 0 : index
    %146 = vector.load %arg10[%c0_177, %c1_178, %c1_179, %c0_180] : memref<3x18x16x8xbf16, #tpu.memory_space<vmem>>, vector<1x16x15x8xbf16>
    %147 = vector.shape_cast %146 : vector<1x16x15x8xbf16> to vector<16x15x8xbf16>
    %148 = vector.shape_cast %145 : vector<16x15x8xbf16> to vector<1x16x15x8xbf16>
    tpu.vector_store %arg10[%c0_177, %c1_178, %c1_179, %c0_180], %148 {strides = array<i32>} : memref<3x18x16x8xbf16, #tpu.memory_space<vmem>>, vector<1x16x15x8xbf16>,
    %149 = vector.extract_strided_slice %141 {offsets = [0, 1, 0], sizes = [16, 15, 8], strides = [1, 1, 1]} : vector<16x16x8xbf16> to vector<16x15x8xbf16>
    %c2_181 = arith.constant 2 : index
    %c1_182 = arith.constant 1 : index
    %c0_183 = arith.constant 0 : index
    %c0_184 = arith.constant 0 : index
    %150 = vector.load %arg10[%c2_181, %c1_182, %c0_183, %c0_184] : memref<3x18x16x8xbf16, #tpu.memory_space<vmem>>, vector<1x16x15x8xbf16>
    %151 = vector.shape_cast %150 : vector<1x16x15x8xbf16> to vector<16x15x8xbf16>
    %152 = vector.shape_cast %149 : vector<16x15x8xbf16> to vector<1x16x15x8xbf16>
    tpu.vector_store %arg10[%c2_181, %c1_182, %c0_183, %c0_184], %152 {strides = array<i32>} : memref<3x18x16x8xbf16, #tpu.memory_space<vmem>>, vector<1x16x15x8xbf16>,
    %cst_185 = arith.constant 0.000000e+00 : bf16
    %153 = vector.broadcast %cst_185 : bf16 to vector<16x1x8xbf16>
    %c0_186 = arith.constant 0 : index
    %c1_187 = arith.constant 1 : index
    %c0_188 = arith.constant 0 : index
    %c0_189 = arith.constant 0 : index
    %154 = vector.load %arg10[%c0_186, %c1_187, %c0_188, %c0_189] : memref<3x18x16x8xbf16, #tpu.memory_space<vmem>>, vector<1x16x1x8xbf16>
    %155 = vector.shape_cast %154 : vector<1x16x1x8xbf16> to vector<16x1x8xbf16>
    %156 = vector.shape_cast %153 : vector<16x1x8xbf16> to vector<1x16x1x8xbf16>
    tpu.vector_store %arg10[%c0_186, %c1_187, %c0_188, %c0_189], %156 {strides = array<i32>} : memref<3x18x16x8xbf16, #tpu.memory_space<vmem>>, vector<1x16x1x8xbf16>,
    %cst_190 = arith.constant 0.000000e+00 : bf16
    %157 = vector.broadcast %cst_190 : bf16 to vector<16x1x8xbf16>
    %c2_191 = arith.constant 2 : index
    %c1_192 = arith.constant 1 : index
    %c15_193 = arith.constant 15 : index
    %c0_194 = arith.constant 0 : index
    %158 = vector.load %arg10[%c2_191, %c1_192, %c15_193, %c0_194] : memref<3x18x16x8xbf16, #tpu.memory_space<vmem>>, vector<1x16x1x8xbf16>
    %159 = vector.shape_cast %158 : vector<1x16x1x8xbf16> to vector<16x1x8xbf16>
    %160 = vector.shape_cast %157 : vector<16x1x8xbf16> to vector<1x16x1x8xbf16>
    tpu.vector_store %arg10[%c2_191, %c1_192, %c15_193, %c0_194], %160 {strides = array<i32>} : memref<3x18x16x8xbf16, #tpu.memory_space<vmem>>, vector<1x16x1x8xbf16>,
    %cst_195 = arith.constant 0.000000e+00 : f32
    %161 = vector.broadcast %cst_195 : f32 to vector<256x8xf32>
    %c0_196 = arith.constant 0 : index
    %c0_197 = arith.constant 0 : index
    %c0_198 = arith.constant 0 : index
    %c0_199 = arith.constant 0 : index
    %162 = vector.load %arg10[%c0_196, %c0_197, %c0_198, %c0_199] : memref<3x18x16x8xbf16, #tpu.memory_space<vmem>>, vector<1x16x16x8xbf16>
    %163 = vector.shape_cast %162 : vector<1x16x16x8xbf16> to vector<16x16x8xbf16>
    %164 = vector.shape_cast %163 : vector<16x16x8xbf16> to vector<256x8xbf16>
    %c0_200 = arith.constant 0 : index
    %c0_201 = arith.constant 0 : index
    %c0_202 = arith.constant 0 : index
    %c0_203 = arith.constant 0 : index
    %165 = vector.load %arg4[%c0_200, %c0_201, %c0_202, %c0_203] : memref<3x3x8x8xbf16, #tpu.memory_space<vmem>>, vector<1x1x8x8xbf16>
    %166 = vector.shape_cast %165 : vector<1x1x8x8xbf16> to vector<8x8xbf16>
    %cst_204 = arith.constant dense<0.000000e+00> : vector<256x8xf32>
    %167 = tpu.matmul %164, %166, %cst_204 {dimension_numbers = #tpu.dot_dimension_numbers<[1], [0], [0], [1], [0, 0, 1, 1], [], []>} : vector<256x8xbf16>, vector<8x8xbf16>, vector<256x8xf32> -> vector<256x8xf32>
    %168 = arith.addf %161, %167 : vector<256x8xf32>
    %c1_205 = arith.constant 1 : index
    %c0_206 = arith.constant 0 : index
    %c0_207 = arith.constant 0 : index
    %c0_208 = arith.constant 0 : index
    %169 = vector.load %arg10[%c1_205, %c0_206, %c0_207, %c0_208] : memref<3x18x16x8xbf16, #tpu.memory_space<vmem>>, vector<1x16x16x8xbf16>
    %170 = vector.shape_cast %169 : vector<1x16x16x8xbf16> to vector<16x16x8xbf16>
    %171 = vector.shape_cast %170 : vector<16x16x8xbf16> to vector<256x8xbf16>
    %c0_209 = arith.constant 0 : index
    %c1_210 = arith.constant 1 : index
    %c0_211 = arith.constant 0 : index
    %c0_212 = arith.constant 0 : index
    %172 = vector.load %arg4[%c0_209, %c1_210, %c0_211, %c0_212] : memref<3x3x8x8xbf16, #tpu.memory_space<vmem>>, vector<1x1x8x8xbf16>
    %173 = vector.shape_cast %172 : vector<1x1x8x8xbf16> to vector<8x8xbf16>
    %cst_213 = arith.constant dense<0.000000e+00> : vector<256x8xf32>
    %174 = tpu.matmul %171, %173, %cst_213 {dimension_numbers = #tpu.dot_dimension_numbers<[1], [0], [0], [1], [0, 0, 1, 1], [], []>} : vector<256x8xbf16>, vector<8x8xbf16>, vector<256x8xf32> -> vector<256x8xf32>
    %175 = arith.addf %168, %174 : vector<256x8xf32>
    %c2_214 = arith.constant 2 : index
    %c0_215 = arith.constant 0 : index
    %c0_216 = arith.constant 0 : index
    %c0_217 = arith.constant 0 : index
    %176 = vector.load %arg10[%c2_214, %c0_215, %c0_216, %c0_217] : memref<3x18x16x8xbf16, #tpu.memory_space<vmem>>, vector<1x16x16x8xbf16>
    %177 = vector.shape_cast %176 : vector<1x16x16x8xbf16> to vector<16x16x8xbf16>
    %178 = vector.shape_cast %177 : vector<16x16x8xbf16> to vector<256x8xbf16>
    %c0_218 = arith.constant 0 : index
    %c2_219 = arith.constant 2 : index
    %c0_220 = arith.constant 0 : index
    %c0_221 = arith.constant 0 : index
    %179 = vector.load %arg4[%c0_218, %c2_219, %c0_220, %c0_221] : memref<3x3x8x8xbf16, #tpu.memory_space<vmem>>, vector<1x1x8x8xbf16>
    %180 = vector.shape_cast %179 : vector<1x1x8x8xbf16> to vector<8x8xbf16>
    %cst_222 = arith.constant dense<0.000000e+00> : vector<256x8xf32>
    %181 = tpu.matmul %178, %180, %cst_222 {dimension_numbers = #tpu.dot_dimension_numbers<[1], [0], [0], [1], [0, 0, 1, 1], [], []>} : vector<256x8xbf16>, vector<8x8xbf16>, vector<256x8xf32> -> vector<256x8xf32>
    %182 = arith.addf %175, %181 : vector<256x8xf32>
    %c0_223 = arith.constant 0 : index
    %c1_224 = arith.constant 1 : index
    %c0_225 = arith.constant 0 : index
    %c0_226 = arith.constant 0 : index
    %183 = vector.load %arg10[%c0_223, %c1_224, %c0_225, %c0_226] : memref<3x18x16x8xbf16, #tpu.memory_space<vmem>>, vector<1x16x16x8xbf16>
    %184 = vector.shape_cast %183 : vector<1x16x16x8xbf16> to vector<16x16x8xbf16>
    %185 = vector.shape_cast %184 : vector<16x16x8xbf16> to vector<256x8xbf16>
    %c1_227 = arith.constant 1 : index
    %c0_228 = arith.constant 0 : index
    %c0_229 = arith.constant 0 : index
    %c0_230 = arith.constant 0 : index
    %186 = vector.load %arg4[%c1_227, %c0_228, %c0_229, %c0_230] : memref<3x3x8x8xbf16, #tpu.memory_space<vmem>>, vector<1x1x8x8xbf16>
    %187 = vector.shape_cast %186 : vector<1x1x8x8xbf16> to vector<8x8xbf16>
    %cst_231 = arith.constant dense<0.000000e+00> : vector<256x8xf32>
    %188 = tpu.matmul %185, %187, %cst_231 {dimension_numbers = #tpu.dot_dimension_numbers<[1], [0], [0], [1], [0, 0, 1, 1], [], []>} : vector<256x8xbf16>, vector<8x8xbf16>, vector<256x8xf32> -> vector<256x8xf32>
    %189 = arith.addf %182, %188 : vector<256x8xf32>
    %c1_232 = arith.constant 1 : index
    %c1_233 = arith.constant 1 : index
    %c0_234 = arith.constant 0 : index
    %c0_235 = arith.constant 0 : index
    %190 = vector.load %arg10[%c1_232, %c1_233, %c0_234, %c0_235] : memref<3x18x16x8xbf16, #tpu.memory_space<vmem>>, vector<1x16x16x8xbf16>
    %191 = vector.shape_cast %190 : vector<1x16x16x8xbf16> to vector<16x16x8xbf16>
    %192 = vector.shape_cast %191 : vector<16x16x8xbf16> to vector<256x8xbf16>
    %c1_236 = arith.constant 1 : index
    %c1_237 = arith.constant 1 : index
    %c0_238 = arith.constant 0 : index
    %c0_239 = arith.constant 0 : index
    %193 = vector.load %arg4[%c1_236, %c1_237, %c0_238, %c0_239] : memref<3x3x8x8xbf16, #tpu.memory_space<vmem>>, vector<1x1x8x8xbf16>
    %194 = vector.shape_cast %193 : vector<1x1x8x8xbf16> to vector<8x8xbf16>
    %cst_240 = arith.constant dense<0.000000e+00> : vector<256x8xf32>
    %195 = tpu.matmul %192, %194, %cst_240 {dimension_numbers = #tpu.dot_dimension_numbers<[1], [0], [0], [1], [0, 0, 1, 1], [], []>} : vector<256x8xbf16>, vector<8x8xbf16>, vector<256x8xf32> -> vector<256x8xf32>
    %196 = arith.addf %189, %195 : vector<256x8xf32>
    %c2_241 = arith.constant 2 : index
    %c1_242 = arith.constant 1 : index
    %c0_243 = arith.constant 0 : index
    %c0_244 = arith.constant 0 : index
    %197 = vector.load %arg10[%c2_241, %c1_242, %c0_243, %c0_244] : memref<3x18x16x8xbf16, #tpu.memory_space<vmem>>, vector<1x16x16x8xbf16>
    %198 = vector.shape_cast %197 : vector<1x16x16x8xbf16> to vector<16x16x8xbf16>
    %199 = vector.shape_cast %198 : vector<16x16x8xbf16> to vector<256x8xbf16>
    %c1_245 = arith.constant 1 : index
    %c2_246 = arith.constant 2 : index
    %c0_247 = arith.constant 0 : index
    %c0_248 = arith.constant 0 : index
    %200 = vector.load %arg4[%c1_245, %c2_246, %c0_247, %c0_248] : memref<3x3x8x8xbf16, #tpu.memory_space<vmem>>, vector<1x1x8x8xbf16>
    %201 = vector.shape_cast %200 : vector<1x1x8x8xbf16> to vector<8x8xbf16>
    %cst_249 = arith.constant dense<0.000000e+00> : vector<256x8xf32>
    %202 = tpu.matmul %199, %201, %cst_249 {dimension_numbers = #tpu.dot_dimension_numbers<[1], [0], [0], [1], [0, 0, 1, 1], [], []>} : vector<256x8xbf16>, vector<8x8xbf16>, vector<256x8xf32> -> vector<256x8xf32>
    %203 = arith.addf %196, %202 : vector<256x8xf32>
    %c0_250 = arith.constant 0 : index
    %c2_251 = arith.constant 2 : index
    %c0_252 = arith.constant 0 : index
    %c0_253 = arith.constant 0 : index
    %204 = vector.load %arg10[%c0_250, %c2_251, %c0_252, %c0_253] : memref<3x18x16x8xbf16, #tpu.memory_space<vmem>>, vector<1x16x16x8xbf16>
    %205 = vector.shape_cast %204 : vector<1x16x16x8xbf16> to vector<16x16x8xbf16>
    %206 = vector.shape_cast %205 : vector<16x16x8xbf16> to vector<256x8xbf16>
    %c2_254 = arith.constant 2 : index
    %c0_255 = arith.constant 0 : index
    %c0_256 = arith.constant 0 : index
    %c0_257 = arith.constant 0 : index
    %207 = vector.load %arg4[%c2_254, %c0_255, %c0_256, %c0_257] : memref<3x3x8x8xbf16, #tpu.memory_space<vmem>>, vector<1x1x8x8xbf16>
    %208 = vector.shape_cast %207 : vector<1x1x8x8xbf16> to vector<8x8xbf16>
    %cst_258 = arith.constant dense<0.000000e+00> : vector<256x8xf32>
    %209 = tpu.matmul %206, %208, %cst_258 {dimension_numbers = #tpu.dot_dimension_numbers<[1], [0], [0], [1], [0, 0, 1, 1], [], []>} : vector<256x8xbf16>, vector<8x8xbf16>, vector<256x8xf32> -> vector<256x8xf32>
    %210 = arith.addf %203, %209 : vector<256x8xf32>
    %c1_259 = arith.constant 1 : index
    %c2_260 = arith.constant 2 : index
    %c0_261 = arith.constant 0 : index
    %c0_262 = arith.constant 0 : index
    %211 = vector.load %arg10[%c1_259, %c2_260, %c0_261, %c0_262] : memref<3x18x16x8xbf16, #tpu.memory_space<vmem>>, vector<1x16x16x8xbf16>
    %212 = vector.shape_cast %211 : vector<1x16x16x8xbf16> to vector<16x16x8xbf16>
    %213 = vector.shape_cast %212 : vector<16x16x8xbf16> to vector<256x8xbf16>
    %c2_263 = arith.constant 2 : index
    %c1_264 = arith.constant 1 : index
    %c0_265 = arith.constant 0 : index
    %c0_266 = arith.constant 0 : index
    %214 = vector.load %arg4[%c2_263, %c1_264, %c0_265, %c0_266] : memref<3x3x8x8xbf16, #tpu.memory_space<vmem>>, vector<1x1x8x8xbf16>
    %215 = vector.shape_cast %214 : vector<1x1x8x8xbf16> to vector<8x8xbf16>
    %cst_267 = arith.constant dense<0.000000e+00> : vector<256x8xf32>
    %216 = tpu.matmul %213, %215, %cst_267 {dimension_numbers = #tpu.dot_dimension_numbers<[1], [0], [0], [1], [0, 0, 1, 1], [], []>} : vector<256x8xbf16>, vector<8x8xbf16>, vector<256x8xf32> -> vector<256x8xf32>
    %217 = arith.addf %210, %216 : vector<256x8xf32>
    %c2_268 = arith.constant 2 : index
    %c2_269 = arith.constant 2 : index
    %c0_270 = arith.constant 0 : index
    %c0_271 = arith.constant 0 : index
    %218 = vector.load %arg10[%c2_268, %c2_269, %c0_270, %c0_271] : memref<3x18x16x8xbf16, #tpu.memory_space<vmem>>, vector<1x16x16x8xbf16>
    %219 = vector.shape_cast %218 : vector<1x16x16x8xbf16> to vector<16x16x8xbf16>
    %220 = vector.shape_cast %219 : vector<16x16x8xbf16> to vector<256x8xbf16>
    %c2_272 = arith.constant 2 : index
    %c2_273 = arith.constant 2 : index
    %c0_274 = arith.constant 0 : index
    %c0_275 = arith.constant 0 : index
    %221 = vector.load %arg4[%c2_272, %c2_273, %c0_274, %c0_275] : memref<3x3x8x8xbf16, #tpu.memory_space<vmem>>, vector<1x1x8x8xbf16>
    %222 = vector.shape_cast %221 : vector<1x1x8x8xbf16> to vector<8x8xbf16>
    %cst_276 = arith.constant dense<0.000000e+00> : vector<256x8xf32>
    %223 = tpu.matmul %220, %222, %cst_276 {dimension_numbers = #tpu.dot_dimension_numbers<[1], [0], [0], [1], [0, 0, 1, 1], [], []>} : vector<256x8xbf16>, vector<8x8xbf16>, vector<256x8xf32> -> vector<256x8xf32>
    %224 = arith.addf %217, %223 : vector<256x8xf32>
    %c0_277 = arith.constant 0 : index
    %c0_278 = arith.constant 0 : index
    %225 = vector.load %arg5[%c0_277, %c0_278] : memref<1x8xf32, #tpu.memory_space<vmem>>, vector<1x8xf32>
    %226 = vector.broadcast %225 : vector<1x8xf32> to vector<256x8xf32>
    %227 = arith.addf %224, %226 : vector<256x8xf32>
    %c0_279 = arith.constant 0 : index
    %c0_280 = arith.constant 0 : index
    %c0_281 = arith.constant 0 : index
    %c0_282 = arith.constant 0 : index
    %228 = vector.load %arg1[%c0_279, %c0_280, %c0_281, %c0_282] : memref<1x16x16x4xbf16, #tpu.memory_space<vmem>>, vector<1x16x16x4xbf16>
    %229 = vector.shape_cast %228 : vector<1x16x16x4xbf16> to vector<16x16x4xbf16>
    %230 = vector.shape_cast %229 : vector<16x16x4xbf16> to vector<256x4xbf16>
    %c0_283 = arith.constant 0 : index
    %c0_284 = arith.constant 0 : index
    %231 = vector.load %arg6[%c0_283, %c0_284] : memref<4x8xbf16, #tpu.memory_space<vmem>>, vector<4x8xbf16>
    %cst_285 = arith.constant dense<0.000000e+00> : vector<256x8xf32>
    %232 = tpu.matmul %230, %231, %cst_285 {dimension_numbers = #tpu.dot_dimension_numbers<[1], [0], [0], [1], [0, 0, 1, 1], [], []>} : vector<256x4xbf16>, vector<4x8xbf16>, vector<256x8xf32> -> vector<256x8xf32>
    %233 = arith.addf %227, %232 : vector<256x8xf32>
    %c0_286 = arith.constant 0 : index
    %c0_287 = arith.constant 0 : index
    %234 = vector.load %arg7[%c0_286, %c0_287] : memref<1x8xf32, #tpu.memory_space<vmem>>, vector<1x8xf32>
    %235 = vector.broadcast %234 : vector<1x8xf32> to vector<256x8xf32>
    %236 = arith.addf %233, %235 : vector<256x8xf32>
    %cst_288 = arith.constant 0.000000e+00 : f32
    %237 = vector.broadcast %cst_288 : f32 to vector<256x8xf32>
    %238 = arith.maximumf %236, %237 : vector<256x8xf32>
    %239 = vector.shape_cast %238 : vector<256x8xf32> to vector<16x16x8xf32>
    %c0_289 = arith.constant 0 : index
    %c0_290 = arith.constant 0 : index
    %c0_291 = arith.constant 0 : index
    %c0_292 = arith.constant 0 : index
    %240 = vector.load %arg8[%c0_289, %c0_290, %c0_291, %c0_292] : memref<1x16x16x8xf32, #tpu.memory_space<vmem>>, vector<1x16x16x8xf32>
    %241 = vector.shape_cast %240 : vector<1x16x16x8xf32> to vector<16x16x8xf32>
    %242 = vector.shape_cast %239 : vector<16x16x8xf32> to vector<1x16x16x8xf32>
    tpu.vector_store %arg8[%c0_289, %c0_290, %c0_291, %c0_292], %242 {strides = array<i32>} : memref<1x16x16x8xf32, #tpu.memory_space<vmem>>, vector<1x16x16x8xf32>,
    return
  }
  func.func @transform_0(%arg0: i32) -> (i32, i32, i32, i32) {
    %c0_i32 = arith.constant 0 : i32
    %c0_i32_0 = arith.constant 0 : i32
    %c0_i32_1 = arith.constant 0 : i32
    %c0_i32_2 = arith.constant 0 : i32
    return %arg0, %c0_i32, %c0_i32_0, %c0_i32_1 : i32, i32, i32, i32
  }
  func.func @transform_1(%arg0: i32) -> (i32, i32, i32, i32) {
    %c0_i32 = arith.constant 0 : i32
    %c0_i32_0 = arith.constant 0 : i32
    %c0_i32_1 = arith.constant 0 : i32
    %c0_i32_2 = arith.constant 0 : i32
    %c0_i32_3 = arith.constant 0 : i32
    return %c0_i32, %c0_i32_0, %c0_i32_1, %c0_i32_2 : i32, i32, i32, i32
  }
  func.func @transform_2(%arg0: i32) -> (i32, i32) {
    %c0_i32 = arith.constant 0 : i32
    %c0_i32_0 = arith.constant 0 : i32
    %c0_i32_1 = arith.constant 0 : i32
    return %c0_i32, %c0_i32_0 : i32, i32
  }
  func.func @transform_3(%arg0: i32) -> (i32, i32, i32, i32) {
    %c0_i32 = arith.constant 0 : i32
    %c0_i32_0 = arith.constant 0 : i32
    %c0_i32_1 = arith.constant 0 : i32
    %c0_i32_2 = arith.constant 0 : i32
    %c0_i32_3 = arith.constant 0 : i32
    return %c0_i32, %c0_i32_0, %c0_i32_1, %c0_i32_2 : i32, i32, i32, i32
  }
  func.func @transform_4(%arg0: i32) -> (i32, i32) {
    %c0_i32 = arith.constant 0 : i32
    %c0_i32_0 = arith.constant 0 : i32
    %c0_i32_1 = arith.constant 0 : i32
    return %c0_i32, %c0_i32_0 : i32, i32
  }
  func.func @transform_5(%arg0: i32) -> (i32, i32) {
    %c0_i32 = arith.constant 0 : i32
    %c0_i32_0 = arith.constant 0 : i32
    %c0_i32_1 = arith.constant 0 : i32
    return %c0_i32, %c0_i32_0 : i32, i32
  }
  func.func @transform_6(%arg0: i32) -> (i32, i32) {
    %c0_i32 = arith.constant 0 : i32
    %c0_i32_0 = arith.constant 0 : i32
    %c0_i32_1 = arith.constant 0 : i32
    return %c0_i32, %c0_i32_0 : i32, i32
  }
  func.func @transform_7(%arg0: i32) -> (i32, i32, i32, i32) {
    %c0_i32 = arith.constant 0 : i32
    %c0_i32_0 = arith.constant 0 : i32
    %c0_i32_1 = arith.constant 0 : i32
    %c0_i32_2 = arith.constant 0 : i32
    return %arg0, %c0_i32, %c0_i32_0, %c0_i32_1 : i32, i32, i32, i32
  }
}

</mosaic_0001>

<llo_original>
// kernel: tpu_custom_call.1
$region0: #{tpu_custom_call.1}
  #allocation0 [shape = 'u32[]', space=smem, size = 0x4, offset = 0x4, fixed_abs, tag = 'smem constant byte address 0x4 - core index']
  #allocation1 [shape = 'u32[144,128]{1,0:T(1,128)}', space=vmem, size = 0x12000, scoped, tag = 'internal scratch']
  #allocation2 [shape = 'bf16[3,18,16,4]{3,2,1,0:T(16,128)(2,1)}', space=vmem, size = 0x36000, scoped, tag = 'scratch operand']
  #allocation3 [shape = 'bf16[3,18,16,8]{3,2,1,0:T(16,128)(2,1)}', space=vmem, size = 0x36000, scoped, tag = 'scratch operand']
  %s0 = inlined_call_operand.vmem [shape: bf16[2,16,16,4], index: 0, kind: input, shape index: {}]
  %s1 = inlined_call_operand.vmem [shape: bf16[3,3,4,8], index: 1, kind: input, shape index: {}]
  %s2 = inlined_call_operand.vmem [shape: f32[1,8], index: 2, kind: input, shape index: {}]
  %s3 = inlined_call_operand.vmem [shape: bf16[3,3,8,8], index: 3, kind: input, shape index: {}]
  %s4 = inlined_call_operand.vmem [shape: f32[1,8], index: 4, kind: input, shape index: {}]
  %s5 = inlined_call_operand.vmem [shape: bf16[4,8], index: 5, kind: input, shape index: {}]
  %s6 = inlined_call_operand.vmem [shape: f32[1,8], index: 6, kind: input, shape index: {}]
  %s7 = inlined_call_operand.vmem [shape: f32[2,16,16,8], index: 7, kind: output, shape index: {}]
  %s8 = sld [smem:[#allocation0]]
  $region61: #{tpu_custom_call.1} parent=0
    _
  %s10 = ssub.s32 1, %s8
  %s11 = scalar_select 0, %s10, %s8
  loop: start=0, step=1, limit=4
  $region2: #{tpu_custom_call.1} parent=0 // loop_pre_header
    _
  $region3: #{tpu_custom_call.1} parent=0 // loop_header
    %s13 = sphi 0, %s17
    %p14 = scmp.ge.s32.totalorder %s13, 4
    %s23 = sphi 0, %s25
    %s26 = sphi 0, %s23
    %s27 = sphi 0, %s26
    %s43 = sphi 0, %s27
    %s47 = sphi 0, %s47
    %s49 = sphi 0, %s47
    %s50 = sphi 0, %s49
    %s64 = sphi 0, %s50
    %s68 = sphi 0, %s68
    %s70 = sphi 0, %s68
    %s71 = sphi 0, %s70
    %s85 = sphi 0, %s71
    %s89 = sphi 0, %s89
    %s91 = sphi 0, %s89
    %s92 = sphi 0, %s91
    %s106 = sphi 0, %s92
    %s110 = sphi 0, %s110
    %s112 = sphi 0, %s110
    %s113 = sphi 0, %s112
    %s127 = sphi 0, %s113
    %s131 = sphi 0, %s131
    %s133 = sphi 0, %s131
    %s134 = sphi 0, %s133
    %s148 = sphi 0, %s134
    %s152 = sphi 0, %s152
    %s154 = sphi 0, %s152
    %s155 = sphi 0, %s154
    %s169 = sphi 0, %s155
    %s175 = sphi 0, %s177
    %s178 = sphi 0, %s175
    %s179 = sphi 0, %s178
    %s195 = sphi 0, %s179
  $region4: #{tpu_custom_call.1} parent=0 // loop_header_branch
    %16 = sbr.rel (%p14) target = $region8
  $region5: #{tpu_custom_call.1} parent=0 // loop_body
    %s18 = ssub.s32 %s13, 1
    %s19 = ssub.s32 %s13, 2
    %s20 = sadd.s32 %s13, 1
    %s21 = ssub.s32 %s13, %s20
    %p22 = scmp.eq.s32.totalorder %s21, 0
    %s24 = sadd.s32 %s23, 1
    %s25 = scalar_select %p22, %s23, %s24
    %p28 = pneg %p22
    %p29 = scmp.eq.s32.totalorder %s13, 1
    %p30 = por %p28, %p29
    %p31 = scmp.ne.s32.totalorder %s23, %s26
    %p32 = scmp.eq.s32.totalorder %s13, 0
    %p33 = por %p31, %p32
    %p34 = scmp.ne.s32.totalorder %s23, %s26
    %p35 = scmp.eq.s32.totalorder %s18, 1
    %p36 = por %p34, %p35
    %p37 = scmp.ne.s32.totalorder %s26, %s27
    %p38 = scmp.eq.s32.totalorder %s18, 0
    %p39 = por %p37, %p38
    %p40 = scmp.ne.s32.totalorder %s26, %s27
    %p41 = scmp.eq.s32.totalorder %s19, 1
    %p42 = por %p40, %p41
    %p44 = scmp.ne.s32.totalorder %s27, %s43
    %p45 = scmp.eq.s32.totalorder %s19, 0
    %p46 = por %p44, %p45
    %s48 = sadd.s32 %s47, 1
    %p51 = scmp.eq.s32.totalorder %s13, 1
    %p52 = scmp.ne.s32.totalorder %s47, %s49
    %p53 = scmp.eq.s32.totalorder %s13, 0
    %p54 = por %p52, %p53
    %p55 = scmp.ne.s32.totalorder %s47, %s49
    %p56 = scmp.eq.s32.totalorder %s18, 1
    %p57 = por %p55, %p56
    %p58 = scmp.ne.s32.totalorder %s49, %s50
    %p59 = scmp.eq.s32.totalorder %s18, 0
    %p60 = por %p58, %p59
    %p61 = scmp.ne.s32.totalorder %s49, %s50
    %p62 = scmp.eq.s32.totalorder %s19, 1
    %p63 = por %p61, %p62
    %p65 = scmp.ne.s32.totalorder %s50, %s64
    %p66 = scmp.eq.s32.totalorder %s19, 0
    %p67 = por %p65, %p66
    %s69 = sadd.s32 %s68, 1
    %p72 = scmp.eq.s32.totalorder %s13, 1
    %p73 = scmp.ne.s32.totalorder %s68, %s70
    %p74 = scmp.eq.s32.totalorder %s13, 0
    %p75 = por %p73, %p74
    %p76 = scmp.ne.s32.totalorder %s68, %s70
    %p77 = scmp.eq.s32.totalorder %s18, 1
    %p78 = por %p76, %p77
    %p79 = scmp.ne.s32.totalorder %s70, %s71
    %p80 = scmp.eq.s32.totalorder %s18, 0
    %p81 = por %p79, %p80
    %p82 = scmp.ne.s32.totalorder %s70, %s71
    %p83 = scmp.eq.s32.totalorder %s19, 1
    %p84 = por %p82, %p83
    %p86 = scmp.ne.s32.totalorder %s71, %s85
    %p87 = scmp.eq.s32.totalorder %s19, 0
    %p88 = por %p86, %p87
    %s90 = sadd.s32 %s89, 1
    %p93 = scmp.eq.s32.totalorder %s13, 1
    %p94 = scmp.ne.s32.totalorder %s89, %s91
    %p95 = scmp.eq.s32.totalorder %s13, 0
    %p96 = por %p94, %p95
    %p97 = scmp.ne.s32.totalorder %s89, %s91
    %p98 = scmp.eq.s32.totalorder %s18, 1
    %p99 = por %p97, %p98
    %p100 = scmp.ne.s32.totalorder %s91, %s92
    %p101 = scmp.eq.s32.totalorder %s18, 0
    %p102 = por %p100, %p101
    %p103 = scmp.ne.s32.totalorder %s91, %s92
    %p104 = scmp.eq.s32.totalorder %s19, 1
    %p105 = por %p103, %p104
    %p107 = scmp.ne.s32.totalorder %s92, %s106
    %p108 = scmp.eq.s32.totalorder %s19, 0
    %p109 = por %p107, %p108
    %s111 = sadd.s32 %s110, 1
    %p114 = scmp.eq.s32.totalorder %s13, 1
    %p115 = scmp.ne.s32.totalorder %s110, %s112
    %p116 = scmp.eq.s32.totalorder %s13, 0
    %p117 = por %p115, %p116
    %p118 = scmp.ne.s32.totalorder %s110, %s112
    %p119 = scmp.eq.s32.totalorder %s18, 1
    %p120 = por %p118, %p119
    %p121 = scmp.ne.s32.totalorder %s112, %s113
    %p122 = scmp.eq.s32.totalorder %s18, 0
    %p123 = por %p121, %p122
    %p124 = scmp.ne.s32.totalorder %s112, %s113
    %p125 = scmp.eq.s32.totalorder %s19, 1
    %p126 = por %p124, %p125
    %p128 = scmp.ne.s32.totalorder %s113, %s127
    %p129 = scmp.eq.s32.totalorder %s19, 0
    %p130 = por %p128, %p129
    %s132 = sadd.s32 %s131, 1
    %p135 = scmp.eq.s32.totalorder %s13, 1
    %p136 = scmp.ne.s32.totalorder %s131, %s133
    %p137 = scmp.eq.s32.totalorder %s13, 0
    %p138 = por %p136, %p137
    %p139 = scmp.ne.s32.totalorder %s131, %s133
    %p140 = scmp.eq.s32.totalorder %s18, 1
    %p141 = por %p139, %p140
    %p142 = scmp.ne.s32.totalorder %s133, %s134
    %p143 = scmp.eq.s32.totalorder %s18, 0
    %p144 = por %p142, %p143
    %p145 = scmp.ne.s32.totalorder %s133, %s134
    %p146 = scmp.eq.s32.totalorder %s19, 1
    %p147 = por %p145, %p146
    %p149 = scmp.ne.s32.totalorder %s134, %s148
    %p150 = scmp.eq.s32.totalorder %s19, 0
    %p151 = por %p149, %p150
    %s153 = sadd.s32 %s152, 1
    %p156 = scmp.eq.s32.totalorder %s13, 1
    %p157 = scmp.ne.s32.totalorder %s152, %s154
    %p158 = scmp.eq.s32.totalorder %s13, 0
    %p159 = por %p157, %p158
    %p160 = scmp.ne.s32.totalorder %s152, %s154
    %p161 = scmp.eq.s32.totalorder %s18, 1
    %p162 = por %p160, %p161
    %p163 = scmp.ne.s32.totalorder %s154, %s155
    %p164 = scmp.eq.s32.totalorder %s18, 0
    %p165 = por %p163, %p164
    %p166 = scmp.ne.s32.totalorder %s154, %s155
    %p167 = scmp.eq.s32.totalorder %s19, 1
    %p168 = por %p166, %p167
    %p170 = scmp.ne.s32.totalorder %s155, %s169
    %p171 = scmp.eq.s32.totalorder %s19, 0
    %p172 = por %p170, %p171
    %s173 = ssub.s32 %s13, %s20
    %p174 = scmp.eq.s32.totalorder %s173, 0
    %s176 = sadd.s32 %s175, 1
    %s177 = scalar_select %p174, %s175, %s176
    %p180 = pneg %p174
    %p181 = scmp.eq.s32.totalorder %s13, 1
    %p182 = por %p180, %p181
    %p183 = scmp.ne.s32.totalorder %s175, %s178
    %p184 = scmp.eq.s32.totalorder %s13, 0
    %p185 = por %p183, %p184
    %p186 = scmp.ne.s32.totalorder %s175, %s178
    %p187 = scmp.eq.s32.totalorder %s18, 1
    %p188 = por %p186, %p187
    %p189 = scmp.ne.s32.totalorder %s178, %s179
    %p190 = scmp.eq.s32.totalorder %s18, 0
    %p191 = por %p189, %p190
    %p192 = scmp.ne.s32.totalorder %s178, %s179
    %p193 = scmp.eq.s32.totalorder %s19, 1
    %p194 = por %p192, %p193
    %p196 = scmp.ne.s32.totalorder %s179, %s195
    %p197 = scmp.eq.s32.totalorder %s19, 0
    %p198 = por %p196, %p197
    %p199 = scmp.le.s32.totalorder 1, %s13
    %p200 = scmp.lt.s32.totalorder %s13, 3
    %p201 = pnand %p199, %p200
    %p202 = pneg %p201
    // Predicated region
    $region9: #{tpu_custom_call.1} parent=5 // pred_check
      _
    $region10: #{tpu_custom_call.1} parent=5 // pred_check_branch
      %204 = sbr.rel (%p201) target = $region12
    $region11: #{tpu_custom_call.1} parent=5 // pred_region
      %s205 = ssub.s32 %s13, 1
      // Predicated region
      $region13: #{tpu_custom_call.1} parent=11 // pred_check
        %p206 = pneg %p60
      $region14: #{tpu_custom_call.1} parent=11 // pred_check_branch
        %208 = sbr.rel (%p206) target = $region16
      $region15: #{tpu_custom_call.1} parent=11 // pred_region
        _
      $region16: #{tpu_custom_call.1} parent=11 // pred_fallthru
        _
      // Predicated region
      $region17: #{tpu_custom_call.1} parent=11 // pred_check
        %p209 = pneg %p81
      $region18: #{tpu_custom_call.1} parent=11 // pred_check_branch
        %211 = sbr.rel (%p209) target = $region20
      $region19: #{tpu_custom_call.1} parent=11 // pred_region
        _
      $region20: #{tpu_custom_call.1} parent=11 // pred_fallthru
        _
      // Predicated region
      $region21: #{tpu_custom_call.1} parent=11 // pred_check
        %p212 = pneg %p102
      $region22: #{tpu_custom_call.1} parent=11 // pred_check_branch
        %214 = sbr.rel (%p212) target = $region24
      $region23: #{tpu_custom_call.1} parent=11 // pred_region
        _
      $region24: #{tpu_custom_call.1} parent=11 // pred_fallthru
        _
      // Predicated region
      $region25: #{tpu_custom_call.1} parent=11 // pred_check
        %p215 = pneg %p123
      $region26: #{tpu_custom_call.1} parent=11 // pred_check_branch
        %217 = sbr.rel (%p215) target = $region28
      $region27: #{tpu_custom_call.1} parent=11 // pred_region
        _
      $region28: #{tpu_custom_call.1} parent=11 // pred_fallthru
        _
      // Predicated region
      $region29: #{tpu_custom_call.1} parent=11 // pred_check
        %p218 = pneg %p144
      $region30: #{tpu_custom_call.1} parent=11 // pred_check_branch
        %220 = sbr.rel (%p218) target = $region32
      $region31: #{tpu_custom_call.1} parent=11 // pred_region
        _
      $region32: #{tpu_custom_call.1} parent=11 // pred_fallthru
        _
      // Predicated region
      $region33: #{tpu_custom_call.1} parent=11 // pred_check
        %p221 = pneg %p165
      $region34: #{tpu_custom_call.1} parent=11 // pred_check_branch
        %223 = sbr.rel (%p221) target = $region36
      $region35: #{tpu_custom_call.1} parent=11 // pred_region
        _
      $region36: #{tpu_custom_call.1} parent=11 // pred_fallthru
        _
    $region12: #{tpu_custom_call.1} parent=5 // pred_fallthru
      _
    %p224 = scmp.lt.s32.totalorder %s13, 2
    // Predicated region
    $region37: #{tpu_custom_call.1} parent=5 // pred_check
      %p225 = pneg %p224
    $region38: #{tpu_custom_call.1} parent=5 // pred_check_branch
      %227 = sbr.rel (%p225) target = $region40
    $region39: #{tpu_custom_call.1} parent=5 // pred_region
      // Predicated region
      $region41: #{tpu_custom_call.1} parent=39 // pred_check
        %p228 = pneg %p33
      $region42: #{tpu_custom_call.1} parent=39 // pred_check_branch
        %230 = sbr.rel (%p228) target = $region44
      $region43: #{tpu_custom_call.1} parent=39 // pred_region
        %p231 = scmp.lt.s32.totalorder %s13, 1
        %s232 = scalar_select %p231, %s13, 1
        %s233 = smul.addr %s232, 32
        %s234 = smul.addr %s233, 4
        %s235 = scalar_lea.vmem %s0, %s234
      $region44: #{tpu_custom_call.1} parent=39 // pred_fallthru
        _
    $region40: #{tpu_custom_call.1} parent=5 // pred_fallthru
      _
    %p236 = scmp.le.s32.totalorder 1, %s13
    %p237 = scmp.lt.s32.totalorder %s13, 3
    %p238 = pnand %p236, %p237
    %p239 = pneg %p238
    // Predicated region
    $region45: #{tpu_custom_call.1} parent=5 // pred_check
      _
    $region46: #{tpu_custom_call.1} parent=5 // pred_check_branch
      %241 = sbr.rel (%p238) target = $region48
    $region47: #{tpu_custom_call.1} parent=5 // pred_region
      %s242 = ssub.s32 %s13, 1
      %p243 = scmp.lt.s32.totalorder %s18, 1
      %s244 = scalar_select %p243, %s18, 1
      %s245 = smul.addr %s244, 32
      %s246 = smul.addr %s245, 4
      %s247 = scalar_lea.vmem %s0, %s246
      %p248 = pneg %p39
      %p249 = pneg %p36
      %p250 = pneg %p60
      %p251 = pneg %p57
      %p252 = pneg %p81
      %p253 = pneg %p78
      %p254 = pneg %p102
      %p255 = pneg %p99
      %p256 = pneg %p123
      %p257 = pneg %p120
      %p258 = pneg %p144
      %p259 = pneg %p141
      %p260 = pneg %p165
      %p261 = pneg %p162
      %p262 = pneg %p191
      %p263 = pneg %p188
      %p264 = scmp.lt.s32.totalorder %s18, 1
      %s265 = scalar_select %p264, %s18, 1
      %s266 = smul.addr %s265, 32
      %s267 = smul.addr %s266, 8
      %s268 = scalar_lea.vmem %s7, %s267
      %p269 = scmp.lt.s32.totalorder %s18, 1
      %s270 = scalar_select %p269, %s18, 1
      %s271 = smul.addr %s270, 32
      %s272 = smul.addr %s271, 4
      %s273 = scalar_lea.vmem %s0, %s272
      %p274 = scmp.lt.s32.totalorder %s18, 1
      %s275 = scalar_select %p274, %s18, 1
      %s276 = smul.addr %s275, 32
      %s277 = smul.addr %s276, 8
      %s278 = scalar_lea.vmem %s7, %s277
      %vm280 = vcmask 31744
      %281 = vst.msk [vmem:[#allocation2] sm:$0xff] %vm280, 0
      %s282 = scalar_lea.vmem [#allocation2], 136
      %283 = vst.msk [vmem:[%s282] sm:$0xff] %vm280, 0
      %s284 = scalar_lea.vmem [#allocation2], 8
      %vm285 = vcmask 24576
      %vm286 = vsmask.f32 256
      %vm287 = vmand %vm285, %vm286
      %v288 = vld [vmem:[%s284] sm:$0x1]
      %v289 = vsel %vm287, 0, %v288
      %290 = vst [vmem:[%s284] sm:$0x1] %v289
      %v291 = vld [vmem:[%s284 + $0x8] sm:$0x1]
      %v292 = vsel %vm287, 0, %v291
      %293 = vst [vmem:[%s284 + $0x8] sm:$0x1] %v292
      %v294 = vld [vmem:[%s284 + $0x10] sm:$0x1]
      %v295 = vsel %vm287, 0, %v294
      %296 = vst [vmem:[%s284 + $0x10] sm:$0x1] %v295
      %v297 = vld [vmem:[%s284 + $0x18] sm:$0x1]
      %v298 = vsel %vm287, 0, %v297
      %299 = vst [vmem:[%s284 + $0x18] sm:$0x1] %v298
      %v300 = vld [vmem:[%s284 + $0x20] sm:$0x1]
      %v301 = vsel %vm287, 0, %v300
      %302 = vst [vmem:[%s284 + $0x20] sm:$0x1] %v301
      %v303 = vld [vmem:[%s284 + $0x28] sm:$0x1]
      %v304 = vsel %vm287, 0, %v303
      %305 = vst [vmem:[%s284 + $0x28] sm:$0x1] %v304
      %v306 = vld [vmem:[%s284 + $0x30] sm:$0x1]
      %v307 = vsel %vm287, 0, %v306
      %308 = vst [vmem:[%s284 + $0x30] sm:$0x1] %v307
      %v309 = vld [vmem:[%s284 + $0x38] sm:$0x1]
      %v310 = vsel %vm287, 0, %v309
      %311 = vst [vmem:[%s284 + $0x38] sm:$0x1] %v310
      %v312 = vld [vmem:[%s284 + $0x40] sm:$0x1]
      %v313 = vsel %vm287, 0, %v312
      %314 = vst [vmem:[%s284 + $0x40] sm:$0x1] %v313
      %v315 = vld [vmem:[%s284 + $0x48] sm:$0x1]
      %v316 = vsel %vm287, 0, %v315
      %317 = vst [vmem:[%s284 + $0x48] sm:$0x1] %v316
      %v318 = vld [vmem:[%s284 + $0x50] sm:$0x1]
      %v319 = vsel %vm287, 0, %v318
      %320 = vst [vmem:[%s284 + $0x50] sm:$0x1] %v319
      %v321 = vld [vmem:[%s284 + $0x58] sm:$0x1]
      %v322 = vsel %vm287, 0, %v321
      %323 = vst [vmem:[%s284 + $0x58] sm:$0x1] %v322
      %v324 = vld [vmem:[%s284 + $0x60] sm:$0x1]
      %v325 = vsel %vm287, 0, %v324
      %326 = vst [vmem:[%s284 + $0x60] sm:$0x1] %v325
      %v327 = vld [vmem:[%s284 + $0x68] sm:$0x1]
      %v328 = vsel %vm287, 0, %v327
      %329 = vst [vmem:[%s284 + $0x68] sm:$0x1] %v328
      %v330 = vld [vmem:[%s284 + $0x70] sm:$0x1]
      %v331 = vsel %vm287, 0, %v330
      %332 = vst [vmem:[%s284 + $0x70] sm:$0x1] %v331
      %v333 = vld [vmem:[%s284 + $0x78] sm:$0x1]
      %v334 = vsel %vm287, 0, %v333
      %335 = vst [vmem:[%s284 + $0x78] sm:$0x1] %v334
      %v336 = vld [vmem:[%s273] sm:$0xf]
      %v337 = vld [vmem:[%s273 + $0x4] sm:$0xf]
      %v338 = vld [vmem:[%s273 + $0x8] sm:$0xf]
      %v339 = vld [vmem:[%s273 + $0xc] sm:$0xf]
      %v340 = vld [vmem:[%s273 + $0x10] sm:$0xf]
      %v341 = vld [vmem:[%s273 + $0x14] sm:$0xf]
      %v342 = vld [vmem:[%s273 + $0x18] sm:$0xf]
      %v343 = vld [vmem:[%s273 + $0x1c] sm:$0xf]
      %v344 = vld [vmem:[%s273 + $0x20] sm:$0xf]
      %v345 = vld [vmem:[%s273 + $0x24] sm:$0xf]
      %v346 = vld [vmem:[%s273 + $0x28] sm:$0xf]
      %v347 = vld [vmem:[%s273 + $0x2c] sm:$0xf]
      %v348 = vld [vmem:[%s273 + $0x30] sm:$0xf]
      %v349 = vld [vmem:[%s273 + $0x34] sm:$0xf]
      %v350 = vld [vmem:[%s273 + $0x38] sm:$0xf]
      %v351 = vld [vmem:[%s273 + $0x3c] sm:$0xf]
      %v352 = vld [vmem:[%s273 + $0x40] sm:$0xf]
      %v353 = vld [vmem:[%s273 + $0x44] sm:$0xf]
      %v354 = vld [vmem:[%s273 + $0x48] sm:$0xf]
      %v355 = vld [vmem:[%s273 + $0x4c] sm:$0xf]
      %v356 = vld [vmem:[%s273 + $0x50] sm:$0xf]
      %v357 = vld [vmem:[%s273 + $0x54] sm:$0xf]
      %v358 = vld [vmem:[%s273 + $0x58] sm:$0xf]
      %v359 = vld [vmem:[%s273 + $0x5c] sm:$0xf]
      %v360 = vld [vmem:[%s273 + $0x60] sm:$0xf]
      %v361 = vld [vmem:[%s273 + $0x64] sm:$0xf]
      %v362 = vld [vmem:[%s273 + $0x68] sm:$0xf]
      %v363 = vld [vmem:[%s273 + $0x6c] sm:$0xf]
      %v364 = vld [vmem:[%s273 + $0x70] sm:$0xf]
      %v365 = vld [vmem:[%s273 + $0x74] sm:$0xf]
      %v366 = vld [vmem:[%s273 + $0x78] sm:$0xf]
      %v367 = vld [vmem:[%s273 + $0x7c] sm:$0xf]
      %v400 = vunpack.c.l.b16 %v336
      %v401 = vunpack.c.l.b16 %v337
      %v402 = vunpack.c.l.b16 %v338
      %v403 = vunpack.c.l.b16 %v339
      %v404 = vunpack.c.l.b16 %v340
      %v405 = vunpack.c.l.b16 %v341
      %v406 = vunpack.c.l.b16 %v342
      %v407 = vunpack.c.l.b16 %v343
      %v408 = vunpack.c.l.b16 %v344
      %v409 = vunpack.c.l.b16 %v345
      %v410 = vunpack.c.l.b16 %v346
      %v411 = vunpack.c.l.b16 %v347
      %v412 = vunpack.c.l.b16 %v348
      %v413 = vunpack.c.l.b16 %v349
      %v414 = vunpack.c.l.b16 %v350
      %v415 = vunpack.c.l.b16 %v351
      %v416 = vunpack.c.l.b16 %v352
      %v417 = vunpack.c.l.b16 %v353
      %v418 = vunpack.c.l.b16 %v354
      %v419 = vunpack.c.l.b16 %v355
      %v420 = vunpack.c.l.b16 %v356
      %v421 = vunpack.c.l.b16 %v357
      %v422 = vunpack.c.l.b16 %v358
      %v423 = vunpack.c.l.b16 %v359
      %v424 = vunpack.c.l.b16 %v360
      %v425 = vunpack.c.l.b16 %v361
      %v426 = vunpack.c.l.b16 %v362
      %v427 = vunpack.c.l.b16 %v363
      %v428 = vunpack.c.l.b16 %v364
      %v429 = vunpack.c.l.b16 %v365
      %v430 = vunpack.c.l.b16 %v366
      %v431 = vunpack.c.l.b16 %v367
      %v432 = vpack.c.b16 %v401, %v400
      %v433 = vpack.c.b16 %v403, %v402
      %v434 = vpack.c.b16 %v405, %v404
      %v435 = vpack.c.b16 %v407, %v406
      %v436 = vpack.c.b16 %v409, %v408
      %v437 = vpack.c.b16 %v411, %v410
      %v438 = vpack.c.b16 %v413, %v412
      %v439 = vpack.c.b16 %v415, %v414
      %v440 = vpack.c.b16 %v417, %v416
      %v441 = vpack.c.b16 %v419, %v418
      %v442 = vpack.c.b16 %v421, %v420
      %v443 = vpack.c.b16 %v423, %v422
      %v444 = vpack.c.b16 %v425, %v424
      %v445 = vpack.c.b16 %v427, %v426
      %v446 = vpack.c.b16 %v429, %v428
      %v447 = vpack.c.b16 %v431, %v430
      %v449 = vshrl.u32 %v432, 16
      %v451 = vrot.slane %v449, 7
      %v452 = vshll.u32 %v432, 16
      %v454 = vor.u32 %v451, %v452
      %v456 = vshrl.u32 %v433, 16
      %v458 = vrot.slane %v456, 7
      %v459 = vshll.u32 %v433, 16
      %v461 = vor.u32 %v458, %v459
      %v463 = vshrl.u32 %v434, 16
      %v465 = vrot.slane %v463, 7
      %v466 = vshll.u32 %v434, 16
      %v468 = vor.u32 %v465, %v466
      %v470 = vshrl.u32 %v435, 16
      %v472 = vrot.slane %v470, 7
      %v473 = vshll.u32 %v435, 16
      %v475 = vor.u32 %v472, %v473
      %v477 = vshrl.u32 %v436, 16
      %v479 = vrot.slane %v477, 7
      %v480 = vshll.u32 %v436, 16
      %v482 = vor.u32 %v479, %v480
      %v484 = vshrl.u32 %v437, 16
      %v486 = vrot.slane %v484, 7
      %v487 = vshll.u32 %v437, 16
      %v489 = vor.u32 %v486, %v487
      %v491 = vshrl.u32 %v438, 16
      %v493 = vrot.slane %v491, 7
      %v494 = vshll.u32 %v438, 16
      %v496 = vor.u32 %v493, %v494
      %v498 = vshrl.u32 %v439, 16
      %v500 = vrot.slane %v498, 7
      %v501 = vshll.u32 %v439, 16
      %v503 = vor.u32 %v500, %v501
      %v505 = vshrl.u32 %v440, 16
      %v507 = vrot.slane %v505, 7
      %v508 = vshll.u32 %v440, 16
      %v510 = vor.u32 %v507, %v508
      %v512 = vshrl.u32 %v441, 16
      %v514 = vrot.slane %v512, 7
      %v515 = vshll.u32 %v441, 16
      %v517 = vor.u32 %v514, %v515
      %v519 = vshrl.u32 %v442, 16
      %v521 = vrot.slane %v519, 7
      %v522 = vshll.u32 %v442, 16
      %v524 = vor.u32 %v521, %v522
      %v526 = vshrl.u32 %v443, 16
      %v528 = vrot.slane %v526, 7
      %v529 = vshll.u32 %v443, 16
      %v531 = vor.u32 %v528, %v529
      %v533 = vshrl.u32 %v444, 16
      %v535 = vrot.slane %v533, 7
      %v536 = vshll.u32 %v444, 16
      %v538 = vor.u32 %v535, %v536
      %v540 = vshrl.u32 %v445, 16
      %v542 = vrot.slane %v540, 7
      %v543 = vshll.u32 %v445, 16
      %v545 = vor.u32 %v542, %v543
      %v547 = vshrl.u32 %v446, 16
      %v549 = vrot.slane %v547, 7
      %v550 = vshll.u32 %v446, 16
      %v552 = vor.u32 %v549, %v550
      %v554 = vshrl.u32 %v447, 16
      %v556 = vrot.slane %v554, 7
      %v557 = vshll.u32 %v447, 16
      %v559 = vor.u32 %v556, %v557
      %vm576 = vcmask 31744
      %vm577 = vsmask.f32 7938
      %vm578 = vmand %vm576, %vm577
      %v579 = vld [vmem:[%s284] sm:$0xff]
      %v580 = vsel %vm578, %v454, %v579
      %581 = vst [vmem:[%s284] sm:$0xff] %v580
      %v582 = vld [vmem:[%s284 + $0x8] sm:$0xff]
      %v583 = vsel %vm578, %v461, %v582
      %584 = vst [vmem:[%s284 + $0x8] sm:$0xff] %v583
      %v585 = vld [vmem:[%s284 + $0x10] sm:$0xff]
      %v586 = vsel %vm578, %v468, %v585
      %587 = vst [vmem:[%s284 + $0x10] sm:$0xff] %v586
      %v588 = vld [vmem:[%s284 + $0x18] sm:$0xff]
      %v589 = vsel %vm578, %v475, %v588
      %590 = vst [vmem:[%s284 + $0x18] sm:$0xff] %v589
      %v591 = vld [vmem:[%s284 + $0x20] sm:$0xff]
      %v592 = vsel %vm578, %v482, %v591
      %593 = vst [vmem:[%s284 + $0x20] sm:$0xff] %v592
      %v594 = vld [vmem:[%s284 + $0x28] sm:$0xff]
      %v595 = vsel %vm578, %v489, %v594
      %596 = vst [vmem:[%s284 + $0x28] sm:$0xff] %v595
      %v597 = vld [vmem:[%s284 + $0x30] sm:$0xff]
      %v598 = vsel %vm578, %v496, %v597
      %599 = vst [vmem:[%s284 + $0x30] sm:$0xff] %v598
      %v600 = vld [vmem:[%s284 + $0x38] sm:$0xff]
      %v601 = vsel %vm578, %v503, %v600
      %602 = vst [vmem:[%s284 + $0x38] sm:$0xff] %v601
      %v603 = vld [vmem:[%s284 + $0x40] sm:$0xff]
      %v604 = vsel %vm578, %v510, %v603
      %605 = vst [vmem:[%s284 + $0x40] sm:$0xff] %v604
      %v606 = vld [vmem:[%s284 + $0x48] sm:$0xff]
      %v607 = vsel %vm578, %v517, %v606
      %608 = vst [vmem:[%s284 + $0x48] sm:$0xff] %v607
      %v609 = vld [vmem:[%s284 + $0x50] sm:$0xff]
      %v610 = vsel %vm578, %v524, %v609
      %611 = vst [vmem:[%s284 + $0x50] sm:$0xff] %v610
      %v612 = vld [vmem:[%s284 + $0x58] sm:$0xff]
      %v613 = vsel %vm578, %v531, %v612
      %614 = vst [vmem:[%s284 + $0x58] sm:$0xff] %v613
      %v615 = vld [vmem:[%s284 + $0x60] sm:$0xff]
      %v616 = vsel %vm578, %v538, %v615
      %617 = vst [vmem:[%s284 + $0x60] sm:$0xff] %v616
      %v618 = vld [vmem:[%s284 + $0x68] sm:$0xff]
      %v619 = vsel %vm578, %v545, %v618
      %620 = vst [vmem:[%s284 + $0x68] sm:$0xff] %v619
      %v621 = vld [vmem:[%s284 + $0x70] sm:$0xff]
      %v622 = vsel %vm578, %v552, %v621
      %623 = vst [vmem:[%s284 + $0x70] sm:$0xff] %v622
      %v624 = vld [vmem:[%s284 + $0x78] sm:$0xff]
      %v625 = vsel %vm578, %v559, %v624
      %626 = vst [vmem:[%s284 + $0x78] sm:$0xff] %v625
      %s627 = scalar_lea.vmem [#allocation2], 144
      %628 = vst.msk [vmem:[%s627] sm:$0xff] %vm280, 0
      %s629 = scalar_lea.vmem [#allocation2], 280
      %630 = vst.msk [vmem:[%s629] sm:$0xff] %vm280, 0
      %v631 = vld [vmem:[%s273] sm:$0xf]
      %v632 = vld [vmem:[%s273 + $0x4] sm:$0xf]
      %v633 = vld [vmem:[%s273 + $0x8] sm:$0xf]
      %v634 = vld [vmem:[%s273 + $0xc] sm:$0xf]
      %v635 = vld [vmem:[%s273 + $0x10] sm:$0xf]
      %v636 = vld [vmem:[%s273 + $0x14] sm:$0xf]
      %v637 = vld [vmem:[%s273 + $0x18] sm:$0xf]
      %v638 = vld [vmem:[%s273 + $0x1c] sm:$0xf]
      %v639 = vld [vmem:[%s273 + $0x20] sm:$0xf]
      %v640 = vld [vmem:[%s273 + $0x24] sm:$0xf]
      %v641 = vld [vmem:[%s273 + $0x28] sm:$0xf]
      %v642 = vld [vmem:[%s273 + $0x2c] sm:$0xf]
      %v643 = vld [vmem:[%s273 + $0x30] sm:$0xf]
      %v644 = vld [vmem:[%s273 + $0x34] sm:$0xf]
      %v645 = vld [vmem:[%s273 + $0x38] sm:$0xf]
      %v646 = vld [vmem:[%s273 + $0x3c] sm:$0xf]
      %v647 = vld [vmem:[%s273 + $0x40] sm:$0xf]
      %v648 = vld [vmem:[%s273 + $0x44] sm:$0xf]
      %v649 = vld [vmem:[%s273 + $0x48] sm:$0xf]
      %v650 = vld [vmem:[%s273 + $0x4c] sm:$0xf]
      %v651 = vld [vmem:[%s273 + $0x50] sm:$0xf]
      %v652 = vld [vmem:[%s273 + $0x54] sm:$0xf]
      %v653 = vld [vmem:[%s273 + $0x58] sm:$0xf]
      %v654 = vld [vmem:[%s273 + $0x5c] sm:$0xf]
      %v655 = vld [vmem:[%s273 + $0x60] sm:$0xf]
      %v656 = vld [vmem:[%s273 + $0x64] sm:$0xf]
      %v657 = vld [vmem:[%s273 + $0x68] sm:$0xf]
      %v658 = vld [vmem:[%s273 + $0x6c] sm:$0xf]
      %v659 = vld [vmem:[%s273 + $0x70] sm:$0xf]
      %v660 = vld [vmem:[%s273 + $0x74] sm:$0xf]
      %v661 = vld [vmem:[%s273 + $0x78] sm:$0xf]
      %v662 = vld [vmem:[%s273 + $0x7c] sm:$0xf]
      %v695 = vunpack.c.l.b16 %v631
      %v696 = vunpack.c.l.b16 %v632
      %v697 = vunpack.c.l.b16 %v633
      %v698 = vunpack.c.l.b16 %v634
      %v699 = vunpack.c.l.b16 %v635
      %v700 = vunpack.c.l.b16 %v636
      %v701 = vunpack.c.l.b16 %v637
      %v702 = vunpack.c.l.b16 %v638
      %v703 = vunpack.c.l.b16 %v639
      %v704 = vunpack.c.l.b16 %v640
      %v705 = vunpack.c.l.b16 %v641
      %v706 = vunpack.c.l.b16 %v642
      %v707 = vunpack.c.l.b16 %v643
      %v708 = vunpack.c.l.b16 %v644
      %v709 = vunpack.c.l.b16 %v645
      %v710 = vunpack.c.l.b16 %v646
      %v711 = vunpack.c.l.b16 %v647
      %v712 = vunpack.c.l.b16 %v648
      %v713 = vunpack.c.l.b16 %v649
      %v714 = vunpack.c.l.b16 %v650
      %v715 = vunpack.c.l.b16 %v651
      %v716 = vunpack.c.l.b16 %v652
      %v717 = vunpack.c.l.b16 %v653
      %v718 = vunpack.c.l.b16 %v654
      %v719 = vunpack.c.l.b16 %v655
      %v720 = vunpack.c.l.b16 %v656
      %v721 = vunpack.c.l.b16 %v657
      %v722 = vunpack.c.l.b16 %v658
      %v723 = vunpack.c.l.b16 %v659
      %v724 = vunpack.c.l.b16 %v660
      %v725 = vunpack.c.l.b16 %v661
      %v726 = vunpack.c.l.b16 %v662
      %v727 = vpack.c.b16 %v696, %v695
      %v728 = vpack.c.b16 %v698, %v697
      %v729 = vpack.c.b16 %v700, %v699
      %v730 = vpack.c.b16 %v702, %v701
      %v731 = vpack.c.b16 %v704, %v703
      %v732 = vpack.c.b16 %v706, %v705
      %v733 = vpack.c.b16 %v708, %v707
      %v734 = vpack.c.b16 %v710, %v709
      %v735 = vpack.c.b16 %v712, %v711
      %v736 = vpack.c.b16 %v714, %v713
      %v737 = vpack.c.b16 %v716, %v715
      %v738 = vpack.c.b16 %v718, %v717
      %v739 = vpack.c.b16 %v720, %v719
      %v740 = vpack.c.b16 %v722, %v721
      %v741 = vpack.c.b16 %v724, %v723
      %v742 = vpack.c.b16 %v726, %v725
      %s759 = scalar_lea.vmem [#allocation2], 152
      %760 = vst.msk [vmem:[%s759] sm:$0xff] %vm280, %v727
      %761 = vst.msk [vmem:[%s759 + $0x8] sm:$0xff] %vm280, %v728
      %762 = vst.msk [vmem:[%s759 + $0x10] sm:$0xff] %vm280, %v729
      %763 = vst.msk [vmem:[%s759 + $0x18] sm:$0xff] %vm280, %v730
      %764 = vst.msk [vmem:[%s759 + $0x20] sm:$0xff] %vm280, %v731
      %765 = vst.msk [vmem:[%s759 + $0x28] sm:$0xff] %vm280, %v732
      %766 = vst.msk [vmem:[%s759 + $0x30] sm:$0xff] %vm280, %v733
      %767 = vst.msk [vmem:[%s759 + $0x38] sm:$0xff] %vm280, %v734
      %768 = vst.msk [vmem:[%s759 + $0x40] sm:$0xff] %vm280, %v735
      %769 = vst.msk [vmem:[%s759 + $0x48] sm:$0xff] %vm280, %v736
      %770 = vst.msk [vmem:[%s759 + $0x50] sm:$0xff] %vm280, %v737
      %771 = vst.msk [vmem:[%s759 + $0x58] sm:$0xff] %vm280, %v738
      %772 = vst.msk [vmem:[%s759 + $0x60] sm:$0xff] %vm280, %v739
      %773 = vst.msk [vmem:[%s759 + $0x68] sm:$0xff] %vm280, %v740
      %774 = vst.msk [vmem:[%s759 + $0x70] sm:$0xff] %vm280, %v741
      %775 = vst.msk [vmem:[%s759 + $0x78] sm:$0xff] %vm280, %v742
      %s776 = scalar_lea.vmem [#allocation2], 288
      %777 = vst.msk [vmem:[%s776] sm:$0xff] %vm280, 0
      %s778 = scalar_lea.vmem [#allocation2], 424
      %779 = vst.msk [vmem:[%s778] sm:$0xff] %vm280, 0
      %s780 = scalar_lea.vmem [#allocation2], 296
      %vm781 = vcmask 31751
      %vm782 = vsmask.f32 7966
      %vm783 = vmand %vm781, %vm782
      %v784 = vld [vmem:[%s780] sm:$0x80]
      %v785 = vsel %vm783, 0, %v784
      %786 = vst [vmem:[%s780] sm:$0x80] %v785
      %v787 = vld [vmem:[%s780 + $0x8] sm:$0x80]
      %v788 = vsel %vm783, 0, %v787
      %789 = vst [vmem:[%s780 + $0x8] sm:$0x80] %v788
      %v790 = vld [vmem:[%s780 + $0x10] sm:$0x80]
      %v791 = vsel %vm783, 0, %v790
      %792 = vst [vmem:[%s780 + $0x10] sm:$0x80] %v791
      %v793 = vld [vmem:[%s780 + $0x18] sm:$0x80]
      %v794 = vsel %vm783, 0, %v793
      %795 = vst [vmem:[%s780 + $0x18] sm:$0x80] %v794
      %v796 = vld [vmem:[%s780 + $0x20] sm:$0x80]
      %v797 = vsel %vm783, 0, %v796
      %798 = vst [vmem:[%s780 + $0x20] sm:$0x80] %v797
      %v799 = vld [vmem:[%s780 + $0x28] sm:$0x80]
      %v800 = vsel %vm783, 0, %v799
      %801 = vst [vmem:[%s780 + $0x28] sm:$0x80] %v800
      %v802 = vld [vmem:[%s780 + $0x30] sm:$0x80]
      %v803 = vsel %vm783, 0, %v802
      %804 = vst [vmem:[%s780 + $0x30] sm:$0x80] %v803
      %v805 = vld [vmem:[%s780 + $0x38] sm:$0x80]
      %v806 = vsel %vm783, 0, %v805
      %807 = vst [vmem:[%s780 + $0x38] sm:$0x80] %v806
      %v808 = vld [vmem:[%s780 + $0x40] sm:$0x80]
      %v809 = vsel %vm783, 0, %v808
      %810 = vst [vmem:[%s780 + $0x40] sm:$0x80] %v809
      %v811 = vld [vmem:[%s780 + $0x48] sm:$0x80]
      %v812 = vsel %vm783, 0, %v811
      %813 = vst [vmem:[%s780 + $0x48] sm:$0x80] %v812
      %v814 = vld [vmem:[%s780 + $0x50] sm:$0x80]
      %v815 = vsel %vm783, 0, %v814
      %816 = vst [vmem:[%s780 + $0x50] sm:$0x80] %v815
      %v817 = vld [vmem:[%s780 + $0x58] sm:$0x80]
      %v818 = vsel %vm783, 0, %v817
      %819 = vst [vmem:[%s780 + $0x58] sm:$0x80] %v818
      %v820 = vld [vmem:[%s780 + $0x60] sm:$0x80]
      %v821 = vsel %vm783, 0, %v820
      %822 = vst [vmem:[%s780 + $0x60] sm:$0x80] %v821
      %v823 = vld [vmem:[%s780 + $0x68] sm:$0x80]
      %v824 = vsel %vm783, 0, %v823
      %825 = vst [vmem:[%s780 + $0x68] sm:$0x80] %v824
      %v826 = vld [vmem:[%s780 + $0x70] sm:$0x80]
      %v827 = vsel %vm783, 0, %v826
      %828 = vst [vmem:[%s780 + $0x70] sm:$0x80] %v827
      %v829 = vld [vmem:[%s780 + $0x78] sm:$0x80]
      %v830 = vsel %vm783, 0, %v829
      %831 = vst [vmem:[%s780 + $0x78] sm:$0x80] %v830
      %v832 = vld [vmem:[%s273] sm:$0xf]
      %v833 = vld [vmem:[%s273 + $0x4] sm:$0xf]
      %v834 = vld [vmem:[%s273 + $0x8] sm:$0xf]
      %v835 = vld [vmem:[%s273 + $0xc] sm:$0xf]
      %v836 = vld [vmem:[%s273 + $0x10] sm:$0xf]
      %v837 = vld [vmem:[%s273 + $0x14] sm:$0xf]
      %v838 = vld [vmem:[%s273 + $0x18] sm:$0xf]
      %v839 = vld [vmem:[%s273 + $0x1c] sm:$0xf]
      %v840 = vld [vmem:[%s273 + $0x20] sm:$0xf]
      %v841 = vld [vmem:[%s273 + $0x24] sm:$0xf]
      %v842 = vld [vmem:[%s273 + $0x28] sm:$0xf]
      %v843 = vld [vmem:[%s273 + $0x2c] sm:$0xf]
      %v844 = vld [vmem:[%s273 + $0x30] sm:$0xf]
      %v845 = vld [vmem:[%s273 + $0x34] sm:$0xf]
      %v846 = vld [vmem:[%s273 + $0x38] sm:$0xf]
      %v847 = vld [vmem:[%s273 + $0x3c] sm:$0xf]
      %v848 = vld [vmem:[%s273 + $0x40] sm:$0xf]
      %v849 = vld [vmem:[%s273 + $0x44] sm:$0xf]
      %v850 = vld [vmem:[%s273 + $0x48] sm:$0xf]
      %v851 = vld [vmem:[%s273 + $0x4c] sm:$0xf]
      %v852 = vld [vmem:[%s273 + $0x50] sm:$0xf]
      %v853 = vld [vmem:[%s273 + $0x54] sm:$0xf]
      %v854 = vld [vmem:[%s273 + $0x58] sm:$0xf]
      %v855 = vld [vmem:[%s273 + $0x5c] sm:$0xf]
      %v856 = vld [vmem:[%s273 + $0x60] sm:$0xf]
      %v857 = vld [vmem:[%s273 + $0x64] sm:$0xf]
      %v858 = vld [vmem:[%s273 + $0x68] sm:$0xf]
      %v859 = vld [vmem:[%s273 + $0x6c] sm:$0xf]
      %v860 = vld [vmem:[%s273 + $0x70] sm:$0xf]
      %v861 = vld [vmem:[%s273 + $0x74] sm:$0xf]
      %v862 = vld [vmem:[%s273 + $0x78] sm:$0xf]
      %v863 = vld [vmem:[%s273 + $0x7c] sm:$0xf]
      %v896 = vunpack.c.l.b16 %v832
      %v897 = vunpack.c.l.b16 %v833
      %v898 = vunpack.c.l.b16 %v834
      %v899 = vunpack.c.l.b16 %v835
      %v900 = vunpack.c.l.b16 %v836
      %v901 = vunpack.c.l.b16 %v837
      %v902 = vunpack.c.l.b16 %v838
      %v903 = vunpack.c.l.b16 %v839
      %v904 = vunpack.c.l.b16 %v840
      %v905 = vunpack.c.l.b16 %v841
      %v906 = vunpack.c.l.b16 %v842
      %v907 = vunpack.c.l.b16 %v843
      %v908 = vunpack.c.l.b16 %v844
      %v909 = vunpack.c.l.b16 %v845
      %v910 = vunpack.c.l.b16 %v846
      %v911 = vunpack.c.l.b16 %v847
      %v912 = vunpack.c.l.b16 %v848
      %v913 = vunpack.c.l.b16 %v849
      %v914 = vunpack.c.l.b16 %v850
      %v915 = vunpack.c.l.b16 %v851
      %v916 = vunpack.c.l.b16 %v852
      %v917 = vunpack.c.l.b16 %v853
      %v918 = vunpack.c.l.b16 %v854
      %v919 = vunpack.c.l.b16 %v855
      %v920 = vunpack.c.l.b16 %v856
      %v921 = vunpack.c.l.b16 %v857
      %v922 = vunpack.c.l.b16 %v858
      %v923 = vunpack.c.l.b16 %v859
      %v924 = vunpack.c.l.b16 %v860
      %v925 = vunpack.c.l.b16 %v861
      %v926 = vunpack.c.l.b16 %v862
      %v927 = vunpack.c.l.b16 %v863
      %v928 = vpack.c.b16 %v897, %v896
      %v929 = vpack.c.b16 %v899, %v898
      %v930 = vpack.c.b16 %v901, %v900
      %v931 = vpack.c.b16 %v903, %v902
      %v932 = vpack.c.b16 %v905, %v904
      %v933 = vpack.c.b16 %v907, %v906
      %v934 = vpack.c.b16 %v909, %v908
      %v935 = vpack.c.b16 %v911, %v910
      %v936 = vpack.c.b16 %v913, %v912
      %v937 = vpack.c.b16 %v915, %v914
      %v938 = vpack.c.b16 %v917, %v916
      %v939 = vpack.c.b16 %v919, %v918
      %v940 = vpack.c.b16 %v921, %v920
      %v941 = vpack.c.b16 %v923, %v922
      %v942 = vpack.c.b16 %v925, %v924
      %v943 = vpack.c.b16 %v927, %v926
      %v945 = vshrl.u32 %v928, 16
      %v947 = vshll.u32 %v928, 16
      %v949 = vrot.slane %v947, 1
      %v950 = vor.u32 %v945, %v949
      %v952 = vshrl.u32 %v929, 16
      %v954 = vshll.u32 %v929, 16
      %v956 = vrot.slane %v954, 1
      %v957 = vor.u32 %v952, %v956
      %v959 = vshrl.u32 %v930, 16
      %v961 = vshll.u32 %v930, 16
      %v963 = vrot.slane %v961, 1
      %v964 = vor.u32 %v959, %v963
      %v966 = vshrl.u32 %v931, 16
      %v968 = vshll.u32 %v931, 16
      %v970 = vrot.slane %v968, 1
      %v971 = vor.u32 %v966, %v970
      %v973 = vshrl.u32 %v932, 16
      %v975 = vshll.u32 %v932, 16
      %v977 = vrot.slane %v975, 1
      %v978 = vor.u32 %v973, %v977
      %v980 = vshrl.u32 %v933, 16
      %v982 = vshll.u32 %v933, 16
      %v984 = vrot.slane %v982, 1
      %v985 = vor.u32 %v980, %v984
      %v987 = vshrl.u32 %v934, 16
      %v989 = vshll.u32 %v934, 16
      %v991 = vrot.slane %v989, 1
      %v992 = vor.u32 %v987, %v991
      %v994 = vshrl.u32 %v935, 16
      %v996 = vshll.u32 %v935, 16
      %v998 = vrot.slane %v996, 1
      %v999 = vor.u32 %v994, %v998
      %v1001 = vshrl.u32 %v936, 16
      %v1003 = vshll.u32 %v936, 16
      %v1005 = vrot.slane %v1003, 1
      %v1006 = vor.u32 %v1001, %v1005
      %v1008 = vshrl.u32 %v937, 16
      %v1010 = vshll.u32 %v937, 16
      %v1012 = vrot.slane %v1010, 1
      %v1013 = vor.u32 %v1008, %v1012
      %v1015 = vshrl.u32 %v938, 16
      %v1017 = vshll.u32 %v938, 16
      %v1019 = vrot.slane %v1017, 1
      %v1020 = vor.u32 %v1015, %v1019
      %v1022 = vshrl.u32 %v939, 16
      %v1024 = vshll.u32 %v939, 16
      %v1026 = vrot.slane %v1024, 1
      %v1027 = vor.u32 %v1022, %v1026
      %v1029 = vshrl.u32 %v940, 16
      %v1031 = vshll.u32 %v940, 16
      %v1033 = vrot.slane %v1031, 1
      %v1034 = vor.u32 %v1029, %v1033
      %v1036 = vshrl.u32 %v941, 16
      %v1038 = vshll.u32 %v941, 16
      %v1040 = vrot.slane %v1038, 1
      %v1041 = vor.u32 %v1036, %v1040
      %v1043 = vshrl.u32 %v942, 16
      %v1045 = vshll.u32 %v942, 16
      %v1047 = vrot.slane %v1045, 1
      %v1048 = vor.u32 %v1043, %v1047
      %v1050 = vshrl.u32 %v943, 16
      %v1052 = vshll.u32 %v943, 16
      %v1054 = vrot.slane %v1052, 1
      %v1055 = vor.u32 %v1050, %v1054
      %vm1072 = vsmask.f32 7424
      %vm1073 = vmand %vm576, %vm1072
      %v1074 = vld [vmem:[%s780] sm:$0xff]
      %v1075 = vsel %vm1073, %v950, %v1074
      %1076 = vst [vmem:[%s780] sm:$0xff] %v1075
      %v1077 = vld [vmem:[%s780 + $0x8] sm:$0xff]
      %v1078 = vsel %vm1073, %v957, %v1077
      %1079 = vst [vmem:[%s780 + $0x8] sm:$0xff] %v1078
      %v1080 = vld [vmem:[%s780 + $0x10] sm:$0xff]
      %v1081 = vsel %vm1073, %v964, %v1080
      %1082 = vst [vmem:[%s780 + $0x10] sm:$0xff] %v1081
      %v1083 = vld [vmem:[%s780 + $0x18] sm:$0xff]
      %v1084 = vsel %vm1073, %v971, %v1083
      %1085 = vst [vmem:[%s780 + $0x18] sm:$0xff] %v1084
      %v1086 = vld [vmem:[%s780 + $0x20] sm:$0xff]
      %v1087 = vsel %vm1073, %v978, %v1086
      %1088 = vst [vmem:[%s780 + $0x20] sm:$0xff] %v1087
      %v1089 = vld [vmem:[%s780 + $0x28] sm:$0xff]
      %v1090 = vsel %vm1073, %v985, %v1089
      %1091 = vst [vmem:[%s780 + $0x28] sm:$0xff] %v1090
      %v1092 = vld [vmem:[%s780 + $0x30] sm:$0xff]
      %v1093 = vsel %vm1073, %v992, %v1092
      %1094 = vst [vmem:[%s780 + $0x30] sm:$0xff] %v1093
      %v1095 = vld [vmem:[%s780 + $0x38] sm:$0xff]
      %v1096 = vsel %vm1073, %v999, %v1095
      %1097 = vst [vmem:[%s780 + $0x38] sm:$0xff] %v1096
      %v1098 = vld [vmem:[%s780 + $0x40] sm:$0xff]
      %v1099 = vsel %vm1073, %v1006, %v1098
      %1100 = vst [vmem:[%s780 + $0x40] sm:$0xff] %v1099
      %v1101 = vld [vmem:[%s780 + $0x48] sm:$0xff]
      %v1102 = vsel %vm1073, %v1013, %v1101
      %1103 = vst [vmem:[%s780 + $0x48] sm:$0xff] %v1102
      %v1104 = vld [vmem:[%s780 + $0x50] sm:$0xff]
      %v1105 = vsel %vm1073, %v1020, %v1104
      %1106 = vst [vmem:[%s780 + $0x50] sm:$0xff] %v1105
      %v1107 = vld [vmem:[%s780 + $0x58] sm:$0xff]
      %v1108 = vsel %vm1073, %v1027, %v1107
      %1109 = vst [vmem:[%s780 + $0x58] sm:$0xff] %v1108
      %v1110 = vld [vmem:[%s780 + $0x60] sm:$0xff]
      %v1111 = vsel %vm1073, %v1034, %v1110
      %1112 = vst [vmem:[%s780 + $0x60] sm:$0xff] %v1111
      %v1113 = vld [vmem:[%s780 + $0x68] sm:$0xff]
      %v1114 = vsel %vm1073, %v1041, %v1113
      %1115 = vst [vmem:[%s780 + $0x68] sm:$0xff] %v1114
      %v1116 = vld [vmem:[%s780 + $0x70] sm:$0xff]
      %v1117 = vsel %vm1073, %v1048, %v1116
      %1118 = vst [vmem:[%s780 + $0x70] sm:$0xff] %v1117
      %v1119 = vld [vmem:[%s780 + $0x78] sm:$0xff]
      %v1120 = vsel %vm1073, %v1055, %v1119
      %1121 = vst [vmem:[%s780 + $0x78] sm:$0xff] %v1120
      %vm1122 = vcmask 64512
      %1123 = vst.msk [vmem:[#allocation3] sm:$0xff] %vm1122, 0
      %s1124 = scalar_lea.vmem [#allocation3], 136
      %1125 = vst.msk [vmem:[%s1124] sm:$0xff] %vm1122, 0
      %s1126 = scalar_lea.vmem [#allocation3], 144
      %1127 = vst.msk [vmem:[%s1126] sm:$0xff] %vm1122, 0
      %s1128 = scalar_lea.vmem [#allocation3], 280
      %1129 = vst.msk [vmem:[%s1128] sm:$0xff] %vm1122, 0
      %s1130 = scalar_lea.vmem [#allocation3], 288
      %1131 = vst.msk [vmem:[%s1130] sm:$0xff] %vm1122, 0
      %s1132 = scalar_lea.vmem [#allocation3], 424
      %1133 = vst.msk [vmem:[%s1132] sm:$0xff] %vm1122, 0
      %v1134 = vld [vmem:[#allocation2] sm:$0xff]
      %v1135 = vld [vmem:[#allocation2 + $0x8] sm:$0xff]
      %v1136 = vld [vmem:[#allocation2 + $0x10] sm:$0xff]
      %v1137 = vld [vmem:[#allocation2 + $0x18] sm:$0xff]
      %v1138 = vld [vmem:[#allocation2 + $0x20] sm:$0xff]
      %v1139 = vld [vmem:[#allocation2 + $0x28] sm:$0xff]
      %v1140 = vld [vmem:[#allocation2 + $0x30] sm:$0xff]
      %v1141 = vld [vmem:[#allocation2 + $0x38] sm:$0xff]
      %v1142 = vld [vmem:[#allocation2 + $0x40] sm:$0xff]
      %v1143 = vld [vmem:[#allocation2 + $0x48] sm:$0xff]
      %v1144 = vld [vmem:[#allocation2 + $0x50] sm:$0xff]
      %v1145 = vld [vmem:[#allocation2 + $0x58] sm:$0xff]
      %v1146 = vld [vmem:[#allocation2 + $0x60] sm:$0xff]
      %v1147 = vld [vmem:[#allocation2 + $0x68] sm:$0xff]
      %v1148 = vld [vmem:[#allocation2 + $0x70] sm:$0xff]
      %v1149 = vld [vmem:[#allocation2 + $0x78] sm:$0xff]
      %v1150 = vld [vmem:[%s1] sm:$0x3]
      %v1151 = vld [vmem:[%s627] sm:$0xff]
      %v1152 = vld [vmem:[%s627 + $0x8] sm:$0xff]
      %v1153 = vld [vmem:[%s627 + $0x10] sm:$0xff]
      %v1154 = vld [vmem:[%s627 + $0x18] sm:$0xff]
      %v1155 = vld [vmem:[%s627 + $0x20] sm:$0xff]
      %v1156 = vld [vmem:[%s627 + $0x28] sm:$0xff]
      %v1157 = vld [vmem:[%s627 + $0x30] sm:$0xff]
      %v1158 = vld [vmem:[%s627 + $0x38] sm:$0xff]
      %v1159 = vld [vmem:[%s627 + $0x40] sm:$0xff]
      %v1160 = vld [vmem:[%s627 + $0x48] sm:$0xff]
      %v1161 = vld [vmem:[%s627 + $0x50] sm:$0xff]
      %v1162 = vld [vmem:[%s627 + $0x58] sm:$0xff]
      %v1163 = vld [vmem:[%s627 + $0x60] sm:$0xff]
      %v1164 = vld [vmem:[%s627 + $0x68] sm:$0xff]
      %v1165 = vld [vmem:[%s627 + $0x70] sm:$0xff]
      %v1166 = vld [vmem:[%s627 + $0x78] sm:$0xff]
      %s1167 = scalar_lea.vmem %s1, 2
      %v1168 = vld [vmem:[%s1167] sm:$0x3]
      %v1170 = vsel %vm280, %v1151, 0
      %v1173 = vsel %vm280, %v1152, 0
      %v1176 = vsel %vm280, %v1153, 0
      %v1179 = vsel %vm280, %v1154, 0
      %v1182 = vsel %vm280, %v1155, 0
      %v1185 = vsel %vm280, %v1156, 0
      %v1188 = vsel %vm280, %v1157, 0
      %v1191 = vsel %vm280, %v1158, 0
      %v1194 = vsel %vm280, %v1159, 0
      %v1197 = vsel %vm280, %v1160, 0
      %v1200 = vsel %vm280, %v1161, 0
      %v1203 = vsel %vm280, %v1162, 0
      %v1206 = vsel %vm280, %v1163, 0
      %v1209 = vsel %vm280, %v1164, 0
      %v1212 = vsel %vm280, %v1165, 0
      %v1215 = vsel %vm280, %v1166, 0
      %vm1217 = vcmask 1041408
      %v1219 = vsel %vm1217, %v1168, 0
      %1221 = vmatprep.subr.bf16.mxu0 0
      %1222 = vmatpush1.bf16.msra.mxu0 %v1219
      %1223 = vmatprep.subr.bf16.mxu0 0
      %1224 = vmatpush1.bf16.msra.mxu0 0
      %1225 = vmatprep.subr.bf16.mxu0 0
      %1226 = vmatpush1.bf16.msra.mxu0 0
      %1227 = vmatprep.subr.bf16.mxu0 0
      %1228 = vmatpush1.bf16.msra.mxu0 0
      %1229 = vmatprep.subr.bf16.mxu0 0
      %1230 = vmatpush1.bf16.msra.mxu0 0
      %1231 = vmatprep.subr.bf16.mxu0 0
      %1232 = vmatpush1.bf16.msra.mxu0 0
      %1233 = vmatprep.subr.bf16.mxu0 0
      %1234 = vmatpush1.bf16.msra.mxu0 0
      %1235 = vmatprep.subr.bf16.mxu0 0
      %1236 = vmatpush1.bf16.msra.mxu0 0
      %1237 = vmatprep.subr.bf16.mxu0 0
      %1238 = vmatpush1.bf16.msra.mxu0 0
      %1239 = vmatprep.subr.bf16.mxu0 0
      %1240 = vmatpush1.bf16.msra.mxu0 0
      %1241 = vmatprep.subr.bf16.mxu0 0
      %1242 = vmatpush1.bf16.msra.mxu0 0
      %1243 = vmatprep.subr.bf16.mxu0 0
      %1244 = vmatpush1.bf16.msra.mxu0 0
      %1245 = vmatprep.subr.bf16.mxu0 0
      %1246 = vmatpush1.bf16.msra.mxu0 0
      %1247 = vmatprep.subr.bf16.mxu0 0
      %1248 = vmatpush1.bf16.msra.mxu0 0
      %1249 = vmatprep.subr.bf16.mxu0 0
      %1250 = vmatpush1.bf16.msra.mxu0 0
      %1251 = vmatprep.subr.bf16.mxu0 0
      %1252 = vmatpush1.bf16.msra.mxu0 0
      %1253 = vmatprep.mubr.bf16.mxu0 0
      %1254 = vmatmul.mubr.bf16.gmra.mrb[0].mxu0 %v1170
      %v1255 = vpop.f32.mrb[0].mxu0
      %v1256 = vadd.f32 0.0, %v1255
      %v1257 = vpop.f32.mrb[0].mxu0
      %v1258 = vpop.f32.mrb[0].mxu0
      %v1259 = vadd.f32 0.0, %v1258
      %v1260 = vpop.f32.mrb[0].mxu0
      %1261 = vmatprep.mubr.bf16.mxu0 0
      %1262 = vmatmul.mubr.bf16.gmra.mrb[0].mxu0 %v1173
      %v1263 = vpop.f32.mrb[0].mxu0
      %v1264 = vadd.f32 0.0, %v1263
      %v1265 = vpop.f32.mrb[0].mxu0
      %v1266 = vpop.f32.mrb[0].mxu0
      %v1267 = vadd.f32 0.0, %v1266
      %v1268 = vpop.f32.mrb[0].mxu0
      %1269 = vmatprep.mubr.bf16.mxu0 0
      %1270 = vmatmul.mubr.bf16.gmra.mrb[0].mxu0 %v1176
      %v1271 = vpop.f32.mrb[0].mxu0
      %v1272 = vadd.f32 0.0, %v1271
      %v1273 = vpop.f32.mrb[0].mxu0
      %v1274 = vpop.f32.mrb[0].mxu0
      %v1275 = vadd.f32 0.0, %v1274
      %v1276 = vpop.f32.mrb[0].mxu0
      %1277 = vmatprep.mubr.bf16.mxu0 0
      %1278 = vmatmul.mubr.bf16.gmra.mrb[0].mxu0 %v1179
      %v1279 = vpop.f32.mrb[0].mxu0
      %v1280 = vadd.f32 0.0, %v1279
      %v1281 = vpop.f32.mrb[0].mxu0
      %v1282 = vpop.f32.mrb[0].mxu0
      %v1283 = vadd.f32 0.0, %v1282
      %v1284 = vpop.f32.mrb[0].mxu0
      %1285 = vmatprep.mubr.bf16.mxu0 0
      %1286 = vmatmul.mubr.bf16.gmra.mrb[0].mxu0 %v1182
      %v1287 = vpop.f32.mrb[0].mxu0
      %v1288 = vadd.f32 0.0, %v1287
      %v1289 = vpop.f32.mrb[0].mxu0
      %v1290 = vpop.f32.mrb[0].mxu0
      %v1291 = vadd.f32 0.0, %v1290
      %v1292 = vpop.f32.mrb[0].mxu0
      %1293 = vmatprep.mubr.bf16.mxu0 0
      %1294 = vmatmul.mubr.bf16.gmra.mrb[0].mxu0 %v1185
      %v1295 = vpop.f32.mrb[0].mxu0
      %v1296 = vadd.f32 0.0, %v1295
      %v1297 = vpop.f32.mrb[0].mxu0
      %v1298 = vpop.f32.mrb[0].mxu0
      %v1299 = vadd.f32 0.0, %v1298
      %v1300 = vpop.f32.mrb[0].mxu0
      %1301 = vmatprep.mubr.bf16.mxu0 0
      %1302 = vmatmul.mubr.bf16.gmra.mrb[0].mxu0 %v1188
      %v1303 = vpop.f32.mrb[0].mxu0
      %v1304 = vadd.f32 0.0, %v1303
      %v1305 = vpop.f32.mrb[0].mxu0
      %v1306 = vpop.f32.mrb[0].mxu0
      %v1307 = vadd.f32 0.0, %v1306
      %v1308 = vpop.f32.mrb[0].mxu0
      %1309 = vmatprep.mubr.bf16.mxu0 0
      %1310 = vmatmul.mubr.bf16.gmra.mrb[0].mxu0 %v1191
      %v1311 = vpop.f32.mrb[0].mxu0
      %v1312 = vadd.f32 0.0, %v1311
      %v1313 = vpop.f32.mrb[0].mxu0
      %v1314 = vpop.f32.mrb[0].mxu0
      %v1315 = vadd.f32 0.0, %v1314
      %v1316 = vpop.f32.mrb[0].mxu0
      %1317 = vmatprep.mubr.bf16.mxu0 0
      %1318 = vmatmul.mubr.bf16.gmra.mrb[0].mxu0 %v1194
      %v1319 = vpop.f32.mrb[0].mxu0
      %v1320 = vadd.f32 0.0, %v1319
      %v1321 = vpop.f32.mrb[0].mxu0
      %v1322 = vpop.f32.mrb[0].mxu0
      %v1323 = vadd.f32 0.0, %v1322
      %v1324 = vpop.f32.mrb[0].mxu0
      %1325 = vmatprep.mubr.bf16.mxu0 0
      %1326 = vmatmul.mubr.bf16.gmra.mrb[0].mxu0 %v1197
      %v1327 = vpop.f32.mrb[0].mxu0
      %v1328 = vadd.f32 0.0, %v1327
      %v1329 = vpop.f32.mrb[0].mxu0
      %v1330 = vpop.f32.mrb[0].mxu0
      %v1331 = vadd.f32 0.0, %v1330
      %v1332 = vpop.f32.mrb[0].mxu0
      %1333 = vmatprep.mubr.bf16.mxu0 0
      %1334 = vmatmul.mubr.bf16.gmra.mrb[0].mxu0 %v1200
      %v1335 = vpop.f32.mrb[0].mxu0
      %v1336 = vadd.f32 0.0, %v1335
      %v1337 = vpop.f32.mrb[0].mxu0
      %v1338 = vpop.f32.mrb[0].mxu0
      %v1339 = vadd.f32 0.0, %v1338
      %v1340 = vpop.f32.mrb[0].mxu0
      %1341 = vmatprep.mubr.bf16.mxu0 0
      %1342 = vmatmul.mubr.bf16.gmra.mrb[0].mxu0 %v1203
      %v1343 = vpop.f32.mrb[0].mxu0
      %v1344 = vadd.f32 0.0, %v1343
      %v1345 = vpop.f32.mrb[0].mxu0
      %v1346 = vpop.f32.mrb[0].mxu0
      %v1347 = vadd.f32 0.0, %v1346
      %v1348 = vpop.f32.mrb[0].mxu0
      %1349 = vmatprep.mubr.bf16.mxu0 0
      %1350 = vmatmul.mubr.bf16.gmra.mrb[0].mxu0 %v1206
      %v1351 = vpop.f32.mrb[0].mxu0
      %v1352 = vadd.f32 0.0, %v1351
      %v1353 = vpop.f32.mrb[0].mxu0
      %v1354 = vpop.f32.mrb[0].mxu0
      %v1355 = vadd.f32 0.0, %v1354
      %v1356 = vpop.f32.mrb[0].mxu0
      %1357 = vmatprep.mubr.bf16.mxu0 0
      %1358 = vmatmul.mubr.bf16.gmra.mrb[0].mxu0 %v1209
      %v1359 = vpop.f32.mrb[0].mxu0
      %v1360 = vadd.f32 0.0, %v1359
      %v1361 = vpop.f32.mrb[0].mxu0
      %v1362 = vpop.f32.mrb[0].mxu0
      %v1363 = vadd.f32 0.0, %v1362
      %v1364 = vpop.f32.mrb[0].mxu0
      %1365 = vmatprep.mubr.bf16.mxu0 0
      %1366 = vmatmul.mubr.bf16.gmra.mrb[0].mxu0 %v1212
      %v1367 = vpop.f32.mrb[0].mxu0
      %v1368 = vadd.f32 0.0, %v1367
      %v1369 = vpop.f32.mrb[0].mxu0
      %v1370 = vpop.f32.mrb[0].mxu0
      %v1371 = vadd.f32 0.0, %v1370
      %v1372 = vpop.f32.mrb[0].mxu0
      %1373 = vmatprep.mubr.bf16.mxu0 0
      %1374 = vmatmul.mubr.bf16.gmra.mrb[0].mxu0 %v1215
      %v1375 = vpop.f32.mrb[0].mxu0
      %v1376 = vadd.f32 0.0, %v1375
      %v1377 = vpop.f32.mrb[0].mxu0
      %v1378 = vpop.f32.mrb[0].mxu0
      %v1379 = vadd.f32 0.0, %v1378
      %v1380 = vpop.f32.mrb[0].mxu0
      %1381 = vdwg.mxu0
      %v1383 = vsel %vm280, %v1134, 0
      %v1386 = vsel %vm280, %v1135, 0
      %v1389 = vsel %vm280, %v1136, 0
      %v1392 = vsel %vm280, %v1137, 0
      %v1395 = vsel %vm280, %v1138, 0
      %v1398 = vsel %vm280, %v1139, 0
      %v1401 = vsel %vm280, %v1140, 0
      %v1404 = vsel %vm280, %v1141, 0
      %v1407 = vsel %vm280, %v1142, 0
      %v1410 = vsel %vm280, %v1143, 0
      %v1413 = vsel %vm280, %v1144, 0
      %v1416 = vsel %vm280, %v1145, 0
      %v1419 = vsel %vm280, %v1146, 0
      %v1422 = vsel %vm280, %v1147, 0
      %v1425 = vsel %vm280, %v1148, 0
      %v1428 = vsel %vm280, %v1149, 0
      %v1431 = vsel %vm1217, %v1150, 0
      %1433 = vmatprep.subr.bf16.mxu0 0
      %1434 = vmatpush1.bf16.msra.mxu0 %v1431
      %1435 = vmatprep.subr.bf16.mxu0 0
      %1436 = vmatpush1.bf16.msra.mxu0 0
      %1437 = vmatprep.subr.bf16.mxu0 0
      %1438 = vmatpush1.bf16.msra.mxu0 0
      %1439 = vmatprep.subr.bf16.mxu0 0
      %1440 = vmatpush1.bf16.msra.mxu0 0
      %1441 = vmatprep.subr.bf16.mxu0 0
      %1442 = vmatpush1.bf16.msra.mxu0 0
      %1443 = vmatprep.subr.bf16.mxu0 0
      %1444 = vmatpush1.bf16.msra.mxu0 0
      %1445 = vmatprep.subr.bf16.mxu0 0
      %1446 = vmatpush1.bf16.msra.mxu0 0
      %1447 = vmatprep.subr.bf16.mxu0 0
      %1448 = vmatpush1.bf16.msra.mxu0 0
      %1449 = vmatprep.subr.bf16.mxu0 0
      %1450 = vmatpush1.bf16.msra.mxu0 0
      %1451 = vmatprep.subr.bf16.mxu0 0
      %1452 = vmatpush1.bf16.msra.mxu0 0
      %1453 = vmatprep.subr.bf16.mxu0 0
      %1454 = vmatpush1.bf16.msra.mxu0 0
      %1455 = vmatprep.subr.bf16.mxu0 0
      %1456 = vmatpush1.bf16.msra.mxu0 0
      %1457 = vmatprep.subr.bf16.mxu0 0
      %1458 = vmatpush1.bf16.msra.mxu0 0
      %1459 = vmatprep.subr.bf16.mxu0 0
      %1460 = vmatpush1.bf16.msra.mxu0 0
      %1461 = vmatprep.subr.bf16.mxu0 0
      %1462 = vmatpush1.bf16.msra.mxu0 0
      %1463 = vmatprep.subr.bf16.mxu0 0
      %1464 = vmatpush1.bf16.msra.mxu0 0
      %1465 = vmatprep.mubr.bf16.mxu0 0
      %1466 = vmatmul.mubr.bf16.gmra.mrb[0].mxu0 %v1383
      %v1467 = vpop.f32.mrb[0].mxu0
      %v1468 = vadd.f32 %v1256, %v1467
      %v1469 = vpop.f32.mrb[0].mxu0
      %v1470 = vpop.f32.mrb[0].mxu0
      %v1471 = vadd.f32 %v1259, %v1470
      %v1472 = vpop.f32.mrb[0].mxu0
      %1473 = vmatprep.mubr.bf16.mxu0 0
      %1474 = vmatmul.mubr.bf16.gmra.mrb[0].mxu0 %v1386
      %v1475 = vpop.f32.mrb[0].mxu0
      %v1476 = vadd.f32 %v1264, %v1475
      %v1477 = vpop.f32.mrb[0].mxu0
      %v1478 = vpop.f32.mrb[0].mxu0
      %v1479 = vadd.f32 %v1267, %v1478
      %v1480 = vpop.f32.mrb[0].mxu0
      %1481 = vmatprep.mubr.bf16.mxu0 0
      %1482 = vmatmul.mubr.bf16.gmra.mrb[0].mxu0 %v1389
      %v1483 = vpop.f32.mrb[0].mxu0
      %v1484 = vadd.f32 %v1272, %v1483
      %v1485 = vpop.f32.mrb[0].mxu0
      %v1486 = vpop.f32.mrb[0].mxu0
      %v1487 = vadd.f32 %v1275, %v1486
      %v1488 = vpop.f32.mrb[0].mxu0
      %1489 = vmatprep.mubr.bf16.mxu0 0
      %1490 = vmatmul.mubr.bf16.gmra.mrb[0].mxu0 %v1392
      %v1491 = vpop.f32.mrb[0].mxu0
      %v1492 = vadd.f32 %v1280, %v1491
      %v1493 = vpop.f32.mrb[0].mxu0
      %v1494 = vpop.f32.mrb[0].mxu0
      %v1495 = vadd.f32 %v1283, %v1494
      %v1496 = vpop.f32.mrb[0].mxu0
      %1497 = vmatprep.mubr.bf16.mxu0 0
      %1498 = vmatmul.mubr.bf16.gmra.mrb[0].mxu0 %v1395
      %v1499 = vpop.f32.mrb[0].mxu0
      %v1500 = vadd.f32 %v1288, %v1499
      %v1501 = vpop.f32.mrb[0].mxu0
      %v1502 = vpop.f32.mrb[0].mxu0
      %v1503 = vadd.f32 %v1291, %v1502
      %v1504 = vpop.f32.mrb[0].mxu0
      %1505 = vmatprep.mubr.bf16.mxu0 0
      %1506 = vmatmul.mubr.bf16.gmra.mrb[0].mxu0 %v1398
      %v1507 = vpop.f32.mrb[0].mxu0
      %v1508 = vadd.f32 %v1296, %v1507
      %v1509 = vpop.f32.mrb[0].mxu0
      %v1510 = vpop.f32.mrb[0].mxu0
      %v1511 = vadd.f32 %v1299, %v1510
      %v1512 = vpop.f32.mrb[0].mxu0
      %1513 = vmatprep.mubr.bf16.mxu0 0
      %1514 = vmatmul.mubr.bf16.gmra.mrb[0].mxu0 %v1401
      %v1515 = vpop.f32.mrb[0].mxu0
      %v1516 = vadd.f32 %v1304, %v1515
      %v1517 = vpop.f32.mrb[0].mxu0
      %v1518 = vpop.f32.mrb[0].mxu0
      %v1519 = vadd.f32 %v1307, %v1518
      %v1520 = vpop.f32.mrb[0].mxu0
      %1521 = vmatprep.mubr.bf16.mxu0 0
      %1522 = vmatmul.mubr.bf16.gmra.mrb[0].mxu0 %v1404
      %v1523 = vpop.f32.mrb[0].mxu0
      %v1524 = vadd.f32 %v1312, %v1523
      %v1525 = vpop.f32.mrb[0].mxu0
      %v1526 = vpop.f32.mrb[0].mxu0
      %v1527 = vadd.f32 %v1315, %v1526
      %v1528 = vpop.f32.mrb[0].mxu0
      %1529 = vmatprep.mubr.bf16.mxu0 0
      %1530 = vmatmul.mubr.bf16.gmra.mrb[0].mxu0 %v1407
      %v1531 = vpop.f32.mrb[0].mxu0
      %v1532 = vadd.f32 %v1320, %v1531
      %v1533 = vpop.f32.mrb[0].mxu0
      %v1534 = vpop.f32.mrb[0].mxu0
      %v1535 = vadd.f32 %v1323, %v1534
      %v1536 = vpop.f32.mrb[0].mxu0
      %1537 = vmatprep.mubr.bf16.mxu0 0
      %1538 = vmatmul.mubr.bf16.gmra.mrb[0].mxu0 %v1410
      %v1539 = vpop.f32.mrb[0].mxu0
      %v1540 = vadd.f32 %v1328, %v1539
      %v1541 = vpop.f32.mrb[0].mxu0
      %v1542 = vpop.f32.mrb[0].mxu0
      %v1543 = vadd.f32 %v1331, %v1542
      %v1544 = vpop.f32.mrb[0].mxu0
      %1545 = vmatprep.mubr.bf16.mxu0 0
      %1546 = vmatmul.mubr.bf16.gmra.mrb[0].mxu0 %v1413
      %v1547 = vpop.f32.mrb[0].mxu0
      %v1548 = vadd.f32 %v1336, %v1547
      %v1549 = vpop.f32.mrb[0].mxu0
      %v1550 = vpop.f32.mrb[0].mxu0
      %v1551 = vadd.f32 %v1339, %v1550
      %v1552 = vpop.f32.mrb[0].mxu0
      %1553 = vmatprep.mubr.bf16.mxu0 0
      %1554 = vmatmul.mubr.bf16.gmra.mrb[0].mxu0 %v1416
      %v1555 = vpop.f32.mrb[0].mxu0
      %v1556 = vadd.f32 %v1344, %v1555
      %v1557 = vpop.f32.mrb[0].mxu0
      %v1558 = vpop.f32.mrb[0].mxu0
      %v1559 = vadd.f32 %v1347, %v1558
      %v1560 = vpop.f32.mrb[0].mxu0
      %1561 = vmatprep.mubr.bf16.mxu0 0
      %1562 = vmatmul.mubr.bf16.gmra.mrb[0].mxu0 %v1419
      %v1563 = vpop.f32.mrb[0].mxu0
      %v1564 = vadd.f32 %v1352, %v1563
      %v1565 = vpop.f32.mrb[0].mxu0
      %v1566 = vpop.f32.mrb[0].mxu0
      %v1567 = vadd.f32 %v1355, %v1566
      %v1568 = vpop.f32.mrb[0].mxu0
      %1569 = vmatprep.mubr.bf16.mxu0 0
      %1570 = vmatmul.mubr.bf16.gmra.mrb[0].mxu0 %v1422
      %v1571 = vpop.f32.mrb[0].mxu0
      %v1572 = vadd.f32 %v1360, %v1571
      %v1573 = vpop.f32.mrb[0].mxu0
      %v1574 = vpop.f32.mrb[0].mxu0
      %v1575 = vadd.f32 %v1363, %v1574
      %v1576 = vpop.f32.mrb[0].mxu0
      %1577 = vmatprep.mubr.bf16.mxu0 0
      %1578 = vmatmul.mubr.bf16.gmra.mrb[0].mxu0 %v1425
      %v1579 = vpop.f32.mrb[0].mxu0
      %v1580 = vadd.f32 %v1368, %v1579
      %v1581 = vpop.f32.mrb[0].mxu0
      %v1582 = vpop.f32.mrb[0].mxu0
      %v1583 = vadd.f32 %v1371, %v1582
      %v1584 = vpop.f32.mrb[0].mxu0
      %1585 = vmatprep.mubr.bf16.mxu0 0
      %1586 = vmatmul.mubr.bf16.gmra.mrb[0].mxu0 %v1428
      %v1587 = vpop.f32.mrb[0].mxu0
      %v1588 = vadd.f32 %v1376, %v1587
      %v1589 = vpop.f32.mrb[0].mxu0
      %v1590 = vpop.f32.mrb[0].mxu0
      %v1591 = vadd.f32 %v1379, %v1590
      %v1592 = vpop.f32.mrb[0].mxu0
      %1593 = vdwg.mxu0
      %v1594 = vld [vmem:[%s776] sm:$0xff]
      %v1595 = vld [vmem:[%s776 + $0x8] sm:$0xff]
      %v1596 = vld [vmem:[%s776 + $0x10] sm:$0xff]
      %v1597 = vld [vmem:[%s776 + $0x18] sm:$0xff]
      %v1598 = vld [vmem:[%s776 + $0x20] sm:$0xff]
      %v1599 = vld [vmem:[%s776 + $0x28] sm:$0xff]
      %v1600 = vld [vmem:[%s776 + $0x30] sm:$0xff]
      %v1601 = vld [vmem:[%s776 + $0x38] sm:$0xff]
      %v1602 = vld [vmem:[%s776 + $0x40] sm:$0xff]
      %v1603 = vld [vmem:[%s776 + $0x48] sm:$0xff]
      %v1604 = vld [vmem:[%s776 + $0x50] sm:$0xff]
      %v1605 = vld [vmem:[%s776 + $0x58] sm:$0xff]
      %v1606 = vld [vmem:[%s776 + $0x60] sm:$0xff]
      %v1607 = vld [vmem:[%s776 + $0x68] sm:$0xff]
      %v1608 = vld [vmem:[%s776 + $0x70] sm:$0xff]
      %v1609 = vld [vmem:[%s776 + $0x78] sm:$0xff]
      %s1610 = scalar_lea.vmem %s1, 4
      %v1611 = vld [vmem:[%s1610] sm:$0x3]
      %v1613 = vsel %vm280, %v1594, 0
      %v1616 = vsel %vm280, %v1595, 0
      %v1619 = vsel %vm280, %v1596, 0
      %v1622 = vsel %vm280, %v1597, 0
      %v1625 = vsel %vm280, %v1598, 0
      %v1628 = vsel %vm280, %v1599, 0
      %v1631 = vsel %vm280, %v1600, 0
      %v1634 = vsel %vm280, %v1601, 0
      %v1637 = vsel %vm280, %v1602, 0
      %v1640 = vsel %vm280, %v1603, 0
      %v1643 = vsel %vm280, %v1604, 0
      %v1646 = vsel %vm280, %v1605, 0
      %v1649 = vsel %vm280, %v1606, 0
      %v1652 = vsel %vm280, %v1607, 0
      %v1655 = vsel %vm280, %v1608, 0
      %v1658 = vsel %vm280, %v1609, 0
      %v1661 = vsel %vm1217, %v1611, 0
      %1663 = vmatprep.subr.bf16.mxu0 0
      %1664 = vmatpush1.bf16.msra.mxu0 %v1661
      %1665 = vmatprep.subr.bf16.mxu0 0
      %1666 = vmatpush1.bf16.msra.mxu0 0
      %1667 = vmatprep.subr.bf16.mxu0 0
      %1668 = vmatpush1.bf16.msra.mxu0 0
      %1669 = vmatprep.subr.bf16.mxu0 0
      %1670 = vmatpush1.bf16.msra.mxu0 0
      %1671 = vmatprep.subr.bf16.mxu0 0
      %1672 = vmatpush1.bf16.msra.mxu0 0
      %1673 = vmatprep.subr.bf16.mxu0 0
      %1674 = vmatpush1.bf16.msra.mxu0 0
      %1675 = vmatprep.subr.bf16.mxu0 0
      %1676 = vmatpush1.bf16.msra.mxu0 0
      %1677 = vmatprep.subr.bf16.mxu0 0
      %1678 = vmatpush1.bf16.msra.mxu0 0
      %1679 = vmatprep.subr.bf16.mxu0 0
      %1680 = vmatpush1.bf16.msra.mxu0 0
      %1681 = vmatprep.subr.bf16.mxu0 0
      %1682 = vmatpush1.bf16.msra.mxu0 0
      %1683 = vmatprep.subr.bf16.mxu0 0
      %1684 = vmatpush1.bf16.msra.mxu0 0
      %1685 = vmatprep.subr.bf16.mxu0 0
      %1686 = vmatpush1.bf16.msra.mxu0 0
      %1687 = vmatprep.subr.bf16.mxu0 0
      %1688 = vmatpush1.bf16.msra.mxu0 0
      %1689 = vmatprep.subr.bf16.mxu0 0
      %1690 = vmatpush1.bf16.msra.mxu0 0
      %1691 = vmatprep.subr.bf16.mxu0 0
      %1692 = vmatpush1.bf16.msra.mxu0 0
      %1693 = vmatprep.subr.bf16.mxu0 0
      %1694 = vmatpush1.bf16.msra.mxu0 0
      %1695 = vmatprep.mubr.bf16.mxu0 0
      %1696 = vmatmul.mubr.bf16.gmra.mrb[0].mxu0 %v1613
      %v1697 = vpop.f32.mrb[0].mxu0
      %v1698 = vadd.f32 0.0, %v1697
      %v1699 = vpop.f32.mrb[0].mxu0
      %v1700 = vpop.f32.mrb[0].mxu0
      %v1701 = vadd.f32 0.0, %v1700
      %v1702 = vpop.f32.mrb[0].mxu0
      %1703 = vmatprep.mubr.bf16.mxu0 0
      %1704 = vmatmul.mubr.bf16.gmra.mrb[0].mxu0 %v1616
      %v1705 = vpop.f32.mrb[0].mxu0
      %v1706 = vadd.f32 0.0, %v1705
      %v1707 = vpop.f32.mrb[0].mxu0
      %v1708 = vpop.f32.mrb[0].mxu0
      %v1709 = vadd.f32 0.0, %v1708
      %v1710 = vpop.f32.mrb[0].mxu0
      %1711 = vmatprep.mubr.bf16.mxu0 0
      %1712 = vmatmul.mubr.bf16.gmra.mrb[0].mxu0 %v1619
      %v1713 = vpop.f32.mrb[0].mxu0
      %v1714 = vadd.f32 0.0, %v1713
      %v1715 = vpop.f32.mrb[0].mxu0
      %v1716 = vpop.f32.mrb[0].mxu0
      %v1717 = vadd.f32 0.0, %v1716
      %v1718 = vpop.f32.mrb[0].mxu0
      %1719 = vmatprep.mubr.bf16.mxu0 0
      %1720 = vmatmul.mubr.bf16.gmra.mrb[0].mxu0 %v1622
      %v1721 = vpop.f32.mrb[0].mxu0
      %v1722 = vadd.f32 0.0, %v1721
      %v1723 = vpop.f32.mrb[0].mxu0
      %v1724 = vpop.f32.mrb[0].mxu0
      %v1725 = vadd.f32 0.0, %v1724
      %v1726 = vpop.f32.mrb[0].mxu0
      %1727 = vmatprep.mubr.bf16.mxu0 0
      %1728 = vmatmul.mubr.bf16.gmra.mrb[0].mxu0 %v1625
      %v1729 = vpop.f32.mrb[0].mxu0
      %v1730 = vadd.f32 0.0, %v1729
      %v1731 = vpop.f32.mrb[0].mxu0
      %v1732 = vpop.f32.mrb[0].mxu0
      %v1733 = vadd.f32 0.0, %v1732
      %v1734 = vpop.f32.mrb[0].mxu0
      %1735 = vmatprep.mubr.bf16.mxu0 0
      %1736 = vmatmul.mubr.bf16.gmra.mrb[0].mxu0 %v1628
      %v1737 = vpop.f32.mrb[0].mxu0
      %v1738 = vadd.f32 0.0, %v1737
      %v1739 = vpop.f32.mrb[0].mxu0
      %v1740 = vpop.f32.mrb[0].mxu0
      %v1741 = vadd.f32 0.0, %v1740
      %v1742 = vpop.f32.mrb[0].mxu0
      %1743 = vmatprep.mubr.bf16.mxu0 0
      %1744 = vmatmul.mubr.bf16.gmra.mrb[0].mxu0 %v1631
      %v1745 = vpop.f32.mrb[0].mxu0
      %v1746 = vadd.f32 0.0, %v1745
      %v1747 = vpop.f32.mrb[0].mxu0
      %v1748 = vpop.f32.mrb[0].mxu0
      %v1749 = vadd.f32 0.0, %v1748
      %v1750 = vpop.f32.mrb[0].mxu0
      %1751 = vmatprep.mubr.bf16.mxu0 0
      %1752 = vmatmul.mubr.bf16.gmra.mrb[0].mxu0 %v1634
      %v1753 = vpop.f32.mrb[0].mxu0
      %v1754 = vadd.f32 0.0, %v1753
      %v1755 = vpop.f32.mrb[0].mxu0
      %v1756 = vpop.f32.mrb[0].mxu0
      %v1757 = vadd.f32 0.0, %v1756
      %v1758 = vpop.f32.mrb[0].mxu0
      %1759 = vmatprep.mubr.bf16.mxu0 0
      %1760 = vmatmul.mubr.bf16.gmra.mrb[0].mxu0 %v1637
      %v1761 = vpop.f32.mrb[0].mxu0
      %v1762 = vadd.f32 0.0, %v1761
      %v1763 = vpop.f32.mrb[0].mxu0
      %v1764 = vpop.f32.mrb[0].mxu0
      %v1765 = vadd.f32 0.0, %v1764
      %v1766 = vpop.f32.mrb[0].mxu0
      %1767 = vmatprep.mubr.bf16.mxu0 0
      %1768 = vmatmul.mubr.bf16.gmra.mrb[0].mxu0 %v1640
      %v1769 = vpop.f32.mrb[0].mxu0
      %v1770 = vadd.f32 0.0, %v1769
      %v1771 = vpop.f32.mrb[0].mxu0
      %v1772 = vpop.f32.mrb[0].mxu0
      %v1773 = vadd.f32 0.0, %v1772
      %v1774 = vpop.f32.mrb[0].mxu0
      %1775 = vmatprep.mubr.bf16.mxu0 0
      %1776 = vmatmul.mubr.bf16.gmra.mrb[0].mxu0 %v1643
      %v1777 = vpop.f32.mrb[0].mxu0
      %v1778 = vadd.f32 0.0, %v1777
      %v1779 = vpop.f32.mrb[0].mxu0
      %v1780 = vpop.f32.mrb[0].mxu0
      %v1781 = vadd.f32 0.0, %v1780
      %v1782 = vpop.f32.mrb[0].mxu0
      %1783 = vmatprep.mubr.bf16.mxu0 0
      %1784 = vmatmul.mubr.bf16.gmra.mrb[0].mxu0 %v1646
      %v1785 = vpop.f32.mrb[0].mxu0
      %v1786 = vadd.f32 0.0, %v1785
      %v1787 = vpop.f32.mrb[0].mxu0
      %v1788 = vpop.f32.mrb[0].mxu0
      %v1789 = vadd.f32 0.0, %v1788
      %v1790 = vpop.f32.mrb[0].mxu0
      %1791 = vmatprep.mubr.bf16.mxu0 0
      %1792 = vmatmul.mubr.bf16.gmra.mrb[0].mxu0 %v1649
      %v1793 = vpop.f32.mrb[0].mxu0
      %v1794 = vadd.f32 0.0, %v1793
      %v1795 = vpop.f32.mrb[0].mxu0
      %v1796 = vpop.f32.mrb[0].mxu0
      %v1797 = vadd.f32 0.0, %v1796
      %v1798 = vpop.f32.mrb[0].mxu0
      %1799 = vmatprep.mubr.bf16.mxu0 0
      %1800 = vmatmul.mubr.bf16.gmra.mrb[0].mxu0 %v1652
      %v1801 = vpop.f32.mrb[0].mxu0
      %v1802 = vadd.f32 0.0, %v1801
      %v1803 = vpop.f32.mrb[0].mxu0
      %v1804 = vpop.f32.mrb[0].mxu0
      %v1805 = vadd.f32 0.0, %v1804
      %v1806 = vpop.f32.mrb[0].mxu0
      %1807 = vmatprep.mubr.bf16.mxu0 0
      %1808 = vmatmul.mubr.bf16.gmra.mrb[0].mxu0 %v1655
      %v1809 = vpop.f32.mrb[0].mxu0
      %v1810 = vadd.f32 0.0, %v1809
      %v1811 = vpop.f32.mrb[0].mxu0
      %v1812 = vpop.f32.mrb[0].mxu0
      %v1813 = vadd.f32 0.0, %v1812
      %v1814 = vpop.f32.mrb[0].mxu0
      %1815 = vmatprep.mubr.bf16.mxu0 0
      %1816 = vmatmul.mubr.bf16.gmra.mrb[0].mxu0 %v1658
      %v1817 = vpop.f32.mrb[0].mxu0
      %v1818 = vadd.f32 0.0, %v1817
      %v1819 = vpop.f32.mrb[0].mxu0
      %v1820 = vpop.f32.mrb[0].mxu0
      %v1821 = vadd.f32 0.0, %v1820
      %v1822 = vpop.f32.mrb[0].mxu0
      %1823 = vdwg.mxu0
      %v1824 = vadd.f32 %v1468, %v1698
      %v1825 = vadd.f32 %v1471, %v1701
      %v1826 = vadd.f32 %v1476, %v1706
      %v1827 = vadd.f32 %v1479, %v1709
      %v1828 = vadd.f32 %v1484, %v1714
      %v1829 = vadd.f32 %v1487, %v1717
      %v1830 = vadd.f32 %v1492, %v1722
      %v1831 = vadd.f32 %v1495, %v1725
      %v1832 = vadd.f32 %v1500, %v1730
      %v1833 = vadd.f32 %v1503, %v1733
      %v1834 = vadd.f32 %v1508, %v1738
      %v1835 = vadd.f32 %v1511, %v1741
      %v1836 = vadd.f32 %v1516, %v1746
      %v1837 = vadd.f32 %v1519, %v1749
      %v1838 = vadd.f32 %v1524, %v1754
      %v1839 = vadd.f32 %v1527, %v1757
      %v1840 = vadd.f32 %v1532, %v1762
      %v1841 = vadd.f32 %v1535, %v1765
      %v1842 = vadd.f32 %v1540, %v1770
      %v1843 = vadd.f32 %v1543, %v1773
      %v1844 = vadd.f32 %v1548, %v1778
      %v1845 = vadd.f32 %v1551, %v1781
      %v1846 = vadd.f32 %v1556, %v1786
      %v1847 = vadd.f32 %v1559, %v1789
      %v1848 = vadd.f32 %v1564, %v1794
      %v1849 = vadd.f32 %v1567, %v1797
      %v1850 = vadd.f32 %v1572, %v1802
      %v1851 = vadd.f32 %v1575, %v1805
      %v1852 = vadd.f32 %v1580, %v1810
      %v1853 = vadd.f32 %v1583, %v1813
      %v1854 = vadd.f32 %v1588, %v1818
      %v1855 = vadd.f32 %v1591, %v1821
      %v1856 = vld [vmem:[%s284] sm:$0xff]
      %v1857 = vld [vmem:[%s284 + $0x8] sm:$0xff]
      %v1858 = vld [vmem:[%s284 + $0x10] sm:$0xff]
      %v1859 = vld [vmem:[%s284 + $0x18] sm:$0xff]
      %v1860 = vld [vmem:[%s284 + $0x20] sm:$0xff]
      %v1861 = vld [vmem:[%s284 + $0x28] sm:$0xff]
      %v1862 = vld [vmem:[%s284 + $0x30] sm:$0xff]
      %v1863 = vld [vmem:[%s284 + $0x38] sm:$0xff]
      %v1864 = vld [vmem:[%s284 + $0x40] sm:$0xff]
      %v1865 = vld [vmem:[%s284 + $0x48] sm:$0xff]
      %v1866 = vld [vmem:[%s284 + $0x50] sm:$0xff]
      %v1867 = vld [vmem:[%s284 + $0x58] sm:$0xff]
      %v1868 = vld [vmem:[%s284 + $0x60] sm:$0xff]
      %v1869 = vld [vmem:[%s284 + $0x68] sm:$0xff]
      %v1870 = vld [vmem:[%s284 + $0x70] sm:$0xff]
      %v1871 = vld [vmem:[%s284 + $0x78] sm:$0xff]
      %s1872 = scalar_lea.vmem %s1, 6
      %v1873 = vld [vmem:[%s1872] sm:$0x3]
      %v1875 = vsel %vm280, %v1856, 0
      %v1878 = vsel %vm280, %v1857, 0
      %v1881 = vsel %vm280, %v1858, 0
      %v1884 = vsel %vm280, %v1859, 0
      %v1887 = vsel %vm280, %v1860, 0
      %v1890 = vsel %vm280, %v1861, 0
      %v1893 = vsel %vm280, %v1862, 0
      %v1896 = vsel %vm280, %v1863, 0
      %v1899 = vsel %vm280, %v1864, 0
      %v1902 = vsel %vm280, %v1865, 0
      %v1905 = vsel %vm280, %v1866, 0
      %v1908 = vsel %vm280, %v1867, 0
      %v1911 = vsel %vm280, %v1868, 0
      %v1914 = vsel %vm280, %v1869, 0
      %v1917 = vsel %vm280, %v1870, 0
      %v1920 = vsel %vm280, %v1871, 0
      %v1923 = vsel %vm1217, %v1873, 0
      %1925 = vmatprep.subr.bf16.mxu0 0
      %1926 = vmatpush1.bf16.msra.mxu0 %v1923
      %1927 = vmatprep.subr.bf16.mxu0 0
      %1928 = vmatpush1.bf16.msra.mxu0 0
      %1929 = vmatprep.subr.bf16.mxu0 0
      %1930 = vmatpush1.bf16.msra.mxu0 0
      %1931 = vmatprep.subr.bf16.mxu0 0
      %1932 = vmatpush1.bf16.msra.mxu0 0
      %1933 = vmatprep.subr.bf16.mxu0 0
      %1934 = vmatpush1.bf16.msra.mxu0 0
      %1935 = vmatprep.subr.bf16.mxu0 0
      %1936 = vmatpush1.bf16.msra.mxu0 0
      %1937 = vmatprep.subr.bf16.mxu0 0
      %1938 = vmatpush1.bf16.msra.mxu0 0
      %1939 = vmatprep.subr.bf16.mxu0 0
      %1940 = vmatpush1.bf16.msra.mxu0 0
      %1941 = vmatprep.subr.bf16.mxu0 0
      %1942 = vmatpush1.bf16.msra.mxu0 0
      %1943 = vmatprep.subr.bf16.mxu0 0
      %1944 = vmatpush1.bf16.msra.mxu0 0
      %1945 = vmatprep.subr.bf16.mxu0 0
      %1946 = vmatpush1.bf16.msra.mxu0 0
      %1947 = vmatprep.subr.bf16.mxu0 0
      %1948 = vmatpush1.bf16.msra.mxu0 0
      %1949 = vmatprep.subr.bf16.mxu0 0
      %1950 = vmatpush1.bf16.msra.mxu0 0
      %1951 = vmatprep.subr.bf16.mxu0 0
      %1952 = vmatpush1.bf16.msra.mxu0 0
      %1953 = vmatprep.subr.bf16.mxu0 0
      %1954 = vmatpush1.bf16.msra.mxu0 0
      %1955 = vmatprep.subr.bf16.mxu0 0
      %1956 = vmatpush1.bf16.msra.mxu0 0
      %1957 = vmatprep.mubr.bf16.mxu0 0
      %1958 = vmatmul.mubr.bf16.gmra.mrb[0].mxu0 %v1875
      %v1959 = vpop.f32.mrb[0].mxu0
      %v1960 = vadd.f32 0.0, %v1959
      %v1961 = vpop.f32.mrb[0].mxu0
      %v1962 = vpop.f32.mrb[0].mxu0
      %v1963 = vadd.f32 0.0, %v1962
      %v1964 = vpop.f32.mrb[0].mxu0
      %1965 = vmatprep.mubr.bf16.mxu0 0
      %1966 = vmatmul.mubr.bf16.gmra.mrb[0].mxu0 %v1878
      %v1967 = vpop.f32.mrb[0].mxu0
      %v1968 = vadd.f32 0.0, %v1967
      %v1969 = vpop.f32.mrb[0].mxu0
      %v1970 = vpop.f32.mrb[0].mxu0
      %v1971 = vadd.f32 0.0, %v1970
      %v1972 = vpop.f32.mrb[0].mxu0
      %1973 = vmatprep.mubr.bf16.mxu0 0
      %1974 = vmatmul.mubr.bf16.gmra.mrb[0].mxu0 %v1881
      %v1975 = vpop.f32.mrb[0].mxu0
      %v1976 = vadd.f32 0.0, %v1975
      %v1977 = vpop.f32.mrb[0].mxu0
      %v1978 = vpop.f32.mrb[0].mxu0
      %v1979 = vadd.f32 0.0, %v1978
      %v1980 = vpop.f32.mrb[0].mxu0
      %1981 = vmatprep.mubr.bf16.mxu0 0
      %1982 = vmatmul.mubr.bf16.gmra.mrb[0].mxu0 %v1884
      %v1983 = vpop.f32.mrb[0].mxu0
      %v1984 = vadd.f32 0.0, %v1983
      %v1985 = vpop.f32.mrb[0].mxu0
      %v1986 = vpop.f32.mrb[0].mxu0
      %v1987 = vadd.f32 0.0, %v1986
      %v1988 = vpop.f32.mrb[0].mxu0
      %1989 = vmatprep.mubr.bf16.mxu0 0
      %1990 = vmatmul.mubr.bf16.gmra.mrb[0].mxu0 %v1887
      %v1991 = vpop.f32.mrb[0].mxu0
      %v1992 = vadd.f32 0.0, %v1991
      %v1993 = vpop.f32.mrb[0].mxu0
      %v1994 = vpop.f32.mrb[0].mxu0
      %v1995 = vadd.f32 0.0, %v1994
      %v1996 = vpop.f32.mrb[0].mxu0
      %1997 = vmatprep.mubr.bf16.mxu0 0
      %1998 = vmatmul.mubr.bf16.gmra.mrb[0].mxu0 %v1890
      %v1999 = vpop.f32.mrb[0].mxu0
      %v2000 = vadd.f32 0.0, %v1999
      %v2001 = vpop.f32.mrb[0].mxu0
      %v2002 = vpop.f32.mrb[0].mxu0
      %v2003 = vadd.f32 0.0, %v2002
      %v2004 = vpop.f32.mrb[0].mxu0
      %2005 = vmatprep.mubr.bf16.mxu0 0
      %2006 = vmatmul.mubr.bf16.gmra.mrb[0].mxu0 %v1893
      %v2007 = vpop.f32.mrb[0].mxu0
      %v2008 = vadd.f32 0.0, %v2007
      %v2009 = vpop.f32.mrb[0].mxu0
      %v2010 = vpop.f32.mrb[0].mxu0
      %v2011 = vadd.f32 0.0, %v2010
      %v2012 = vpop.f32.mrb[0].mxu0
      %2013 = vmatprep.mubr.bf16.mxu0 0
      %2014 = vmatmul.mubr.bf16.gmra.mrb[0].mxu0 %v1896
      %v2015 = vpop.f32.mrb[0].mxu0
      %v2016 = vadd.f32 0.0, %v2015
      %v2017 = vpop.f32.mrb[0].mxu0
      %v2018 = vpop.f32.mrb[0].mxu0
      %v2019 = vadd.f32 0.0, %v2018
      %v2020 = vpop.f32.mrb[0].mxu0
      %2021 = vmatprep.mubr.bf16.mxu0 0
      %2022 = vmatmul.mubr.bf16.gmra.mrb[0].mxu0 %v1899
      %v2023 = vpop.f32.mrb[0].mxu0
      %v2024 = vadd.f32 0.0, %v2023
      %v2025 = vpop.f32.mrb[0].mxu0
      %v2026 = vpop.f32.mrb[0].mxu0
      %v2027 = vadd.f32 0.0, %v2026
      %v2028 = vpop.f32.mrb[0].mxu0
      %2029 = vmatprep.mubr.bf16.mxu0 0
      %2030 = vmatmul.mubr.bf16.gmra.mrb[0].mxu0 %v1902
      %v2031 = vpop.f32.mrb[0].mxu0
      %v2032 = vadd.f32 0.0, %v2031
      %v2033 = vpop.f32.mrb[0].mxu0
      %v2034 = vpop.f32.mrb[0].mxu0
      %v2035 = vadd.f32 0.0, %v2034
      %v2036 = vpop.f32.mrb[0].mxu0
      %2037 = vmatprep.mubr.bf16.mxu0 0
      %2038 = vmatmul.mubr.bf16.gmra.mrb[0].mxu0 %v1905
      %v2039 = vpop.f32.mrb[0].mxu0
      %v2040 = vadd.f32 0.0, %v2039
      %v2041 = vpop.f32.mrb[0].mxu0
      %v2042 = vpop.f32.mrb[0].mxu0
      %v2043 = vadd.f32 0.0, %v2042
      %v2044 = vpop.f32.mrb[0].mxu0
      %2045 = vmatprep.mubr.bf16.mxu0 0
      %2046 = vmatmul.mubr.bf16.gmra.mrb[0].mxu0 %v1908
      %v2047 = vpop.f32.mrb[0].mxu0
      %v2048 = vadd.f32 0.0, %v2047
      %v2049 = vpop.f32.mrb[0].mxu0
      %v2050 = vpop.f32.mrb[0].mxu0
      %v2051 = vadd.f32 0.0, %v2050
      %v2052 = vpop.f32.mrb[0].mxu0
      %2053 = vmatprep.mubr.bf16.mxu0 0
      %2054 = vmatmul.mubr.bf16.gmra.mrb[0].mxu0 %v1911
      %v2055 = vpop.f32.mrb[0].mxu0
      %v2056 = vadd.f32 0.0, %v2055
      %v2057 = vpop.f32.mrb[0].mxu0
      %v2058 = vpop.f32.mrb[0].mxu0
      %v2059 = vadd.f32 0.0, %v2058
      %v2060 = vpop.f32.mrb[0].mxu0
      %2061 = vmatprep.mubr.bf16.mxu0 0
      %2062 = vmatmul.mubr.bf16.gmra.mrb[0].mxu0 %v1914
      %v2063 = vpop.f32.mrb[0].mxu0
      %v2064 = vadd.f32 0.0, %v2063
      %v2065 = vpop.f32.mrb[0].mxu0
      %v2066 = vpop.f32.mrb[0].mxu0
      %v2067 = vadd.f32 0.0, %v2066
      %v2068 = vpop.f32.mrb[0].mxu0
      %2069 = vmatprep.mubr.bf16.mxu0 0
      %2070 = vmatmul.mubr.bf16.gmra.mrb[0].mxu0 %v1917
      %v2071 = vpop.f32.mrb[0].mxu0
      %v2072 = vadd.f32 0.0, %v2071
      %v2073 = vpop.f32.mrb[0].mxu0
      %v2074 = vpop.f32.mrb[0].mxu0
      %v2075 = vadd.f32 0.0, %v2074
      %v2076 = vpop.f32.mrb[0].mxu0
      %2077 = vmatprep.mubr.bf16.mxu0 0
      %2078 = vmatmul.mubr.bf16.gmra.mrb[0].mxu0 %v1920
      %v2079 = vpop.f32.mrb[0].mxu0
      %v2080 = vadd.f32 0.0, %v2079
      %v2081 = vpop.f32.mrb[0].mxu0
      %v2082 = vpop.f32.mrb[0].mxu0
      %v2083 = vadd.f32 0.0, %v2082
      %v2084 = vpop.f32.mrb[0].mxu0
      %2085 = vdwg.mxu0
      %v2086 = vadd.f32 %v1824, %v1960
      %v2087 = vadd.f32 %v1825, %v1963
      %v2088 = vadd.f32 %v1826, %v1968
      %v2089 = vadd.f32 %v1827, %v1971
      %v2090 = vadd.f32 %v1828, %v1976
      %v2091 = vadd.f32 %v1829, %v1979
      %v2092 = vadd.f32 %v1830, %v1984
      %v2093 = vadd.f32 %v1831, %v1987
      %v2094 = vadd.f32 %v1832, %v1992
      %v2095 = vadd.f32 %v1833, %v1995
      %v2096 = vadd.f32 %v1834, %v2000
      %v2097 = vadd.f32 %v1835, %v2003
      %v2098 = vadd.f32 %v1836, %v2008
      %v2099 = vadd.f32 %v1837, %v2011
      %v2100 = vadd.f32 %v1838, %v2016
      %v2101 = vadd.f32 %v1839, %v2019
      %v2102 = vadd.f32 %v1840, %v2024
      %v2103 = vadd.f32 %v1841, %v2027
      %v2104 = vadd.f32 %v1842, %v2032
      %v2105 = vadd.f32 %v1843, %v2035
      %v2106 = vadd.f32 %v1844, %v2040
      %v2107 = vadd.f32 %v1845, %v2043
      %v2108 = vadd.f32 %v1846, %v2048
      %v2109 = vadd.f32 %v1847, %v2051
      %v2110 = vadd.f32 %v1848, %v2056
      %v2111 = vadd.f32 %v1849, %v2059
      %v2112 = vadd.f32 %v1850, %v2064
      %v2113 = vadd.f32 %v1851, %v2067
      %v2114 = vadd.f32 %v1852, %v2072
      %v2115 = vadd.f32 %v1853, %v2075
      %v2116 = vadd.f32 %v1854, %v2080
      %v2117 = vadd.f32 %v1855, %v2083
      %v2118 = vld [vmem:[%s759] sm:$0xff]
      %v2119 = vld [vmem:[%s759 + $0x8] sm:$0xff]
      %v2120 = vld [vmem:[%s759 + $0x10] sm:$0xff]
      %v2121 = vld [vmem:[%s759 + $0x18] sm:$0xff]
      %v2122 = vld [vmem:[%s759 + $0x20] sm:$0xff]
      %v2123 = vld [vmem:[%s759 + $0x28] sm:$0xff]
      %v2124 = vld [vmem:[%s759 + $0x30] sm:$0xff]
      %v2125 = vld [vmem:[%s759 + $0x38] sm:$0xff]
      %v2126 = vld [vmem:[%s759 + $0x40] sm:$0xff]
      %v2127 = vld [vmem:[%s759 + $0x48] sm:$0xff]
      %v2128 = vld [vmem:[%s759 + $0x50] sm:$0xff]
      %v2129 = vld [vmem:[%s759 + $0x58] sm:$0xff]
      %v2130 = vld [vmem:[%s759 + $0x60] sm:$0xff]
      %v2131 = vld [vmem:[%s759 + $0x68] sm:$0xff]
      %v2132 = vld [vmem:[%s759 + $0x70] sm:$0xff]
      %v2133 = vld [vmem:[%s759 + $0x78] sm:$0xff]
      %s2134 = scalar_lea.vmem %s1, 8
      %v2135 = vld [vmem:[%s2134] sm:$0x3]
      %v2137 = vsel %vm280, %v2118, 0
      %v2140 = vsel %vm280, %v2119, 0
      %v2143 = vsel %vm280, %v2120, 0
      %v2146 = vsel %vm280, %v2121, 0
      %v2149 = vsel %vm280, %v2122, 0
      %v2152 = vsel %vm280, %v2123, 0
      %v2155 = vsel %vm280, %v2124, 0
      %v2158 = vsel %vm280, %v2125, 0
      %v2161 = vsel %vm280, %v2126, 0
      %v2164 = vsel %vm280, %v2127, 0
      %v2167 = vsel %vm280, %v2128, 0
      %v2170 = vsel %vm280, %v2129, 0
      %v2173 = vsel %vm280, %v2130, 0
      %v2176 = vsel %vm280, %v2131, 0
      %v2179 = vsel %vm280, %v2132, 0
      %v2182 = vsel %vm280, %v2133, 0
      %v2185 = vsel %vm1217, %v2135, 0
      %2187 = vmatprep.subr.bf16.mxu0 0
      %2188 = vmatpush1.bf16.msra.mxu0 %v2185
      %2189 = vmatprep.subr.bf16.mxu0 0
      %2190 = vmatpush1.bf16.msra.mxu0 0
      %2191 = vmatprep.subr.bf16.mxu0 0
      %2192 = vmatpush1.bf16.msra.mxu0 0
      %2193 = vmatprep.subr.bf16.mxu0 0
      %2194 = vmatpush1.bf16.msra.mxu0 0
      %2195 = vmatprep.subr.bf16.mxu0 0
      %2196 = vmatpush1.bf16.msra.mxu0 0
      %2197 = vmatprep.subr.bf16.mxu0 0
      %2198 = vmatpush1.bf16.msra.mxu0 0
      %2199 = vmatprep.subr.bf16.mxu0 0
      %2200 = vmatpush1.bf16.msra.mxu0 0
      %2201 = vmatprep.subr.bf16.mxu0 0
      %2202 = vmatpush1.bf16.msra.mxu0 0
      %2203 = vmatprep.subr.bf16.mxu0 0
      %2204 = vmatpush1.bf16.msra.mxu0 0
      %2205 = vmatprep.subr.bf16.mxu0 0
      %2206 = vmatpush1.bf16.msra.mxu0 0
      %2207 = vmatprep.subr.bf16.mxu0 0
      %2208 = vmatpush1.bf16.msra.mxu0 0
      %2209 = vmatprep.subr.bf16.mxu0 0
      %2210 = vmatpush1.bf16.msra.mxu0 0
      %2211 = vmatprep.subr.bf16.mxu0 0
      %2212 = vmatpush1.bf16.msra.mxu0 0
      %2213 = vmatprep.subr.bf16.mxu0 0
      %2214 = vmatpush1.bf16.msra.mxu0 0
      %2215 = vmatprep.subr.bf16.mxu0 0
      %2216 = vmatpush1.bf16.msra.mxu0 0
      %2217 = vmatprep.subr.bf16.mxu0 0
      %2218 = vmatpush1.bf16.msra.mxu0 0
      %2219 = vmatprep.mubr.bf16.mxu0 0
      %2220 = vmatmul.mubr.bf16.gmra.mrb[0].mxu0 %v2137
      %v2221 = vpop.f32.mrb[0].mxu0
      %v2222 = vadd.f32 0.0, %v2221
      %v2223 = vpop.f32.mrb[0].mxu0
      %v2224 = vpop.f32.mrb[0].mxu0
      %v2225 = vadd.f32 0.0, %v2224
      %v2226 = vpop.f32.mrb[0].mxu0
      %2227 = vmatprep.mubr.bf16.mxu0 0
      %2228 = vmatmul.mubr.bf16.gmra.mrb[0].mxu0 %v2140
      %v2229 = vpop.f32.mrb[0].mxu0
      %v2230 = vadd.f32 0.0, %v2229
      %v2231 = vpop.f32.mrb[0].mxu0
      %v2232 = vpop.f32.mrb[0].mxu0
      %v2233 = vadd.f32 0.0, %v2232
      %v2234 = vpop.f32.mrb[0].mxu0
      %2235 = vmatprep.mubr.bf16.mxu0 0
      %2236 = vmatmul.mubr.bf16.gmra.mrb[0].mxu0 %v2143
      %v2237 = vpop.f32.mrb[0].mxu0
      %v2238 = vadd.f32 0.0, %v2237
      %v2239 = vpop.f32.mrb[0].mxu0
      %v2240 = vpop.f32.mrb[0].mxu0
      %v2241 = vadd.f32 0.0, %v2240
      %v2242 = vpop.f32.mrb[0].mxu0
      %2243 = vmatprep.mubr.bf16.mxu0 0
      %2244 = vmatmul.mubr.bf16.gmra.mrb[0].mxu0 %v2146
      %v2245 = vpop.f32.mrb[0].mxu0
      %v2246 = vadd.f32 0.0, %v2245
      %v2247 = vpop.f32.mrb[0].mxu0
      %v2248 = vpop.f32.mrb[0].mxu0
      %v2249 = vadd.f32 0.0, %v2248
      %v2250 = vpop.f32.mrb[0].mxu0
      %2251 = vmatprep.mubr.bf16.mxu0 0
      %2252 = vmatmul.mubr.bf16.gmra.mrb[0].mxu0 %v2149
      %v2253 = vpop.f32.mrb[0].mxu0
      %v2254 = vadd.f32 0.0, %v2253
      %v2255 = vpop.f32.mrb[0].mxu0
      %v2256 = vpop.f32.mrb[0].mxu0
      %v2257 = vadd.f32 0.0, %v2256
      %v2258 = vpop.f32.mrb[0].mxu0
      %2259 = vmatprep.mubr.bf16.mxu0 0
      %2260 = vmatmul.mubr.bf16.gmra.mrb[0].mxu0 %v2152
      %v2261 = vpop.f32.mrb[0].mxu0
      %v2262 = vadd.f32 0.0, %v2261
      %v2263 = vpop.f32.mrb[0].mxu0
      %v2264 = vpop.f32.mrb[0].mxu0
      %v2265 = vadd.f32 0.0, %v2264
      %v2266 = vpop.f32.mrb[0].mxu0
      %2267 = vmatprep.mubr.bf16.mxu0 0
      %2268 = vmatmul.mubr.bf16.gmra.mrb[0].mxu0 %v2155
      %v2269 = vpop.f32.mrb[0].mxu0
      %v2270 = vadd.f32 0.0, %v2269
      %v2271 = vpop.f32.mrb[0].mxu0
      %v2272 = vpop.f32.mrb[0].mxu0
      %v2273 = vadd.f32 0.0, %v2272
      %v2274 = vpop.f32.mrb[0].mxu0
      %2275 = vmatprep.mubr.bf16.mxu0 0
      %2276 = vmatmul.mubr.bf16.gmra.mrb[0].mxu0 %v2158
      %v2277 = vpop.f32.mrb[0].mxu0
      %v2278 = vadd.f32 0.0, %v2277
      %v2279 = vpop.f32.mrb[0].mxu0
      %v2280 = vpop.f32.mrb[0].mxu0
      %v2281 = vadd.f32 0.0, %v2280
      %v2282 = vpop.f32.mrb[0].mxu0
      %2283 = vmatprep.mubr.bf16.mxu0 0
      %2284 = vmatmul.mubr.bf16.gmra.mrb[0].mxu0 %v2161
      %v2285 = vpop.f32.mrb[0].mxu0
      %v2286 = vadd.f32 0.0, %v2285
      %v2287 = vpop.f32.mrb[0].mxu0
      %v2288 = vpop.f32.mrb[0].mxu0
      %v2289 = vadd.f32 0.0, %v2288
      %v2290 = vpop.f32.mrb[0].mxu0
      %2291 = vmatprep.mubr.bf16.mxu0 0
      %2292 = vmatmul.mubr.bf16.gmra.mrb[0].mxu0 %v2164
      %v2293 = vpop.f32.mrb[0].mxu0
      %v2294 = vadd.f32 0.0, %v2293
      %v2295 = vpop.f32.mrb[0].mxu0
      %v2296 = vpop.f32.mrb[0].mxu0
      %v2297 = vadd.f32 0.0, %v2296
      %v2298 = vpop.f32.mrb[0].mxu0
      %2299 = vmatprep.mubr.bf16.mxu0 0
      %2300 = vmatmul.mubr.bf16.gmra.mrb[0].mxu0 %v2167
      %v2301 = vpop.f32.mrb[0].mxu0
      %v2302 = vadd.f32 0.0, %v2301
      %v2303 = vpop.f32.mrb[0].mxu0
      %v2304 = vpop.f32.mrb[0].mxu0
      %v2305 = vadd.f32 0.0, %v2304
      %v2306 = vpop.f32.mrb[0].mxu0
      %2307 = vmatprep.mubr.bf16.mxu0 0
      %2308 = vmatmul.mubr.bf16.gmra.mrb[0].mxu0 %v2170
      %v2309 = vpop.f32.mrb[0].mxu0
      %v2310 = vadd.f32 0.0, %v2309
      %v2311 = vpop.f32.mrb[0].mxu0
      %v2312 = vpop.f32.mrb[0].mxu0
      %v2313 = vadd.f32 0.0, %v2312
      %v2314 = vpop.f32.mrb[0].mxu0
      %2315 = vmatprep.mubr.bf16.mxu0 0
      %2316 = vmatmul.mubr.bf16.gmra.mrb[0].mxu0 %v2173
      %v2317 = vpop.f32.mrb[0].mxu0
      %v2318 = vadd.f32 0.0, %v2317
      %v2319 = vpop.f32.mrb[0].mxu0
      %v2320 = vpop.f32.mrb[0].mxu0
      %v2321 = vadd.f32 0.0, %v2320
      %v2322 = vpop.f32.mrb[0].mxu0
      %2323 = vmatprep.mubr.bf16.mxu0 0
      %2324 = vmatmul.mubr.bf16.gmra.mrb[0].mxu0 %v2176
      %v2325 = vpop.f32.mrb[0].mxu0
      %v2326 = vadd.f32 0.0, %v2325
      %v2327 = vpop.f32.mrb[0].mxu0
      %v2328 = vpop.f32.mrb[0].mxu0
      %v2329 = vadd.f32 0.0, %v2328
      %v2330 = vpop.f32.mrb[0].mxu0
      %2331 = vmatprep.mubr.bf16.mxu0 0
      %2332 = vmatmul.mubr.bf16.gmra.mrb[0].mxu0 %v2179
      %v2333 = vpop.f32.mrb[0].mxu0
      %v2334 = vadd.f32 0.0, %v2333
      %v2335 = vpop.f32.mrb[0].mxu0
      %v2336 = vpop.f32.mrb[0].mxu0
      %v2337 = vadd.f32 0.0, %v2336
      %v2338 = vpop.f32.mrb[0].mxu0
      %2339 = vmatprep.mubr.bf16.mxu0 0
      %2340 = vmatmul.mubr.bf16.gmra.mrb[0].mxu0 %v2182
      %v2341 = vpop.f32.mrb[0].mxu0
      %v2342 = vadd.f32 0.0, %v2341
      %v2343 = vpop.f32.mrb[0].mxu0
      %v2344 = vpop.f32.mrb[0].mxu0
      %v2345 = vadd.f32 0.0, %v2344
      %v2346 = vpop.f32.mrb[0].mxu0
      %2347 = vdwg.mxu0
      %v2348 = vadd.f32 %v2086, %v2222
      %v2349 = vadd.f32 %v2087, %v2225
      %v2350 = vadd.f32 %v2088, %v2230
      %v2351 = vadd.f32 %v2089, %v2233
      %v2352 = vadd.f32 %v2090, %v2238
      %v2353 = vadd.f32 %v2091, %v2241
      %v2354 = vadd.f32 %v2092, %v2246
      %v2355 = vadd.f32 %v2093, %v2249
      %v2356 = vadd.f32 %v2094, %v2254
      %v2357 = vadd.f32 %v2095, %v2257
      %v2358 = vadd.f32 %v2096, %v2262
      %v2359 = vadd.f32 %v2097, %v2265
      %v2360 = vadd.f32 %v2098, %v2270
      %v2361 = vadd.f32 %v2099, %v2273
      %v2362 = vadd.f32 %v2100, %v2278
      %v2363 = vadd.f32 %v2101, %v2281
      %v2364 = vadd.f32 %v2102, %v2286
      %v2365 = vadd.f32 %v2103, %v2289
      %v2366 = vadd.f32 %v2104, %v2294
      %v2367 = vadd.f32 %v2105, %v2297
      %v2368 = vadd.f32 %v2106, %v2302
      %v2369 = vadd.f32 %v2107, %v2305
      %v2370 = vadd.f32 %v2108, %v2310
      %v2371 = vadd.f32 %v2109, %v2313
      %v2372 = vadd.f32 %v2110, %v2318
      %v2373 = vadd.f32 %v2111, %v2321
      %v2374 = vadd.f32 %v2112, %v2326
      %v2375 = vadd.f32 %v2113, %v2329
      %v2376 = vadd.f32 %v2114, %v2334
      %v2377 = vadd.f32 %v2115, %v2337
      %v2378 = vadd.f32 %v2116, %v2342
      %v2379 = vadd.f32 %v2117, %v2345
      %v2380 = vld [vmem:[%s780] sm:$0xff]
      %v2381 = vld [vmem:[%s780 + $0x8] sm:$0xff]
      %v2382 = vld [vmem:[%s780 + $0x10] sm:$0xff]
      %v2383 = vld [vmem:[%s780 + $0x18] sm:$0xff]
      %v2384 = vld [vmem:[%s780 + $0x20] sm:$0xff]
      %v2385 = vld [vmem:[%s780 + $0x28] sm:$0xff]
      %v2386 = vld [vmem:[%s780 + $0x30] sm:$0xff]
      %v2387 = vld [vmem:[%s780 + $0x38] sm:$0xff]
      %v2388 = vld [vmem:[%s780 + $0x40] sm:$0xff]
      %v2389 = vld [vmem:[%s780 + $0x48] sm:$0xff]
      %v2390 = vld [vmem:[%s780 + $0x50] sm:$0xff]
      %v2391 = vld [vmem:[%s780 + $0x58] sm:$0xff]
      %v2392 = vld [vmem:[%s780 + $0x60] sm:$0xff]
      %v2393 = vld [vmem:[%s780 + $0x68] sm:$0xff]
      %v2394 = vld [vmem:[%s780 + $0x70] sm:$0xff]
      %v2395 = vld [vmem:[%s780 + $0x78] sm:$0xff]
      %s2396 = scalar_lea.vmem %s1, 10
      %v2397 = vld [vmem:[%s2396] sm:$0x3]
      %v2399 = vsel %vm280, %v2380, 0
      %v2402 = vsel %vm280, %v2381, 0
      %v2405 = vsel %vm280, %v2382, 0
      %v2408 = vsel %vm280, %v2383, 0
      %v2411 = vsel %vm280, %v2384, 0
      %v2414 = vsel %vm280, %v2385, 0
      %v2417 = vsel %vm280, %v2386, 0
      %v2420 = vsel %vm280, %v2387, 0
      %v2423 = vsel %vm280, %v2388, 0
      %v2426 = vsel %vm280, %v2389, 0
      %v2429 = vsel %vm280, %v2390, 0
      %v2432 = vsel %vm280, %v2391, 0
      %v2435 = vsel %vm280, %v2392, 0
      %v2438 = vsel %vm280, %v2393, 0
      %v2441 = vsel %vm280, %v2394, 0
      %v2444 = vsel %vm280, %v2395, 0
      %v2447 = vsel %vm1217, %v2397, 0
      %2449 = vmatprep.subr.bf16.mxu0 0
      %2450 = vmatpush1.bf16.msra.mxu0 %v2447
      %2451 = vmatprep.subr.bf16.mxu0 0
      %2452 = vmatpush1.bf16.msra.mxu0 0
      %2453 = vmatprep.subr.bf16.mxu0 0
      %2454 = vmatpush1.bf16.msra.mxu0 0
      %2455 = vmatprep.subr.bf16.mxu0 0
      %2456 = vmatpush1.bf16.msra.mxu0 0
      %2457 = vmatprep.subr.bf16.mxu0 0
      %2458 = vmatpush1.bf16.msra.mxu0 0
      %2459 = vmatprep.subr.bf16.mxu0 0
      %2460 = vmatpush1.bf16.msra.mxu0 0
      %2461 = vmatprep.subr.bf16.mxu0 0
      %2462 = vmatpush1.bf16.msra.mxu0 0
      %2463 = vmatprep.subr.bf16.mxu0 0
      %2464 = vmatpush1.bf16.msra.mxu0 0
      %2465 = vmatprep.subr.bf16.mxu0 0
      %2466 = vmatpush1.bf16.msra.mxu0 0
      %2467 = vmatprep.subr.bf16.mxu0 0
      %2468 = vmatpush1.bf16.msra.mxu0 0
      %2469 = vmatprep.subr.bf16.mxu0 0
      %2470 = vmatpush1.bf16.msra.mxu0 0
      %2471 = vmatprep.subr.bf16.mxu0 0
      %2472 = vmatpush1.bf16.msra.mxu0 0
      %2473 = vmatprep.subr.bf16.mxu0 0
      %2474 = vmatpush1.bf16.msra.mxu0 0
      %2475 = vmatprep.subr.bf16.mxu0 0
      %2476 = vmatpush1.bf16.msra.mxu0 0
      %2477 = vmatprep.subr.bf16.mxu0 0
      %2478 = vmatpush1.bf16.msra.mxu0 0
      %2479 = vmatprep.subr.bf16.mxu0 0
      %2480 = vmatpush1.bf16.msra.mxu0 0
      %2481 = vmatprep.mubr.bf16.mxu0 0
      %2482 = vmatmul.mubr.bf16.gmra.mrb[0].mxu0 %v2399
      %v2483 = vpop.f32.mrb[0].mxu0
      %v2484 = vadd.f32 0.0, %v2483
      %v2485 = vpop.f32.mrb[0].mxu0
      %v2486 = vpop.f32.mrb[0].mxu0
      %v2487 = vadd.f32 0.0, %v2486
      %v2488 = vpop.f32.mrb[0].mxu0
      %2489 = vmatprep.mubr.bf16.mxu0 0
      %2490 = vmatmul.mubr.bf16.gmra.mrb[0].mxu0 %v2402
      %v2491 = vpop.f32.mrb[0].mxu0
      %v2492 = vadd.f32 0.0, %v2491
      %v2493 = vpop.f32.mrb[0].mxu0
      %v2494 = vpop.f32.mrb[0].mxu0
      %v2495 = vadd.f32 0.0, %v2494
      %v2496 = vpop.f32.mrb[0].mxu0
      %2497 = vmatprep.mubr.bf16.mxu0 0
      %2498 = vmatmul.mubr.bf16.gmra.mrb[0].mxu0 %v2405
      %v2499 = vpop.f32.mrb[0].mxu0
      %v2500 = vadd.f32 0.0, %v2499
      %v2501 = vpop.f32.mrb[0].mxu0
      %v2502 = vpop.f32.mrb[0].mxu0
      %v2503 = vadd.f32 0.0, %v2502
      %v2504 = vpop.f32.mrb[0].mxu0
      %2505 = vmatprep.mubr.bf16.mxu0 0
      %2506 = vmatmul.mubr.bf16.gmra.mrb[0].mxu0 %v2408
      %v2507 = vpop.f32.mrb[0].mxu0
      %v2508 = vadd.f32 0.0, %v2507
      %v2509 = vpop.f32.mrb[0].mxu0
      %v2510 = vpop.f32.mrb[0].mxu0
      %v2511 = vadd.f32 0.0, %v2510
      %v2512 = vpop.f32.mrb[0].mxu0
      %2513 = vmatprep.mubr.bf16.mxu0 0
      %2514 = vmatmul.mubr.bf16.gmra.mrb[0].mxu0 %v2411
      %v2515 = vpop.f32.mrb[0].mxu0
      %v2516 = vadd.f32 0.0, %v2515
      %v2517 = vpop.f32.mrb[0].mxu0
      %v2518 = vpop.f32.mrb[0].mxu0
      %v2519 = vadd.f32 0.0, %v2518
      %v2520 = vpop.f32.mrb[0].mxu0
      %2521 = vmatprep.mubr.bf16.mxu0 0
      %2522 = vmatmul.mubr.bf16.gmra.mrb[0].mxu0 %v2414
      %v2523 = vpop.f32.mrb[0].mxu0
      %v2524 = vadd.f32 0.0, %v2523
      %v2525 = vpop.f32.mrb[0].mxu0
      %v2526 = vpop.f32.mrb[0].mxu0
      %v2527 = vadd.f32 0.0, %v2526
      %v2528 = vpop.f32.mrb[0].mxu0
      %2529 = vmatprep.mubr.bf16.mxu0 0
      %2530 = vmatmul.mubr.bf16.gmra.mrb[0].mxu0 %v2417
      %v2531 = vpop.f32.mrb[0].mxu0
      %v2532 = vadd.f32 0.0, %v2531
      %v2533 = vpop.f32.mrb[0].mxu0
      %v2534 = vpop.f32.mrb[0].mxu0
      %v2535 = vadd.f32 0.0, %v2534
      %v2536 = vpop.f32.mrb[0].mxu0
      %2537 = vmatprep.mubr.bf16.mxu0 0
      %2538 = vmatmul.mubr.bf16.gmra.mrb[0].mxu0 %v2420
      %v2539 = vpop.f32.mrb[0].mxu0
      %v2540 = vadd.f32 0.0, %v2539
      %v2541 = vpop.f32.mrb[0].mxu0
      %v2542 = vpop.f32.mrb[0].mxu0
      %v2543 = vadd.f32 0.0, %v2542
      %v2544 = vpop.f32.mrb[0].mxu0
      %2545 = vmatprep.mubr.bf16.mxu0 0
      %2546 = vmatmul.mubr.bf16.gmra.mrb[0].mxu0 %v2423
      %v2547 = vpop.f32.mrb[0].mxu0
      %v2548 = vadd.f32 0.0, %v2547
      %v2549 = vpop.f32.mrb[0].mxu0
      %v2550 = vpop.f32.mrb[0].mxu0
      %v2551 = vadd.f32 0.0, %v2550
      %v2552 = vpop.f32.mrb[0].mxu0
      %2553 = vmatprep.mubr.bf16.mxu0 0
      %2554 = vmatmul.mubr.bf16.gmra.mrb[0].mxu0 %v2426
      %v2555 = vpop.f32.mrb[0].mxu0
      %v2556 = vadd.f32 0.0, %v2555
      %v2557 = vpop.f32.mrb[0].mxu0
      %v2558 = vpop.f32.mrb[0].mxu0
      %v2559 = vadd.f32 0.0, %v2558
      %v2560 = vpop.f32.mrb[0].mxu0
      %2561 = vmatprep.mubr.bf16.mxu0 0
      %2562 = vmatmul.mubr.bf16.gmra.mrb[0].mxu0 %v2429
      %v2563 = vpop.f32.mrb[0].mxu0
      %v2564 = vadd.f32 0.0, %v2563
      %v2565 = vpop.f32.mrb[0].mxu0
      %v2566 = vpop.f32.mrb[0].mxu0
      %v2567 = vadd.f32 0.0, %v2566
      %v2568 = vpop.f32.mrb[0].mxu0
      %2569 = vmatprep.mubr.bf16.mxu0 0
      %2570 = vmatmul.mubr.bf16.gmra.mrb[0].mxu0 %v2432
      %v2571 = vpop.f32.mrb[0].mxu0
      %v2572 = vadd.f32 0.0, %v2571
      %v2573 = vpop.f32.mrb[0].mxu0
      %v2574 = vpop.f32.mrb[0].mxu0
      %v2575 = vadd.f32 0.0, %v2574
      %v2576 = vpop.f32.mrb[0].mxu0
      %2577 = vmatprep.mubr.bf16.mxu0 0
      %2578 = vmatmul.mubr.bf16.gmra.mrb[0].mxu0 %v2435
      %v2579 = vpop.f32.mrb[0].mxu0
      %v2580 = vadd.f32 0.0, %v2579
      %v2581 = vpop.f32.mrb[0].mxu0
      %v2582 = vpop.f32.mrb[0].mxu0
      %v2583 = vadd.f32 0.0, %v2582
      %v2584 = vpop.f32.mrb[0].mxu0
      %2585 = vmatprep.mubr.bf16.mxu0 0
      %2586 = vmatmul.mubr.bf16.gmra.mrb[0].mxu0 %v2438
      %v2587 = vpop.f32.mrb[0].mxu0
      %v2588 = vadd.f32 0.0, %v2587
      %v2589 = vpop.f32.mrb[0].mxu0
      %v2590 = vpop.f32.mrb[0].mxu0
      %v2591 = vadd.f32 0.0, %v2590
      %v2592 = vpop.f32.mrb[0].mxu0
      %2593 = vmatprep.mubr.bf16.mxu0 0
      %2594 = vmatmul.mubr.bf16.gmra.mrb[0].mxu0 %v2441
      %v2595 = vpop.f32.mrb[0].mxu0
      %v2596 = vadd.f32 0.0, %v2595
      %v2597 = vpop.f32.mrb[0].mxu0
      %v2598 = vpop.f32.mrb[0].mxu0
      %v2599 = vadd.f32 0.0, %v2598
      %v2600 = vpop.f32.mrb[0].mxu0
      %2601 = vmatprep.mubr.bf16.mxu0 0
      %2602 = vmatmul.mubr.bf16.gmra.mrb[0].mxu0 %v2444
      %v2603 = vpop.f32.mrb[0].mxu0
      %v2604 = vadd.f32 0.0, %v2603
      %v2605 = vpop.f32.mrb[0].mxu0
      %v2606 = vpop.f32.mrb[0].mxu0
      %v2607 = vadd.f32 0.0, %v2606
      %v2608 = vpop.f32.mrb[0].mxu0
      %2609 = vdwg.mxu0
      %v2610 = vadd.f32 %v2348, %v2484
      %v2611 = vadd.f32 %v2349, %v2487
      %v2612 = vadd.f32 %v2350, %v2492
      %v2613 = vadd.f32 %v2351, %v2495
      %v2614 = vadd.f32 %v2352, %v2500
      %v2615 = vadd.f32 %v2353, %v2503
      %v2616 = vadd.f32 %v2354, %v2508
      %v2617 = vadd.f32 %v2355, %v2511
      %v2618 = vadd.f32 %v2356, %v2516
      %v2619 = vadd.f32 %v2357, %v2519
      %v2620 = vadd.f32 %v2358, %v2524
      %v2621 = vadd.f32 %v2359, %v2527
      %v2622 = vadd.f32 %v2360, %v2532
      %v2623 = vadd.f32 %v2361, %v2535
      %v2624 = vadd.f32 %v2362, %v2540
      %v2625 = vadd.f32 %v2363, %v2543
      %v2626 = vadd.f32 %v2364, %v2548
      %v2627 = vadd.f32 %v2365, %v2551
      %v2628 = vadd.f32 %v2366, %v2556
      %v2629 = vadd.f32 %v2367, %v2559
      %v2630 = vadd.f32 %v2368, %v2564
      %v2631 = vadd.f32 %v2369, %v2567
      %v2632 = vadd.f32 %v2370, %v2572
      %v2633 = vadd.f32 %v2371, %v2575
      %v2634 = vadd.f32 %v2372, %v2580
      %v2635 = vadd.f32 %v2373, %v2583
      %v2636 = vadd.f32 %v2374, %v2588
      %v2637 = vadd.f32 %v2375, %v2591
      %v2638 = vadd.f32 %v2376, %v2596
      %v2639 = vadd.f32 %v2377, %v2599
      %v2640 = vadd.f32 %v2378, %v2604
      %v2641 = vadd.f32 %v2379, %v2607
      %s2642 = scalar_lea.vmem [#allocation2], 16
      %v2643 = vld [vmem:[%s2642] sm:$0xff]
      %v2644 = vld [vmem:[%s2642 + $0x8] sm:$0xff]
      %v2645 = vld [vmem:[%s2642 + $0x10] sm:$0xff]
      %v2646 = vld [vmem:[%s2642 + $0x18] sm:$0xff]
      %v2647 = vld [vmem:[%s2642 + $0x20] sm:$0xff]
      %v2648 = vld [vmem:[%s2642 + $0x28] sm:$0xff]
      %v2649 = vld [vmem:[%s2642 + $0x30] sm:$0xff]
      %v2650 = vld [vmem:[%s2642 + $0x38] sm:$0xff]
      %v2651 = vld [vmem:[%s2642 + $0x40] sm:$0xff]
      %v2652 = vld [vmem:[%s2642 + $0x48] sm:$0xff]
      %v2653 = vld [vmem:[%s2642 + $0x50] sm:$0xff]
      %v2654 = vld [vmem:[%s2642 + $0x58] sm:$0xff]
      %v2655 = vld [vmem:[%s2642 + $0x60] sm:$0xff]
      %v2656 = vld [vmem:[%s2642 + $0x68] sm:$0xff]
      %v2657 = vld [vmem:[%s2642 + $0x70] sm:$0xff]
      %v2658 = vld [vmem:[%s2642 + $0x78] sm:$0xff]
      %s2659 = scalar_lea.vmem %s1, 12
      %v2660 = vld [vmem:[%s2659] sm:$0x3]
      %v2662 = vsel %vm280, %v2643, 0
      %v2665 = vsel %vm280, %v2644, 0
      %v2668 = vsel %vm280, %v2645, 0
      %v2671 = vsel %vm280, %v2646, 0
      %v2674 = vsel %vm280, %v2647, 0
      %v2677 = vsel %vm280, %v2648, 0
      %v2680 = vsel %vm280, %v2649, 0
      %v2683 = vsel %vm280, %v2650, 0
      %v2686 = vsel %vm280, %v2651, 0
      %v2689 = vsel %vm280, %v2652, 0
      %v2692 = vsel %vm280, %v2653, 0
      %v2695 = vsel %vm280, %v2654, 0
      %v2698 = vsel %vm280, %v2655, 0
      %v2701 = vsel %vm280, %v2656, 0
      %v2704 = vsel %vm280, %v2657, 0
      %v2707 = vsel %vm280, %v2658, 0
      %v2710 = vsel %vm1217, %v2660, 0
      %2712 = vmatprep.subr.bf16.mxu0 0
      %2713 = vmatpush1.bf16.msra.mxu0 %v2710
      %2714 = vmatprep.subr.bf16.mxu0 0
      %2715 = vmatpush1.bf16.msra.mxu0 0
      %2716 = vmatprep.subr.bf16.mxu0 0
      %2717 = vmatpush1.bf16.msra.mxu0 0
      %2718 = vmatprep.subr.bf16.mxu0 0
      %2719 = vmatpush1.bf16.msra.mxu0 0
      %2720 = vmatprep.subr.bf16.mxu0 0
      %2721 = vmatpush1.bf16.msra.mxu0 0
      %2722 = vmatprep.subr.bf16.mxu0 0
      %2723 = vmatpush1.bf16.msra.mxu0 0
      %2724 = vmatprep.subr.bf16.mxu0 0
      %2725 = vmatpush1.bf16.msra.mxu0 0
      %2726 = vmatprep.subr.bf16.mxu0 0
      %2727 = vmatpush1.bf16.msra.mxu0 0
      %2728 = vmatprep.subr.bf16.mxu0 0
      %2729 = vmatpush1.bf16.msra.mxu0 0
      %2730 = vmatprep.subr.bf16.mxu0 0
      %2731 = vmatpush1.bf16.msra.mxu0 0
      %2732 = vmatprep.subr.bf16.mxu0 0
      %2733 = vmatpush1.bf16.msra.mxu0 0
      %2734 = vmatprep.subr.bf16.mxu0 0
      %2735 = vmatpush1.bf16.msra.mxu0 0
      %2736 = vmatprep.subr.bf16.mxu0 0
      %2737 = vmatpush1.bf16.msra.mxu0 0
      %2738 = vmatprep.subr.bf16.mxu0 0
      %2739 = vmatpush1.bf16.msra.mxu0 0
      %2740 = vmatprep.subr.bf16.mxu0 0
      %2741 = vmatpush1.bf16.msra.mxu0 0
      %2742 = vmatprep.subr.bf16.mxu0 0
      %2743 = vmatpush1.bf16.msra.mxu0 0
      %2744 = vmatprep.mubr.bf16.mxu0 0
      %2745 = vmatmul.mubr.bf16.gmra.mrb[0].mxu0 %v2662
      %v2746 = vpop.f32.mrb[0].mxu0
      %v2747 = vadd.f32 0.0, %v2746
      %v2748 = vpop.f32.mrb[0].mxu0
      %v2749 = vpop.f32.mrb[0].mxu0
      %v2750 = vadd.f32 0.0, %v2749
      %v2751 = vpop.f32.mrb[0].mxu0
      %2752 = vmatprep.mubr.bf16.mxu0 0
      %2753 = vmatmul.mubr.bf16.gmra.mrb[0].mxu0 %v2665
      %v2754 = vpop.f32.mrb[0].mxu0
      %v2755 = vadd.f32 0.0, %v2754
      %v2756 = vpop.f32.mrb[0].mxu0
      %v2757 = vpop.f32.mrb[0].mxu0
      %v2758 = vadd.f32 0.0, %v2757
      %v2759 = vpop.f32.mrb[0].mxu0
      %2760 = vmatprep.mubr.bf16.mxu0 0
      %2761 = vmatmul.mubr.bf16.gmra.mrb[0].mxu0 %v2668
      %v2762 = vpop.f32.mrb[0].mxu0
      %v2763 = vadd.f32 0.0, %v2762
      %v2764 = vpop.f32.mrb[0].mxu0
      %v2765 = vpop.f32.mrb[0].mxu0
      %v2766 = vadd.f32 0.0, %v2765
      %v2767 = vpop.f32.mrb[0].mxu0
      %2768 = vmatprep.mubr.bf16.mxu0 0
      %2769 = vmatmul.mubr.bf16.gmra.mrb[0].mxu0 %v2671
      %v2770 = vpop.f32.mrb[0].mxu0
      %v2771 = vadd.f32 0.0, %v2770
      %v2772 = vpop.f32.mrb[0].mxu0
      %v2773 = vpop.f32.mrb[0].mxu0
      %v2774 = vadd.f32 0.0, %v2773
      %v2775 = vpop.f32.mrb[0].mxu0
      %2776 = vmatprep.mubr.bf16.mxu0 0
      %2777 = vmatmul.mubr.bf16.gmra.mrb[0].mxu0 %v2674
      %v2778 = vpop.f32.mrb[0].mxu0
      %v2779 = vadd.f32 0.0, %v2778
      %v2780 = vpop.f32.mrb[0].mxu0
      %v2781 = vpop.f32.mrb[0].mxu0
      %v2782 = vadd.f32 0.0, %v2781
      %v2783 = vpop.f32.mrb[0].mxu0
      %2784 = vmatprep.mubr.bf16.mxu0 0
      %2785 = vmatmul.mubr.bf16.gmra.mrb[0].mxu0 %v2677
      %v2786 = vpop.f32.mrb[0].mxu0
      %v2787 = vadd.f32 0.0, %v2786
      %v2788 = vpop.f32.mrb[0].mxu0
      %v2789 = vpop.f32.mrb[0].mxu0
      %v2790 = vadd.f32 0.0, %v2789
      %v2791 = vpop.f32.mrb[0].mxu0
      %2792 = vmatprep.mubr.bf16.mxu0 0
      %2793 = vmatmul.mubr.bf16.gmra.mrb[0].mxu0 %v2680
      %v2794 = vpop.f32.mrb[0].mxu0
      %v2795 = vadd.f32 0.0, %v2794
      %v2796 = vpop.f32.mrb[0].mxu0
      %v2797 = vpop.f32.mrb[0].mxu0
      %v2798 = vadd.f32 0.0, %v2797
      %v2799 = vpop.f32.mrb[0].mxu0
      %2800 = vmatprep.mubr.bf16.mxu0 0
      %2801 = vmatmul.mubr.bf16.gmra.mrb[0].mxu0 %v2683
      %v2802 = vpop.f32.mrb[0].mxu0
      %v2803 = vadd.f32 0.0, %v2802
      %v2804 = vpop.f32.mrb[0].mxu0
      %v2805 = vpop.f32.mrb[0].mxu0
      %v2806 = vadd.f32 0.0, %v2805
      %v2807 = vpop.f32.mrb[0].mxu0
      %2808 = vmatprep.mubr.bf16.mxu0 0
      %2809 = vmatmul.mubr.bf16.gmra.mrb[0].mxu0 %v2686
      %v2810 = vpop.f32.mrb[0].mxu0
      %v2811 = vadd.f32 0.0, %v2810
      %v2812 = vpop.f32.mrb[0].mxu0
      %v2813 = vpop.f32.mrb[0].mxu0
      %v2814 = vadd.f32 0.0, %v2813
      %v2815 = vpop.f32.mrb[0].mxu0
      %2816 = vmatprep.mubr.bf16.mxu0 0
      %2817 = vmatmul.mubr.bf16.gmra.mrb[0].mxu0 %v2689
      %v2818 = vpop.f32.mrb[0].mxu0
      %v2819 = vadd.f32 0.0, %v2818
      %v2820 = vpop.f32.mrb[0].mxu0
      %v2821 = vpop.f32.mrb[0].mxu0
      %v2822 = vadd.f32 0.0, %v2821
      %v2823 = vpop.f32.mrb[0].mxu0
      %2824 = vmatprep.mubr.bf16.mxu0 0
      %2825 = vmatmul.mubr.bf16.gmra.mrb[0].mxu0 %v2692
      %v2826 = vpop.f32.mrb[0].mxu0
      %v2827 = vadd.f32 0.0, %v2826
      %v2828 = vpop.f32.mrb[0].mxu0
      %v2829 = vpop.f32.mrb[0].mxu0
      %v2830 = vadd.f32 0.0, %v2829
      %v2831 = vpop.f32.mrb[0].mxu0
      %2832 = vmatprep.mubr.bf16.mxu0 0
      %2833 = vmatmul.mubr.bf16.gmra.mrb[0].mxu0 %v2695
      %v2834 = vpop.f32.mrb[0].mxu0
      %v2835 = vadd.f32 0.0, %v2834
      %v2836 = vpop.f32.mrb[0].mxu0
      %v2837 = vpop.f32.mrb[0].mxu0
      %v2838 = vadd.f32 0.0, %v2837
      %v2839 = vpop.f32.mrb[0].mxu0
      %2840 = vmatprep.mubr.bf16.mxu0 0
      %2841 = vmatmul.mubr.bf16.gmra.mrb[0].mxu0 %v2698
      %v2842 = vpop.f32.mrb[0].mxu0
      %v2843 = vadd.f32 0.0, %v2842
      %v2844 = vpop.f32.mrb[0].mxu0
      %v2845 = vpop.f32.mrb[0].mxu0
      %v2846 = vadd.f32 0.0, %v2845
      %v2847 = vpop.f32.mrb[0].mxu0
      %2848 = vmatprep.mubr.bf16.mxu0 0
      %2849 = vmatmul.mubr.bf16.gmra.mrb[0].mxu0 %v2701
      %v2850 = vpop.f32.mrb[0].mxu0
      %v2851 = vadd.f32 0.0, %v2850
      %v2852 = vpop.f32.mrb[0].mxu0
      %v2853 = vpop.f32.mrb[0].mxu0
      %v2854 = vadd.f32 0.0, %v2853
      %v2855 = vpop.f32.mrb[0].mxu0
      %2856 = vmatprep.mubr.bf16.mxu0 0
      %2857 = vmatmul.mubr.bf16.gmra.mrb[0].mxu0 %v2704
      %v2858 = vpop.f32.mrb[0].mxu0
      %v2859 = vadd.f32 0.0, %v2858
      %v2860 = vpop.f32.mrb[0].mxu0
      %v2861 = vpop.f32.mrb[0].mxu0
      %v2862 = vadd.f32 0.0, %v2861
      %v2863 = vpop.f32.mrb[0].mxu0
      %2864 = vmatprep.mubr.bf16.mxu0 0
      %2865 = vmatmul.mubr.bf16.gmra.mrb[0].mxu0 %v2707
      %v2866 = vpop.f32.mrb[0].mxu0
      %v2867 = vadd.f32 0.0, %v2866
      %v2868 = vpop.f32.mrb[0].mxu0
      %v2869 = vpop.f32.mrb[0].mxu0
      %v2870 = vadd.f32 0.0, %v2869
      %v2871 = vpop.f32.mrb[0].mxu0
      %2872 = vdwg.mxu0
      %v2873 = vadd.f32 %v2610, %v2747
      %v2874 = vadd.f32 %v2611, %v2750
      %v2875 = vadd.f32 %v2612, %v2755
      %v2876 = vadd.f32 %v2613, %v2758
      %v2877 = vadd.f32 %v2614, %v2763
      %v2878 = vadd.f32 %v2615, %v2766
      %v2879 = vadd.f32 %v2616, %v2771
      %v2880 = vadd.f32 %v2617, %v2774
      %v2881 = vadd.f32 %v2618, %v2779
      %v2882 = vadd.f32 %v2619, %v2782
      %v2883 = vadd.f32 %v2620, %v2787
      %v2884 = vadd.f32 %v2621, %v2790
      %v2885 = vadd.f32 %v2622, %v2795
      %v2886 = vadd.f32 %v2623, %v2798
      %v2887 = vadd.f32 %v2624, %v2803
      %v2888 = vadd.f32 %v2625, %v2806
      %v2889 = vadd.f32 %v2626, %v2811
      %v2890 = vadd.f32 %v2627, %v2814
      %v2891 = vadd.f32 %v2628, %v2819
      %v2892 = vadd.f32 %v2629, %v2822
      %v2893 = vadd.f32 %v2630, %v2827
      %v2894 = vadd.f32 %v2631, %v2830
      %v2895 = vadd.f32 %v2632, %v2835
      %v2896 = vadd.f32 %v2633, %v2838
      %v2897 = vadd.f32 %v2634, %v2843
      %v2898 = vadd.f32 %v2635, %v2846
      %v2899 = vadd.f32 %v2636, %v2851
      %v2900 = vadd.f32 %v2637, %v2854
      %v2901 = vadd.f32 %v2638, %v2859
      %v2902 = vadd.f32 %v2639, %v2862
      %v2903 = vadd.f32 %v2640, %v2867
      %v2904 = vadd.f32 %v2641, %v2870
      %s2905 = scalar_lea.vmem [#allocation2], 160
      %v2906 = vld [vmem:[%s2905] sm:$0xff]
      %v2907 = vld [vmem:[%s2905 + $0x8] sm:$0xff]
      %v2908 = vld [vmem:[%s2905 + $0x10] sm:$0xff]
      %v2909 = vld [vmem:[%s2905 + $0x18] sm:$0xff]
      %v2910 = vld [vmem:[%s2905 + $0x20] sm:$0xff]
      %v2911 = vld [vmem:[%s2905 + $0x28] sm:$0xff]
      %v2912 = vld [vmem:[%s2905 + $0x30] sm:$0xff]
      %v2913 = vld [vmem:[%s2905 + $0x38] sm:$0xff]
      %v2914 = vld [vmem:[%s2905 + $0x40] sm:$0xff]
      %v2915 = vld [vmem:[%s2905 + $0x48] sm:$0xff]
      %v2916 = vld [vmem:[%s2905 + $0x50] sm:$0xff]
      %v2917 = vld [vmem:[%s2905 + $0x58] sm:$0xff]
      %v2918 = vld [vmem:[%s2905 + $0x60] sm:$0xff]
      %v2919 = vld [vmem:[%s2905 + $0x68] sm:$0xff]
      %v2920 = vld [vmem:[%s2905 + $0x70] sm:$0xff]
      %v2921 = vld [vmem:[%s2905 + $0x78] sm:$0xff]
      %s2922 = scalar_lea.vmem %s1, 14
      %v2923 = vld [vmem:[%s2922] sm:$0x3]
      %v2925 = vsel %vm280, %v2906, 0
      %v2928 = vsel %vm280, %v2907, 0
      %v2931 = vsel %vm280, %v2908, 0
      %v2934 = vsel %vm280, %v2909, 0
      %v2937 = vsel %vm280, %v2910, 0
      %v2940 = vsel %vm280, %v2911, 0
      %v2943 = vsel %vm280, %v2912, 0
      %v2946 = vsel %vm280, %v2913, 0
      %v2949 = vsel %vm280, %v2914, 0
      %v2952 = vsel %vm280, %v2915, 0
      %v2955 = vsel %vm280, %v2916, 0
      %v2958 = vsel %vm280, %v2917, 0
      %v2961 = vsel %vm280, %v2918, 0
      %v2964 = vsel %vm280, %v2919, 0
      %v2967 = vsel %vm280, %v2920, 0
      %v2970 = vsel %vm280, %v2921, 0
      %v2973 = vsel %vm1217, %v2923, 0
      %2975 = vmatprep.subr.bf16.mxu0 0
      %2976 = vmatpush1.bf16.msra.mxu0 %v2973
      %2977 = vmatprep.subr.bf16.mxu0 0
      %2978 = vmatpush1.bf16.msra.mxu0 0
      %2979 = vmatprep.subr.bf16.mxu0 0
      %2980 = vmatpush1.bf16.msra.mxu0 0
      %2981 = vmatprep.subr.bf16.mxu0 0
      %2982 = vmatpush1.bf16.msra.mxu0 0
      %2983 = vmatprep.subr.bf16.mxu0 0
      %2984 = vmatpush1.bf16.msra.mxu0 0
      %2985 = vmatprep.subr.bf16.mxu0 0
      %2986 = vmatpush1.bf16.msra.mxu0 0
      %2987 = vmatprep.subr.bf16.mxu0 0
      %2988 = vmatpush1.bf16.msra.mxu0 0
      %2989 = vmatprep.subr.bf16.mxu0 0
      %2990 = vmatpush1.bf16.msra.mxu0 0
      %2991 = vmatprep.subr.bf16.mxu0 0
      %2992 = vmatpush1.bf16.msra.mxu0 0
      %2993 = vmatprep.subr.bf16.mxu0 0
      %2994 = vmatpush1.bf16.msra.mxu0 0
      %2995 = vmatprep.subr.bf16.mxu0 0
      %2996 = vmatpush1.bf16.msra.mxu0 0
      %2997 = vmatprep.subr.bf16.mxu0 0
      %2998 = vmatpush1.bf16.msra.mxu0 0
      %2999 = vmatprep.subr.bf16.mxu0 0
      %3000 = vmatpush1.bf16.msra.mxu0 0
      %3001 = vmatprep.subr.bf16.mxu0 0
      %3002 = vmatpush1.bf16.msra.mxu0 0
      %3003 = vmatprep.subr.bf16.mxu0 0
      %3004 = vmatpush1.bf16.msra.mxu0 0
      %3005 = vmatprep.subr.bf16.mxu0 0
      %3006 = vmatpush1.bf16.msra.mxu0 0
      %3007 = vmatprep.mubr.bf16.mxu0 0
      %3008 = vmatmul.mubr.bf16.gmra.mrb[0].mxu0 %v2925
      %v3009 = vpop.f32.mrb[0].mxu0
      %v3010 = vadd.f32 0.0, %v3009
      %v3011 = vpop.f32.mrb[0].mxu0
      %v3012 = vpop.f32.mrb[0].mxu0
      %v3013 = vadd.f32 0.0, %v3012
      %v3014 = vpop.f32.mrb[0].mxu0
      %3015 = vmatprep.mubr.bf16.mxu0 0
      %3016 = vmatmul.mubr.bf16.gmra.mrb[0].mxu0 %v2928
      %v3017 = vpop.f32.mrb[0].mxu0
      %v3018 = vadd.f32 0.0, %v3017
      %v3019 = vpop.f32.mrb[0].mxu0
      %v3020 = vpop.f32.mrb[0].mxu0
      %v3021 = vadd.f32 0.0, %v3020
      %v3022 = vpop.f32.mrb[0].mxu0
      %3023 = vmatprep.mubr.bf16.mxu0 0
      %3024 = vmatmul.mubr.bf16.gmra.mrb[0].mxu0 %v2931
      %v3025 = vpop.f32.mrb[0].mxu0
      %v3026 = vadd.f32 0.0, %v3025
      %v3027 = vpop.f32.mrb[0].mxu0
      %v3028 = vpop.f32.mrb[0].mxu0
      %v3029 = vadd.f32 0.0, %v3028
      %v3030 = vpop.f32.mrb[0].mxu0
      %3031 = vmatprep.mubr.bf16.mxu0 0
      %3032 = vmatmul.mubr.bf16.gmra.mrb[0].mxu0 %v2934
      %v3033 = vpop.f32.mrb[0].mxu0
      %v3034 = vadd.f32 0.0, %v3033
      %v3035 = vpop.f32.mrb[0].mxu0
      %v3036 = vpop.f32.mrb[0].mxu0
      %v3037 = vadd.f32 0.0, %v3036
      %v3038 = vpop.f32.mrb[0].mxu0
      %3039 = vmatprep.mubr.bf16.mxu0 0
      %3040 = vmatmul.mubr.bf16.gmra.mrb[0].mxu0 %v2937
      %v3041 = vpop.f32.mrb[0].mxu0
      %v3042 = vadd.f32 0.0, %v3041
      %v3043 = vpop.f32.mrb[0].mxu0
      %v3044 = vpop.f32.mrb[0].mxu0
      %v3045 = vadd.f32 0.0, %v3044
      %v3046 = vpop.f32.mrb[0].mxu0
      %3047 = vmatprep.mubr.bf16.mxu0 0
      %3048 = vmatmul.mubr.bf16.gmra.mrb[0].mxu0 %v2940
      %v3049 = vpop.f32.mrb[0].mxu0
      %v3050 = vadd.f32 0.0, %v3049
      %v3051 = vpop.f32.mrb[0].mxu0
      %v3052 = vpop.f32.mrb[0].mxu0
      %v3053 = vadd.f32 0.0, %v3052
      %v3054 = vpop.f32.mrb[0].mxu0
      %3055 = vmatprep.mubr.bf16.mxu0 0
      %3056 = vmatmul.mubr.bf16.gmra.mrb[0].mxu0 %v2943
      %v3057 = vpop.f32.mrb[0].mxu0
      %v3058 = vadd.f32 0.0, %v3057
      %v3059 = vpop.f32.mrb[0].mxu0
      %v3060 = vpop.f32.mrb[0].mxu0
      %v3061 = vadd.f32 0.0, %v3060
      %v3062 = vpop.f32.mrb[0].mxu0
      %3063 = vmatprep.mubr.bf16.mxu0 0
      %3064 = vmatmul.mubr.bf16.gmra.mrb[0].mxu0 %v2946
      %v3065 = vpop.f32.mrb[0].mxu0
      %v3066 = vadd.f32 0.0, %v3065
      %v3067 = vpop.f32.mrb[0].mxu0
      %v3068 = vpop.f32.mrb[0].mxu0
      %v3069 = vadd.f32 0.0, %v3068
      %v3070 = vpop.f32.mrb[0].mxu0
      %3071 = vmatprep.mubr.bf16.mxu0 0
      %3072 = vmatmul.mubr.bf16.gmra.mrb[0].mxu0 %v2949
      %v3073 = vpop.f32.mrb[0].mxu0
      %v3074 = vadd.f32 0.0, %v3073
      %v3075 = vpop.f32.mrb[0].mxu0
      %v3076 = vpop.f32.mrb[0].mxu0
      %v3077 = vadd.f32 0.0, %v3076
      %v3078 = vpop.f32.mrb[0].mxu0
      %3079 = vmatprep.mubr.bf16.mxu0 0
      %3080 = vmatmul.mubr.bf16.gmra.mrb[0].mxu0 %v2952
      %v3081 = vpop.f32.mrb[0].mxu0
      %v3082 = vadd.f32 0.0, %v3081
      %v3083 = vpop.f32.mrb[0].mxu0
      %v3084 = vpop.f32.mrb[0].mxu0
      %v3085 = vadd.f32 0.0, %v3084
      %v3086 = vpop.f32.mrb[0].mxu0
      %3087 = vmatprep.mubr.bf16.mxu0 0
      %3088 = vmatmul.mubr.bf16.gmra.mrb[0].mxu0 %v2955
      %v3089 = vpop.f32.mrb[0].mxu0
      %v3090 = vadd.f32 0.0, %v3089
      %v3091 = vpop.f32.mrb[0].mxu0
      %v3092 = vpop.f32.mrb[0].mxu0
      %v3093 = vadd.f32 0.0, %v3092
      %v3094 = vpop.f32.mrb[0].mxu0
      %3095 = vmatprep.mubr.bf16.mxu0 0
      %3096 = vmatmul.mubr.bf16.gmra.mrb[0].mxu0 %v2958
      %v3097 = vpop.f32.mrb[0].mxu0
      %v3098 = vadd.f32 0.0, %v3097
      %v3099 = vpop.f32.mrb[0].mxu0
      %v3100 = vpop.f32.mrb[0].mxu0
      %v3101 = vadd.f32 0.0, %v3100
      %v3102 = vpop.f32.mrb[0].mxu0
      %3103 = vmatprep.mubr.bf16.mxu0 0
      %3104 = vmatmul.mubr.bf16.gmra.mrb[0].mxu0 %v2961
      %v3105 = vpop.f32.mrb[0].mxu0
      %v3106 = vadd.f32 0.0, %v3105
      %v3107 = vpop.f32.mrb[0].mxu0
      %v3108 = vpop.f32.mrb[0].mxu0
      %v3109 = vadd.f32 0.0, %v3108
      %v3110 = vpop.f32.mrb[0].mxu0
      %3111 = vmatprep.mubr.bf16.mxu0 0
      %3112 = vmatmul.mubr.bf16.gmra.mrb[0].mxu0 %v2964
      %v3113 = vpop.f32.mrb[0].mxu0
      %v3114 = vadd.f32 0.0, %v3113
      %v3115 = vpop.f32.mrb[0].mxu0
      %v3116 = vpop.f32.mrb[0].mxu0
      %v3117 = vadd.f32 0.0, %v3116
      %v3118 = vpop.f32.mrb[0].mxu0
      %3119 = vmatprep.mubr.bf16.mxu0 0
      %3120 = vmatmul.mubr.bf16.gmra.mrb[0].mxu0 %v2967
      %v3121 = vpop.f32.mrb[0].mxu0
      %v3122 = vadd.f32 0.0, %v3121
      %v3123 = vpop.f32.mrb[0].mxu0
      %v3124 = vpop.f32.mrb[0].mxu0
      %v3125 = vadd.f32 0.0, %v3124
      %v3126 = vpop.f32.mrb[0].mxu0
      %3127 = vmatprep.mubr.bf16.mxu0 0
      %3128 = vmatmul.mubr.bf16.gmra.mrb[0].mxu0 %v2970
      %v3129 = vpop.f32.mrb[0].mxu0
      %v3130 = vadd.f32 0.0, %v3129
      %v3131 = vpop.f32.mrb[0].mxu0
      %v3132 = vpop.f32.mrb[0].mxu0
      %v3133 = vadd.f32 0.0, %v3132
      %v3134 = vpop.f32.mrb[0].mxu0
      %3135 = vdwg.mxu0
      %v3136 = vadd.f32 %v2873, %v3010
      %v3137 = vadd.f32 %v2874, %v3013
      %v3138 = vadd.f32 %v2875, %v3018
      %v3139 = vadd.f32 %v2876, %v3021
      %v3140 = vadd.f32 %v2877, %v3026
      %v3141 = vadd.f32 %v2878, %v3029
      %v3142 = vadd.f32 %v2879, %v3034
      %v3143 = vadd.f32 %v2880, %v3037
      %v3144 = vadd.f32 %v2881, %v3042
      %v3145 = vadd.f32 %v2882, %v3045
      %v3146 = vadd.f32 %v2883, %v3050
      %v3147 = vadd.f32 %v2884, %v3053
      %v3148 = vadd.f32 %v2885, %v3058
      %v3149 = vadd.f32 %v2886, %v3061
      %v3150 = vadd.f32 %v2887, %v3066
      %v3151 = vadd.f32 %v2888, %v3069
      %v3152 = vadd.f32 %v2889, %v3074
      %v3153 = vadd.f32 %v2890, %v3077
      %v3154 = vadd.f32 %v2891, %v3082
      %v3155 = vadd.f32 %v2892, %v3085
      %v3156 = vadd.f32 %v2893, %v3090
      %v3157 = vadd.f32 %v2894, %v3093
      %v3158 = vadd.f32 %v2895, %v3098
      %v3159 = vadd.f32 %v2896, %v3101
      %v3160 = vadd.f32 %v2897, %v3106
      %v3161 = vadd.f32 %v2898, %v3109
      %v3162 = vadd.f32 %v2899, %v3114
      %v3163 = vadd.f32 %v2900, %v3117
      %v3164 = vadd.f32 %v2901, %v3122
      %v3165 = vadd.f32 %v2902, %v3125
      %v3166 = vadd.f32 %v2903, %v3130
      %v3167 = vadd.f32 %v2904, %v3133
      %s3168 = scalar_lea.vmem [#allocation2], 304
      %v3169 = vld [vmem:[%s3168] sm:$0xff]
      %v3170 = vld [vmem:[%s3168 + $0x8] sm:$0xff]
      %v3171 = vld [vmem:[%s3168 + $0x10] sm:$0xff]
      %v3172 = vld [vmem:[%s3168 + $0x18] sm:$0xff]
      %v3173 = vld [vmem:[%s3168 + $0x20] sm:$0xff]
      %v3174 = vld [vmem:[%s3168 + $0x28] sm:$0xff]
      %v3175 = vld [vmem:[%s3168 + $0x30] sm:$0xff]
      %v3176 = vld [vmem:[%s3168 + $0x38] sm:$0xff]
      %v3177 = vld [vmem:[%s3168 + $0x40] sm:$0xff]
      %v3178 = vld [vmem:[%s3168 + $0x48] sm:$0xff]
      %v3179 = vld [vmem:[%s3168 + $0x50] sm:$0xff]
      %v3180 = vld [vmem:[%s3168 + $0x58] sm:$0xff]
      %v3181 = vld [vmem:[%s3168 + $0x60] sm:$0xff]
      %v3182 = vld [vmem:[%s3168 + $0x68] sm:$0xff]
      %v3183 = vld [vmem:[%s3168 + $0x70] sm:$0xff]
      %v3184 = vld [vmem:[%s3168 + $0x78] sm:$0xff]
      %s3185 = scalar_lea.vmem %s1, 16
      %v3186 = vld [vmem:[%s3185] sm:$0x3]
      %v3188 = vsel %vm280, %v3169, 0
      %v3191 = vsel %vm280, %v3170, 0
      %v3194 = vsel %vm280, %v3171, 0
      %v3197 = vsel %vm280, %v3172, 0
      %v3200 = vsel %vm280, %v3173, 0
      %v3203 = vsel %vm280, %v3174, 0
      %v3206 = vsel %vm280, %v3175, 0
      %v3209 = vsel %vm280, %v3176, 0
      %v3212 = vsel %vm280, %v3177, 0
      %v3215 = vsel %vm280, %v3178, 0
      %v3218 = vsel %vm280, %v3179, 0
      %v3221 = vsel %vm280, %v3180, 0
      %v3224 = vsel %vm280, %v3181, 0
      %v3227 = vsel %vm280, %v3182, 0
      %v3230 = vsel %vm280, %v3183, 0
      %v3233 = vsel %vm280, %v3184, 0
      %v3236 = vsel %vm1217, %v3186, 0
      %3238 = vmatprep.subr.bf16.mxu0 0
      %3239 = vmatpush1.bf16.msra.mxu0 %v3236
      %3240 = vmatprep.subr.bf16.mxu0 0
      %3241 = vmatpush1.bf16.msra.mxu0 0
      %3242 = vmatprep.subr.bf16.mxu0 0
      %3243 = vmatpush1.bf16.msra.mxu0 0
      %3244 = vmatprep.subr.bf16.mxu0 0
      %3245 = vmatpush1.bf16.msra.mxu0 0
      %3246 = vmatprep.subr.bf16.mxu0 0
      %3247 = vmatpush1.bf16.msra.mxu0 0
      %3248 = vmatprep.subr.bf16.mxu0 0
      %3249 = vmatpush1.bf16.msra.mxu0 0
      %3250 = vmatprep.subr.bf16.mxu0 0
      %3251 = vmatpush1.bf16.msra.mxu0 0
      %3252 = vmatprep.subr.bf16.mxu0 0
      %3253 = vmatpush1.bf16.msra.mxu0 0
      %3254 = vmatprep.subr.bf16.mxu0 0
      %3255 = vmatpush1.bf16.msra.mxu0 0
      %3256 = vmatprep.subr.bf16.mxu0 0
      %3257 = vmatpush1.bf16.msra.mxu0 0
      %3258 = vmatprep.subr.bf16.mxu0 0
      %3259 = vmatpush1.bf16.msra.mxu0 0
      %3260 = vmatprep.subr.bf16.mxu0 0
      %3261 = vmatpush1.bf16.msra.mxu0 0
      %3262 = vmatprep.subr.bf16.mxu0 0
      %3263 = vmatpush1.bf16.msra.mxu0 0
      %3264 = vmatprep.subr.bf16.mxu0 0
      %3265 = vmatpush1.bf16.msra.mxu0 0
      %3266 = vmatprep.subr.bf16.mxu0 0
      %3267 = vmatpush1.bf16.msra.mxu0 0
      %3268 = vmatprep.subr.bf16.mxu0 0
      %3269 = vmatpush1.bf16.msra.mxu0 0
      %3270 = vmatprep.mubr.bf16.mxu0 0
      %3271 = vmatmul.mubr.bf16.gmra.mrb[0].mxu0 %v3188
      %v3272 = vpop.f32.mrb[0].mxu0
      %v3273 = vadd.f32 0.0, %v3272
      %v3274 = vpop.f32.mrb[0].mxu0
      %v3275 = vpop.f32.mrb[0].mxu0
      %v3276 = vadd.f32 0.0, %v3275
      %v3277 = vpop.f32.mrb[0].mxu0
      %3278 = vmatprep.mubr.bf16.mxu0 0
      %3279 = vmatmul.mubr.bf16.gmra.mrb[0].mxu0 %v3191
      %v3280 = vpop.f32.mrb[0].mxu0
      %v3281 = vadd.f32 0.0, %v3280
      %v3282 = vpop.f32.mrb[0].mxu0
      %v3283 = vpop.f32.mrb[0].mxu0
      %v3284 = vadd.f32 0.0, %v3283
      %v3285 = vpop.f32.mrb[0].mxu0
      %3286 = vmatprep.mubr.bf16.mxu0 0
      %3287 = vmatmul.mubr.bf16.gmra.mrb[0].mxu0 %v3194
      %v3288 = vpop.f32.mrb[0].mxu0
      %v3289 = vadd.f32 0.0, %v3288
      %v3290 = vpop.f32.mrb[0].mxu0
      %v3291 = vpop.f32.mrb[0].mxu0
      %v3292 = vadd.f32 0.0, %v3291
      %v3293 = vpop.f32.mrb[0].mxu0
      %3294 = vmatprep.mubr.bf16.mxu0 0
      %3295 = vmatmul.mubr.bf16.gmra.mrb[0].mxu0 %v3197
      %v3296 = vpop.f32.mrb[0].mxu0
      %v3297 = vadd.f32 0.0, %v3296
      %v3298 = vpop.f32.mrb[0].mxu0
      %v3299 = vpop.f32.mrb[0].mxu0
      %v3300 = vadd.f32 0.0, %v3299
      %v3301 = vpop.f32.mrb[0].mxu0
      %3302 = vmatprep.mubr.bf16.mxu0 0
      %3303 = vmatmul.mubr.bf16.gmra.mrb[0].mxu0 %v3200
      %v3304 = vpop.f32.mrb[0].mxu0
      %v3305 = vadd.f32 0.0, %v3304
      %v3306 = vpop.f32.mrb[0].mxu0
      %v3307 = vpop.f32.mrb[0].mxu0
      %v3308 = vadd.f32 0.0, %v3307
      %v3309 = vpop.f32.mrb[0].mxu0
      %3310 = vmatprep.mubr.bf16.mxu0 0
      %3311 = vmatmul.mubr.bf16.gmra.mrb[0].mxu0 %v3203
      %v3312 = vpop.f32.mrb[0].mxu0
      %v3313 = vadd.f32 0.0, %v3312
      %v3314 = vpop.f32.mrb[0].mxu0
      %v3315 = vpop.f32.mrb[0].mxu0
      %v3316 = vadd.f32 0.0, %v3315
      %v3317 = vpop.f32.mrb[0].mxu0
      %3318 = vmatprep.mubr.bf16.mxu0 0
      %3319 = vmatmul.mubr.bf16.gmra.mrb[0].mxu0 %v3206
      %v3320 = vpop.f32.mrb[0].mxu0
      %v3321 = vadd.f32 0.0, %v3320
      %v3322 = vpop.f32.mrb[0].mxu0
      %v3323 = vpop.f32.mrb[0].mxu0
      %v3324 = vadd.f32 0.0, %v3323
      %v3325 = vpop.f32.mrb[0].mxu0
      %3326 = vmatprep.mubr.bf16.mxu0 0
      %3327 = vmatmul.mubr.bf16.gmra.mrb[0].mxu0 %v3209
      %v3328 = vpop.f32.mrb[0].mxu0
      %v3329 = vadd.f32 0.0, %v3328
      %v3330 = vpop.f32.mrb[0].mxu0
      %v3331 = vpop.f32.mrb[0].mxu0
      %v3332 = vadd.f32 0.0, %v3331
      %v3333 = vpop.f32.mrb[0].mxu0
      %3334 = vmatprep.mubr.bf16.mxu0 0
      %3335 = vmatmul.mubr.bf16.gmra.mrb[0].mxu0 %v3212
      %v3336 = vpop.f32.mrb[0].mxu0
      %v3337 = vadd.f32 0.0, %v3336
      %v3338 = vpop.f32.mrb[0].mxu0
      %v3339 = vpop.f32.mrb[0].mxu0
      %v3340 = vadd.f32 0.0, %v3339
      %v3341 = vpop.f32.mrb[0].mxu0
      %3342 = vmatprep.mubr.bf16.mxu0 0
      %3343 = vmatmul.mubr.bf16.gmra.mrb[0].mxu0 %v3215
      %v3344 = vpop.f32.mrb[0].mxu0
      %v3345 = vadd.f32 0.0, %v3344
      %v3346 = vpop.f32.mrb[0].mxu0
      %v3347 = vpop.f32.mrb[0].mxu0
      %v3348 = vadd.f32 0.0, %v3347
      %v3349 = vpop.f32.mrb[0].mxu0
      %3350 = vmatprep.mubr.bf16.mxu0 0
      %3351 = vmatmul.mubr.bf16.gmra.mrb[0].mxu0 %v3218
      %v3352 = vpop.f32.mrb[0].mxu0
      %v3353 = vadd.f32 0.0, %v3352
      %v3354 = vpop.f32.mrb[0].mxu0
      %v3355 = vpop.f32.mrb[0].mxu0
      %v3356 = vadd.f32 0.0, %v3355
      %v3357 = vpop.f32.mrb[0].mxu0
      %3358 = vmatprep.mubr.bf16.mxu0 0
      %3359 = vmatmul.mubr.bf16.gmra.mrb[0].mxu0 %v3221
      %v3360 = vpop.f32.mrb[0].mxu0
      %v3361 = vadd.f32 0.0, %v3360
      %v3362 = vpop.f32.mrb[0].mxu0
      %v3363 = vpop.f32.mrb[0].mxu0
      %v3364 = vadd.f32 0.0, %v3363
      %v3365 = vpop.f32.mrb[0].mxu0
      %3366 = vmatprep.mubr.bf16.mxu0 0
      %3367 = vmatmul.mubr.bf16.gmra.mrb[0].mxu0 %v3224
      %v3368 = vpop.f32.mrb[0].mxu0
      %v3369 = vadd.f32 0.0, %v3368
      %v3370 = vpop.f32.mrb[0].mxu0
      %v3371 = vpop.f32.mrb[0].mxu0
      %v3372 = vadd.f32 0.0, %v3371
      %v3373 = vpop.f32.mrb[0].mxu0
      %3374 = vmatprep.mubr.bf16.mxu0 0
      %3375 = vmatmul.mubr.bf16.gmra.mrb[0].mxu0 %v3227
      %v3376 = vpop.f32.mrb[0].mxu0
      %v3377 = vadd.f32 0.0, %v3376
      %v3378 = vpop.f32.mrb[0].mxu0
      %v3379 = vpop.f32.mrb[0].mxu0
      %v3380 = vadd.f32 0.0, %v3379
      %v3381 = vpop.f32.mrb[0].mxu0
      %3382 = vmatprep.mubr.bf16.mxu0 0
      %3383 = vmatmul.mubr.bf16.gmra.mrb[0].mxu0 %v3230
      %v3384 = vpop.f32.mrb[0].mxu0
      %v3385 = vadd.f32 0.0, %v3384
      %v3386 = vpop.f32.mrb[0].mxu0
      %v3387 = vpop.f32.mrb[0].mxu0
      %v3388 = vadd.f32 0.0, %v3387
      %v3389 = vpop.f32.mrb[0].mxu0
      %3390 = vmatprep.mubr.bf16.mxu0 0
      %3391 = vmatmul.mubr.bf16.gmra.mrb[0].mxu0 %v3233
      %v3392 = vpop.f32.mrb[0].mxu0
      %v3393 = vadd.f32 0.0, %v3392
      %v3394 = vpop.f32.mrb[0].mxu0
      %v3395 = vpop.f32.mrb[0].mxu0
      %v3396 = vadd.f32 0.0, %v3395
      %v3397 = vpop.f32.mrb[0].mxu0
      %3398 = vdwg.mxu0
      %v3399 = vadd.f32 %v3136, %v3273
      %v3400 = vadd.f32 %v3137, %v3276
      %v3401 = vadd.f32 %v3138, %v3281
      %v3402 = vadd.f32 %v3139, %v3284
      %v3403 = vadd.f32 %v3140, %v3289
      %v3404 = vadd.f32 %v3141, %v3292
      %v3405 = vadd.f32 %v3142, %v3297
      %v3406 = vadd.f32 %v3143, %v3300
      %v3407 = vadd.f32 %v3144, %v3305
      %v3408 = vadd.f32 %v3145, %v3308
      %v3409 = vadd.f32 %v3146, %v3313
      %v3410 = vadd.f32 %v3147, %v3316
      %v3411 = vadd.f32 %v3148, %v3321
      %v3412 = vadd.f32 %v3149, %v3324
      %v3413 = vadd.f32 %v3150, %v3329
      %v3414 = vadd.f32 %v3151, %v3332
      %v3415 = vadd.f32 %v3152, %v3337
      %v3416 = vadd.f32 %v3153, %v3340
      %v3417 = vadd.f32 %v3154, %v3345
      %v3418 = vadd.f32 %v3155, %v3348
      %v3419 = vadd.f32 %v3156, %v3353
      %v3420 = vadd.f32 %v3157, %v3356
      %v3421 = vadd.f32 %v3158, %v3361
      %v3422 = vadd.f32 %v3159, %v3364
      %v3423 = vadd.f32 %v3160, %v3369
      %v3424 = vadd.f32 %v3161, %v3372
      %v3425 = vadd.f32 %v3162, %v3377
      %v3426 = vadd.f32 %v3163, %v3380
      %v3427 = vadd.f32 %v3164, %v3385
      %v3428 = vadd.f32 %v3165, %v3388
      %v3429 = vadd.f32 %v3166, %v3393
      %v3430 = vadd.f32 %v3167, %v3396
      %v3431 = vld [vmem:[%s2] sm:$0x1]
      %v3433 = vlaneseq
      %v3434 = vshrl.u32 %v3433, 7
      %v3435 = vsub.s32 0, %v3434
      %v3436 = vrot.slane %v3431, %v3435
      %v3438 = vadd.f32 %v3399, %v3436
      %v3439 = vadd.f32 %v3400, %v3436
      %v3440 = vadd.f32 %v3401, %v3436
      %v3441 = vadd.f32 %v3402, %v3436
      %v3442 = vadd.f32 %v3403, %v3436
      %v3443 = vadd.f32 %v3404, %v3436
      %v3444 = vadd.f32 %v3405, %v3436
      %v3445 = vadd.f32 %v3406, %v3436
      %v3446 = vadd.f32 %v3407, %v3436
      %v3447 = vadd.f32 %v3408, %v3436
      %v3448 = vadd.f32 %v3409, %v3436
      %v3449 = vadd.f32 %v3410, %v3436
      %v3450 = vadd.f32 %v3411, %v3436
      %v3451 = vadd.f32 %v3412, %v3436
      %v3452 = vadd.f32 %v3413, %v3436
      %v3453 = vadd.f32 %v3414, %v3436
      %v3454 = vadd.f32 %v3415, %v3436
      %v3455 = vadd.f32 %v3416, %v3436
      %v3456 = vadd.f32 %v3417, %v3436
      %v3457 = vadd.f32 %v3418, %v3436
      %v3458 = vadd.f32 %v3419, %v3436
      %v3459 = vadd.f32 %v3420, %v3436
      %v3460 = vadd.f32 %v3421, %v3436
      %v3461 = vadd.f32 %v3422, %v3436
      %v3462 = vadd.f32 %v3423, %v3436
      %v3463 = vadd.f32 %v3424, %v3436
      %v3464 = vadd.f32 %v3425, %v3436
      %v3465 = vadd.f32 %v3426, %v3436
      %v3466 = vadd.f32 %v3427, %v3436
      %v3467 = vadd.f32 %v3428, %v3436
      %v3468 = vadd.f32 %v3429, %v3436
      %v3469 = vadd.f32 %v3430, %v3436
      %v3470 = vmax.f32 %v3438, 0.0
      %v3471 = vmax.f32 %v3439, 0.0
      %v3472 = vmax.f32 %v3440, 0.0
      %v3473 = vmax.f32 %v3441, 0.0
      %v3474 = vmax.f32 %v3442, 0.0
      %v3475 = vmax.f32 %v3443, 0.0
      %v3476 = vmax.f32 %v3444, 0.0
      %v3477 = vmax.f32 %v3445, 0.0
      %v3478 = vmax.f32 %v3446, 0.0
      %v3479 = vmax.f32 %v3447, 0.0
      %v3480 = vmax.f32 %v3448, 0.0
      %v3481 = vmax.f32 %v3449, 0.0
      %v3482 = vmax.f32 %v3450, 0.0
      %v3483 = vmax.f32 %v3451, 0.0
      %v3484 = vmax.f32 %v3452, 0.0
      %v3485 = vmax.f32 %v3453, 0.0
      %v3486 = vmax.f32 %v3454, 0.0
      %v3487 = vmax.f32 %v3455, 0.0
      %v3488 = vmax.f32 %v3456, 0.0
      %v3489 = vmax.f32 %v3457, 0.0
      %v3490 = vmax.f32 %v3458, 0.0
      %v3491 = vmax.f32 %v3459, 0.0
      %v3492 = vmax.f32 %v3460, 0.0
      %v3493 = vmax.f32 %v3461, 0.0
      %v3494 = vmax.f32 %v3462, 0.0
      %v3495 = vmax.f32 %v3463, 0.0
      %v3496 = vmax.f32 %v3464, 0.0
      %v3497 = vmax.f32 %v3465, 0.0
      %v3498 = vmax.f32 %v3466, 0.0
      %v3499 = vmax.f32 %v3467, 0.0
      %v3500 = vmax.f32 %v3468, 0.0
      %v3501 = vmax.f32 %v3469, 0.0
      %v3502 = vpack.c.bf16 %v3471, %v3470
      %v3503 = vpack.c.bf16 %v3473, %v3472
      %v3504 = vpack.c.bf16 %v3475, %v3474
      %v3505 = vpack.c.bf16 %v3477, %v3476
      %v3506 = vpack.c.bf16 %v3479, %v3478
      %v3507 = vpack.c.bf16 %v3481, %v3480
      %v3508 = vpack.c.bf16 %v3483, %v3482
      %v3509 = vpack.c.bf16 %v3485, %v3484
      %v3510 = vpack.c.bf16 %v3487, %v3486
      %v3511 = vpack.c.bf16 %v3489, %v3488
      %v3512 = vpack.c.bf16 %v3491, %v3490
      %v3513 = vpack.c.bf16 %v3493, %v3492
      %v3514 = vpack.c.bf16 %v3495, %v3494
      %v3515 = vpack.c.bf16 %v3497, %v3496
      %v3516 = vpack.c.bf16 %v3499, %v3498
      %v3517 = vpack.c.bf16 %v3501, %v3500
      %s3518 = scalar_lea.vmem [#allocation3], 152
      %3519 = vst.msk [vmem:[%s3518] sm:$0xff] %vm1122, %v3502
      %3520 = vst.msk [vmem:[%s3518 + $0x8] sm:$0xff] %vm1122, %v3503
      %3521 = vst.msk [vmem:[%s3518 + $0x10] sm:$0xff] %vm1122, %v3504
      %3522 = vst.msk [vmem:[%s3518 + $0x18] sm:$0xff] %vm1122, %v3505
      %3523 = vst.msk [vmem:[%s3518 + $0x20] sm:$0xff] %vm1122, %v3506
      %3524 = vst.msk [vmem:[%s3518 + $0x28] sm:$0xff] %vm1122, %v3507
      %3525 = vst.msk [vmem:[%s3518 + $0x30] sm:$0xff] %vm1122, %v3508
      %3526 = vst.msk [vmem:[%s3518 + $0x38] sm:$0xff] %vm1122, %v3509
      %3527 = vst.msk [vmem:[%s3518 + $0x40] sm:$0xff] %vm1122, %v3510
      %3528 = vst.msk [vmem:[%s3518 + $0x48] sm:$0xff] %vm1122, %v3511
      %3529 = vst.msk [vmem:[%s3518 + $0x50] sm:$0xff] %vm1122, %v3512
      %3530 = vst.msk [vmem:[%s3518 + $0x58] sm:$0xff] %vm1122, %v3513
      %3531 = vst.msk [vmem:[%s3518 + $0x60] sm:$0xff] %vm1122, %v3514
      %3532 = vst.msk [vmem:[%s3518 + $0x68] sm:$0xff] %vm1122, %v3515
      %3533 = vst.msk [vmem:[%s3518 + $0x70] sm:$0xff] %vm1122, %v3516
      %3534 = vst.msk [vmem:[%s3518 + $0x78] sm:$0xff] %vm1122, %v3517
      %v3536 = vshrl.u32 %v3502, 16
      %v3538 = vrot.slane %v3536, 7
      %v3539 = vshll.u32 %v3502, 16
      %v3541 = vor.u32 %v3538, %v3539
      %v3543 = vshrl.u32 %v3503, 16
      %v3545 = vrot.slane %v3543, 7
      %v3546 = vshll.u32 %v3503, 16
      %v3548 = vor.u32 %v3545, %v3546
      %v3550 = vshrl.u32 %v3504, 16
      %v3552 = vrot.slane %v3550, 7
      %v3553 = vshll.u32 %v3504, 16
      %v3555 = vor.u32 %v3552, %v3553
      %v3557 = vshrl.u32 %v3505, 16
      %v3559 = vrot.slane %v3557, 7
      %v3560 = vshll.u32 %v3505, 16
      %v3562 = vor.u32 %v3559, %v3560
      %v3564 = vshrl.u32 %v3506, 16
      %v3566 = vrot.slane %v3564, 7
      %v3567 = vshll.u32 %v3506, 16
      %v3569 = vor.u32 %v3566, %v3567
      %v3571 = vshrl.u32 %v3507, 16
      %v3573 = vrot.slane %v3571, 7
      %v3574 = vshll.u32 %v3507, 16
      %v3576 = vor.u32 %v3573, %v3574
      %v3578 = vshrl.u32 %v3508, 16
      %v3580 = vrot.slane %v3578, 7
      %v3581 = vshll.u32 %v3508, 16
      %v3583 = vor.u32 %v3580, %v3581
      %v3585 = vshrl.u32 %v3509, 16
      %v3587 = vrot.slane %v3585, 7
      %v3588 = vshll.u32 %v3509, 16
      %v3590 = vor.u32 %v3587, %v3588
      %v3592 = vshrl.u32 %v3510, 16
      %v3594 = vrot.slane %v3592, 7
      %v3595 = vshll.u32 %v3510, 16
      %v3597 = vor.u32 %v3594, %v3595
      %v3599 = vshrl.u32 %v3511, 16
      %v3601 = vrot.slane %v3599, 7
      %v3602 = vshll.u32 %v3511, 16
      %v3604 = vor.u32 %v3601, %v3602
      %v3606 = vshrl.u32 %v3512, 16
      %v3608 = vrot.slane %v3606, 7
      %v3609 = vshll.u32 %v3512, 16
      %v3611 = vor.u32 %v3608, %v3609
      %v3613 = vshrl.u32 %v3513, 16
      %v3615 = vrot.slane %v3613, 7
      %v3616 = vshll.u32 %v3513, 16
      %v3618 = vor.u32 %v3615, %v3616
      %v3620 = vshrl.u32 %v3514, 16
      %v3622 = vrot.slane %v3620, 7
      %v3623 = vshll.u32 %v3514, 16
      %v3625 = vor.u32 %v3622, %v3623
      %v3627 = vshrl.u32 %v3515, 16
      %v3629 = vrot.slane %v3627, 7
      %v3630 = vshll.u32 %v3515, 16
      %v3632 = vor.u32 %v3629, %v3630
      %v3634 = vshrl.u32 %v3516, 16
      %v3636 = vrot.slane %v3634, 7
      %v3637 = vshll.u32 %v3516, 16
      %v3639 = vor.u32 %v3636, %v3637
      %v3641 = vshrl.u32 %v3517, 16
      %v3643 = vrot.slane %v3641, 7
      %v3644 = vshll.u32 %v3517, 16
      %v3646 = vor.u32 %v3643, %v3644
      %s3663 = scalar_lea.vmem [#allocation3], 8
      %vm3664 = vcmask 64512
      %vm3665 = vmand %vm3664, %vm577
      %v3666 = vld [vmem:[%s3663] sm:$0xff]
      %v3667 = vsel %vm3665, %v3541, %v3666
      %3668 = vst [vmem:[%s3663] sm:$0xff] %v3667
      %v3669 = vld [vmem:[%s3663 + $0x8] sm:$0xff]
      %v3670 = vsel %vm3665, %v3548, %v3669
      %3671 = vst [vmem:[%s3663 + $0x8] sm:$0xff] %v3670
      %v3672 = vld [vmem:[%s3663 + $0x10] sm:$0xff]
      %v3673 = vsel %vm3665, %v3555, %v3672
      %3674 = vst [vmem:[%s3663 + $0x10] sm:$0xff] %v3673
      %v3675 = vld [vmem:[%s3663 + $0x18] sm:$0xff]
      %v3676 = vsel %vm3665, %v3562, %v3675
      %3677 = vst [vmem:[%s3663 + $0x18] sm:$0xff] %v3676
      %v3678 = vld [vmem:[%s3663 + $0x20] sm:$0xff]
      %v3679 = vsel %vm3665, %v3569, %v3678
      %3680 = vst [vmem:[%s3663 + $0x20] sm:$0xff] %v3679
      %v3681 = vld [vmem:[%s3663 + $0x28] sm:$0xff]
      %v3682 = vsel %vm3665, %v3576, %v3681
      %3683 = vst [vmem:[%s3663 + $0x28] sm:$0xff] %v3682
      %v3684 = vld [vmem:[%s3663 + $0x30] sm:$0xff]
      %v3685 = vsel %vm3665, %v3583, %v3684
      %3686 = vst [vmem:[%s3663 + $0x30] sm:$0xff] %v3685
      %v3687 = vld [vmem:[%s3663 + $0x38] sm:$0xff]
      %v3688 = vsel %vm3665, %v3590, %v3687
      %3689 = vst [vmem:[%s3663 + $0x38] sm:$0xff] %v3688
      %v3690 = vld [vmem:[%s3663 + $0x40] sm:$0xff]
      %v3691 = vsel %vm3665, %v3597, %v3690
      %3692 = vst [vmem:[%s3663 + $0x40] sm:$0xff] %v3691
      %v3693 = vld [vmem:[%s3663 + $0x48] sm:$0xff]
      %v3694 = vsel %vm3665, %v3604, %v3693
      %3695 = vst [vmem:[%s3663 + $0x48] sm:$0xff] %v3694
      %v3696 = vld [vmem:[%s3663 + $0x50] sm:$0xff]
      %v3697 = vsel %vm3665, %v3611, %v3696
      %3698 = vst [vmem:[%s3663 + $0x50] sm:$0xff] %v3697
      %v3699 = vld [vmem:[%s3663 + $0x58] sm:$0xff]
      %v3700 = vsel %vm3665, %v3618, %v3699
      %3701 = vst [vmem:[%s3663 + $0x58] sm:$0xff] %v3700
      %v3702 = vld [vmem:[%s3663 + $0x60] sm:$0xff]
      %v3703 = vsel %vm3665, %v3625, %v3702
      %3704 = vst [vmem:[%s3663 + $0x60] sm:$0xff] %v3703
      %v3705 = vld [vmem:[%s3663 + $0x68] sm:$0xff]
      %v3706 = vsel %vm3665, %v3632, %v3705
      %3707 = vst [vmem:[%s3663 + $0x68] sm:$0xff] %v3706
      %v3708 = vld [vmem:[%s3663 + $0x70] sm:$0xff]
      %v3709 = vsel %vm3665, %v3639, %v3708
      %3710 = vst [vmem:[%s3663 + $0x70] sm:$0xff] %v3709
      %v3711 = vld [vmem:[%s3663 + $0x78] sm:$0xff]
      %v3712 = vsel %vm3665, %v3646, %v3711
      %3713 = vst [vmem:[%s3663 + $0x78] sm:$0xff] %v3712
      %v3714 = vrot.slane %v3539, 1
      %v3715 = vor.u32 %v3536, %v3714
      %v3716 = vrot.slane %v3546, 1
      %v3717 = vor.u32 %v3543, %v3716
      %v3718 = vrot.slane %v3553, 1
      %v3719 = vor.u32 %v3550, %v3718
      %v3720 = vrot.slane %v3560, 1
      %v3721 = vor.u32 %v3557, %v3720
      %v3722 = vrot.slane %v3567, 1
      %v3723 = vor.u32 %v3564, %v3722
      %v3724 = vrot.slane %v3574, 1
      %v3725 = vor.u32 %v3571, %v3724
      %v3726 = vrot.slane %v3581, 1
      %v3727 = vor.u32 %v3578, %v3726
      %v3728 = vrot.slane %v3588, 1
      %v3729 = vor.u32 %v3585, %v3728
      %v3730 = vrot.slane %v3595, 1
      %v3731 = vor.u32 %v3592, %v3730
      %v3732 = vrot.slane %v3602, 1
      %v3733 = vor.u32 %v3599, %v3732
      %v3734 = vrot.slane %v3609, 1
      %v3735 = vor.u32 %v3606, %v3734
      %v3736 = vrot.slane %v3616, 1
      %v3737 = vor.u32 %v3613, %v3736
      %v3738 = vrot.slane %v3623, 1
      %v3739 = vor.u32 %v3620, %v3738
      %v3740 = vrot.slane %v3630, 1
      %v3741 = vor.u32 %v3627, %v3740
      %v3742 = vrot.slane %v3637, 1
      %v3743 = vor.u32 %v3634, %v3742
      %v3744 = vrot.slane %v3644, 1
      %v3745 = vor.u32 %v3641, %v3744
      %s3762 = scalar_lea.vmem [#allocation3], 296
      %vm3763 = vmand %vm3664, %vm1072
      %v3764 = vld [vmem:[%s3762] sm:$0xff]
      %v3765 = vsel %vm3763, %v3715, %v3764
      %3766 = vst [vmem:[%s3762] sm:$0xff] %v3765
      %v3767 = vld [vmem:[%s3762 + $0x8] sm:$0xff]
      %v3768 = vsel %vm3763, %v3717, %v3767
      %3769 = vst [vmem:[%s3762 + $0x8] sm:$0xff] %v3768
      %v3770 = vld [vmem:[%s3762 + $0x10] sm:$0xff]
      %v3771 = vsel %vm3763, %v3719, %v3770
      %3772 = vst [vmem:[%s3762 + $0x10] sm:$0xff] %v3771
      %v3773 = vld [vmem:[%s3762 + $0x18] sm:$0xff]
      %v3774 = vsel %vm3763, %v3721, %v3773
      %3775 = vst [vmem:[%s3762 + $0x18] sm:$0xff] %v3774
      %v3776 = vld [vmem:[%s3762 + $0x20] sm:$0xff]
      %v3777 = vsel %vm3763, %v3723, %v3776
      %3778 = vst [vmem:[%s3762 + $0x20] sm:$0xff] %v3777
      %v3779 = vld [vmem:[%s3762 + $0x28] sm:$0xff]
      %v3780 = vsel %vm3763, %v3725, %v3779
      %3781 = vst [vmem:[%s3762 + $0x28] sm:$0xff] %v3780
      %v3782 = vld [vmem:[%s3762 + $0x30] sm:$0xff]
      %v3783 = vsel %vm3763, %v3727, %v3782
      %3784 = vst [vmem:[%s3762 + $0x30] sm:$0xff] %v3783
      %v3785 = vld [vmem:[%s3762 + $0x38] sm:$0xff]
      %v3786 = vsel %vm3763, %v3729, %v3785
      %3787 = vst [vmem:[%s3762 + $0x38] sm:$0xff] %v3786
      %v3788 = vld [vmem:[%s3762 + $0x40] sm:$0xff]
      %v3789 = vsel %vm3763, %v3731, %v3788
      %3790 = vst [vmem:[%s3762 + $0x40] sm:$0xff] %v3789
      %v3791 = vld [vmem:[%s3762 + $0x48] sm:$0xff]
      %v3792 = vsel %vm3763, %v3733, %v3791
      %3793 = vst [vmem:[%s3762 + $0x48] sm:$0xff] %v3792
      %v3794 = vld [vmem:[%s3762 + $0x50] sm:$0xff]
      %v3795 = vsel %vm3763, %v3735, %v3794
      %3796 = vst [vmem:[%s3762 + $0x50] sm:$0xff] %v3795
      %v3797 = vld [vmem:[%s3762 + $0x58] sm:$0xff]
      %v3798 = vsel %vm3763, %v3737, %v3797
      %3799 = vst [vmem:[%s3762 + $0x58] sm:$0xff] %v3798
      %v3800 = vld [vmem:[%s3762 + $0x60] sm:$0xff]
      %v3801 = vsel %vm3763, %v3739, %v3800
      %3802 = vst [vmem:[%s3762 + $0x60] sm:$0xff] %v3801
      %v3803 = vld [vmem:[%s3762 + $0x68] sm:$0xff]
      %v3804 = vsel %vm3763, %v3741, %v3803
      %3805 = vst [vmem:[%s3762 + $0x68] sm:$0xff] %v3804
      %v3806 = vld [vmem:[%s3762 + $0x70] sm:$0xff]
      %v3807 = vsel %vm3763, %v3743, %v3806
      %3808 = vst [vmem:[%s3762 + $0x70] sm:$0xff] %v3807
      %v3809 = vld [vmem:[%s3762 + $0x78] sm:$0xff]
      %v3810 = vsel %vm3763, %v3745, %v3809
      %3811 = vst [vmem:[%s3762 + $0x78] sm:$0xff] %v3810
      %vm3812 = vcmask 57344
      %vm3813 = vmand %vm3812, %vm286
      %v3814 = vld [vmem:[%s3663] sm:$0x1]
      %v3815 = vsel %vm3813, 0, %v3814
      %3816 = vst [vmem:[%s3663] sm:$0x1] %v3815
      %v3817 = vld [vmem:[%s3663 + $0x8] sm:$0x1]
      %v3818 = vsel %vm3813, 0, %v3817
      %3819 = vst [vmem:[%s3663 + $0x8] sm:$0x1] %v3818
      %v3820 = vld [vmem:[%s3663 + $0x10] sm:$0x1]
      %v3821 = vsel %vm3813, 0, %v3820
      %3822 = vst [vmem:[%s3663 + $0x10] sm:$0x1] %v3821
      %v3823 = vld [vmem:[%s3663 + $0x18] sm:$0x1]
      %v3824 = vsel %vm3813, 0, %v3823
      %3825 = vst [vmem:[%s3663 + $0x18] sm:$0x1] %v3824
      %v3826 = vld [vmem:[%s3663 + $0x20] sm:$0x1]
      %v3827 = vsel %vm3813, 0, %v3826
      %3828 = vst [vmem:[%s3663 + $0x20] sm:$0x1] %v3827
      %v3829 = vld [vmem:[%s3663 + $0x28] sm:$0x1]
      %v3830 = vsel %vm3813, 0, %v3829
      %3831 = vst [vmem:[%s3663 + $0x28] sm:$0x1] %v3830
      %v3832 = vld [vmem:[%s3663 + $0x30] sm:$0x1]
      %v3833 = vsel %vm3813, 0, %v3832
      %3834 = vst [vmem:[%s3663 + $0x30] sm:$0x1] %v3833
      %v3835 = vld [vmem:[%s3663 + $0x38] sm:$0x1]
      %v3836 = vsel %vm3813, 0, %v3835
      %3837 = vst [vmem:[%s3663 + $0x38] sm:$0x1] %v3836
      %v3838 = vld [vmem:[%s3663 + $0x40] sm:$0x1]
      %v3839 = vsel %vm3813, 0, %v3838
      %3840 = vst [vmem:[%s3663 + $0x40] sm:$0x1] %v3839
      %v3841 = vld [vmem:[%s3663 + $0x48] sm:$0x1]
      %v3842 = vsel %vm3813, 0, %v3841
      %3843 = vst [vmem:[%s3663 + $0x48] sm:$0x1] %v3842
      %v3844 = vld [vmem:[%s3663 + $0x50] sm:$0x1]
      %v3845 = vsel %vm3813, 0, %v3844
      %3846 = vst [vmem:[%s3663 + $0x50] sm:$0x1] %v3845
      %v3847 = vld [vmem:[%s3663 + $0x58] sm:$0x1]
      %v3848 = vsel %vm3813, 0, %v3847
      %3849 = vst [vmem:[%s3663 + $0x58] sm:$0x1] %v3848
      %v3850 = vld [vmem:[%s3663 + $0x60] sm:$0x1]
      %v3851 = vsel %vm3813, 0, %v3850
      %3852 = vst [vmem:[%s3663 + $0x60] sm:$0x1] %v3851
      %v3853 = vld [vmem:[%s3663 + $0x68] sm:$0x1]
      %v3854 = vsel %vm3813, 0, %v3853
      %3855 = vst [vmem:[%s3663 + $0x68] sm:$0x1] %v3854
      %v3856 = vld [vmem:[%s3663 + $0x70] sm:$0x1]
      %v3857 = vsel %vm3813, 0, %v3856
      %3858 = vst [vmem:[%s3663 + $0x70] sm:$0x1] %v3857
      %v3859 = vld [vmem:[%s3663 + $0x78] sm:$0x1]
      %v3860 = vsel %vm3813, 0, %v3859
      %3861 = vst [vmem:[%s3663 + $0x78] sm:$0x1] %v3860
      %vm3862 = vcmask 64519
      %vm3863 = vmand %vm3862, %vm782
      %v3864 = vld [vmem:[%s3762] sm:$0x80]
      %v3865 = vsel %vm3863, 0, %v3864
      %3866 = vst [vmem:[%s3762] sm:$0x80] %v3865
      %v3867 = vld [vmem:[%s3762 + $0x8] sm:$0x80]
      %v3868 = vsel %vm3863, 0, %v3867
      %3869 = vst [vmem:[%s3762 + $0x8] sm:$0x80] %v3868
      %v3870 = vld [vmem:[%s3762 + $0x10] sm:$0x80]
      %v3871 = vsel %vm3863, 0, %v3870
      %3872 = vst [vmem:[%s3762 + $0x10] sm:$0x80] %v3871
      %v3873 = vld [vmem:[%s3762 + $0x18] sm:$0x80]
      %v3874 = vsel %vm3863, 0, %v3873
      %3875 = vst [vmem:[%s3762 + $0x18] sm:$0x80] %v3874
      %v3876 = vld [vmem:[%s3762 + $0x20] sm:$0x80]
      %v3877 = vsel %vm3863, 0, %v3876
      %3878 = vst [vmem:[%s3762 + $0x20] sm:$0x80] %v3877
      %v3879 = vld [vmem:[%s3762 + $0x28] sm:$0x80]
      %v3880 = vsel %vm3863, 0, %v3879
      %3881 = vst [vmem:[%s3762 + $0x28] sm:$0x80] %v3880
      %v3882 = vld [vmem:[%s3762 + $0x30] sm:$0x80]
      %v3883 = vsel %vm3863, 0, %v3882
      %3884 = vst [vmem:[%s3762 + $0x30] sm:$0x80] %v3883
      %v3885 = vld [vmem:[%s3762 + $0x38] sm:$0x80]
      %v3886 = vsel %vm3863, 0, %v3885
      %3887 = vst [vmem:[%s3762 + $0x38] sm:$0x80] %v3886
      %v3888 = vld [vmem:[%s3762 + $0x40] sm:$0x80]
      %v3889 = vsel %vm3863, 0, %v3888
      %3890 = vst [vmem:[%s3762 + $0x40] sm:$0x80] %v3889
      %v3891 = vld [vmem:[%s3762 + $0x48] sm:$0x80]
      %v3892 = vsel %vm3863, 0, %v3891
      %3893 = vst [vmem:[%s3762 + $0x48] sm:$0x80] %v3892
      %v3894 = vld [vmem:[%s3762 + $0x50] sm:$0x80]
      %v3895 = vsel %vm3863, 0, %v3894
      %3896 = vst [vmem:[%s3762 + $0x50] sm:$0x80] %v3895
      %v3897 = vld [vmem:[%s3762 + $0x58] sm:$0x80]
      %v3898 = vsel %vm3863, 0, %v3897
      %3899 = vst [vmem:[%s3762 + $0x58] sm:$0x80] %v3898
      %v3900 = vld [vmem:[%s3762 + $0x60] sm:$0x80]
      %v3901 = vsel %vm3863, 0, %v3900
      %3902 = vst [vmem:[%s3762 + $0x60] sm:$0x80] %v3901
      %v3903 = vld [vmem:[%s3762 + $0x68] sm:$0x80]
      %v3904 = vsel %vm3863, 0, %v3903
      %3905 = vst [vmem:[%s3762 + $0x68] sm:$0x80] %v3904
      %v3906 = vld [vmem:[%s3762 + $0x70] sm:$0x80]
      %v3907 = vsel %vm3863, 0, %v3906
      %3908 = vst [vmem:[%s3762 + $0x70] sm:$0x80] %v3907
      %v3909 = vld [vmem:[%s3762 + $0x78] sm:$0x80]
      %v3910 = vsel %vm3863, 0, %v3909
      %3911 = vst [vmem:[%s3762 + $0x78] sm:$0x80] %v3910
      %v3912 = vld [vmem:[#allocation3] sm:$0xff]
      %v3913 = vld [vmem:[#allocation3 + $0x8] sm:$0xff]
      %v3914 = vld [vmem:[#allocation3 + $0x10] sm:$0xff]
      %v3915 = vld [vmem:[#allocation3 + $0x18] sm:$0xff]
      %v3916 = vld [vmem:[#allocation3 + $0x20] sm:$0xff]
      %v3917 = vld [vmem:[#allocation3 + $0x28] sm:$0xff]
      %v3918 = vld [vmem:[#allocation3 + $0x30] sm:$0xff]
      %v3919 = vld [vmem:[#allocation3 + $0x38] sm:$0xff]
      %v3920 = vld [vmem:[#allocation3 + $0x40] sm:$0xff]
      %v3921 = vld [vmem:[#allocation3 + $0x48] sm:$0xff]
      %v3922 = vld [vmem:[#allocation3 + $0x50] sm:$0xff]
      %v3923 = vld [vmem:[#allocation3 + $0x58] sm:$0xff]
      %v3924 = vld [vmem:[#allocation3 + $0x60] sm:$0xff]
      %v3925 = vld [vmem:[#allocation3 + $0x68] sm:$0xff]
      %v3926 = vld [vmem:[#allocation3 + $0x70] sm:$0xff]
      %v3927 = vld [vmem:[#allocation3 + $0x78] sm:$0xff]
      %v3928 = vld [vmem:[%s3] sm:$0xf]
      %v3929 = vld [vmem:[%s1126] sm:$0xff]
      %v3930 = vld [vmem:[%s1126 + $0x8] sm:$0xff]
      %v3931 = vld [vmem:[%s1126 + $0x10] sm:$0xff]
      %v3932 = vld [vmem:[%s1126 + $0x18] sm:$0xff]
      %v3933 = vld [vmem:[%s1126 + $0x20] sm:$0xff]
      %v3934 = vld [vmem:[%s1126 + $0x28] sm:$0xff]
      %v3935 = vld [vmem:[%s1126 + $0x30] sm:$0xff]
      %v3936 = vld [vmem:[%s1126 + $0x38] sm:$0xff]
      %v3937 = vld [vmem:[%s1126 + $0x40] sm:$0xff]
      %v3938 = vld [vmem:[%s1126 + $0x48] sm:$0xff]
      %v3939 = vld [vmem:[%s1126 + $0x50] sm:$0xff]
      %v3940 = vld [vmem:[%s1126 + $0x58] sm:$0xff]
      %v3941 = vld [vmem:[%s1126 + $0x60] sm:$0xff]
      %v3942 = vld [vmem:[%s1126 + $0x68] sm:$0xff]
      %v3943 = vld [vmem:[%s1126 + $0x70] sm:$0xff]
      %v3944 = vld [vmem:[%s1126 + $0x78] sm:$0xff]
      %s3945 = scalar_lea.vmem %s3, 4
      %v3946 = vld [vmem:[%s3945] sm:$0xf]
      %v3948 = vsel %vm1122, %v3929, 0
      %v3951 = vsel %vm1122, %v3930, 0
      %v3954 = vsel %vm1122, %v3931, 0
      %v3957 = vsel %vm1122, %v3932, 0
      %v3960 = vsel %vm1122, %v3933, 0
      %v3963 = vsel %vm1122, %v3934, 0
      %v3966 = vsel %vm1122, %v3935, 0
      %v3969 = vsel %vm1122, %v3936, 0
      %v3972 = vsel %vm1122, %v3937, 0
      %v3975 = vsel %vm1122, %v3938, 0
      %v3978 = vsel %vm1122, %v3939, 0
      %v3981 = vsel %vm1122, %v3940, 0
      %v3984 = vsel %vm1122, %v3941, 0
      %v3987 = vsel %vm1122, %v3942, 0
      %v3990 = vsel %vm1122, %v3943, 0
      %v3993 = vsel %vm1122, %v3944, 0
      %vm3995 = vcmask 1043456
      %v3997 = vsel %vm3995, %v3946, 0
      %3999 = vmatprep.subr.bf16.mxu0 0
      %4000 = vmatpush1.bf16.msra.mxu0 %v3997
      %4001 = vmatprep.subr.bf16.mxu0 0
      %4002 = vmatpush1.bf16.msra.mxu0 0
      %4003 = vmatprep.subr.bf16.mxu0 0
      %4004 = vmatpush1.bf16.msra.mxu0 0
      %4005 = vmatprep.subr.bf16.mxu0 0
      %4006 = vmatpush1.bf16.msra.mxu0 0
      %4007 = vmatprep.subr.bf16.mxu0 0
      %4008 = vmatpush1.bf16.msra.mxu0 0
      %4009 = vmatprep.subr.bf16.mxu0 0
      %4010 = vmatpush1.bf16.msra.mxu0 0
      %4011 = vmatprep.subr.bf16.mxu0 0
      %4012 = vmatpush1.bf16.msra.mxu0 0
      %4013 = vmatprep.subr.bf16.mxu0 0
      %4014 = vmatpush1.bf16.msra.mxu0 0
      %4015 = vmatprep.subr.bf16.mxu0 0
      %4016 = vmatpush1.bf16.msra.mxu0 0
      %4017 = vmatprep.subr.bf16.mxu0 0
      %4018 = vmatpush1.bf16.msra.mxu0 0
      %4019 = vmatprep.subr.bf16.mxu0 0
      %4020 = vmatpush1.bf16.msra.mxu0 0
      %4021 = vmatprep.subr.bf16.mxu0 0
      %4022 = vmatpush1.bf16.msra.mxu0 0
      %4023 = vmatprep.subr.bf16.mxu0 0
      %4024 = vmatpush1.bf16.msra.mxu0 0
      %4025 = vmatprep.subr.bf16.mxu0 0
      %4026 = vmatpush1.bf16.msra.mxu0 0
      %4027 = vmatprep.subr.bf16.mxu0 0
      %4028 = vmatpush1.bf16.msra.mxu0 0
      %4029 = vmatprep.subr.bf16.mxu0 0
      %4030 = vmatpush1.bf16.msra.mxu0 0
      %4031 = vmatprep.mubr.bf16.mxu0 0
      %4032 = vmatmul.mubr.bf16.gmra.mrb[0].mxu0 %v3948
      %v4033 = vpop.f32.mrb[0].mxu0
      %v4034 = vadd.f32 0.0, %v4033
      %v4035 = vpop.f32.mrb[0].mxu0
      %v4036 = vpop.f32.mrb[0].mxu0
      %v4037 = vadd.f32 0.0, %v4036
      %v4038 = vpop.f32.mrb[0].mxu0
      %4039 = vmatprep.mubr.bf16.mxu0 0
      %4040 = vmatmul.mubr.bf16.gmra.mrb[0].mxu0 %v3951
      %v4041 = vpop.f32.mrb[0].mxu0
      %v4042 = vadd.f32 0.0, %v4041
      %v4043 = vpop.f32.mrb[0].mxu0
      %v4044 = vpop.f32.mrb[0].mxu0
      %v4045 = vadd.f32 0.0, %v4044
      %v4046 = vpop.f32.mrb[0].mxu0
      %4047 = vmatprep.mubr.bf16.mxu0 0
      %4048 = vmatmul.mubr.bf16.gmra.mrb[0].mxu0 %v3954
      %v4049 = vpop.f32.mrb[0].mxu0
      %v4050 = vadd.f32 0.0, %v4049
      %v4051 = vpop.f32.mrb[0].mxu0
      %v4052 = vpop.f32.mrb[0].mxu0
      %v4053 = vadd.f32 0.0, %v4052
      %v4054 = vpop.f32.mrb[0].mxu0
      %4055 = vmatprep.mubr.bf16.mxu0 0
      %4056 = vmatmul.mubr.bf16.gmra.mrb[0].mxu0 %v3957
      %v4057 = vpop.f32.mrb[0].mxu0
      %v4058 = vadd.f32 0.0, %v4057
      %v4059 = vpop.f32.mrb[0].mxu0
      %v4060 = vpop.f32.mrb[0].mxu0
      %v4061 = vadd.f32 0.0, %v4060
      %v4062 = vpop.f32.mrb[0].mxu0
      %4063 = vmatprep.mubr.bf16.mxu0 0
      %4064 = vmatmul.mubr.bf16.gmra.mrb[0].mxu0 %v3960
      %v4065 = vpop.f32.mrb[0].mxu0
      %v4066 = vadd.f32 0.0, %v4065
      %v4067 = vpop.f32.mrb[0].mxu0
      %v4068 = vpop.f32.mrb[0].mxu0
      %v4069 = vadd.f32 0.0, %v4068
      %v4070 = vpop.f32.mrb[0].mxu0
      %4071 = vmatprep.mubr.bf16.mxu0 0
      %4072 = vmatmul.mubr.bf16.gmra.mrb[0].mxu0 %v3963
      %v4073 = vpop.f32.mrb[0].mxu0
      %v4074 = vadd.f32 0.0, %v4073
      %v4075 = vpop.f32.mrb[0].mxu0
      %v4076 = vpop.f32.mrb[0].mxu0
      %v4077 = vadd.f32 0.0, %v4076
      %v4078 = vpop.f32.mrb[0].mxu0
      %4079 = vmatprep.mubr.bf16.mxu0 0
      %4080 = vmatmul.mubr.bf16.gmra.mrb[0].mxu0 %v3966
      %v4081 = vpop.f32.mrb[0].mxu0
      %v4082 = vadd.f32 0.0, %v4081
      %v4083 = vpop.f32.mrb[0].mxu0
      %v4084 = vpop.f32.mrb[0].mxu0
      %v4085 = vadd.f32 0.0, %v4084
      %v4086 = vpop.f32.mrb[0].mxu0
      %4087 = vmatprep.mubr.bf16.mxu0 0
      %4088 = vmatmul.mubr.bf16.gmra.mrb[0].mxu0 %v3969
      %v4089 = vpop.f32.mrb[0].mxu0
      %v4090 = vadd.f32 0.0, %v4089
      %v4091 = vpop.f32.mrb[0].mxu0
      %v4092 = vpop.f32.mrb[0].mxu0
      %v4093 = vadd.f32 0.0, %v4092
      %v4094 = vpop.f32.mrb[0].mxu0
      %4095 = vmatprep.mubr.bf16.mxu0 0
      %4096 = vmatmul.mubr.bf16.gmra.mrb[0].mxu0 %v3972
      %v4097 = vpop.f32.mrb[0].mxu0
      %v4098 = vadd.f32 0.0, %v4097
      %v4099 = vpop.f32.mrb[0].mxu0
      %v4100 = vpop.f32.mrb[0].mxu0
      %v4101 = vadd.f32 0.0, %v4100
      %v4102 = vpop.f32.mrb[0].mxu0
      %4103 = vmatprep.mubr.bf16.mxu0 0
      %4104 = vmatmul.mubr.bf16.gmra.mrb[0].mxu0 %v3975
      %v4105 = vpop.f32.mrb[0].mxu0
      %v4106 = vadd.f32 0.0, %v4105
      %v4107 = vpop.f32.mrb[0].mxu0
      %v4108 = vpop.f32.mrb[0].mxu0
      %v4109 = vadd.f32 0.0, %v4108
      %v4110 = vpop.f32.mrb[0].mxu0
      %4111 = vmatprep.mubr.bf16.mxu0 0
      %4112 = vmatmul.mubr.bf16.gmra.mrb[0].mxu0 %v3978
      %v4113 = vpop.f32.mrb[0].mxu0
      %v4114 = vadd.f32 0.0, %v4113
      %v4115 = vpop.f32.mrb[0].mxu0
      %v4116 = vpop.f32.mrb[0].mxu0
      %v4117 = vadd.f32 0.0, %v4116
      %v4118 = vpop.f32.mrb[0].mxu0
      %4119 = vmatprep.mubr.bf16.mxu0 0
      %4120 = vmatmul.mubr.bf16.gmra.mrb[0].mxu0 %v3981
      %v4121 = vpop.f32.mrb[0].mxu0
      %v4122 = vadd.f32 0.0, %v4121
      %v4123 = vpop.f32.mrb[0].mxu0
      %v4124 = vpop.f32.mrb[0].mxu0
      %v4125 = vadd.f32 0.0, %v4124
      %v4126 = vpop.f32.mrb[0].mxu0
      %4127 = vmatprep.mubr.bf16.mxu0 0
      %4128 = vmatmul.mubr.bf16.gmra.mrb[0].mxu0 %v3984
      %v4129 = vpop.f32.mrb[0].mxu0
      %v4130 = vadd.f32 0.0, %v4129
      %v4131 = vpop.f32.mrb[0].mxu0
      %v4132 = vpop.f32.mrb[0].mxu0
      %v4133 = vadd.f32 0.0, %v4132
      %v4134 = vpop.f32.mrb[0].mxu0
      %4135 = vmatprep.mubr.bf16.mxu0 0
      %4136 = vmatmul.mubr.bf16.gmra.mrb[0].mxu0 %v3987
      %v4137 = vpop.f32.mrb[0].mxu0
      %v4138 = vadd.f32 0.0, %v4137
      %v4139 = vpop.f32.mrb[0].mxu0
      %v4140 = vpop.f32.mrb[0].mxu0
      %v4141 = vadd.f32 0.0, %v4140
      %v4142 = vpop.f32.mrb[0].mxu0
      %4143 = vmatprep.mubr.bf16.mxu0 0
      %4144 = vmatmul.mubr.bf16.gmra.mrb[0].mxu0 %v3990
      %v4145 = vpop.f32.mrb[0].mxu0
      %v4146 = vadd.f32 0.0, %v4145
      %v4147 = vpop.f32.mrb[0].mxu0
      %v4148 = vpop.f32.mrb[0].mxu0
      %v4149 = vadd.f32 0.0, %v4148
      %v4150 = vpop.f32.mrb[0].mxu0
      %4151 = vmatprep.mubr.bf16.mxu0 0
      %4152 = vmatmul.mubr.bf16.gmra.mrb[0].mxu0 %v3993
      %v4153 = vpop.f32.mrb[0].mxu0
      %v4154 = vadd.f32 0.0, %v4153
      %v4155 = vpop.f32.mrb[0].mxu0
      %v4156 = vpop.f32.mrb[0].mxu0
      %v4157 = vadd.f32 0.0, %v4156
      %v4158 = vpop.f32.mrb[0].mxu0
      %4159 = vdwg.mxu0
      %v4161 = vsel %vm1122, %v3912, 0
      %v4164 = vsel %vm1122, %v3913, 0
      %v4167 = vsel %vm1122, %v3914, 0
      %v4170 = vsel %vm1122, %v3915, 0
      %v4173 = vsel %vm1122, %v3916, 0
      %v4176 = vsel %vm1122, %v3917, 0
      %v4179 = vsel %vm1122, %v3918, 0
      %v4182 = vsel %vm1122, %v3919, 0
      %v4185 = vsel %vm1122, %v3920, 0
      %v4188 = vsel %vm1122, %v3921, 0
      %v4191 = vsel %vm1122, %v3922, 0
      %v4194 = vsel %vm1122, %v3923, 0
      %v4197 = vsel %vm1122, %v3924, 0
      %v4200 = vsel %vm1122, %v3925, 0
      %v4203 = vsel %vm1122, %v3926, 0
      %v4206 = vsel %vm1122, %v3927, 0
      %v4209 = vsel %vm3995, %v3928, 0
      %4211 = vmatprep.subr.bf16.mxu0 0
      %4212 = vmatpush1.bf16.msra.mxu0 %v4209
      %4213 = vmatprep.subr.bf16.mxu0 0
      %4214 = vmatpush1.bf16.msra.mxu0 0
      %4215 = vmatprep.subr.bf16.mxu0 0
      %4216 = vmatpush1.bf16.msra.mxu0 0
      %4217 = vmatprep.subr.bf16.mxu0 0
      %4218 = vmatpush1.bf16.msra.mxu0 0
      %4219 = vmatprep.subr.bf16.mxu0 0
      %4220 = vmatpush1.bf16.msra.mxu0 0
      %4221 = vmatprep.subr.bf16.mxu0 0
      %4222 = vmatpush1.bf16.msra.mxu0 0
      %4223 = vmatprep.subr.bf16.mxu0 0
      %4224 = vmatpush1.bf16.msra.mxu0 0
      %4225 = vmatprep.subr.bf16.mxu0 0
      %4226 = vmatpush1.bf16.msra.mxu0 0
      %4227 = vmatprep.subr.bf16.mxu0 0
      %4228 = vmatpush1.bf16.msra.mxu0 0
      %4229 = vmatprep.subr.bf16.mxu0 0
      %4230 = vmatpush1.bf16.msra.mxu0 0
      %4231 = vmatprep.subr.bf16.mxu0 0
      %4232 = vmatpush1.bf16.msra.mxu0 0
      %4233 = vmatprep.subr.bf16.mxu0 0
      %4234 = vmatpush1.bf16.msra.mxu0 0
      %4235 = vmatprep.subr.bf16.mxu0 0
      %4236 = vmatpush1.bf16.msra.mxu0 0
      %4237 = vmatprep.subr.bf16.mxu0 0
      %4238 = vmatpush1.bf16.msra.mxu0 0
      %4239 = vmatprep.subr.bf16.mxu0 0
      %4240 = vmatpush1.bf16.msra.mxu0 0
      %4241 = vmatprep.subr.bf16.mxu0 0
      %4242 = vmatpush1.bf16.msra.mxu0 0
      %4243 = vmatprep.mubr.bf16.mxu0 0
      %4244 = vmatmul.mubr.bf16.gmra.mrb[0].mxu0 %v4161
      %v4245 = vpop.f32.mrb[0].mxu0
      %v4246 = vadd.f32 %v4034, %v4245
      %v4247 = vpop.f32.mrb[0].mxu0
      %v4248 = vpop.f32.mrb[0].mxu0
      %v4249 = vadd.f32 %v4037, %v4248
      %v4250 = vpop.f32.mrb[0].mxu0
      %4251 = vmatprep.mubr.bf16.mxu0 0
      %4252 = vmatmul.mubr.bf16.gmra.mrb[0].mxu0 %v4164
      %v4253 = vpop.f32.mrb[0].mxu0
      %v4254 = vadd.f32 %v4042, %v4253
      %v4255 = vpop.f32.mrb[0].mxu0
      %v4256 = vpop.f32.mrb[0].mxu0
      %v4257 = vadd.f32 %v4045, %v4256
      %v4258 = vpop.f32.mrb[0].mxu0
      %4259 = vmatprep.mubr.bf16.mxu0 0
      %4260 = vmatmul.mubr.bf16.gmra.mrb[0].mxu0 %v4167
      %v4261 = vpop.f32.mrb[0].mxu0
      %v4262 = vadd.f32 %v4050, %v4261
      %v4263 = vpop.f32.mrb[0].mxu0
      %v4264 = vpop.f32.mrb[0].mxu0
      %v4265 = vadd.f32 %v4053, %v4264
      %v4266 = vpop.f32.mrb[0].mxu0
      %4267 = vmatprep.mubr.bf16.mxu0 0
      %4268 = vmatmul.mubr.bf16.gmra.mrb[0].mxu0 %v4170
      %v4269 = vpop.f32.mrb[0].mxu0
      %v4270 = vadd.f32 %v4058, %v4269
      %v4271 = vpop.f32.mrb[0].mxu0
      %v4272 = vpop.f32.mrb[0].mxu0
      %v4273 = vadd.f32 %v4061, %v4272
      %v4274 = vpop.f32.mrb[0].mxu0
      %4275 = vmatprep.mubr.bf16.mxu0 0
      %4276 = vmatmul.mubr.bf16.gmra.mrb[0].mxu0 %v4173
      %v4277 = vpop.f32.mrb[0].mxu0
      %v4278 = vadd.f32 %v4066, %v4277
      %v4279 = vpop.f32.mrb[0].mxu0
      %v4280 = vpop.f32.mrb[0].mxu0
      %v4281 = vadd.f32 %v4069, %v4280
      %v4282 = vpop.f32.mrb[0].mxu0
      %4283 = vmatprep.mubr.bf16.mxu0 0
      %4284 = vmatmul.mubr.bf16.gmra.mrb[0].mxu0 %v4176
      %v4285 = vpop.f32.mrb[0].mxu0
      %v4286 = vadd.f32 %v4074, %v4285
      %v4287 = vpop.f32.mrb[0].mxu0
      %v4288 = vpop.f32.mrb[0].mxu0
      %v4289 = vadd.f32 %v4077, %v4288
      %v4290 = vpop.f32.mrb[0].mxu0
      %4291 = vmatprep.mubr.bf16.mxu0 0
      %4292 = vmatmul.mubr.bf16.gmra.mrb[0].mxu0 %v4179
      %v4293 = vpop.f32.mrb[0].mxu0
      %v4294 = vadd.f32 %v4082, %v4293
      %v4295 = vpop.f32.mrb[0].mxu0
      %v4296 = vpop.f32.mrb[0].mxu0
      %v4297 = vadd.f32 %v4085, %v4296
      %v4298 = vpop.f32.mrb[0].mxu0
      %4299 = vmatprep.mubr.bf16.mxu0 0
      %4300 = vmatmul.mubr.bf16.gmra.mrb[0].mxu0 %v4182
      %v4301 = vpop.f32.mrb[0].mxu0
      %v4302 = vadd.f32 %v4090, %v4301
      %v4303 = vpop.f32.mrb[0].mxu0
      %v4304 = vpop.f32.mrb[0].mxu0
      %v4305 = vadd.f32 %v4093, %v4304
      %v4306 = vpop.f32.mrb[0].mxu0
      %4307 = vmatprep.mubr.bf16.mxu0 0
      %4308 = vmatmul.mubr.bf16.gmra.mrb[0].mxu0 %v4185
      %v4309 = vpop.f32.mrb[0].mxu0
      %v4310 = vadd.f32 %v4098, %v4309
      %v4311 = vpop.f32.mrb[0].mxu0
      %v4312 = vpop.f32.mrb[0].mxu0
      %v4313 = vadd.f32 %v4101, %v4312
      %v4314 = vpop.f32.mrb[0].mxu0
      %4315 = vmatprep.mubr.bf16.mxu0 0
      %4316 = vmatmul.mubr.bf16.gmra.mrb[0].mxu0 %v4188
      %v4317 = vpop.f32.mrb[0].mxu0
      %v4318 = vadd.f32 %v4106, %v4317
      %v4319 = vpop.f32.mrb[0].mxu0
      %v4320 = vpop.f32.mrb[0].mxu0
      %v4321 = vadd.f32 %v4109, %v4320
      %v4322 = vpop.f32.mrb[0].mxu0
      %4323 = vmatprep.mubr.bf16.mxu0 0
      %4324 = vmatmul.mubr.bf16.gmra.mrb[0].mxu0 %v4191
      %v4325 = vpop.f32.mrb[0].mxu0
      %v4326 = vadd.f32 %v4114, %v4325
      %v4327 = vpop.f32.mrb[0].mxu0
      %v4328 = vpop.f32.mrb[0].mxu0
      %v4329 = vadd.f32 %v4117, %v4328
      %v4330 = vpop.f32.mrb[0].mxu0
      %4331 = vmatprep.mubr.bf16.mxu0 0
      %4332 = vmatmul.mubr.bf16.gmra.mrb[0].mxu0 %v4194
      %v4333 = vpop.f32.mrb[0].mxu0
      %v4334 = vadd.f32 %v4122, %v4333
      %v4335 = vpop.f32.mrb[0].mxu0
      %v4336 = vpop.f32.mrb[0].mxu0
      %v4337 = vadd.f32 %v4125, %v4336
      %v4338 = vpop.f32.mrb[0].mxu0
      %4339 = vmatprep.mubr.bf16.mxu0 0
      %4340 = vmatmul.mubr.bf16.gmra.mrb[0].mxu0 %v4197
      %v4341 = vpop.f32.mrb[0].mxu0
      %v4342 = vadd.f32 %v4130, %v4341
      %v4343 = vpop.f32.mrb[0].mxu0
      %v4344 = vpop.f32.mrb[0].mxu0
      %v4345 = vadd.f32 %v4133, %v4344
      %v4346 = vpop.f32.mrb[0].mxu0
      %4347 = vmatprep.mubr.bf16.mxu0 0
      %4348 = vmatmul.mubr.bf16.gmra.mrb[0].mxu0 %v4200
      %v4349 = vpop.f32.mrb[0].mxu0
      %v4350 = vadd.f32 %v4138, %v4349
      %v4351 = vpop.f32.mrb[0].mxu0
      %v4352 = vpop.f32.mrb[0].mxu0
      %v4353 = vadd.f32 %v4141, %v4352
      %v4354 = vpop.f32.mrb[0].mxu0
      %4355 = vmatprep.mubr.bf16.mxu0 0
      %4356 = vmatmul.mubr.bf16.gmra.mrb[0].mxu0 %v4203
      %v4357 = vpop.f32.mrb[0].mxu0
      %v4358 = vadd.f32 %v4146, %v4357
      %v4359 = vpop.f32.mrb[0].mxu0
      %v4360 = vpop.f32.mrb[0].mxu0
      %v4361 = vadd.f32 %v4149, %v4360
      %v4362 = vpop.f32.mrb[0].mxu0
      %4363 = vmatprep.mubr.bf16.mxu0 0
      %4364 = vmatmul.mubr.bf16.gmra.mrb[0].mxu0 %v4206
      %v4365 = vpop.f32.mrb[0].mxu0
      %v4366 = vadd.f32 %v4154, %v4365
      %v4367 = vpop.f32.mrb[0].mxu0
      %v4368 = vpop.f32.mrb[0].mxu0
      %v4369 = vadd.f32 %v4157, %v4368
      %v4370 = vpop.f32.mrb[0].mxu0
      %4371 = vdwg.mxu0
      %v4372 = vld [vmem:[%s1130] sm:$0xff]
      %v4373 = vld [vmem:[%s1130 + $0x8] sm:$0xff]
      %v4374 = vld [vmem:[%s1130 + $0x10] sm:$0xff]
      %v4375 = vld [vmem:[%s1130 + $0x18] sm:$0xff]
      %v4376 = vld [vmem:[%s1130 + $0x20] sm:$0xff]
      %v4377 = vld [vmem:[%s1130 + $0x28] sm:$0xff]
      %v4378 = vld [vmem:[%s1130 + $0x30] sm:$0xff]
      %v4379 = vld [vmem:[%s1130 + $0x38] sm:$0xff]
      %v4380 = vld [vmem:[%s1130 + $0x40] sm:$0xff]
      %v4381 = vld [vmem:[%s1130 + $0x48] sm:$0xff]
      %v4382 = vld [vmem:[%s1130 + $0x50] sm:$0xff]
      %v4383 = vld [vmem:[%s1130 + $0x58] sm:$0xff]
      %v4384 = vld [vmem:[%s1130 + $0x60] sm:$0xff]
      %v4385 = vld [vmem:[%s1130 + $0x68] sm:$0xff]
      %v4386 = vld [vmem:[%s1130 + $0x70] sm:$0xff]
      %v4387 = vld [vmem:[%s1130 + $0x78] sm:$0xff]
      %s4388 = scalar_lea.vmem %s3, 8
      %v4389 = vld [vmem:[%s4388] sm:$0xf]
      %v4391 = vsel %vm1122, %v4372, 0
      %v4394 = vsel %vm1122, %v4373, 0
      %v4397 = vsel %vm1122, %v4374, 0
      %v4400 = vsel %vm1122, %v4375, 0
      %v4403 = vsel %vm1122, %v4376, 0
      %v4406 = vsel %vm1122, %v4377, 0
      %v4409 = vsel %vm1122, %v4378, 0
      %v4412 = vsel %vm1122, %v4379, 0
      %v4415 = vsel %vm1122, %v4380, 0
      %v4418 = vsel %vm1122, %v4381, 0
      %v4421 = vsel %vm1122, %v4382, 0
      %v4424 = vsel %vm1122, %v4383, 0
      %v4427 = vsel %vm1122, %v4384, 0
      %v4430 = vsel %vm1122, %v4385, 0
      %v4433 = vsel %vm1122, %v4386, 0
      %v4436 = vsel %vm1122, %v4387, 0
      %v4439 = vsel %vm3995, %v4389, 0
      %4441 = vmatprep.subr.bf16.mxu0 0
      %4442 = vmatpush1.bf16.msra.mxu0 %v4439
      %4443 = vmatprep.subr.bf16.mxu0 0
      %4444 = vmatpush1.bf16.msra.mxu0 0
      %4445 = vmatprep.subr.bf16.mxu0 0
      %4446 = vmatpush1.bf16.msra.mxu0 0
      %4447 = vmatprep.subr.bf16.mxu0 0
      %4448 = vmatpush1.bf16.msra.mxu0 0
      %4449 = vmatprep.subr.bf16.mxu0 0
      %4450 = vmatpush1.bf16.msra.mxu0 0
      %4451 = vmatprep.subr.bf16.mxu0 0
      %4452 = vmatpush1.bf16.msra.mxu0 0
      %4453 = vmatprep.subr.bf16.mxu0 0
      %4454 = vmatpush1.bf16.msra.mxu0 0
      %4455 = vmatprep.subr.bf16.mxu0 0
      %4456 = vmatpush1.bf16.msra.mxu0 0
      %4457 = vmatprep.subr.bf16.mxu0 0
      %4458 = vmatpush1.bf16.msra.mxu0 0
      %4459 = vmatprep.subr.bf16.mxu0 0
      %4460 = vmatpush1.bf16.msra.mxu0 0
      %4461 = vmatprep.subr.bf16.mxu0 0
      %4462 = vmatpush1.bf16.msra.mxu0 0
      %4463 = vmatprep.subr.bf16.mxu0 0
      %4464 = vmatpush1.bf16.msra.mxu0 0
      %4465 = vmatprep.subr.bf16.mxu0 0
      %4466 = vmatpush1.bf16.msra.mxu0 0
      %4467 = vmatprep.subr.bf16.mxu0 0
      %4468 = vmatpush1.bf16.msra.mxu0 0
      %4469 = vmatprep.subr.bf16.mxu0 0
      %4470 = vmatpush1.bf16.msra.mxu0 0
      %4471 = vmatprep.subr.bf16.mxu0 0
      %4472 = vmatpush1.bf16.msra.mxu0 0
      %4473 = vmatprep.mubr.bf16.mxu0 0
      %4474 = vmatmul.mubr.bf16.gmra.mrb[0].mxu0 %v4391
      %v4475 = vpop.f32.mrb[0].mxu0
      %v4476 = vadd.f32 0.0, %v4475
      %v4477 = vpop.f32.mrb[0].mxu0
      %v4478 = vpop.f32.mrb[0].mxu0
      %v4479 = vadd.f32 0.0, %v4478
      %v4480 = vpop.f32.mrb[0].mxu0
      %4481 = vmatprep.mubr.bf16.mxu0 0
      %4482 = vmatmul.mubr.bf16.gmra.mrb[0].mxu0 %v4394
      %v4483 = vpop.f32.mrb[0].mxu0
      %v4484 = vadd.f32 0.0, %v4483
      %v4485 = vpop.f32.mrb[0].mxu0
      %v4486 = vpop.f32.mrb[0].mxu0
      %v4487 = vadd.f32 0.0, %v4486
      %v4488 = vpop.f32.mrb[0].mxu0
      %4489 = vmatprep.mubr.bf16.mxu0 0
      %4490 = vmatmul.mubr.bf16.gmra.mrb[0].mxu0 %v4397
      %v4491 = vpop.f32.mrb[0].mxu0
      %v4492 = vadd.f32 0.0, %v4491
      %v4493 = vpop.f32.mrb[0].mxu0
      %v4494 = vpop.f32.mrb[0].mxu0
      %v4495 = vadd.f32 0.0, %v4494
      %v4496 = vpop.f32.mrb[0].mxu0
      %4497 = vmatprep.mubr.bf16.mxu0 0
      %4498 = vmatmul.mubr.bf16.gmra.mrb[0].mxu0 %v4400
      %v4499 = vpop.f32.mrb[0].mxu0
      %v4500 = vadd.f32 0.0, %v4499
      %v4501 = vpop.f32.mrb[0].mxu0
      %v4502 = vpop.f32.mrb[0].mxu0
      %v4503 = vadd.f32 0.0, %v4502
      %v4504 = vpop.f32.mrb[0].mxu0
      %4505 = vmatprep.mubr.bf16.mxu0 0
      %4506 = vmatmul.mubr.bf16.gmra.mrb[0].mxu0 %v4403
      %v4507 = vpop.f32.mrb[0].mxu0
      %v4508 = vadd.f32 0.0, %v4507
      %v4509 = vpop.f32.mrb[0].mxu0
      %v4510 = vpop.f32.mrb[0].mxu0
      %v4511 = vadd.f32 0.0, %v4510
      %v4512 = vpop.f32.mrb[0].mxu0
      %4513 = vmatprep.mubr.bf16.mxu0 0
      %4514 = vmatmul.mubr.bf16.gmra.mrb[0].mxu0 %v4406
      %v4515 = vpop.f32.mrb[0].mxu0
      %v4516 = vadd.f32 0.0, %v4515
      %v4517 = vpop.f32.mrb[0].mxu0
      %v4518 = vpop.f32.mrb[0].mxu0
      %v4519 = vadd.f32 0.0, %v4518
      %v4520 = vpop.f32.mrb[0].mxu0
      %4521 = vmatprep.mubr.bf16.mxu0 0
      %4522 = vmatmul.mubr.bf16.gmra.mrb[0].mxu0 %v4409
      %v4523 = vpop.f32.mrb[0].mxu0
      %v4524 = vadd.f32 0.0, %v4523
      %v4525 = vpop.f32.mrb[0].mxu0
      %v4526 = vpop.f32.mrb[0].mxu0
      %v4527 = vadd.f32 0.0, %v4526
      %v4528 = vpop.f32.mrb[0].mxu0
      %4529 = vmatprep.mubr.bf16.mxu0 0
      %4530 = vmatmul.mubr.bf16.gmra.mrb[0].mxu0 %v4412
      %v4531 = vpop.f32.mrb[0].mxu0
      %v4532 = vadd.f32 0.0, %v4531
      %v4533 = vpop.f32.mrb[0].mxu0
      %v4534 = vpop.f32.mrb[0].mxu0
      %v4535 = vadd.f32 0.0, %v4534
      %v4536 = vpop.f32.mrb[0].mxu0
      %4537 = vmatprep.mubr.bf16.mxu0 0
      %4538 = vmatmul.mubr.bf16.gmra.mrb[0].mxu0 %v4415
      %v4539 = vpop.f32.mrb[0].mxu0
      %v4540 = vadd.f32 0.0, %v4539
      %v4541 = vpop.f32.mrb[0].mxu0
      %v4542 = vpop.f32.mrb[0].mxu0
      %v4543 = vadd.f32 0.0, %v4542
      %v4544 = vpop.f32.mrb[0].mxu0
      %4545 = vmatprep.mubr.bf16.mxu0 0
      %4546 = vmatmul.mubr.bf16.gmra.mrb[0].mxu0 %v4418
      %v4547 = vpop.f32.mrb[0].mxu0
      %v4548 = vadd.f32 0.0, %v4547
      %v4549 = vpop.f32.mrb[0].mxu0
      %v4550 = vpop.f32.mrb[0].mxu0
      %v4551 = vadd.f32 0.0, %v4550
      %v4552 = vpop.f32.mrb[0].mxu0
      %4553 = vmatprep.mubr.bf16.mxu0 0
      %4554 = vmatmul.mubr.bf16.gmra.mrb[0].mxu0 %v4421
      %v4555 = vpop.f32.mrb[0].mxu0
      %v4556 = vadd.f32 0.0, %v4555
      %v4557 = vpop.f32.mrb[0].mxu0
      %v4558 = vpop.f32.mrb[0].mxu0
      %v4559 = vadd.f32 0.0, %v4558
      %v4560 = vpop.f32.mrb[0].mxu0
      %4561 = vmatprep.mubr.bf16.mxu0 0
      %4562 = vmatmul.mubr.bf16.gmra.mrb[0].mxu0 %v4424
      %v4563 = vpop.f32.mrb[0].mxu0
      %v4564 = vadd.f32 0.0, %v4563
      %v4565 = vpop.f32.mrb[0].mxu0
      %v4566 = vpop.f32.mrb[0].mxu0
      %v4567 = vadd.f32 0.0, %v4566
      %v4568 = vpop.f32.mrb[0].mxu0
      %4569 = vmatprep.mubr.bf16.mxu0 0
      %4570 = vmatmul.mubr.bf16.gmra.mrb[0].mxu0 %v4427
      %v4571 = vpop.f32.mrb[0].mxu0
      %v4572 = vadd.f32 0.0, %v4571
      %v4573 = vpop.f32.mrb[0].mxu0
      %v4574 = vpop.f32.mrb[0].mxu0
      %v4575 = vadd.f32 0.0, %v4574
      %v4576 = vpop.f32.mrb[0].mxu0
      %4577 = vmatprep.mubr.bf16.mxu0 0
      %4578 = vmatmul.mubr.bf16.gmra.mrb[0].mxu0 %v4430
      %v4579 = vpop.f32.mrb[0].mxu0
      %v4580 = vadd.f32 0.0, %v4579
      %v4581 = vpop.f32.mrb[0].mxu0
      %v4582 = vpop.f32.mrb[0].mxu0
      %v4583 = vadd.f32 0.0, %v4582
      %v4584 = vpop.f32.mrb[0].mxu0
      %4585 = vmatprep.mubr.bf16.mxu0 0
      %4586 = vmatmul.mubr.bf16.gmra.mrb[0].mxu0 %v4433
      %v4587 = vpop.f32.mrb[0].mxu0
      %v4588 = vadd.f32 0.0, %v4587
      %v4589 = vpop.f32.mrb[0].mxu0
      %v4590 = vpop.f32.mrb[0].mxu0
      %v4591 = vadd.f32 0.0, %v4590
      %v4592 = vpop.f32.mrb[0].mxu0
      %4593 = vmatprep.mubr.bf16.mxu0 0
      %4594 = vmatmul.mubr.bf16.gmra.mrb[0].mxu0 %v4436
      %v4595 = vpop.f32.mrb[0].mxu0
      %v4596 = vadd.f32 0.0, %v4595
      %v4597 = vpop.f32.mrb[0].mxu0
      %v4598 = vpop.f32.mrb[0].mxu0
      %v4599 = vadd.f32 0.0, %v4598
      %v4600 = vpop.f32.mrb[0].mxu0
      %4601 = vdwg.mxu0
      %v4602 = vadd.f32 %v4246, %v4476
      %v4603 = vadd.f32 %v4249, %v4479
      %v4604 = vadd.f32 %v4254, %v4484
      %v4605 = vadd.f32 %v4257, %v4487
      %v4606 = vadd.f32 %v4262, %v4492
      %v4607 = vadd.f32 %v4265, %v4495
      %v4608 = vadd.f32 %v4270, %v4500
      %v4609 = vadd.f32 %v4273, %v4503
      %v4610 = vadd.f32 %v4278, %v4508
      %v4611 = vadd.f32 %v4281, %v4511
      %v4612 = vadd.f32 %v4286, %v4516
      %v4613 = vadd.f32 %v4289, %v4519
      %v4614 = vadd.f32 %v4294, %v4524
      %v4615 = vadd.f32 %v4297, %v4527
      %v4616 = vadd.f32 %v4302, %v4532
      %v4617 = vadd.f32 %v4305, %v4535
      %v4618 = vadd.f32 %v4310, %v4540
      %v4619 = vadd.f32 %v4313, %v4543
      %v4620 = vadd.f32 %v4318, %v4548
      %v4621 = vadd.f32 %v4321, %v4551
      %v4622 = vadd.f32 %v4326, %v4556
      %v4623 = vadd.f32 %v4329, %v4559
      %v4624 = vadd.f32 %v4334, %v4564
      %v4625 = vadd.f32 %v4337, %v4567
      %v4626 = vadd.f32 %v4342, %v4572
      %v4627 = vadd.f32 %v4345, %v4575
      %v4628 = vadd.f32 %v4350, %v4580
      %v4629 = vadd.f32 %v4353, %v4583
      %v4630 = vadd.f32 %v4358, %v4588
      %v4631 = vadd.f32 %v4361, %v4591
      %v4632 = vadd.f32 %v4366, %v4596
      %v4633 = vadd.f32 %v4369, %v4599
      %v4634 = vld [vmem:[%s3663] sm:$0xff]
      %v4635 = vld [vmem:[%s3663 + $0x8] sm:$0xff]
      %v4636 = vld [vmem:[%s3663 + $0x10] sm:$0xff]
      %v4637 = vld [vmem:[%s3663 + $0x18] sm:$0xff]
      %v4638 = vld [vmem:[%s3663 + $0x20] sm:$0xff]
      %v4639 = vld [vmem:[%s3663 + $0x28] sm:$0xff]
      %v4640 = vld [vmem:[%s3663 + $0x30] sm:$0xff]
      %v4641 = vld [vmem:[%s3663 + $0x38] sm:$0xff]
      %v4642 = vld [vmem:[%s3663 + $0x40] sm:$0xff]
      %v4643 = vld [vmem:[%s3663 + $0x48] sm:$0xff]
      %v4644 = vld [vmem:[%s3663 + $0x50] sm:$0xff]
      %v4645 = vld [vmem:[%s3663 + $0x58] sm:$0xff]
      %v4646 = vld [vmem:[%s3663 + $0x60] sm:$0xff]
      %v4647 = vld [vmem:[%s3663 + $0x68] sm:$0xff]
      %v4648 = vld [vmem:[%s3663 + $0x70] sm:$0xff]
      %v4649 = vld [vmem:[%s3663 + $0x78] sm:$0xff]
      %s4650 = scalar_lea.vmem %s3, 12
      %v4651 = vld [vmem:[%s4650] sm:$0xf]
      %v4653 = vsel %vm1122, %v4634, 0
      %v4656 = vsel %vm1122, %v4635, 0
      %v4659 = vsel %vm1122, %v4636, 0
      %v4662 = vsel %vm1122, %v4637, 0
      %v4665 = vsel %vm1122, %v4638, 0
      %v4668 = vsel %vm1122, %v4639, 0
      %v4671 = vsel %vm1122, %v4640, 0
      %v4674 = vsel %vm1122, %v4641, 0
      %v4677 = vsel %vm1122, %v4642, 0
      %v4680 = vsel %vm1122, %v4643, 0
      %v4683 = vsel %vm1122, %v4644, 0
      %v4686 = vsel %vm1122, %v4645, 0
      %v4689 = vsel %vm1122, %v4646, 0
      %v4692 = vsel %vm1122, %v4647, 0
      %v4695 = vsel %vm1122, %v4648, 0
      %v4698 = vsel %vm1122, %v4649, 0
      %v4701 = vsel %vm3995, %v4651, 0
      %4703 = vmatprep.subr.bf16.mxu0 0
      %4704 = vmatpush1.bf16.msra.mxu0 %v4701
      %4705 = vmatprep.subr.bf16.mxu0 0
      %4706 = vmatpush1.bf16.msra.mxu0 0
      %4707 = vmatprep.subr.bf16.mxu0 0
      %4708 = vmatpush1.bf16.msra.mxu0 0
      %4709 = vmatprep.subr.bf16.mxu0 0
      %4710 = vmatpush1.bf16.msra.mxu0 0
      %4711 = vmatprep.subr.bf16.mxu0 0
      %4712 = vmatpush1.bf16.msra.mxu0 0
      %4713 = vmatprep.subr.bf16.mxu0 0
      %4714 = vmatpush1.bf16.msra.mxu0 0
      %4715 = vmatprep.subr.bf16.mxu0 0
      %4716 = vmatpush1.bf16.msra.mxu0 0
      %4717 = vmatprep.subr.bf16.mxu0 0
      %4718 = vmatpush1.bf16.msra.mxu0 0
      %4719 = vmatprep.subr.bf16.mxu0 0
      %4720 = vmatpush1.bf16.msra.mxu0 0
      %4721 = vmatprep.subr.bf16.mxu0 0
      %4722 = vmatpush1.bf16.msra.mxu0 0
      %4723 = vmatprep.subr.bf16.mxu0 0
      %4724 = vmatpush1.bf16.msra.mxu0 0
      %4725 = vmatprep.subr.bf16.mxu0 0
      %4726 = vmatpush1.bf16.msra.mxu0 0
      %4727 = vmatprep.subr.bf16.mxu0 0
      %4728 = vmatpush1.bf16.msra.mxu0 0
      %4729 = vmatprep.subr.bf16.mxu0 0
      %4730 = vmatpush1.bf16.msra.mxu0 0
      %4731 = vmatprep.subr.bf16.mxu0 0
      %4732 = vmatpush1.bf16.msra.mxu0 0
      %4733 = vmatprep.subr.bf16.mxu0 0
      %4734 = vmatpush1.bf16.msra.mxu0 0
      %4735 = vmatprep.mubr.bf16.mxu0 0
      %4736 = vmatmul.mubr.bf16.gmra.mrb[0].mxu0 %v4653
      %v4737 = vpop.f32.mrb[0].mxu0
      %v4738 = vadd.f32 0.0, %v4737
      %v4739 = vpop.f32.mrb[0].mxu0
      %v4740 = vpop.f32.mrb[0].mxu0
      %v4741 = vadd.f32 0.0, %v4740
      %v4742 = vpop.f32.mrb[0].mxu0
      %4743 = vmatprep.mubr.bf16.mxu0 0
      %4744 = vmatmul.mubr.bf16.gmra.mrb[0].mxu0 %v4656
      %v4745 = vpop.f32.mrb[0].mxu0
      %v4746 = vadd.f32 0.0, %v4745
      %v4747 = vpop.f32.mrb[0].mxu0
      %v4748 = vpop.f32.mrb[0].mxu0
      %v4749 = vadd.f32 0.0, %v4748
      %v4750 = vpop.f32.mrb[0].mxu0
      %4751 = vmatprep.mubr.bf16.mxu0 0
      %4752 = vmatmul.mubr.bf16.gmra.mrb[0].mxu0 %v4659
      %v4753 = vpop.f32.mrb[0].mxu0
      %v4754 = vadd.f32 0.0, %v4753
      %v4755 = vpop.f32.mrb[0].mxu0
      %v4756 = vpop.f32.mrb[0].mxu0
      %v4757 = vadd.f32 0.0, %v4756
      %v4758 = vpop.f32.mrb[0].mxu0
      %4759 = vmatprep.mubr.bf16.mxu0 0
      %4760 = vmatmul.mubr.bf16.gmra.mrb[0].mxu0 %v4662
      %v4761 = vpop.f32.mrb[0].mxu0
      %v4762 = vadd.f32 0.0, %v4761
      %v4763 = vpop.f32.mrb[0].mxu0
      %v4764 = vpop.f32.mrb[0].mxu0
      %v4765 = vadd.f32 0.0, %v4764
      %v4766 = vpop.f32.mrb[0].mxu0
      %4767 = vmatprep.mubr.bf16.mxu0 0
      %4768 = vmatmul.mubr.bf16.gmra.mrb[0].mxu0 %v4665
      %v4769 = vpop.f32.mrb[0].mxu0
      %v4770 = vadd.f32 0.0, %v4769
      %v4771 = vpop.f32.mrb[0].mxu0
      %v4772 = vpop.f32.mrb[0].mxu0
      %v4773 = vadd.f32 0.0, %v4772
      %v4774 = vpop.f32.mrb[0].mxu0
      %4775 = vmatprep.mubr.bf16.mxu0 0
      %4776 = vmatmul.mubr.bf16.gmra.mrb[0].mxu0 %v4668
      %v4777 = vpop.f32.mrb[0].mxu0
      %v4778 = vadd.f32 0.0, %v4777
      %v4779 = vpop.f32.mrb[0].mxu0
      %v4780 = vpop.f32.mrb[0].mxu0
      %v4781 = vadd.f32 0.0, %v4780
      %v4782 = vpop.f32.mrb[0].mxu0
      %4783 = vmatprep.mubr.bf16.mxu0 0
      %4784 = vmatmul.mubr.bf16.gmra.mrb[0].mxu0 %v4671
      %v4785 = vpop.f32.mrb[0].mxu0
      %v4786 = vadd.f32 0.0, %v4785
      %v4787 = vpop.f32.mrb[0].mxu0
      %v4788 = vpop.f32.mrb[0].mxu0
      %v4789 = vadd.f32 0.0, %v4788
      %v4790 = vpop.f32.mrb[0].mxu0
      %4791 = vmatprep.mubr.bf16.mxu0 0
      %4792 = vmatmul.mubr.bf16.gmra.mrb[0].mxu0 %v4674
      %v4793 = vpop.f32.mrb[0].mxu0
      %v4794 = vadd.f32 0.0, %v4793
      %v4795 = vpop.f32.mrb[0].mxu0
      %v4796 = vpop.f32.mrb[0].mxu0
      %v4797 = vadd.f32 0.0, %v4796
      %v4798 = vpop.f32.mrb[0].mxu0
      %4799 = vmatprep.mubr.bf16.mxu0 0
      %4800 = vmatmul.mubr.bf16.gmra.mrb[0].mxu0 %v4677
      %v4801 = vpop.f32.mrb[0].mxu0
      %v4802 = vadd.f32 0.0, %v4801
      %v4803 = vpop.f32.mrb[0].mxu0
      %v4804 = vpop.f32.mrb[0].mxu0
      %v4805 = vadd.f32 0.0, %v4804
      %v4806 = vpop.f32.mrb[0].mxu0
      %4807 = vmatprep.mubr.bf16.mxu0 0
      %4808 = vmatmul.mubr.bf16.gmra.mrb[0].mxu0 %v4680
      %v4809 = vpop.f32.mrb[0].mxu0
      %v4810 = vadd.f32 0.0, %v4809
      %v4811 = vpop.f32.mrb[0].mxu0
      %v4812 = vpop.f32.mrb[0].mxu0
      %v4813 = vadd.f32 0.0, %v4812
      %v4814 = vpop.f32.mrb[0].mxu0
      %4815 = vmatprep.mubr.bf16.mxu0 0
      %4816 = vmatmul.mubr.bf16.gmra.mrb[0].mxu0 %v4683
      %v4817 = vpop.f32.mrb[0].mxu0
      %v4818 = vadd.f32 0.0, %v4817
      %v4819 = vpop.f32.mrb[0].mxu0
      %v4820 = vpop.f32.mrb[0].mxu0
      %v4821 = vadd.f32 0.0, %v4820
      %v4822 = vpop.f32.mrb[0].mxu0
      %4823 = vmatprep.mubr.bf16.mxu0 0
      %4824 = vmatmul.mubr.bf16.gmra.mrb[0].mxu0 %v4686
      %v4825 = vpop.f32.mrb[0].mxu0
      %v4826 = vadd.f32 0.0, %v4825
      %v4827 = vpop.f32.mrb[0].mxu0
      %v4828 = vpop.f32.mrb[0].mxu0
      %v4829 = vadd.f32 0.0, %v4828
      %v4830 = vpop.f32.mrb[0].mxu0
      %4831 = vmatprep.mubr.bf16.mxu0 0
      %4832 = vmatmul.mubr.bf16.gmra.mrb[0].mxu0 %v4689
      %v4833 = vpop.f32.mrb[0].mxu0
      %v4834 = vadd.f32 0.0, %v4833
      %v4835 = vpop.f32.mrb[0].mxu0
      %v4836 = vpop.f32.mrb[0].mxu0
      %v4837 = vadd.f32 0.0, %v4836
      %v4838 = vpop.f32.mrb[0].mxu0
      %4839 = vmatprep.mubr.bf16.mxu0 0
      %4840 = vmatmul.mubr.bf16.gmra.mrb[0].mxu0 %v4692
      %v4841 = vpop.f32.mrb[0].mxu0
      %v4842 = vadd.f32 0.0, %v4841
      %v4843 = vpop.f32.mrb[0].mxu0
      %v4844 = vpop.f32.mrb[0].mxu0
      %v4845 = vadd.f32 0.0, %v4844
      %v4846 = vpop.f32.mrb[0].mxu0
      %4847 = vmatprep.mubr.bf16.mxu0 0
      %4848 = vmatmul.mubr.bf16.gmra.mrb[0].mxu0 %v4695
      %v4849 = vpop.f32.mrb[0].mxu0
      %v4850 = vadd.f32 0.0, %v4849
      %v4851 = vpop.f32.mrb[0].mxu0
      %v4852 = vpop.f32.mrb[0].mxu0
      %v4853 = vadd.f32 0.0, %v4852
      %v4854 = vpop.f32.mrb[0].mxu0
      %4855 = vmatprep.mubr.bf16.mxu0 0
      %4856 = vmatmul.mubr.bf16.gmra.mrb[0].mxu0 %v4698
      %v4857 = vpop.f32.mrb[0].mxu0
      %v4858 = vadd.f32 0.0, %v4857
      %v4859 = vpop.f32.mrb[0].mxu0
      %v4860 = vpop.f32.mrb[0].mxu0
      %v4861 = vadd.f32 0.0, %v4860
      %v4862 = vpop.f32.mrb[0].mxu0
      %4863 = vdwg.mxu0
      %v4864 = vadd.f32 %v4602, %v4738
      %v4865 = vadd.f32 %v4603, %v4741
      %v4866 = vadd.f32 %v4604, %v4746
      %v4867 = vadd.f32 %v4605, %v4749
      %v4868 = vadd.f32 %v4606, %v4754
      %v4869 = vadd.f32 %v4607, %v4757
      %v4870 = vadd.f32 %v4608, %v4762
      %v4871 = vadd.f32 %v4609, %v4765
      %v4872 = vadd.f32 %v4610, %v4770
      %v4873 = vadd.f32 %v4611, %v4773
      %v4874 = vadd.f32 %v4612, %v4778
      %v4875 = vadd.f32 %v4613, %v4781
      %v4876 = vadd.f32 %v4614, %v4786
      %v4877 = vadd.f32 %v4615, %v4789
      %v4878 = vadd.f32 %v4616, %v4794
      %v4879 = vadd.f32 %v4617, %v4797
      %v4880 = vadd.f32 %v4618, %v4802
      %v4881 = vadd.f32 %v4619, %v4805
      %v4882 = vadd.f32 %v4620, %v4810
      %v4883 = vadd.f32 %v4621, %v4813
      %v4884 = vadd.f32 %v4622, %v4818
      %v4885 = vadd.f32 %v4623, %v4821
      %v4886 = vadd.f32 %v4624, %v4826
      %v4887 = vadd.f32 %v4625, %v4829
      %v4888 = vadd.f32 %v4626, %v4834
      %v4889 = vadd.f32 %v4627, %v4837
      %v4890 = vadd.f32 %v4628, %v4842
      %v4891 = vadd.f32 %v4629, %v4845
      %v4892 = vadd.f32 %v4630, %v4850
      %v4893 = vadd.f32 %v4631, %v4853
      %v4894 = vadd.f32 %v4632, %v4858
      %v4895 = vadd.f32 %v4633, %v4861
      %v4896 = vld [vmem:[%s3518] sm:$0xff]
      %v4897 = vld [vmem:[%s3518 + $0x8] sm:$0xff]
      %v4898 = vld [vmem:[%s3518 + $0x10] sm:$0xff]
      %v4899 = vld [vmem:[%s3518 + $0x18] sm:$0xff]
      %v4900 = vld [vmem:[%s3518 + $0x20] sm:$0xff]
      %v4901 = vld [vmem:[%s3518 + $0x28] sm:$0xff]
      %v4902 = vld [vmem:[%s3518 + $0x30] sm:$0xff]
      %v4903 = vld [vmem:[%s3518 + $0x38] sm:$0xff]
      %v4904 = vld [vmem:[%s3518 + $0x40] sm:$0xff]
      %v4905 = vld [vmem:[%s3518 + $0x48] sm:$0xff]
      %v4906 = vld [vmem:[%s3518 + $0x50] sm:$0xff]
      %v4907 = vld [vmem:[%s3518 + $0x58] sm:$0xff]
      %v4908 = vld [vmem:[%s3518 + $0x60] sm:$0xff]
      %v4909 = vld [vmem:[%s3518 + $0x68] sm:$0xff]
      %v4910 = vld [vmem:[%s3518 + $0x70] sm:$0xff]
      %v4911 = vld [vmem:[%s3518 + $0x78] sm:$0xff]
      %s4912 = scalar_lea.vmem %s3, 16
      %v4913 = vld [vmem:[%s4912] sm:$0xf]
      %v4915 = vsel %vm1122, %v4896, 0
      %v4918 = vsel %vm1122, %v4897, 0
      %v4921 = vsel %vm1122, %v4898, 0
      %v4924 = vsel %vm1122, %v4899, 0
      %v4927 = vsel %vm1122, %v4900, 0
      %v4930 = vsel %vm1122, %v4901, 0
      %v4933 = vsel %vm1122, %v4902, 0
      %v4936 = vsel %vm1122, %v4903, 0
      %v4939 = vsel %vm1122, %v4904, 0
      %v4942 = vsel %vm1122, %v4905, 0
      %v4945 = vsel %vm1122, %v4906, 0
      %v4948 = vsel %vm1122, %v4907, 0
      %v4951 = vsel %vm1122, %v4908, 0
      %v4954 = vsel %vm1122, %v4909, 0
      %v4957 = vsel %vm1122, %v4910, 0
      %v4960 = vsel %vm1122, %v4911, 0
      %v4963 = vsel %vm3995, %v4913, 0
      %4965 = vmatprep.subr.bf16.mxu0 0
      %4966 = vmatpush1.bf16.msra.mxu0 %v4963
      %4967 = vmatprep.subr.bf16.mxu0 0
      %4968 = vmatpush1.bf16.msra.mxu0 0
      %4969 = vmatprep.subr.bf16.mxu0 0
      %4970 = vmatpush1.bf16.msra.mxu0 0
      %4971 = vmatprep.subr.bf16.mxu0 0
      %4972 = vmatpush1.bf16.msra.mxu0 0
      %4973 = vmatprep.subr.bf16.mxu0 0
      %4974 = vmatpush1.bf16.msra.mxu0 0
      %4975 = vmatprep.subr.bf16.mxu0 0
      %4976 = vmatpush1.bf16.msra.mxu0 0
      %4977 = vmatprep.subr.bf16.mxu0 0
      %4978 = vmatpush1.bf16.msra.mxu0 0
      %4979 = vmatprep.subr.bf16.mxu0 0
      %4980 = vmatpush1.bf16.msra.mxu0 0
      %4981 = vmatprep.subr.bf16.mxu0 0
      %4982 = vmatpush1.bf16.msra.mxu0 0
      %4983 = vmatprep.subr.bf16.mxu0 0
      %4984 = vmatpush1.bf16.msra.mxu0 0
      %4985 = vmatprep.subr.bf16.mxu0 0
      %4986 = vmatpush1.bf16.msra.mxu0 0
      %4987 = vmatprep.subr.bf16.mxu0 0
      %4988 = vmatpush1.bf16.msra.mxu0 0
      %4989 = vmatprep.subr.bf16.mxu0 0
      %4990 = vmatpush1.bf16.msra.mxu0 0
      %4991 = vmatprep.subr.bf16.mxu0 0
      %4992 = vmatpush1.bf16.msra.mxu0 0
      %4993 = vmatprep.subr.bf16.mxu0 0
      %4994 = vmatpush1.bf16.msra.mxu0 0
      %4995 = vmatprep.subr.bf16.mxu0 0
      %4996 = vmatpush1.bf16.msra.mxu0 0
      %4997 = vmatprep.mubr.bf16.mxu0 0
      %4998 = vmatmul.mubr.bf16.gmra.mrb[0].mxu0 %v4915
      %v4999 = vpop.f32.mrb[0].mxu0
      %v5000 = vadd.f32 0.0, %v4999
      %v5001 = vpop.f32.mrb[0].mxu0
      %v5002 = vpop.f32.mrb[0].mxu0
      %v5003 = vadd.f32 0.0, %v5002
      %v5004 = vpop.f32.mrb[0].mxu0
      %5005 = vmatprep.mubr.bf16.mxu0 0
      %5006 = vmatmul.mubr.bf16.gmra.mrb[0].mxu0 %v4918
      %v5007 = vpop.f32.mrb[0].mxu0
      %v5008 = vadd.f32 0.0, %v5007
      %v5009 = vpop.f32.mrb[0].mxu0
      %v5010 = vpop.f32.mrb[0].mxu0
      %v5011 = vadd.f32 0.0, %v5010
      %v5012 = vpop.f32.mrb[0].mxu0
      %5013 = vmatprep.mubr.bf16.mxu0 0
      %5014 = vmatmul.mubr.bf16.gmra.mrb[0].mxu0 %v4921
      %v5015 = vpop.f32.mrb[0].mxu0
      %v5016 = vadd.f32 0.0, %v5015
      %v5017 = vpop.f32.mrb[0].mxu0
      %v5018 = vpop.f32.mrb[0].mxu0
      %v5019 = vadd.f32 0.0, %v5018
      %v5020 = vpop.f32.mrb[0].mxu0
      %5021 = vmatprep.mubr.bf16.mxu0 0
      %5022 = vmatmul.mubr.bf16.gmra.mrb[0].mxu0 %v4924
      %v5023 = vpop.f32.mrb[0].mxu0
      %v5024 = vadd.f32 0.0, %v5023
      %v5025 = vpop.f32.mrb[0].mxu0
      %v5026 = vpop.f32.mrb[0].mxu0
      %v5027 = vadd.f32 0.0, %v5026
      %v5028 = vpop.f32.mrb[0].mxu0
      %5029 = vmatprep.mubr.bf16.mxu0 0
      %5030 = vmatmul.mubr.bf16.gmra.mrb[0].mxu0 %v4927
      %v5031 = vpop.f32.mrb[0].mxu0
      %v5032 = vadd.f32 0.0, %v5031
      %v5033 = vpop.f32.mrb[0].mxu0
      %v5034 = vpop.f32.mrb[0].mxu0
      %v5035 = vadd.f32 0.0, %v5034
      %v5036 = vpop.f32.mrb[0].mxu0
      %5037 = vmatprep.mubr.bf16.mxu0 0
      %5038 = vmatmul.mubr.bf16.gmra.mrb[0].mxu0 %v4930
      %v5039 = vpop.f32.mrb[0].mxu0
      %v5040 = vadd.f32 0.0, %v5039
      %v5041 = vpop.f32.mrb[0].mxu0
      %v5042 = vpop.f32.mrb[0].mxu0
      %v5043 = vadd.f32 0.0, %v5042
      %v5044 = vpop.f32.mrb[0].mxu0
      %5045 = vmatprep.mubr.bf16.mxu0 0
      %5046 = vmatmul.mubr.bf16.gmra.mrb[0].mxu0 %v4933
      %v5047 = vpop.f32.mrb[0].mxu0
      %v5048 = vadd.f32 0.0, %v5047
      %v5049 = vpop.f32.mrb[0].mxu0
      %v5050 = vpop.f32.mrb[0].mxu0
      %v5051 = vadd.f32 0.0, %v5050
      %v5052 = vpop.f32.mrb[0].mxu0
      %5053 = vmatprep.mubr.bf16.mxu0 0
      %5054 = vmatmul.mubr.bf16.gmra.mrb[0].mxu0 %v4936
      %v5055 = vpop.f32.mrb[0].mxu0
      %v5056 = vadd.f32 0.0, %v5055
      %v5057 = vpop.f32.mrb[0].mxu0
      %v5058 = vpop.f32.mrb[0].mxu0
      %v5059 = vadd.f32 0.0, %v5058
      %v5060 = vpop.f32.mrb[0].mxu0
      %5061 = vmatprep.mubr.bf16.mxu0 0
      %5062 = vmatmul.mubr.bf16.gmra.mrb[0].mxu0 %v4939
      %v5063 = vpop.f32.mrb[0].mxu0
      %v5064 = vadd.f32 0.0, %v5063
      %v5065 = vpop.f32.mrb[0].mxu0
      %v5066 = vpop.f32.mrb[0].mxu0
      %v5067 = vadd.f32 0.0, %v5066
      %v5068 = vpop.f32.mrb[0].mxu0
      %5069 = vmatprep.mubr.bf16.mxu0 0
      %5070 = vmatmul.mubr.bf16.gmra.mrb[0].mxu0 %v4942
      %v5071 = vpop.f32.mrb[0].mxu0
      %v5072 = vadd.f32 0.0, %v5071
      %v5073 = vpop.f32.mrb[0].mxu0
      %v5074 = vpop.f32.mrb[0].mxu0
      %v5075 = vadd.f32 0.0, %v5074
      %v5076 = vpop.f32.mrb[0].mxu0
      %5077 = vmatprep.mubr.bf16.mxu0 0
      %5078 = vmatmul.mubr.bf16.gmra.mrb[0].mxu0 %v4945
      %v5079 = vpop.f32.mrb[0].mxu0
      %v5080 = vadd.f32 0.0, %v5079
      %v5081 = vpop.f32.mrb[0].mxu0
      %v5082 = vpop.f32.mrb[0].mxu0
      %v5083 = vadd.f32 0.0, %v5082
      %v5084 = vpop.f32.mrb[0].mxu0
      %5085 = vmatprep.mubr.bf16.mxu0 0
      %5086 = vmatmul.mubr.bf16.gmra.mrb[0].mxu0 %v4948
      %v5087 = vpop.f32.mrb[0].mxu0
      %v5088 = vadd.f32 0.0, %v5087
      %v5089 = vpop.f32.mrb[0].mxu0
      %v5090 = vpop.f32.mrb[0].mxu0
      %v5091 = vadd.f32 0.0, %v5090
      %v5092 = vpop.f32.mrb[0].mxu0
      %5093 = vmatprep.mubr.bf16.mxu0 0
      %5094 = vmatmul.mubr.bf16.gmra.mrb[0].mxu0 %v4951
      %v5095 = vpop.f32.mrb[0].mxu0
      %v5096 = vadd.f32 0.0, %v5095
      %v5097 = vpop.f32.mrb[0].mxu0
      %v5098 = vpop.f32.mrb[0].mxu0
      %v5099 = vadd.f32 0.0, %v5098
      %v5100 = vpop.f32.mrb[0].mxu0
      %5101 = vmatprep.mubr.bf16.mxu0 0
      %5102 = vmatmul.mubr.bf16.gmra.mrb[0].mxu0 %v4954
      %v5103 = vpop.f32.mrb[0].mxu0
      %v5104 = vadd.f32 0.0, %v5103
      %v5105 = vpop.f32.mrb[0].mxu0
      %v5106 = vpop.f32.mrb[0].mxu0
      %v5107 = vadd.f32 0.0, %v5106
      %v5108 = vpop.f32.mrb[0].mxu0
      %5109 = vmatprep.mubr.bf16.mxu0 0
      %5110 = vmatmul.mubr.bf16.gmra.mrb[0].mxu0 %v4957
      %v5111 = vpop.f32.mrb[0].mxu0
      %v5112 = vadd.f32 0.0, %v5111
      %v5113 = vpop.f32.mrb[0].mxu0
      %v5114 = vpop.f32.mrb[0].mxu0
      %v5115 = vadd.f32 0.0, %v5114
      %v5116 = vpop.f32.mrb[0].mxu0
      %5117 = vmatprep.mubr.bf16.mxu0 0
      %5118 = vmatmul.mubr.bf16.gmra.mrb[0].mxu0 %v4960
      %v5119 = vpop.f32.mrb[0].mxu0
      %v5120 = vadd.f32 0.0, %v5119
      %v5121 = vpop.f32.mrb[0].mxu0
      %v5122 = vpop.f32.mrb[0].mxu0
      %v5123 = vadd.f32 0.0, %v5122
      %v5124 = vpop.f32.mrb[0].mxu0
      %5125 = vdwg.mxu0
      %v5126 = vadd.f32 %v4864, %v5000
      %v5127 = vadd.f32 %v4865, %v5003
      %v5128 = vadd.f32 %v4866, %v5008
      %v5129 = vadd.f32 %v4867, %v5011
      %v5130 = vadd.f32 %v4868, %v5016
      %v5131 = vadd.f32 %v4869, %v5019
      %v5132 = vadd.f32 %v4870, %v5024
      %v5133 = vadd.f32 %v4871, %v5027
      %v5134 = vadd.f32 %v4872, %v5032
      %v5135 = vadd.f32 %v4873, %v5035
      %v5136 = vadd.f32 %v4874, %v5040
      %v5137 = vadd.f32 %v4875, %v5043
      %v5138 = vadd.f32 %v4876, %v5048
      %v5139 = vadd.f32 %v4877, %v5051
      %v5140 = vadd.f32 %v4878, %v5056
      %v5141 = vadd.f32 %v4879, %v5059
      %v5142 = vadd.f32 %v4880, %v5064
      %v5143 = vadd.f32 %v4881, %v5067
      %v5144 = vadd.f32 %v4882, %v5072
      %v5145 = vadd.f32 %v4883, %v5075
      %v5146 = vadd.f32 %v4884, %v5080
      %v5147 = vadd.f32 %v4885, %v5083
      %v5148 = vadd.f32 %v4886, %v5088
      %v5149 = vadd.f32 %v4887, %v5091
      %v5150 = vadd.f32 %v4888, %v5096
      %v5151 = vadd.f32 %v4889, %v5099
      %v5152 = vadd.f32 %v4890, %v5104
      %v5153 = vadd.f32 %v4891, %v5107
      %v5154 = vadd.f32 %v4892, %v5112
      %v5155 = vadd.f32 %v4893, %v5115
      %v5156 = vadd.f32 %v4894, %v5120
      %v5157 = vadd.f32 %v4895, %v5123
      %v5158 = vld [vmem:[%s3762] sm:$0xff]
      %v5159 = vld [vmem:[%s3762 + $0x8] sm:$0xff]
      %v5160 = vld [vmem:[%s3762 + $0x10] sm:$0xff]
      %v5161 = vld [vmem:[%s3762 + $0x18] sm:$0xff]
      %v5162 = vld [vmem:[%s3762 + $0x20] sm:$0xff]
      %v5163 = vld [vmem:[%s3762 + $0x28] sm:$0xff]
      %v5164 = vld [vmem:[%s3762 + $0x30] sm:$0xff]
      %v5165 = vld [vmem:[%s3762 + $0x38] sm:$0xff]
      %v5166 = vld [vmem:[%s3762 + $0x40] sm:$0xff]
      %v5167 = vld [vmem:[%s3762 + $0x48] sm:$0xff]
      %v5168 = vld [vmem:[%s3762 + $0x50] sm:$0xff]
      %v5169 = vld [vmem:[%s3762 + $0x58] sm:$0xff]
      %v5170 = vld [vmem:[%s3762 + $0x60] sm:$0xff]
      %v5171 = vld [vmem:[%s3762 + $0x68] sm:$0xff]
      %v5172 = vld [vmem:[%s3762 + $0x70] sm:$0xff]
      %v5173 = vld [vmem:[%s3762 + $0x78] sm:$0xff]
      %s5174 = scalar_lea.vmem %s3, 20
      %v5175 = vld [vmem:[%s5174] sm:$0xf]
      %v5177 = vsel %vm1122, %v5158, 0
      %v5180 = vsel %vm1122, %v5159, 0
      %v5183 = vsel %vm1122, %v5160, 0
      %v5186 = vsel %vm1122, %v5161, 0
      %v5189 = vsel %vm1122, %v5162, 0
      %v5192 = vsel %vm1122, %v5163, 0
      %v5195 = vsel %vm1122, %v5164, 0
      %v5198 = vsel %vm1122, %v5165, 0
      %v5201 = vsel %vm1122, %v5166, 0
      %v5204 = vsel %vm1122, %v5167, 0
      %v5207 = vsel %vm1122, %v5168, 0
      %v5210 = vsel %vm1122, %v5169, 0
      %v5213 = vsel %vm1122, %v5170, 0
      %v5216 = vsel %vm1122, %v5171, 0
      %v5219 = vsel %vm1122, %v5172, 0
      %v5222 = vsel %vm1122, %v5173, 0
      %v5225 = vsel %vm3995, %v5175, 0
      %5227 = vmatprep.subr.bf16.mxu0 0
      %5228 = vmatpush1.bf16.msra.mxu0 %v5225
      %5229 = vmatprep.subr.bf16.mxu0 0
      %5230 = vmatpush1.bf16.msra.mxu0 0
      %5231 = vmatprep.subr.bf16.mxu0 0
      %5232 = vmatpush1.bf16.msra.mxu0 0
      %5233 = vmatprep.subr.bf16.mxu0 0
      %5234 = vmatpush1.bf16.msra.mxu0 0
      %5235 = vmatprep.subr.bf16.mxu0 0
      %5236 = vmatpush1.bf16.msra.mxu0 0
      %5237 = vmatprep.subr.bf16.mxu0 0
      %5238 = vmatpush1.bf16.msra.mxu0 0
      %5239 = vmatprep.subr.bf16.mxu0 0
      %5240 = vmatpush1.bf16.msra.mxu0 0
      %5241 = vmatprep.subr.bf16.mxu0 0
      %5242 = vmatpush1.bf16.msra.mxu0 0
      %5243 = vmatprep.subr.bf16.mxu0 0
      %5244 = vmatpush1.bf16.msra.mxu0 0
      %5245 = vmatprep.subr.bf16.mxu0 0
      %5246 = vmatpush1.bf16.msra.mxu0 0
      %5247 = vmatprep.subr.bf16.mxu0 0
      %5248 = vmatpush1.bf16.msra.mxu0 0
      %5249 = vmatprep.subr.bf16.mxu0 0
      %5250 = vmatpush1.bf16.msra.mxu0 0
      %5251 = vmatprep.subr.bf16.mxu0 0
      %5252 = vmatpush1.bf16.msra.mxu0 0
      %5253 = vmatprep.subr.bf16.mxu0 0
      %5254 = vmatpush1.bf16.msra.mxu0 0
      %5255 = vmatprep.subr.bf16.mxu0 0
      %5256 = vmatpush1.bf16.msra.mxu0 0
      %5257 = vmatprep.subr.bf16.mxu0 0
      %5258 = vmatpush1.bf16.msra.mxu0 0
      %5259 = vmatprep.mubr.bf16.mxu0 0
      %5260 = vmatmul.mubr.bf16.gmra.mrb[0].mxu0 %v5177
      %v5261 = vpop.f32.mrb[0].mxu0
      %v5262 = vadd.f32 0.0, %v5261
      %v5263 = vpop.f32.mrb[0].mxu0
      %v5264 = vpop.f32.mrb[0].mxu0
      %v5265 = vadd.f32 0.0, %v5264
      %v5266 = vpop.f32.mrb[0].mxu0
      %5267 = vmatprep.mubr.bf16.mxu0 0
      %5268 = vmatmul.mubr.bf16.gmra.mrb[0].mxu0 %v5180
      %v5269 = vpop.f32.mrb[0].mxu0
      %v5270 = vadd.f32 0.0, %v5269
      %v5271 = vpop.f32.mrb[0].mxu0
      %v5272 = vpop.f32.mrb[0].mxu0
      %v5273 = vadd.f32 0.0, %v5272
      %v5274 = vpop.f32.mrb[0].mxu0
      %5275 = vmatprep.mubr.bf16.mxu0 0
      %5276 = vmatmul.mubr.bf16.gmra.mrb[0].mxu0 %v5183
      %v5277 = vpop.f32.mrb[0].mxu0
      %v5278 = vadd.f32 0.0, %v5277
      %v5279 = vpop.f32.mrb[0].mxu0
      %v5280 = vpop.f32.mrb[0].mxu0
      %v5281 = vadd.f32 0.0, %v5280
      %v5282 = vpop.f32.mrb[0].mxu0
      %5283 = vmatprep.mubr.bf16.mxu0 0
      %5284 = vmatmul.mubr.bf16.gmra.mrb[0].mxu0 %v5186
      %v5285 = vpop.f32.mrb[0].mxu0
      %v5286 = vadd.f32 0.0, %v5285
      %v5287 = vpop.f32.mrb[0].mxu0
      %v5288 = vpop.f32.mrb[0].mxu0
      %v5289 = vadd.f32 0.0, %v5288
      %v5290 = vpop.f32.mrb[0].mxu0
      %5291 = vmatprep.mubr.bf16.mxu0 0
      %5292 = vmatmul.mubr.bf16.gmra.mrb[0].mxu0 %v5189
      %v5293 = vpop.f32.mrb[0].mxu0
      %v5294 = vadd.f32 0.0, %v5293
      %v5295 = vpop.f32.mrb[0].mxu0
      %v5296 = vpop.f32.mrb[0].mxu0
      %v5297 = vadd.f32 0.0, %v5296
      %v5298 = vpop.f32.mrb[0].mxu0
      %5299 = vmatprep.mubr.bf16.mxu0 0
      %5300 = vmatmul.mubr.bf16.gmra.mrb[0].mxu0 %v5192
      %v5301 = vpop.f32.mrb[0].mxu0
      %v5302 = vadd.f32 0.0, %v5301
      %v5303 = vpop.f32.mrb[0].mxu0
      %v5304 = vpop.f32.mrb[0].mxu0
      %v5305 = vadd.f32 0.0, %v5304
      %v5306 = vpop.f32.mrb[0].mxu0
      %5307 = vmatprep.mubr.bf16.mxu0 0
      %5308 = vmatmul.mubr.bf16.gmra.mrb[0].mxu0 %v5195
      %v5309 = vpop.f32.mrb[0].mxu0
      %v5310 = vadd.f32 0.0, %v5309
      %v5311 = vpop.f32.mrb[0].mxu0
      %v5312 = vpop.f32.mrb[0].mxu0
      %v5313 = vadd.f32 0.0, %v5312
      %v5314 = vpop.f32.mrb[0].mxu0
      %5315 = vmatprep.mubr.bf16.mxu0 0
      %5316 = vmatmul.mubr.bf16.gmra.mrb[0].mxu0 %v5198
      %v5317 = vpop.f32.mrb[0].mxu0
      %v5318 = vadd.f32 0.0, %v5317
      %v5319 = vpop.f32.mrb[0].mxu0
      %v5320 = vpop.f32.mrb[0].mxu0
      %v5321 = vadd.f32 0.0, %v5320
      %v5322 = vpop.f32.mrb[0].mxu0
      %5323 = vmatprep.mubr.bf16.mxu0 0
      %5324 = vmatmul.mubr.bf16.gmra.mrb[0].mxu0 %v5201
      %v5325 = vpop.f32.mrb[0].mxu0
      %v5326 = vadd.f32 0.0, %v5325
      %v5327 = vpop.f32.mrb[0].mxu0
      %v5328 = vpop.f32.mrb[0].mxu0
      %v5329 = vadd.f32 0.0, %v5328
      %v5330 = vpop.f32.mrb[0].mxu0
      %5331 = vmatprep.mubr.bf16.mxu0 0
      %5332 = vmatmul.mubr.bf16.gmra.mrb[0].mxu0 %v5204
      %v5333 = vpop.f32.mrb[0].mxu0
      %v5334 = vadd.f32 0.0, %v5333
      %v5335 = vpop.f32.mrb[0].mxu0
      %v5336 = vpop.f32.mrb[0].mxu0
      %v5337 = vadd.f32 0.0, %v5336
      %v5338 = vpop.f32.mrb[0].mxu0
      %5339 = vmatprep.mubr.bf16.mxu0 0
      %5340 = vmatmul.mubr.bf16.gmra.mrb[0].mxu0 %v5207
      %v5341 = vpop.f32.mrb[0].mxu0
      %v5342 = vadd.f32 0.0, %v5341
      %v5343 = vpop.f32.mrb[0].mxu0
      %v5344 = vpop.f32.mrb[0].mxu0
      %v5345 = vadd.f32 0.0, %v5344
      %v5346 = vpop.f32.mrb[0].mxu0
      %5347 = vmatprep.mubr.bf16.mxu0 0
      %5348 = vmatmul.mubr.bf16.gmra.mrb[0].mxu0 %v5210
      %v5349 = vpop.f32.mrb[0].mxu0
      %v5350 = vadd.f32 0.0, %v5349
      %v5351 = vpop.f32.mrb[0].mxu0
      %v5352 = vpop.f32.mrb[0].mxu0
      %v5353 = vadd.f32 0.0, %v5352
      %v5354 = vpop.f32.mrb[0].mxu0
      %5355 = vmatprep.mubr.bf16.mxu0 0
      %5356 = vmatmul.mubr.bf16.gmra.mrb[0].mxu0 %v5213
      %v5357 = vpop.f32.mrb[0].mxu0
      %v5358 = vadd.f32 0.0, %v5357
      %v5359 = vpop.f32.mrb[0].mxu0
      %v5360 = vpop.f32.mrb[0].mxu0
      %v5361 = vadd.f32 0.0, %v5360
      %v5362 = vpop.f32.mrb[0].mxu0
      %5363 = vmatprep.mubr.bf16.mxu0 0
      %5364 = vmatmul.mubr.bf16.gmra.mrb[0].mxu0 %v5216
      %v5365 = vpop.f32.mrb[0].mxu0
      %v5366 = vadd.f32 0.0, %v5365
      %v5367 = vpop.f32.mrb[0].mxu0
      %v5368 = vpop.f32.mrb[0].mxu0
      %v5369 = vadd.f32 0.0, %v5368
      %v5370 = vpop.f32.mrb[0].mxu0
      %5371 = vmatprep.mubr.bf16.mxu0 0
      %5372 = vmatmul.mubr.bf16.gmra.mrb[0].mxu0 %v5219
      %v5373 = vpop.f32.mrb[0].mxu0
      %v5374 = vadd.f32 0.0, %v5373
      %v5375 = vpop.f32.mrb[0].mxu0
      %v5376 = vpop.f32.mrb[0].mxu0
      %v5377 = vadd.f32 0.0, %v5376
      %v5378 = vpop.f32.mrb[0].mxu0
      %5379 = vmatprep.mubr.bf16.mxu0 0
      %5380 = vmatmul.mubr.bf16.gmra.mrb[0].mxu0 %v5222
      %v5381 = vpop.f32.mrb[0].mxu0
      %v5382 = vadd.f32 0.0, %v5381
      %v5383 = vpop.f32.mrb[0].mxu0
      %v5384 = vpop.f32.mrb[0].mxu0
      %v5385 = vadd.f32 0.0, %v5384
      %v5386 = vpop.f32.mrb[0].mxu0
      %5387 = vdwg.mxu0
      %v5388 = vadd.f32 %v5126, %v5262
      %v5389 = vadd.f32 %v5127, %v5265
      %v5390 = vadd.f32 %v5128, %v5270
      %v5391 = vadd.f32 %v5129, %v5273
      %v5392 = vadd.f32 %v5130, %v5278
      %v5393 = vadd.f32 %v5131, %v5281
      %v5394 = vadd.f32 %v5132, %v5286
      %v5395 = vadd.f32 %v5133, %v5289
      %v5396 = vadd.f32 %v5134, %v5294
      %v5397 = vadd.f32 %v5135, %v5297
      %v5398 = vadd.f32 %v5136, %v5302
      %v5399 = vadd.f32 %v5137, %v5305
      %v5400 = vadd.f32 %v5138, %v5310
      %v5401 = vadd.f32 %v5139, %v5313
      %v5402 = vadd.f32 %v5140, %v5318
      %v5403 = vadd.f32 %v5141, %v5321
      %v5404 = vadd.f32 %v5142, %v5326
      %v5405 = vadd.f32 %v5143, %v5329
      %v5406 = vadd.f32 %v5144, %v5334
      %v5407 = vadd.f32 %v5145, %v5337
      %v5408 = vadd.f32 %v5146, %v5342
      %v5409 = vadd.f32 %v5147, %v5345
      %v5410 = vadd.f32 %v5148, %v5350
      %v5411 = vadd.f32 %v5149, %v5353
      %v5412 = vadd.f32 %v5150, %v5358
      %v5413 = vadd.f32 %v5151, %v5361
      %v5414 = vadd.f32 %v5152, %v5366
      %v5415 = vadd.f32 %v5153, %v5369
      %v5416 = vadd.f32 %v5154, %v5374
      %v5417 = vadd.f32 %v5155, %v5377
      %v5418 = vadd.f32 %v5156, %v5382
      %v5419 = vadd.f32 %v5157, %v5385
      %s5420 = scalar_lea.vmem [#allocation3], 16
      %v5421 = vld [vmem:[%s5420] sm:$0xff]
      %v5422 = vld [vmem:[%s5420 + $0x8] sm:$0xff]
      %v5423 = vld [vmem:[%s5420 + $0x10] sm:$0xff]
      %v5424 = vld [vmem:[%s5420 + $0x18] sm:$0xff]
      %v5425 = vld [vmem:[%s5420 + $0x20] sm:$0xff]
      %v5426 = vld [vmem:[%s5420 + $0x28] sm:$0xff]
      %v5427 = vld [vmem:[%s5420 + $0x30] sm:$0xff]
      %v5428 = vld [vmem:[%s5420 + $0x38] sm:$0xff]
      %v5429 = vld [vmem:[%s5420 + $0x40] sm:$0xff]
      %v5430 = vld [vmem:[%s5420 + $0x48] sm:$0xff]
      %v5431 = vld [vmem:[%s5420 + $0x50] sm:$0xff]
      %v5432 = vld [vmem:[%s5420 + $0x58] sm:$0xff]
      %v5433 = vld [vmem:[%s5420 + $0x60] sm:$0xff]
      %v5434 = vld [vmem:[%s5420 + $0x68] sm:$0xff]
      %v5435 = vld [vmem:[%s5420 + $0x70] sm:$0xff]
      %v5436 = vld [vmem:[%s5420 + $0x78] sm:$0xff]
      %s5437 = scalar_lea.vmem %s3, 24
      %v5438 = vld [vmem:[%s5437] sm:$0xf]
      %v5440 = vsel %vm1122, %v5421, 0
      %v5443 = vsel %vm1122, %v5422, 0
      %v5446 = vsel %vm1122, %v5423, 0
      %v5449 = vsel %vm1122, %v5424, 0
      %v5452 = vsel %vm1122, %v5425, 0
      %v5455 = vsel %vm1122, %v5426, 0
      %v5458 = vsel %vm1122, %v5427, 0
      %v5461 = vsel %vm1122, %v5428, 0
      %v5464 = vsel %vm1122, %v5429, 0
      %v5467 = vsel %vm1122, %v5430, 0
      %v5470 = vsel %vm1122, %v5431, 0
      %v5473 = vsel %vm1122, %v5432, 0
      %v5476 = vsel %vm1122, %v5433, 0
      %v5479 = vsel %vm1122, %v5434, 0
      %v5482 = vsel %vm1122, %v5435, 0
      %v5485 = vsel %vm1122, %v5436, 0
      %v5488 = vsel %vm3995, %v5438, 0
      %5490 = vmatprep.subr.bf16.mxu0 0
      %5491 = vmatpush1.bf16.msra.mxu0 %v5488
      %5492 = vmatprep.subr.bf16.mxu0 0
      %5493 = vmatpush1.bf16.msra.mxu0 0
      %5494 = vmatprep.subr.bf16.mxu0 0
      %5495 = vmatpush1.bf16.msra.mxu0 0
      %5496 = vmatprep.subr.bf16.mxu0 0
      %5497 = vmatpush1.bf16.msra.mxu0 0
      %5498 = vmatprep.subr.bf16.mxu0 0
      %5499 = vmatpush1.bf16.msra.mxu0 0
      %5500 = vmatprep.subr.bf16.mxu0 0
      %5501 = vmatpush1.bf16.msra.mxu0 0
      %5502 = vmatprep.subr.bf16.mxu0 0
      %5503 = vmatpush1.bf16.msra.mxu0 0
      %5504 = vmatprep.subr.bf16.mxu0 0
      %5505 = vmatpush1.bf16.msra.mxu0 0
      %5506 = vmatprep.subr.bf16.mxu0 0
      %5507 = vmatpush1.bf16.msra.mxu0 0
      %5508 = vmatprep.subr.bf16.mxu0 0
      %5509 = vmatpush1.bf16.msra.mxu0 0
      %5510 = vmatprep.subr.bf16.mxu0 0
      %5511 = vmatpush1.bf16.msra.mxu0 0
      %5512 = vmatprep.subr.bf16.mxu0 0
      %5513 = vmatpush1.bf16.msra.mxu0 0
      %5514 = vmatprep.subr.bf16.mxu0 0
      %5515 = vmatpush1.bf16.msra.mxu0 0
      %5516 = vmatprep.subr.bf16.mxu0 0
      %5517 = vmatpush1.bf16.msra.mxu0 0
      %5518 = vmatprep.subr.bf16.mxu0 0
      %5519 = vmatpush1.bf16.msra.mxu0 0
      %5520 = vmatprep.subr.bf16.mxu0 0
      %5521 = vmatpush1.bf16.msra.mxu0 0
      %5522 = vmatprep.mubr.bf16.mxu0 0
      %5523 = vmatmul.mubr.bf16.gmra.mrb[0].mxu0 %v5440
      %v5524 = vpop.f32.mrb[0].mxu0
      %v5525 = vadd.f32 0.0, %v5524
      %v5526 = vpop.f32.mrb[0].mxu0
      %v5527 = vpop.f32.mrb[0].mxu0
      %v5528 = vadd.f32 0.0, %v5527
      %v5529 = vpop.f32.mrb[0].mxu0
      %5530 = vmatprep.mubr.bf16.mxu0 0
      %5531 = vmatmul.mubr.bf16.gmra.mrb[0].mxu0 %v5443
      %v5532 = vpop.f32.mrb[0].mxu0
      %v5533 = vadd.f32 0.0, %v5532
      %v5534 = vpop.f32.mrb[0].mxu0
      %v5535 = vpop.f32.mrb[0].mxu0
      %v5536 = vadd.f32 0.0, %v5535
      %v5537 = vpop.f32.mrb[0].mxu0
      %5538 = vmatprep.mubr.bf16.mxu0 0
      %5539 = vmatmul.mubr.bf16.gmra.mrb[0].mxu0 %v5446
      %v5540 = vpop.f32.mrb[0].mxu0
      %v5541 = vadd.f32 0.0, %v5540
      %v5542 = vpop.f32.mrb[0].mxu0
      %v5543 = vpop.f32.mrb[0].mxu0
      %v5544 = vadd.f32 0.0, %v5543
      %v5545 = vpop.f32.mrb[0].mxu0
      %5546 = vmatprep.mubr.bf16.mxu0 0
      %5547 = vmatmul.mubr.bf16.gmra.mrb[0].mxu0 %v5449
      %v5548 = vpop.f32.mrb[0].mxu0
      %v5549 = vadd.f32 0.0, %v5548
      %v5550 = vpop.f32.mrb[0].mxu0
      %v5551 = vpop.f32.mrb[0].mxu0
      %v5552 = vadd.f32 0.0, %v5551
      %v5553 = vpop.f32.mrb[0].mxu0
      %5554 = vmatprep.mubr.bf16.mxu0 0
      %5555 = vmatmul.mubr.bf16.gmra.mrb[0].mxu0 %v5452
      %v5556 = vpop.f32.mrb[0].mxu0
      %v5557 = vadd.f32 0.0, %v5556
      %v5558 = vpop.f32.mrb[0].mxu0
      %v5559 = vpop.f32.mrb[0].mxu0
      %v5560 = vadd.f32 0.0, %v5559
      %v5561 = vpop.f32.mrb[0].mxu0
      %5562 = vmatprep.mubr.bf16.mxu0 0
      %5563 = vmatmul.mubr.bf16.gmra.mrb[0].mxu0 %v5455
      %v5564 = vpop.f32.mrb[0].mxu0
      %v5565 = vadd.f32 0.0, %v5564
      %v5566 = vpop.f32.mrb[0].mxu0
      %v5567 = vpop.f32.mrb[0].mxu0
      %v5568 = vadd.f32 0.0, %v5567
      %v5569 = vpop.f32.mrb[0].mxu0
      %5570 = vmatprep.mubr.bf16.mxu0 0
      %5571 = vmatmul.mubr.bf16.gmra.mrb[0].mxu0 %v5458
      %v5572 = vpop.f32.mrb[0].mxu0
      %v5573 = vadd.f32 0.0, %v5572
      %v5574 = vpop.f32.mrb[0].mxu0
      %v5575 = vpop.f32.mrb[0].mxu0
      %v5576 = vadd.f32 0.0, %v5575
      %v5577 = vpop.f32.mrb[0].mxu0
      %5578 = vmatprep.mubr.bf16.mxu0 0
      %5579 = vmatmul.mubr.bf16.gmra.mrb[0].mxu0 %v5461
      %v5580 = vpop.f32.mrb[0].mxu0
      %v5581 = vadd.f32 0.0, %v5580
      %v5582 = vpop.f32.mrb[0].mxu0
      %v5583 = vpop.f32.mrb[0].mxu0
      %v5584 = vadd.f32 0.0, %v5583
      %v5585 = vpop.f32.mrb[0].mxu0
      %5586 = vmatprep.mubr.bf16.mxu0 0
      %5587 = vmatmul.mubr.bf16.gmra.mrb[0].mxu0 %v5464
      %v5588 = vpop.f32.mrb[0].mxu0
      %v5589 = vadd.f32 0.0, %v5588
      %v5590 = vpop.f32.mrb[0].mxu0
      %v5591 = vpop.f32.mrb[0].mxu0
      %v5592 = vadd.f32 0.0, %v5591
      %v5593 = vpop.f32.mrb[0].mxu0
      %5594 = vmatprep.mubr.bf16.mxu0 0
      %5595 = vmatmul.mubr.bf16.gmra.mrb[0].mxu0 %v5467
      %v5596 = vpop.f32.mrb[0].mxu0
      %v5597 = vadd.f32 0.0, %v5596
      %v5598 = vpop.f32.mrb[0].mxu0
      %v5599 = vpop.f32.mrb[0].mxu0
      %v5600 = vadd.f32 0.0, %v5599
      %v5601 = vpop.f32.mrb[0].mxu0
      %5602 = vmatprep.mubr.bf16.mxu0 0
      %5603 = vmatmul.mubr.bf16.gmra.mrb[0].mxu0 %v5470
      %v5604 = vpop.f32.mrb[0].mxu0
      %v5605 = vadd.f32 0.0, %v5604
      %v5606 = vpop.f32.mrb[0].mxu0
      %v5607 = vpop.f32.mrb[0].mxu0
      %v5608 = vadd.f32 0.0, %v5607
      %v5609 = vpop.f32.mrb[0].mxu0
      %5610 = vmatprep.mubr.bf16.mxu0 0
      %5611 = vmatmul.mubr.bf16.gmra.mrb[0].mxu0 %v5473
      %v5612 = vpop.f32.mrb[0].mxu0
      %v5613 = vadd.f32 0.0, %v5612
      %v5614 = vpop.f32.mrb[0].mxu0
      %v5615 = vpop.f32.mrb[0].mxu0
      %v5616 = vadd.f32 0.0, %v5615
      %v5617 = vpop.f32.mrb[0].mxu0
      %5618 = vmatprep.mubr.bf16.mxu0 0
      %5619 = vmatmul.mubr.bf16.gmra.mrb[0].mxu0 %v5476
      %v5620 = vpop.f32.mrb[0].mxu0
      %v5621 = vadd.f32 0.0, %v5620
      %v5622 = vpop.f32.mrb[0].mxu0
      %v5623 = vpop.f32.mrb[0].mxu0
      %v5624 = vadd.f32 0.0, %v5623
      %v5625 = vpop.f32.mrb[0].mxu0
      %5626 = vmatprep.mubr.bf16.mxu0 0
      %5627 = vmatmul.mubr.bf16.gmra.mrb[0].mxu0 %v5479
      %v5628 = vpop.f32.mrb[0].mxu0
      %v5629 = vadd.f32 0.0, %v5628
      %v5630 = vpop.f32.mrb[0].mxu0
      %v5631 = vpop.f32.mrb[0].mxu0
      %v5632 = vadd.f32 0.0, %v5631
      %v5633 = vpop.f32.mrb[0].mxu0
      %5634 = vmatprep.mubr.bf16.mxu0 0
      %5635 = vmatmul.mubr.bf16.gmra.mrb[0].mxu0 %v5482
      %v5636 = vpop.f32.mrb[0].mxu0
      %v5637 = vadd.f32 0.0, %v5636
      %v5638 = vpop.f32.mrb[0].mxu0
      %v5639 = vpop.f32.mrb[0].mxu0
      %v5640 = vadd.f32 0.0, %v5639
      %v5641 = vpop.f32.mrb[0].mxu0
      %5642 = vmatprep.mubr.bf16.mxu0 0
      %5643 = vmatmul.mubr.bf16.gmra.mrb[0].mxu0 %v5485
      %v5644 = vpop.f32.mrb[0].mxu0
      %v5645 = vadd.f32 0.0, %v5644
      %v5646 = vpop.f32.mrb[0].mxu0
      %v5647 = vpop.f32.mrb[0].mxu0
      %v5648 = vadd.f32 0.0, %v5647
      %v5649 = vpop.f32.mrb[0].mxu0
      %5650 = vdwg.mxu0
      %v5651 = vadd.f32 %v5388, %v5525
      %v5652 = vadd.f32 %v5389, %v5528
      %v5653 = vadd.f32 %v5390, %v5533
      %v5654 = vadd.f32 %v5391, %v5536
      %v5655 = vadd.f32 %v5392, %v5541
      %v5656 = vadd.f32 %v5393, %v5544
      %v5657 = vadd.f32 %v5394, %v5549
      %v5658 = vadd.f32 %v5395, %v5552
      %v5659 = vadd.f32 %v5396, %v5557
      %v5660 = vadd.f32 %v5397, %v5560
      %v5661 = vadd.f32 %v5398, %v5565
      %v5662 = vadd.f32 %v5399, %v5568
      %v5663 = vadd.f32 %v5400, %v5573
      %v5664 = vadd.f32 %v5401, %v5576
      %v5665 = vadd.f32 %v5402, %v5581
      %v5666 = vadd.f32 %v5403, %v5584
      %v5667 = vadd.f32 %v5404, %v5589
      %v5668 = vadd.f32 %v5405, %v5592
      %v5669 = vadd.f32 %v5406, %v5597
      %v5670 = vadd.f32 %v5407, %v5600
      %v5671 = vadd.f32 %v5408, %v5605
      %v5672 = vadd.f32 %v5409, %v5608
      %v5673 = vadd.f32 %v5410, %v5613
      %v5674 = vadd.f32 %v5411, %v5616
      %v5675 = vadd.f32 %v5412, %v5621
      %v5676 = vadd.f32 %v5413, %v5624
      %v5677 = vadd.f32 %v5414, %v5629
      %v5678 = vadd.f32 %v5415, %v5632
      %v5679 = vadd.f32 %v5416, %v5637
      %v5680 = vadd.f32 %v5417, %v5640
      %v5681 = vadd.f32 %v5418, %v5645
      %v5682 = vadd.f32 %v5419, %v5648
      %s5683 = scalar_lea.vmem [#allocation3], 160
      %v5684 = vld [vmem:[%s5683] sm:$0xff]
      %v5685 = vld [vmem:[%s5683 + $0x8] sm:$0xff]
      %v5686 = vld [vmem:[%s5683 + $0x10] sm:$0xff]
      %v5687 = vld [vmem:[%s5683 + $0x18] sm:$0xff]
      %v5688 = vld [vmem:[%s5683 + $0x20] sm:$0xff]
      %v5689 = vld [vmem:[%s5683 + $0x28] sm:$0xff]
      %v5690 = vld [vmem:[%s5683 + $0x30] sm:$0xff]
      %v5691 = vld [vmem:[%s5683 + $0x38] sm:$0xff]
      %v5692 = vld [vmem:[%s5683 + $0x40] sm:$0xff]
      %v5693 = vld [vmem:[%s5683 + $0x48] sm:$0xff]
      %v5694 = vld [vmem:[%s5683 + $0x50] sm:$0xff]
      %v5695 = vld [vmem:[%s5683 + $0x58] sm:$0xff]
      %v5696 = vld [vmem:[%s5683 + $0x60] sm:$0xff]
      %v5697 = vld [vmem:[%s5683 + $0x68] sm:$0xff]
      %v5698 = vld [vmem:[%s5683 + $0x70] sm:$0xff]
      %v5699 = vld [vmem:[%s5683 + $0x78] sm:$0xff]
      %s5700 = scalar_lea.vmem %s3, 28
      %v5701 = vld [vmem:[%s5700] sm:$0xf]
      %v5703 = vsel %vm1122, %v5684, 0
      %v5706 = vsel %vm1122, %v5685, 0
      %v5709 = vsel %vm1122, %v5686, 0
      %v5712 = vsel %vm1122, %v5687, 0
      %v5715 = vsel %vm1122, %v5688, 0
      %v5718 = vsel %vm1122, %v5689, 0
      %v5721 = vsel %vm1122, %v5690, 0
      %v5724 = vsel %vm1122, %v5691, 0
      %v5727 = vsel %vm1122, %v5692, 0
      %v5730 = vsel %vm1122, %v5693, 0
      %v5733 = vsel %vm1122, %v5694, 0
      %v5736 = vsel %vm1122, %v5695, 0
      %v5739 = vsel %vm1122, %v5696, 0
      %v5742 = vsel %vm1122, %v5697, 0
      %v5745 = vsel %vm1122, %v5698, 0
      %v5748 = vsel %vm1122, %v5699, 0
      %v5751 = vsel %vm3995, %v5701, 0
      %5753 = vmatprep.subr.bf16.mxu0 0
      %5754 = vmatpush1.bf16.msra.mxu0 %v5751
      %5755 = vmatprep.subr.bf16.mxu0 0
      %5756 = vmatpush1.bf16.msra.mxu0 0
      %5757 = vmatprep.subr.bf16.mxu0 0
      %5758 = vmatpush1.bf16.msra.mxu0 0
      %5759 = vmatprep.subr.bf16.mxu0 0
      %5760 = vmatpush1.bf16.msra.mxu0 0
      %5761 = vmatprep.subr.bf16.mxu0 0
      %5762 = vmatpush1.bf16.msra.mxu0 0
      %5763 = vmatprep.subr.bf16.mxu0 0
      %5764 = vmatpush1.bf16.msra.mxu0 0
      %5765 = vmatprep.subr.bf16.mxu0 0
      %5766 = vmatpush1.bf16.msra.mxu0 0
      %5767 = vmatprep.subr.bf16.mxu0 0
      %5768 = vmatpush1.bf16.msra.mxu0 0
      %5769 = vmatprep.subr.bf16.mxu0 0
      %5770 = vmatpush1.bf16.msra.mxu0 0
      %5771 = vmatprep.subr.bf16.mxu0 0
      %5772 = vmatpush1.bf16.msra.mxu0 0
      %5773 = vmatprep.subr.bf16.mxu0 0
      %5774 = vmatpush1.bf16.msra.mxu0 0
      %5775 = vmatprep.subr.bf16.mxu0 0
      %5776 = vmatpush1.bf16.msra.mxu0 0
      %5777 = vmatprep.subr.bf16.mxu0 0
      %5778 = vmatpush1.bf16.msra.mxu0 0
      %5779 = vmatprep.subr.bf16.mxu0 0
      %5780 = vmatpush1.bf16.msra.mxu0 0
      %5781 = vmatprep.subr.bf16.mxu0 0
      %5782 = vmatpush1.bf16.msra.mxu0 0
      %5783 = vmatprep.subr.bf16.mxu0 0
      %5784 = vmatpush1.bf16.msra.mxu0 0
      %5785 = vmatprep.mubr.bf16.mxu0 0
      %5786 = vmatmul.mubr.bf16.gmra.mrb[0].mxu0 %v5703
      %v5787 = vpop.f32.mrb[0].mxu0
      %v5788 = vadd.f32 0.0, %v5787
      %v5789 = vpop.f32.mrb[0].mxu0
      %v5790 = vpop.f32.mrb[0].mxu0
      %v5791 = vadd.f32 0.0, %v5790
      %v5792 = vpop.f32.mrb[0].mxu0
      %5793 = vmatprep.mubr.bf16.mxu0 0
      %5794 = vmatmul.mubr.bf16.gmra.mrb[0].mxu0 %v5706
      %v5795 = vpop.f32.mrb[0].mxu0
      %v5796 = vadd.f32 0.0, %v5795
      %v5797 = vpop.f32.mrb[0].mxu0
      %v5798 = vpop.f32.mrb[0].mxu0
      %v5799 = vadd.f32 0.0, %v5798
      %v5800 = vpop.f32.mrb[0].mxu0
      %5801 = vmatprep.mubr.bf16.mxu0 0
      %5802 = vmatmul.mubr.bf16.gmra.mrb[0].mxu0 %v5709
      %v5803 = vpop.f32.mrb[0].mxu0
      %v5804 = vadd.f32 0.0, %v5803
      %v5805 = vpop.f32.mrb[0].mxu0
      %v5806 = vpop.f32.mrb[0].mxu0
      %v5807 = vadd.f32 0.0, %v5806
      %v5808 = vpop.f32.mrb[0].mxu0
      %5809 = vmatprep.mubr.bf16.mxu0 0
      %5810 = vmatmul.mubr.bf16.gmra.mrb[0].mxu0 %v5712
      %v5811 = vpop.f32.mrb[0].mxu0
      %v5812 = vadd.f32 0.0, %v5811
      %v5813 = vpop.f32.mrb[0].mxu0
      %v5814 = vpop.f32.mrb[0].mxu0
      %v5815 = vadd.f32 0.0, %v5814
      %v5816 = vpop.f32.mrb[0].mxu0
      %5817 = vmatprep.mubr.bf16.mxu0 0
      %5818 = vmatmul.mubr.bf16.gmra.mrb[0].mxu0 %v5715
      %v5819 = vpop.f32.mrb[0].mxu0
      %v5820 = vadd.f32 0.0, %v5819
      %v5821 = vpop.f32.mrb[0].mxu0
      %v5822 = vpop.f32.mrb[0].mxu0
      %v5823 = vadd.f32 0.0, %v5822
      %v5824 = vpop.f32.mrb[0].mxu0
      %5825 = vmatprep.mubr.bf16.mxu0 0
      %5826 = vmatmul.mubr.bf16.gmra.mrb[0].mxu0 %v5718
      %v5827 = vpop.f32.mrb[0].mxu0
      %v5828 = vadd.f32 0.0, %v5827
      %v5829 = vpop.f32.mrb[0].mxu0
      %v5830 = vpop.f32.mrb[0].mxu0
      %v5831 = vadd.f32 0.0, %v5830
      %v5832 = vpop.f32.mrb[0].mxu0
      %5833 = vmatprep.mubr.bf16.mxu0 0
      %5834 = vmatmul.mubr.bf16.gmra.mrb[0].mxu0 %v5721
      %v5835 = vpop.f32.mrb[0].mxu0
      %v5836 = vadd.f32 0.0, %v5835
      %v5837 = vpop.f32.mrb[0].mxu0
      %v5838 = vpop.f32.mrb[0].mxu0
      %v5839 = vadd.f32 0.0, %v5838
      %v5840 = vpop.f32.mrb[0].mxu0
      %5841 = vmatprep.mubr.bf16.mxu0 0
      %5842 = vmatmul.mubr.bf16.gmra.mrb[0].mxu0 %v5724
      %v5843 = vpop.f32.mrb[0].mxu0
      %v5844 = vadd.f32 0.0, %v5843
      %v5845 = vpop.f32.mrb[0].mxu0
      %v5846 = vpop.f32.mrb[0].mxu0
      %v5847 = vadd.f32 0.0, %v5846
      %v5848 = vpop.f32.mrb[0].mxu0
      %5849 = vmatprep.mubr.bf16.mxu0 0
      %5850 = vmatmul.mubr.bf16.gmra.mrb[0].mxu0 %v5727
      %v5851 = vpop.f32.mrb[0].mxu0
      %v5852 = vadd.f32 0.0, %v5851
      %v5853 = vpop.f32.mrb[0].mxu0
      %v5854 = vpop.f32.mrb[0].mxu0
      %v5855 = vadd.f32 0.0, %v5854
      %v5856 = vpop.f32.mrb[0].mxu0
      %5857 = vmatprep.mubr.bf16.mxu0 0
      %5858 = vmatmul.mubr.bf16.gmra.mrb[0].mxu0 %v5730
      %v5859 = vpop.f32.mrb[0].mxu0
      %v5860 = vadd.f32 0.0, %v5859
      %v5861 = vpop.f32.mrb[0].mxu0
      %v5862 = vpop.f32.mrb[0].mxu0
      %v5863 = vadd.f32 0.0, %v5862
      %v5864 = vpop.f32.mrb[0].mxu0
      %5865 = vmatprep.mubr.bf16.mxu0 0
      %5866 = vmatmul.mubr.bf16.gmra.mrb[0].mxu0 %v5733
      %v5867 = vpop.f32.mrb[0].mxu0
      %v5868 = vadd.f32 0.0, %v5867
      %v5869 = vpop.f32.mrb[0].mxu0
      %v5870 = vpop.f32.mrb[0].mxu0
      %v5871 = vadd.f32 0.0, %v5870
      %v5872 = vpop.f32.mrb[0].mxu0
      %5873 = vmatprep.mubr.bf16.mxu0 0
      %5874 = vmatmul.mubr.bf16.gmra.mrb[0].mxu0 %v5736
      %v5875 = vpop.f32.mrb[0].mxu0
      %v5876 = vadd.f32 0.0, %v5875
      %v5877 = vpop.f32.mrb[0].mxu0
      %v5878 = vpop.f32.mrb[0].mxu0
      %v5879 = vadd.f32 0.0, %v5878
      %v5880 = vpop.f32.mrb[0].mxu0
      %5881 = vmatprep.mubr.bf16.mxu0 0
      %5882 = vmatmul.mubr.bf16.gmra.mrb[0].mxu0 %v5739
      %v5883 = vpop.f32.mrb[0].mxu0
      %v5884 = vadd.f32 0.0, %v5883
      %v5885 = vpop.f32.mrb[0].mxu0
      %v5886 = vpop.f32.mrb[0].mxu0
      %v5887 = vadd.f32 0.0, %v5886
      %v5888 = vpop.f32.mrb[0].mxu0
      %5889 = vmatprep.mubr.bf16.mxu0 0
      %5890 = vmatmul.mubr.bf16.gmra.mrb[0].mxu0 %v5742
      %v5891 = vpop.f32.mrb[0].mxu0
      %v5892 = vadd.f32 0.0, %v5891
      %v5893 = vpop.f32.mrb[0].mxu0
      %v5894 = vpop.f32.mrb[0].mxu0
      %v5895 = vadd.f32 0.0, %v5894
      %v5896 = vpop.f32.mrb[0].mxu0
      %5897 = vmatprep.mubr.bf16.mxu0 0
      %5898 = vmatmul.mubr.bf16.gmra.mrb[0].mxu0 %v5745
      %v5899 = vpop.f32.mrb[0].mxu0
      %v5900 = vadd.f32 0.0, %v5899
      %v5901 = vpop.f32.mrb[0].mxu0
      %v5902 = vpop.f32.mrb[0].mxu0
      %v5903 = vadd.f32 0.0, %v5902
      %v5904 = vpop.f32.mrb[0].mxu0
      %5905 = vmatprep.mubr.bf16.mxu0 0
      %5906 = vmatmul.mubr.bf16.gmra.mrb[0].mxu0 %v5748
      %v5907 = vpop.f32.mrb[0].mxu0
      %v5908 = vadd.f32 0.0, %v5907
      %v5909 = vpop.f32.mrb[0].mxu0
      %v5910 = vpop.f32.mrb[0].mxu0
      %v5911 = vadd.f32 0.0, %v5910
      %v5912 = vpop.f32.mrb[0].mxu0
      %5913 = vdwg.mxu0
      %v5914 = vadd.f32 %v5651, %v5788
      %v5915 = vadd.f32 %v5652, %v5791
      %v5916 = vadd.f32 %v5653, %v5796
      %v5917 = vadd.f32 %v5654, %v5799
      %v5918 = vadd.f32 %v5655, %v5804
      %v5919 = vadd.f32 %v5656, %v5807
      %v5920 = vadd.f32 %v5657, %v5812
      %v5921 = vadd.f32 %v5658, %v5815
      %v5922 = vadd.f32 %v5659, %v5820
      %v5923 = vadd.f32 %v5660, %v5823
      %v5924 = vadd.f32 %v5661, %v5828
      %v5925 = vadd.f32 %v5662, %v5831
      %v5926 = vadd.f32 %v5663, %v5836
      %v5927 = vadd.f32 %v5664, %v5839
      %v5928 = vadd.f32 %v5665, %v5844
      %v5929 = vadd.f32 %v5666, %v5847
      %v5930 = vadd.f32 %v5667, %v5852
      %v5931 = vadd.f32 %v5668, %v5855
      %v5932 = vadd.f32 %v5669, %v5860
      %v5933 = vadd.f32 %v5670, %v5863
      %v5934 = vadd.f32 %v5671, %v5868
      %v5935 = vadd.f32 %v5672, %v5871
      %v5936 = vadd.f32 %v5673, %v5876
      %v5937 = vadd.f32 %v5674, %v5879
      %v5938 = vadd.f32 %v5675, %v5884
      %v5939 = vadd.f32 %v5676, %v5887
      %v5940 = vadd.f32 %v5677, %v5892
      %v5941 = vadd.f32 %v5678, %v5895
      %v5942 = vadd.f32 %v5679, %v5900
      %v5943 = vadd.f32 %v5680, %v5903
      %v5944 = vadd.f32 %v5681, %v5908
      %v5945 = vadd.f32 %v5682, %v5911
      %s5946 = scalar_lea.vmem [#allocation3], 304
      %v5947 = vld [vmem:[%s5946] sm:$0xff]
      %v5948 = vld [vmem:[%s5946 + $0x8] sm:$0xff]
      %v5949 = vld [vmem:[%s5946 + $0x10] sm:$0xff]
      %v5950 = vld [vmem:[%s5946 + $0x18] sm:$0xff]
      %v5951 = vld [vmem:[%s5946 + $0x20] sm:$0xff]
      %v5952 = vld [vmem:[%s5946 + $0x28] sm:$0xff]
      %v5953 = vld [vmem:[%s5946 + $0x30] sm:$0xff]
      %v5954 = vld [vmem:[%s5946 + $0x38] sm:$0xff]
      %v5955 = vld [vmem:[%s5946 + $0x40] sm:$0xff]
      %v5956 = vld [vmem:[%s5946 + $0x48] sm:$0xff]
      %v5957 = vld [vmem:[%s5946 + $0x50] sm:$0xff]
      %v5958 = vld [vmem:[%s5946 + $0x58] sm:$0xff]
      %v5959 = vld [vmem:[%s5946 + $0x60] sm:$0xff]
      %v5960 = vld [vmem:[%s5946 + $0x68] sm:$0xff]
      %v5961 = vld [vmem:[%s5946 + $0x70] sm:$0xff]
      %v5962 = vld [vmem:[%s5946 + $0x78] sm:$0xff]
      %s5963 = scalar_lea.vmem %s3, 32
      %v5964 = vld [vmem:[%s5963] sm:$0xf]
      %v5966 = vsel %vm1122, %v5947, 0
      %v5969 = vsel %vm1122, %v5948, 0
      %v5972 = vsel %vm1122, %v5949, 0
      %v5975 = vsel %vm1122, %v5950, 0
      %v5978 = vsel %vm1122, %v5951, 0
      %v5981 = vsel %vm1122, %v5952, 0
      %v5984 = vsel %vm1122, %v5953, 0
      %v5987 = vsel %vm1122, %v5954, 0
      %v5990 = vsel %vm1122, %v5955, 0
      %v5993 = vsel %vm1122, %v5956, 0
      %v5996 = vsel %vm1122, %v5957, 0
      %v5999 = vsel %vm1122, %v5958, 0
      %v6002 = vsel %vm1122, %v5959, 0
      %v6005 = vsel %vm1122, %v5960, 0
      %v6008 = vsel %vm1122, %v5961, 0
      %v6011 = vsel %vm1122, %v5962, 0
      %v6014 = vsel %vm3995, %v5964, 0
      %6016 = vmatprep.subr.bf16.mxu0 0
      %6017 = vmatpush1.bf16.msra.mxu0 %v6014
      %6018 = vmatprep.subr.bf16.mxu0 0
      %6019 = vmatpush1.bf16.msra.mxu0 0
      %6020 = vmatprep.subr.bf16.mxu0 0
      %6021 = vmatpush1.bf16.msra.mxu0 0
      %6022 = vmatprep.subr.bf16.mxu0 0
      %6023 = vmatpush1.bf16.msra.mxu0 0
      %6024 = vmatprep.subr.bf16.mxu0 0
      %6025 = vmatpush1.bf16.msra.mxu0 0
      %6026 = vmatprep.subr.bf16.mxu0 0
      %6027 = vmatpush1.bf16.msra.mxu0 0
      %6028 = vmatprep.subr.bf16.mxu0 0
      %6029 = vmatpush1.bf16.msra.mxu0 0
      %6030 = vmatprep.subr.bf16.mxu0 0
      %6031 = vmatpush1.bf16.msra.mxu0 0
      %6032 = vmatprep.subr.bf16.mxu0 0
      %6033 = vmatpush1.bf16.msra.mxu0 0
      %6034 = vmatprep.subr.bf16.mxu0 0
      %6035 = vmatpush1.bf16.msra.mxu0 0
      %6036 = vmatprep.subr.bf16.mxu0 0
      %6037 = vmatpush1.bf16.msra.mxu0 0
      %6038 = vmatprep.subr.bf16.mxu0 0
      %6039 = vmatpush1.bf16.msra.mxu0 0
      %6040 = vmatprep.subr.bf16.mxu0 0
      %6041 = vmatpush1.bf16.msra.mxu0 0
      %6042 = vmatprep.subr.bf16.mxu0 0
      %6043 = vmatpush1.bf16.msra.mxu0 0
      %6044 = vmatprep.subr.bf16.mxu0 0
      %6045 = vmatpush1.bf16.msra.mxu0 0
      %6046 = vmatprep.subr.bf16.mxu0 0
      %6047 = vmatpush1.bf16.msra.mxu0 0
      %6048 = vmatprep.mubr.bf16.mxu0 0
      %6049 = vmatmul.mubr.bf16.gmra.mrb[0].mxu0 %v5966
      %v6050 = vpop.f32.mrb[0].mxu0
      %v6051 = vadd.f32 0.0, %v6050
      %v6052 = vpop.f32.mrb[0].mxu0
      %v6053 = vpop.f32.mrb[0].mxu0
      %v6054 = vadd.f32 0.0, %v6053
      %v6055 = vpop.f32.mrb[0].mxu0
      %6056 = vmatprep.mubr.bf16.mxu0 0
      %6057 = vmatmul.mubr.bf16.gmra.mrb[0].mxu0 %v5969
      %v6058 = vpop.f32.mrb[0].mxu0
      %v6059 = vadd.f32 0.0, %v6058
      %v6060 = vpop.f32.mrb[0].mxu0
      %v6061 = vpop.f32.mrb[0].mxu0
      %v6062 = vadd.f32 0.0, %v6061
      %v6063 = vpop.f32.mrb[0].mxu0
      %6064 = vmatprep.mubr.bf16.mxu0 0
      %6065 = vmatmul.mubr.bf16.gmra.mrb[0].mxu0 %v5972
      %v6066 = vpop.f32.mrb[0].mxu0
      %v6067 = vadd.f32 0.0, %v6066
      %v6068 = vpop.f32.mrb[0].mxu0
      %v6069 = vpop.f32.mrb[0].mxu0
      %v6070 = vadd.f32 0.0, %v6069
      %v6071 = vpop.f32.mrb[0].mxu0
      %6072 = vmatprep.mubr.bf16.mxu0 0
      %6073 = vmatmul.mubr.bf16.gmra.mrb[0].mxu0 %v5975
      %v6074 = vpop.f32.mrb[0].mxu0
      %v6075 = vadd.f32 0.0, %v6074
      %v6076 = vpop.f32.mrb[0].mxu0
      %v6077 = vpop.f32.mrb[0].mxu0
      %v6078 = vadd.f32 0.0, %v6077
      %v6079 = vpop.f32.mrb[0].mxu0
      %6080 = vmatprep.mubr.bf16.mxu0 0
      %6081 = vmatmul.mubr.bf16.gmra.mrb[0].mxu0 %v5978
      %v6082 = vpop.f32.mrb[0].mxu0
      %v6083 = vadd.f32 0.0, %v6082
      %v6084 = vpop.f32.mrb[0].mxu0
      %v6085 = vpop.f32.mrb[0].mxu0
      %v6086 = vadd.f32 0.0, %v6085
      %v6087 = vpop.f32.mrb[0].mxu0
      %6088 = vmatprep.mubr.bf16.mxu0 0
      %6089 = vmatmul.mubr.bf16.gmra.mrb[0].mxu0 %v5981
      %v6090 = vpop.f32.mrb[0].mxu0
      %v6091 = vadd.f32 0.0, %v6090
      %v6092 = vpop.f32.mrb[0].mxu0
      %v6093 = vpop.f32.mrb[0].mxu0
      %v6094 = vadd.f32 0.0, %v6093
      %v6095 = vpop.f32.mrb[0].mxu0
      %6096 = vmatprep.mubr.bf16.mxu0 0
      %6097 = vmatmul.mubr.bf16.gmra.mrb[0].mxu0 %v5984
      %v6098 = vpop.f32.mrb[0].mxu0
      %v6099 = vadd.f32 0.0, %v6098
      %v6100 = vpop.f32.mrb[0].mxu0
      %v6101 = vpop.f32.mrb[0].mxu0
      %v6102 = vadd.f32 0.0, %v6101
      %v6103 = vpop.f32.mrb[0].mxu0
      %6104 = vmatprep.mubr.bf16.mxu0 0
      %6105 = vmatmul.mubr.bf16.gmra.mrb[0].mxu0 %v5987
      %v6106 = vpop.f32.mrb[0].mxu0
      %v6107 = vadd.f32 0.0, %v6106
      %v6108 = vpop.f32.mrb[0].mxu0
      %v6109 = vpop.f32.mrb[0].mxu0
      %v6110 = vadd.f32 0.0, %v6109
      %v6111 = vpop.f32.mrb[0].mxu0
      %6112 = vmatprep.mubr.bf16.mxu0 0
      %6113 = vmatmul.mubr.bf16.gmra.mrb[0].mxu0 %v5990
      %v6114 = vpop.f32.mrb[0].mxu0
      %v6115 = vadd.f32 0.0, %v6114
      %v6116 = vpop.f32.mrb[0].mxu0
      %v6117 = vpop.f32.mrb[0].mxu0
      %v6118 = vadd.f32 0.0, %v6117
      %v6119 = vpop.f32.mrb[0].mxu0
      %6120 = vmatprep.mubr.bf16.mxu0 0
      %6121 = vmatmul.mubr.bf16.gmra.mrb[0].mxu0 %v5993
      %v6122 = vpop.f32.mrb[0].mxu0
      %v6123 = vadd.f32 0.0, %v6122
      %v6124 = vpop.f32.mrb[0].mxu0
      %v6125 = vpop.f32.mrb[0].mxu0
      %v6126 = vadd.f32 0.0, %v6125
      %v6127 = vpop.f32.mrb[0].mxu0
      %6128 = vmatprep.mubr.bf16.mxu0 0
      %6129 = vmatmul.mubr.bf16.gmra.mrb[0].mxu0 %v5996
      %v6130 = vpop.f32.mrb[0].mxu0
      %v6131 = vadd.f32 0.0, %v6130
      %v6132 = vpop.f32.mrb[0].mxu0
      %v6133 = vpop.f32.mrb[0].mxu0
      %v6134 = vadd.f32 0.0, %v6133
      %v6135 = vpop.f32.mrb[0].mxu0
      %6136 = vmatprep.mubr.bf16.mxu0 0
      %6137 = vmatmul.mubr.bf16.gmra.mrb[0].mxu0 %v5999
      %v6138 = vpop.f32.mrb[0].mxu0
      %v6139 = vadd.f32 0.0, %v6138
      %v6140 = vpop.f32.mrb[0].mxu0
      %v6141 = vpop.f32.mrb[0].mxu0
      %v6142 = vadd.f32 0.0, %v6141
      %v6143 = vpop.f32.mrb[0].mxu0
      %6144 = vmatprep.mubr.bf16.mxu0 0
      %6145 = vmatmul.mubr.bf16.gmra.mrb[0].mxu0 %v6002
      %v6146 = vpop.f32.mrb[0].mxu0
      %v6147 = vadd.f32 0.0, %v6146
      %v6148 = vpop.f32.mrb[0].mxu0
      %v6149 = vpop.f32.mrb[0].mxu0
      %v6150 = vadd.f32 0.0, %v6149
      %v6151 = vpop.f32.mrb[0].mxu0
      %6152 = vmatprep.mubr.bf16.mxu0 0
      %6153 = vmatmul.mubr.bf16.gmra.mrb[0].mxu0 %v6005
      %v6154 = vpop.f32.mrb[0].mxu0
      %v6155 = vadd.f32 0.0, %v6154
      %v6156 = vpop.f32.mrb[0].mxu0
      %v6157 = vpop.f32.mrb[0].mxu0
      %v6158 = vadd.f32 0.0, %v6157
      %v6159 = vpop.f32.mrb[0].mxu0
      %6160 = vmatprep.mubr.bf16.mxu0 0
      %6161 = vmatmul.mubr.bf16.gmra.mrb[0].mxu0 %v6008
      %v6162 = vpop.f32.mrb[0].mxu0
      %v6163 = vadd.f32 0.0, %v6162
      %v6164 = vpop.f32.mrb[0].mxu0
      %v6165 = vpop.f32.mrb[0].mxu0
      %v6166 = vadd.f32 0.0, %v6165
      %v6167 = vpop.f32.mrb[0].mxu0
      %6168 = vmatprep.mubr.bf16.mxu0 0
      %6169 = vmatmul.mubr.bf16.gmra.mrb[0].mxu0 %v6011
      %v6170 = vpop.f32.mrb[0].mxu0
      %v6171 = vadd.f32 0.0, %v6170
      %v6172 = vpop.f32.mrb[0].mxu0
      %v6173 = vpop.f32.mrb[0].mxu0
      %v6174 = vadd.f32 0.0, %v6173
      %v6175 = vpop.f32.mrb[0].mxu0
      %6176 = vdwg.mxu0
      %v6177 = vadd.f32 %v5914, %v6051
      %v6178 = vadd.f32 %v5915, %v6054
      %v6179 = vadd.f32 %v5916, %v6059
      %v6180 = vadd.f32 %v5917, %v6062
      %v6181 = vadd.f32 %v5918, %v6067
      %v6182 = vadd.f32 %v5919, %v6070
      %v6183 = vadd.f32 %v5920, %v6075
      %v6184 = vadd.f32 %v5921, %v6078
      %v6185 = vadd.f32 %v5922, %v6083
      %v6186 = vadd.f32 %v5923, %v6086
      %v6187 = vadd.f32 %v5924, %v6091
      %v6188 = vadd.f32 %v5925, %v6094
      %v6189 = vadd.f32 %v5926, %v6099
      %v6190 = vadd.f32 %v5927, %v6102
      %v6191 = vadd.f32 %v5928, %v6107
      %v6192 = vadd.f32 %v5929, %v6110
      %v6193 = vadd.f32 %v5930, %v6115
      %v6194 = vadd.f32 %v5931, %v6118
      %v6195 = vadd.f32 %v5932, %v6123
      %v6196 = vadd.f32 %v5933, %v6126
      %v6197 = vadd.f32 %v5934, %v6131
      %v6198 = vadd.f32 %v5935, %v6134
      %v6199 = vadd.f32 %v5936, %v6139
      %v6200 = vadd.f32 %v5937, %v6142
      %v6201 = vadd.f32 %v5938, %v6147
      %v6202 = vadd.f32 %v5939, %v6150
      %v6203 = vadd.f32 %v5940, %v6155
      %v6204 = vadd.f32 %v5941, %v6158
      %v6205 = vadd.f32 %v5942, %v6163
      %v6206 = vadd.f32 %v5943, %v6166
      %v6207 = vadd.f32 %v5944, %v6171
      %v6208 = vadd.f32 %v5945, %v6174
      %v6209 = vld [vmem:[%s4] sm:$0x1]
      %v6211 = vlaneseq
      %v6212 = vshrl.u32 %v6211, 7
      %v6213 = vsub.s32 0, %v6212
      %v6214 = vrot.slane %v6209, %v6213
      %v6216 = vadd.f32 %v6177, %v6214
      %v6217 = vadd.f32 %v6178, %v6214
      %v6218 = vadd.f32 %v6179, %v6214
      %v6219 = vadd.f32 %v6180, %v6214
      %v6220 = vadd.f32 %v6181, %v6214
      %v6221 = vadd.f32 %v6182, %v6214
      %v6222 = vadd.f32 %v6183, %v6214
      %v6223 = vadd.f32 %v6184, %v6214
      %v6224 = vadd.f32 %v6185, %v6214
      %v6225 = vadd.f32 %v6186, %v6214
      %v6226 = vadd.f32 %v6187, %v6214
      %v6227 = vadd.f32 %v6188, %v6214
      %v6228 = vadd.f32 %v6189, %v6214
      %v6229 = vadd.f32 %v6190, %v6214
      %v6230 = vadd.f32 %v6191, %v6214
      %v6231 = vadd.f32 %v6192, %v6214
      %v6232 = vadd.f32 %v6193, %v6214
      %v6233 = vadd.f32 %v6194, %v6214
      %v6234 = vadd.f32 %v6195, %v6214
      %v6235 = vadd.f32 %v6196, %v6214
      %v6236 = vadd.f32 %v6197, %v6214
      %v6237 = vadd.f32 %v6198, %v6214
      %v6238 = vadd.f32 %v6199, %v6214
      %v6239 = vadd.f32 %v6200, %v6214
      %v6240 = vadd.f32 %v6201, %v6214
      %v6241 = vadd.f32 %v6202, %v6214
      %v6242 = vadd.f32 %v6203, %v6214
      %v6243 = vadd.f32 %v6204, %v6214
      %v6244 = vadd.f32 %v6205, %v6214
      %v6245 = vadd.f32 %v6206, %v6214
      %v6246 = vadd.f32 %v6207, %v6214
      %v6247 = vadd.f32 %v6208, %v6214
      %v6248 = vld [vmem:[%s273] sm:$0xf]
      %v6249 = vld [vmem:[%s273 + $0x4] sm:$0xf]
      %v6250 = vld [vmem:[%s273 + $0x8] sm:$0xf]
      %v6251 = vld [vmem:[%s273 + $0xc] sm:$0xf]
      %v6252 = vld [vmem:[%s273 + $0x10] sm:$0xf]
      %v6253 = vld [vmem:[%s273 + $0x14] sm:$0xf]
      %v6254 = vld [vmem:[%s273 + $0x18] sm:$0xf]
      %v6255 = vld [vmem:[%s273 + $0x1c] sm:$0xf]
      %v6256 = vld [vmem:[%s273 + $0x20] sm:$0xf]
      %v6257 = vld [vmem:[%s273 + $0x24] sm:$0xf]
      %v6258 = vld [vmem:[%s273 + $0x28] sm:$0xf]
      %v6259 = vld [vmem:[%s273 + $0x2c] sm:$0xf]
      %v6260 = vld [vmem:[%s273 + $0x30] sm:$0xf]
      %v6261 = vld [vmem:[%s273 + $0x34] sm:$0xf]
      %v6262 = vld [vmem:[%s273 + $0x38] sm:$0xf]
      %v6263 = vld [vmem:[%s273 + $0x3c] sm:$0xf]
      %v6264 = vld [vmem:[%s273 + $0x40] sm:$0xf]
      %v6265 = vld [vmem:[%s273 + $0x44] sm:$0xf]
      %v6266 = vld [vmem:[%s273 + $0x48] sm:$0xf]
      %v6267 = vld [vmem:[%s273 + $0x4c] sm:$0xf]
      %v6268 = vld [vmem:[%s273 + $0x50] sm:$0xf]
      %v6269 = vld [vmem:[%s273 + $0x54] sm:$0xf]
      %v6270 = vld [vmem:[%s273 + $0x58] sm:$0xf]
      %v6271 = vld [vmem:[%s273 + $0x5c] sm:$0xf]
      %v6272 = vld [vmem:[%s273 + $0x60] sm:$0xf]
      %v6273 = vld [vmem:[%s273 + $0x64] sm:$0xf]
      %v6274 = vld [vmem:[%s273 + $0x68] sm:$0xf]
      %v6275 = vld [vmem:[%s273 + $0x6c] sm:$0xf]
      %v6276 = vld [vmem:[%s273 + $0x70] sm:$0xf]
      %v6277 = vld [vmem:[%s273 + $0x74] sm:$0xf]
      %v6278 = vld [vmem:[%s273 + $0x78] sm:$0xf]
      %v6279 = vld [vmem:[%s273 + $0x7c] sm:$0xf]
      %v6280 = vld [vmem:[%s5] sm:$0x3]
      %v6313 = vunpack.c.l.b16 %v6248
      %v6314 = vunpack.c.l.b16 %v6249
      %v6315 = vunpack.c.l.b16 %v6250
      %v6316 = vunpack.c.l.b16 %v6251
      %v6317 = vunpack.c.l.b16 %v6252
      %v6318 = vunpack.c.l.b16 %v6253
      %v6319 = vunpack.c.l.b16 %v6254
      %v6320 = vunpack.c.l.b16 %v6255
      %v6321 = vunpack.c.l.b16 %v6256
      %v6322 = vunpack.c.l.b16 %v6257
      %v6323 = vunpack.c.l.b16 %v6258
      %v6324 = vunpack.c.l.b16 %v6259
      %v6325 = vunpack.c.l.b16 %v6260
      %v6326 = vunpack.c.l.b16 %v6261
      %v6327 = vunpack.c.l.b16 %v6262
      %v6328 = vunpack.c.l.b16 %v6263
      %v6329 = vunpack.c.l.b16 %v6264
      %v6330 = vunpack.c.l.b16 %v6265
      %v6331 = vunpack.c.l.b16 %v6266
      %v6332 = vunpack.c.l.b16 %v6267
      %v6333 = vunpack.c.l.b16 %v6268
      %v6334 = vunpack.c.l.b16 %v6269
      %v6335 = vunpack.c.l.b16 %v6270
      %v6336 = vunpack.c.l.b16 %v6271
      %v6337 = vunpack.c.l.b16 %v6272
      %v6338 = vunpack.c.l.b16 %v6273
      %v6339 = vunpack.c.l.b16 %v6274
      %v6340 = vunpack.c.l.b16 %v6275
      %v6341 = vunpack.c.l.b16 %v6276
      %v6342 = vunpack.c.l.b16 %v6277
      %v6343 = vunpack.c.l.b16 %v6278
      %v6344 = vunpack.c.l.b16 %v6279
      %v6345 = vpack.c.b16 %v6314, %v6313
      %v6346 = vpack.c.b16 %v6316, %v6315
      %v6347 = vpack.c.b16 %v6318, %v6317
      %v6348 = vpack.c.b16 %v6320, %v6319
      %v6349 = vpack.c.b16 %v6322, %v6321
      %v6350 = vpack.c.b16 %v6324, %v6323
      %v6351 = vpack.c.b16 %v6326, %v6325
      %v6352 = vpack.c.b16 %v6328, %v6327
      %v6353 = vpack.c.b16 %v6330, %v6329
      %v6354 = vpack.c.b16 %v6332, %v6331
      %v6355 = vpack.c.b16 %v6334, %v6333
      %v6356 = vpack.c.b16 %v6336, %v6335
      %v6357 = vpack.c.b16 %v6338, %v6337
      %v6358 = vpack.c.b16 %v6340, %v6339
      %v6359 = vpack.c.b16 %v6342, %v6341
      %v6360 = vpack.c.b16 %v6344, %v6343
      %v6362 = vsel %vm280, %v6345, 0
      %v6365 = vsel %vm280, %v6346, 0
      %v6368 = vsel %vm280, %v6347, 0
      %v6371 = vsel %vm280, %v6348, 0
      %v6374 = vsel %vm280, %v6349, 0
      %v6377 = vsel %vm280, %v6350, 0
      %v6380 = vsel %vm280, %v6351, 0
      %v6383 = vsel %vm280, %v6352, 0
      %v6386 = vsel %vm280, %v6353, 0
      %v6389 = vsel %vm280, %v6354, 0
      %v6392 = vsel %vm280, %v6355, 0
      %v6395 = vsel %vm280, %v6356, 0
      %v6398 = vsel %vm280, %v6357, 0
      %v6401 = vsel %vm280, %v6358, 0
      %v6404 = vsel %vm280, %v6359, 0
      %v6407 = vsel %vm280, %v6360, 0
      %v6410 = vsel %vm1217, %v6280, 0
      %6412 = vmatprep.subr.bf16.mxu0 0
      %6413 = vmatpush1.bf16.msra.mxu0 %v6410
      %6414 = vmatprep.subr.bf16.mxu0 0
      %6415 = vmatpush1.bf16.msra.mxu0 0
      %6416 = vmatprep.subr.bf16.mxu0 0
      %6417 = vmatpush1.bf16.msra.mxu0 0
      %6418 = vmatprep.subr.bf16.mxu0 0
      %6419 = vmatpush1.bf16.msra.mxu0 0
      %6420 = vmatprep.subr.bf16.mxu0 0
      %6421 = vmatpush1.bf16.msra.mxu0 0
      %6422 = vmatprep.subr.bf16.mxu0 0
      %6423 = vmatpush1.bf16.msra.mxu0 0
      %6424 = vmatprep.subr.bf16.mxu0 0
      %6425 = vmatpush1.bf16.msra.mxu0 0
      %6426 = vmatprep.subr.bf16.mxu0 0
      %6427 = vmatpush1.bf16.msra.mxu0 0
      %6428 = vmatprep.subr.bf16.mxu0 0
      %6429 = vmatpush1.bf16.msra.mxu0 0
      %6430 = vmatprep.subr.bf16.mxu0 0
      %6431 = vmatpush1.bf16.msra.mxu0 0
      %6432 = vmatprep.subr.bf16.mxu0 0
      %6433 = vmatpush1.bf16.msra.mxu0 0
      %6434 = vmatprep.subr.bf16.mxu0 0
      %6435 = vmatpush1.bf16.msra.mxu0 0
      %6436 = vmatprep.subr.bf16.mxu0 0
      %6437 = vmatpush1.bf16.msra.mxu0 0
      %6438 = vmatprep.subr.bf16.mxu0 0
      %6439 = vmatpush1.bf16.msra.mxu0 0
      %6440 = vmatprep.subr.bf16.mxu0 0
      %6441 = vmatpush1.bf16.msra.mxu0 0
      %6442 = vmatprep.subr.bf16.mxu0 0
      %6443 = vmatpush1.bf16.msra.mxu0 0
      %6444 = vmatprep.mubr.bf16.mxu0 0
      %6445 = vmatmul.mubr.bf16.gmra.mrb[0].mxu0 %v6362
      %v6446 = vpop.f32.mrb[0].mxu0
      %v6447 = vadd.f32 0.0, %v6446
      %v6448 = vpop.f32.mrb[0].mxu0
      %v6449 = vpop.f32.mrb[0].mxu0
      %v6450 = vadd.f32 0.0, %v6449
      %v6451 = vpop.f32.mrb[0].mxu0
      %6452 = vmatprep.mubr.bf16.mxu0 0
      %6453 = vmatmul.mubr.bf16.gmra.mrb[0].mxu0 %v6365
      %v6454 = vpop.f32.mrb[0].mxu0
      %v6455 = vadd.f32 0.0, %v6454
      %v6456 = vpop.f32.mrb[0].mxu0
      %v6457 = vpop.f32.mrb[0].mxu0
      %v6458 = vadd.f32 0.0, %v6457
      %v6459 = vpop.f32.mrb[0].mxu0
      %6460 = vmatprep.mubr.bf16.mxu0 0
      %6461 = vmatmul.mubr.bf16.gmra.mrb[0].mxu0 %v6368
      %v6462 = vpop.f32.mrb[0].mxu0
      %v6463 = vadd.f32 0.0, %v6462
      %v6464 = vpop.f32.mrb[0].mxu0
      %v6465 = vpop.f32.mrb[0].mxu0
      %v6466 = vadd.f32 0.0, %v6465
      %v6467 = vpop.f32.mrb[0].mxu0
      %6468 = vmatprep.mubr.bf16.mxu0 0
      %6469 = vmatmul.mubr.bf16.gmra.mrb[0].mxu0 %v6371
      %v6470 = vpop.f32.mrb[0].mxu0
      %v6471 = vadd.f32 0.0, %v6470
      %v6472 = vpop.f32.mrb[0].mxu0
      %v6473 = vpop.f32.mrb[0].mxu0
      %v6474 = vadd.f32 0.0, %v6473
      %v6475 = vpop.f32.mrb[0].mxu0
      %6476 = vmatprep.mubr.bf16.mxu0 0
      %6477 = vmatmul.mubr.bf16.gmra.mrb[0].mxu0 %v6374
      %v6478 = vpop.f32.mrb[0].mxu0
      %v6479 = vadd.f32 0.0, %v6478
      %v6480 = vpop.f32.mrb[0].mxu0
      %v6481 = vpop.f32.mrb[0].mxu0
      %v6482 = vadd.f32 0.0, %v6481
      %v6483 = vpop.f32.mrb[0].mxu0
      %6484 = vmatprep.mubr.bf16.mxu0 0
      %6485 = vmatmul.mubr.bf16.gmra.mrb[0].mxu0 %v6377
      %v6486 = vpop.f32.mrb[0].mxu0
      %v6487 = vadd.f32 0.0, %v6486
      %v6488 = vpop.f32.mrb[0].mxu0
      %v6489 = vpop.f32.mrb[0].mxu0
      %v6490 = vadd.f32 0.0, %v6489
      %v6491 = vpop.f32.mrb[0].mxu0
      %6492 = vmatprep.mubr.bf16.mxu0 0
      %6493 = vmatmul.mubr.bf16.gmra.mrb[0].mxu0 %v6380
      %v6494 = vpop.f32.mrb[0].mxu0
      %v6495 = vadd.f32 0.0, %v6494
      %v6496 = vpop.f32.mrb[0].mxu0
      %v6497 = vpop.f32.mrb[0].mxu0
      %v6498 = vadd.f32 0.0, %v6497
      %v6499 = vpop.f32.mrb[0].mxu0
      %6500 = vmatprep.mubr.bf16.mxu0 0
      %6501 = vmatmul.mubr.bf16.gmra.mrb[0].mxu0 %v6383
      %v6502 = vpop.f32.mrb[0].mxu0
      %v6503 = vadd.f32 0.0, %v6502
      %v6504 = vpop.f32.mrb[0].mxu0
      %v6505 = vpop.f32.mrb[0].mxu0
      %v6506 = vadd.f32 0.0, %v6505
      %v6507 = vpop.f32.mrb[0].mxu0
      %6508 = vmatprep.mubr.bf16.mxu0 0
      %6509 = vmatmul.mubr.bf16.gmra.mrb[0].mxu0 %v6386
      %v6510 = vpop.f32.mrb[0].mxu0
      %v6511 = vadd.f32 0.0, %v6510
      %v6512 = vpop.f32.mrb[0].mxu0
      %v6513 = vpop.f32.mrb[0].mxu0
      %v6514 = vadd.f32 0.0, %v6513
      %v6515 = vpop.f32.mrb[0].mxu0
      %6516 = vmatprep.mubr.bf16.mxu0 0
      %6517 = vmatmul.mubr.bf16.gmra.mrb[0].mxu0 %v6389
      %v6518 = vpop.f32.mrb[0].mxu0
      %v6519 = vadd.f32 0.0, %v6518
      %v6520 = vpop.f32.mrb[0].mxu0
      %v6521 = vpop.f32.mrb[0].mxu0
      %v6522 = vadd.f32 0.0, %v6521
      %v6523 = vpop.f32.mrb[0].mxu0
      %6524 = vmatprep.mubr.bf16.mxu0 0
      %6525 = vmatmul.mubr.bf16.gmra.mrb[0].mxu0 %v6392
      %v6526 = vpop.f32.mrb[0].mxu0
      %v6527 = vadd.f32 0.0, %v6526
      %v6528 = vpop.f32.mrb[0].mxu0
      %v6529 = vpop.f32.mrb[0].mxu0
      %v6530 = vadd.f32 0.0, %v6529
      %v6531 = vpop.f32.mrb[0].mxu0
      %6532 = vmatprep.mubr.bf16.mxu0 0
      %6533 = vmatmul.mubr.bf16.gmra.mrb[0].mxu0 %v6395
      %v6534 = vpop.f32.mrb[0].mxu0
      %v6535 = vadd.f32 0.0, %v6534
      %v6536 = vpop.f32.mrb[0].mxu0
      %v6537 = vpop.f32.mrb[0].mxu0
      %v6538 = vadd.f32 0.0, %v6537
      %v6539 = vpop.f32.mrb[0].mxu0
      %6540 = vmatprep.mubr.bf16.mxu0 0
      %6541 = vmatmul.mubr.bf16.gmra.mrb[0].mxu0 %v6398
      %v6542 = vpop.f32.mrb[0].mxu0
      %v6543 = vadd.f32 0.0, %v6542
      %v6544 = vpop.f32.mrb[0].mxu0
      %v6545 = vpop.f32.mrb[0].mxu0
      %v6546 = vadd.f32 0.0, %v6545
      %v6547 = vpop.f32.mrb[0].mxu0
      %6548 = vmatprep.mubr.bf16.mxu0 0
      %6549 = vmatmul.mubr.bf16.gmra.mrb[0].mxu0 %v6401
      %v6550 = vpop.f32.mrb[0].mxu0
      %v6551 = vadd.f32 0.0, %v6550
      %v6552 = vpop.f32.mrb[0].mxu0
      %v6553 = vpop.f32.mrb[0].mxu0
      %v6554 = vadd.f32 0.0, %v6553
      %v6555 = vpop.f32.mrb[0].mxu0
      %6556 = vmatprep.mubr.bf16.mxu0 0
      %6557 = vmatmul.mubr.bf16.gmra.mrb[0].mxu0 %v6404
      %v6558 = vpop.f32.mrb[0].mxu0
      %v6559 = vadd.f32 0.0, %v6558
      %v6560 = vpop.f32.mrb[0].mxu0
      %v6561 = vpop.f32.mrb[0].mxu0
      %v6562 = vadd.f32 0.0, %v6561
      %v6563 = vpop.f32.mrb[0].mxu0
      %6564 = vmatprep.mubr.bf16.mxu0 0
      %6565 = vmatmul.mubr.bf16.gmra.mrb[0].mxu0 %v6407
      %v6566 = vpop.f32.mrb[0].mxu0
      %v6567 = vadd.f32 0.0, %v6566
      %v6568 = vpop.f32.mrb[0].mxu0
      %v6569 = vpop.f32.mrb[0].mxu0
      %v6570 = vadd.f32 0.0, %v6569
      %v6571 = vpop.f32.mrb[0].mxu0
      %6572 = vdwg.mxu0
      %v6573 = vadd.f32 %v6216, %v6447
      %v6574 = vadd.f32 %v6217, %v6450
      %v6575 = vadd.f32 %v6218, %v6455
      %v6576 = vadd.f32 %v6219, %v6458
      %v6577 = vadd.f32 %v6220, %v6463
      %v6578 = vadd.f32 %v6221, %v6466
      %v6579 = vadd.f32 %v6222, %v6471
      %v6580 = vadd.f32 %v6223, %v6474
      %v6581 = vadd.f32 %v6224, %v6479
      %v6582 = vadd.f32 %v6225, %v6482
      %v6583 = vadd.f32 %v6226, %v6487
      %v6584 = vadd.f32 %v6227, %v6490
      %v6585 = vadd.f32 %v6228, %v6495
      %v6586 = vadd.f32 %v6229, %v6498
      %v6587 = vadd.f32 %v6230, %v6503
      %v6588 = vadd.f32 %v6231, %v6506
      %v6589 = vadd.f32 %v6232, %v6511
      %v6590 = vadd.f32 %v6233, %v6514
      %v6591 = vadd.f32 %v6234, %v6519
      %v6592 = vadd.f32 %v6235, %v6522
      %v6593 = vadd.f32 %v6236, %v6527
      %v6594 = vadd.f32 %v6237, %v6530
      %v6595 = vadd.f32 %v6238, %v6535
      %v6596 = vadd.f32 %v6239, %v6538
      %v6597 = vadd.f32 %v6240, %v6543
      %v6598 = vadd.f32 %v6241, %v6546
      %v6599 = vadd.f32 %v6242, %v6551
      %v6600 = vadd.f32 %v6243, %v6554
      %v6601 = vadd.f32 %v6244, %v6559
      %v6602 = vadd.f32 %v6245, %v6562
      %v6603 = vadd.f32 %v6246, %v6567
      %v6604 = vadd.f32 %v6247, %v6570
      %v6605 = vld [vmem:[%s6] sm:$0x1]
      %v6607 = vlaneseq
      %v6608 = vshrl.u32 %v6607, 7
      %v6609 = vsub.s32 0, %v6608
      %v6610 = vrot.slane %v6605, %v6609
      %v6612 = vadd.f32 %v6573, %v6610
      %v6613 = vadd.f32 %v6574, %v6610
      %v6614 = vadd.f32 %v6575, %v6610
      %v6615 = vadd.f32 %v6576, %v6610
      %v6616 = vadd.f32 %v6577, %v6610
      %v6617 = vadd.f32 %v6578, %v6610
      %v6618 = vadd.f32 %v6579, %v6610
      %v6619 = vadd.f32 %v6580, %v6610
      %v6620 = vadd.f32 %v6581, %v6610
      %v6621 = vadd.f32 %v6582, %v6610
      %v6622 = vadd.f32 %v6583, %v6610
      %v6623 = vadd.f32 %v6584, %v6610
      %v6624 = vadd.f32 %v6585, %v6610
      %v6625 = vadd.f32 %v6586, %v6610
      %v6626 = vadd.f32 %v6587, %v6610
      %v6627 = vadd.f32 %v6588, %v6610
      %v6628 = vadd.f32 %v6589, %v6610
      %v6629 = vadd.f32 %v6590, %v6610
      %v6630 = vadd.f32 %v6591, %v6610
      %v6631 = vadd.f32 %v6592, %v6610
      %v6632 = vadd.f32 %v6593, %v6610
      %v6633 = vadd.f32 %v6594, %v6610
      %v6634 = vadd.f32 %v6595, %v6610
      %v6635 = vadd.f32 %v6596, %v6610
      %v6636 = vadd.f32 %v6597, %v6610
      %v6637 = vadd.f32 %v6598, %v6610
      %v6638 = vadd.f32 %v6599, %v6610
      %v6639 = vadd.f32 %v6600, %v6610
      %v6640 = vadd.f32 %v6601, %v6610
      %v6641 = vadd.f32 %v6602, %v6610
      %v6642 = vadd.f32 %v6603, %v6610
      %v6643 = vadd.f32 %v6604, %v6610
      %v6644 = vmax.f32 %v6612, 0.0
      %v6645 = vmax.f32 %v6613, 0.0
      %v6646 = vmax.f32 %v6614, 0.0
      %v6647 = vmax.f32 %v6615, 0.0
      %v6648 = vmax.f32 %v6616, 0.0
      %v6649 = vmax.f32 %v6617, 0.0
      %v6650 = vmax.f32 %v6618, 0.0
      %v6651 = vmax.f32 %v6619, 0.0
      %v6652 = vmax.f32 %v6620, 0.0
      %v6653 = vmax.f32 %v6621, 0.0
      %v6654 = vmax.f32 %v6622, 0.0
      %v6655 = vmax.f32 %v6623, 0.0
      %v6656 = vmax.f32 %v6624, 0.0
      %v6657 = vmax.f32 %v6625, 0.0
      %v6658 = vmax.f32 %v6626, 0.0
      %v6659 = vmax.f32 %v6627, 0.0
      %v6660 = vmax.f32 %v6628, 0.0
      %v6661 = vmax.f32 %v6629, 0.0
      %v6662 = vmax.f32 %v6630, 0.0
      %v6663 = vmax.f32 %v6631, 0.0
      %v6664 = vmax.f32 %v6632, 0.0
      %v6665 = vmax.f32 %v6633, 0.0
      %v6666 = vmax.f32 %v6634, 0.0
      %v6667 = vmax.f32 %v6635, 0.0
      %v6668 = vmax.f32 %v6636, 0.0
      %v6669 = vmax.f32 %v6637, 0.0
      %v6670 = vmax.f32 %v6638, 0.0
      %v6671 = vmax.f32 %v6639, 0.0
      %v6672 = vmax.f32 %v6640, 0.0
      %v6673 = vmax.f32 %v6641, 0.0
      %v6674 = vmax.f32 %v6642, 0.0
      %v6675 = vmax.f32 %v6643, 0.0
      %6676 = vst.msk [vmem:[%s278] sm:$0xff] %vm1122, %v6644
      %6677 = vst.msk [vmem:[%s278 + $0x8] sm:$0xff] %vm1122, %v6645
      %6678 = vst.msk [vmem:[%s278 + $0x10] sm:$0xff] %vm1122, %v6646
      %6679 = vst.msk [vmem:[%s278 + $0x18] sm:$0xff] %vm1122, %v6647
      %6680 = vst.msk [vmem:[%s278 + $0x20] sm:$0xff] %vm1122, %v6648
      %6681 = vst.msk [vmem:[%s278 + $0x28] sm:$0xff] %vm1122, %v6649
      %6682 = vst.msk [vmem:[%s278 + $0x30] sm:$0xff] %vm1122, %v6650
      %6683 = vst.msk [vmem:[%s278 + $0x38] sm:$0xff] %vm1122, %v6651
      %6684 = vst.msk [vmem:[%s278 + $0x40] sm:$0xff] %vm1122, %v6652
      %6685 = vst.msk [vmem:[%s278 + $0x48] sm:$0xff] %vm1122, %v6653
      %6686 = vst.msk [vmem:[%s278 + $0x50] sm:$0xff] %vm1122, %v6654
      %6687 = vst.msk [vmem:[%s278 + $0x58] sm:$0xff] %vm1122, %v6655
      %6688 = vst.msk [vmem:[%s278 + $0x60] sm:$0xff] %vm1122, %v6656
      %6689 = vst.msk [vmem:[%s278 + $0x68] sm:$0xff] %vm1122, %v6657
      %6690 = vst.msk [vmem:[%s278 + $0x70] sm:$0xff] %vm1122, %v6658
      %6691 = vst.msk [vmem:[%s278 + $0x78] sm:$0xff] %vm1122, %v6659
      %6692 = vst.msk [vmem:[%s278 + $0x80] sm:$0xff] %vm1122, %v6660
      %6693 = vst.msk [vmem:[%s278 + $0x88] sm:$0xff] %vm1122, %v6661
      %6694 = vst.msk [vmem:[%s278 + $0x90] sm:$0xff] %vm1122, %v6662
      %6695 = vst.msk [vmem:[%s278 + $0x98] sm:$0xff] %vm1122, %v6663
      %6696 = vst.msk [vmem:[%s278 + $0xa0] sm:$0xff] %vm1122, %v6664
      %6697 = vst.msk [vmem:[%s278 + $0xa8] sm:$0xff] %vm1122, %v6665
      %6698 = vst.msk [vmem:[%s278 + $0xb0] sm:$0xff] %vm1122, %v6666
      %6699 = vst.msk [vmem:[%s278 + $0xb8] sm:$0xff] %vm1122, %v6667
      %6700 = vst.msk [vmem:[%s278 + $0xc0] sm:$0xff] %vm1122, %v6668
      %6701 = vst.msk [vmem:[%s278 + $0xc8] sm:$0xff] %vm1122, %v6669
      %6702 = vst.msk [vmem:[%s278 + $0xd0] sm:$0xff] %vm1122, %v6670
      %6703 = vst.msk [vmem:[%s278 + $0xd8] sm:$0xff] %vm1122, %v6671
      %6704 = vst.msk [vmem:[%s278 + $0xe0] sm:$0xff] %vm1122, %v6672
      %6705 = vst.msk [vmem:[%s278 + $0xe8] sm:$0xff] %vm1122, %v6673
      %6706 = vst.msk [vmem:[%s278 + $0xf0] sm:$0xff] %vm1122, %v6674
      %6707 = vst.msk [vmem:[%s278 + $0xf8] sm:$0xff] %vm1122, %v6675
      %p6708 = scmp.lt.s32.totalorder %s18, 1
      %s6709 = scalar_select %p6708, %s18, 1
      %s6710 = smul.addr %s6709, 32
      %s6711 = smul.addr %s6710, 8
      %s6712 = scalar_lea.vmem %s7, %s6711
      // Predicated region
      $region49: #{tpu_custom_call.1} parent=47 // pred_check
        %p6713 = pneg %p188
      $region50: #{tpu_custom_call.1} parent=47 // pred_check_branch
        %6715 = sbr.rel (%p6713) target = $region52
      $region51: #{tpu_custom_call.1} parent=47 // pred_region
        _
      $region52: #{tpu_custom_call.1} parent=47 // pred_fallthru
        _
    $region48: #{tpu_custom_call.1} parent=5 // pred_fallthru
      _
    %p6716 = scmp.le.s32.totalorder 2, %s13
    // Predicated region
    $region53: #{tpu_custom_call.1} parent=5 // pred_check
      %p6717 = pneg %p6716
    $region54: #{tpu_custom_call.1} parent=5 // pred_check_branch
      %6719 = sbr.rel (%p6717) target = $region56
    $region55: #{tpu_custom_call.1} parent=5 // pred_region
      %s6720 = ssub.s32 %s13, 2
      // Predicated region
      $region57: #{tpu_custom_call.1} parent=55 // pred_check
        %p6721 = pneg %p194
      $region58: #{tpu_custom_call.1} parent=55 // pred_check_branch
        %6723 = sbr.rel (%p6721) target = $region60
      $region59: #{tpu_custom_call.1} parent=55 // pred_region
        %p6724 = scmp.lt.s32.totalorder %s19, 1
        %s6725 = scalar_select %p6724, %s19, 1
        %s6726 = smul.addr %s6725, 32
        %s6727 = smul.addr %s6726, 8
        %s6728 = scalar_lea.vmem %s7, %s6727
      $region60: #{tpu_custom_call.1} parent=55 // pred_fallthru
        _
    $region56: #{tpu_custom_call.1} parent=5 // pred_fallthru
      _
  $region6: #{tpu_custom_call.1} parent=0 // loop_footer
    %s17 = sadd.s32 1, %s13
  $region7: #{tpu_custom_call.1} parent=0 // loop_footer_branch
    %12 = sbr.rel target = $region3
  $region8: #{tpu_custom_call.1} parent=0 // loop_exit
    _

</llo_original>
